<compile_context>
chip_gen: v7x
topology: tpu7x:2x2x1
jax: 0.10.0
libtpu: 0.0.40
codegen_flags: <defaults>
</compile_context>

<pallas_src>
import math
from functools import partial

import jax
import jax.numpy as jnp
from jax.experimental import pallas as pl
from jax.experimental.pallas import tpu as pltpu

PAD_IDX, START_IDX, END_IDX = 0, 2, 3


# ------------------------------ in-kernel helpers ---------------------------

def _layernorm_f32(x, g, b):
    # x: (M, D) f32; g/b: (1, D) f32 ; nn.LayerNorm with eps=1e-5
    mu = jnp.mean(x, axis=-1, keepdims=True)
    xc = x - mu
    var = jnp.mean(xc * xc, axis=-1, keepdims=True)
    return xc * jax.lax.rsqrt(var + 1e-5) * g + b


def _matmul_nt(a, w):
    # a: (M, K), w: (N, K) -> (M, N) f32   (== torch F.linear, no bias)
    return jax.lax.dot_general(a, w, (((1,), (1,)), ((), ())),
                               preferred_element_type=jnp.float32)


def _mha_rows(q, k, v, wo, bo, valid, n_heads, hd):
    """Multi-head attention for one batch item's rows.

    q: (Tq, D) bf16 (already scaled by 1/sqrt(hd)); k/v: (Tk, D) bf16;
    wo: (D, D) bf16 [out, in]; bo: (1, D) f32; valid: (1, Tk) or (Tq, Tk) bool.
    Heads are folded directly into the output projection (no concat).
    """
    out = bo
    for h in range(n_heads):                      # static, small
        c0 = h * hd
        qh = q[:, c0:c0 + hd]
        kh = k[:, c0:c0 + hd]
        vh = v[:, c0:c0 + hd]
        s = _matmul_nt(qh, kh)                    # (Tq, Tk) f32
        s = jnp.where(valid, s, jnp.float32(-1e30))
        s = s - jnp.max(s, axis=-1, keepdims=True)
        p = jnp.exp(s)
        p = p * pl.reciprocal(jnp.sum(p, axis=-1, keepdims=True), approx=True)
        oh = jnp.dot(p.astype(jnp.bfloat16), vh,
                     preferred_element_type=jnp.float32)          # (Tq, hd)
        out = out + _matmul_nt(oh.astype(jnp.bfloat16), wo[:, c0:c0 + hd])
    return out                                    # (Tq, D) f32


def _full_spec(shape):
    zeros = (0,) * len(shape)
    return pl.BlockSpec(tuple(shape), lambda i, _z=zeros: _z)


# --------------------------- fused encoder stack -----------------------------

def _encoder_stack_kernel(n_layers, n_heads, seq_len,
                          x_ref, kmask_ref, rmask_ref,
                          wqkv_ref, bqkv_ref, wo_ref, bo_ref, g1_ref, b1_ref,
                          w1_ref, bf1_ref, w2_ref, bf2_ref, g2_ref, b2_ref,
                          o_ref, att_ref):
    BT, D = x_ref.shape
    B = BT // seq_len
    hd = D // n_heads
    scale = 1.0 / math.sqrt(hd)

    kmask = kmask_ref[...]                         # (B, Ts) f32, hoisted
    rmask = rmask_ref[...]                         # (BT, 1) f32
    x = x_ref[...].astype(jnp.float32)             # running activation (f32)

    for l in range(n_layers):                      # static layer loop (fused stack)
        # --- self attention: QKV projection batch-folded over all rows ---
        qkv = _matmul_nt(x.astype(jnp.bfloat16), wqkv_ref[l]) + bqkv_ref[l]
        q = (qkv[:, 0:D] * scale).astype(jnp.bfloat16)       # scale folded into q
        k = qkv[:, D:2 * D].astype(jnp.bfloat16)
        v = qkv[:, 2 * D:3 * D].astype(jnp.bfloat16)
        wo = wo_ref[l]
        bo = bo_ref[l]
        for b in range(B):
            r0 = b * seq_len
            valid = kmask[b:b + 1, :] > 0.5                   # (1, Ts) key-pad mask
            att_ref[r0:r0 + seq_len, :] = _mha_rows(
                q[r0:r0 + seq_len], k[r0:r0 + seq_len], v[r0:r0 + seq_len],
                wo, bo, valid, n_heads, hd)
        x = _layernorm_f32(x + att_ref[...], g1_ref[l], b1_ref[l])

        # --- FFN + residual + LayerNorm + row mask (batch-folded) ---
        h1 = jnp.maximum(_matmul_nt(x.astype(jnp.bfloat16), w1_ref[l]) + bf1_ref[l],
                         0.0)
        y2 = _matmul_nt(h1.astype(jnp.bfloat16), w2_ref[l]) + bf2_ref[l]
        x = _layernorm_f32(x + y2, g2_ref[l], b2_ref[l]) * rmask

    o_ref[...] = x.astype(o_ref.dtype)


def encoder_forward(params, cfg, xs):
    B, Ts = xs.shape
    D, H, L = cfg["embedding_size"], cfg["n_heads"], cfg["n_layers"]
    mask = (xs != PAD_IDX).astype(jnp.float32)                     # (B, Ts)
    x = jnp.take(params["emb"], xs, axis=0) * math.sqrt(D)         # embeddings_scale
    x = x + params["enc_pos"][:Ts][None]
    x = x * mask[..., None]
    x_flat = x.reshape(B * Ts, D).astype(jnp.bfloat16)
    rmask = mask.reshape(B * Ts, 1)

    e = params["enc"]
    args = (x_flat, mask, rmask,
            e["wqkv"], e["bqkv"], e["wo"], e["bo"], e["ln1g"], e["ln1b"],
            e["w1"], e["b1"], e["w2"], e["b2"], e["ln2g"], e["ln2b"])
    out = pl.pallas_call(
        partial(_encoder_stack_kernel, L, H, Ts),
        out_shape=jax.ShapeDtypeStruct((B * Ts, D), jnp.bfloat16),
        grid=(1,),
        in_specs=[_full_spec(a.shape) for a in args],
        out_specs=_full_spec((B * Ts, D)),
        scratch_shapes=[pltpu.VMEM((B * Ts, D), jnp.float32)],
        compiler_params=pltpu.CompilerParams(dimension_semantics=("arbitrary",)),
    )(*args)
    return out.reshape(B, Ts, D), mask


# --------------------------- fused decoder stack -----------------------------

def _decoder_stack_kernel(n_layers, n_heads, tgt_len, src_len,
                          x_ref, enc_ref, ekmask_ref,
                          swqkv_ref, sbqkv_ref, swo_ref, sbo_ref, g1_ref, b1_ref,
                          cwqkv_ref, cbqkv_ref, cwo_ref, cbo_ref, g2_ref, b2_ref,
                          w1_ref, bf1_ref, w2_ref, bf2_ref, g3_ref, b3_ref,
                          o_ref, att_ref):
    BT, D = x_ref.shape
    B = BT // tgt_len
    hd = D // n_heads
    scale = 1.0 / math.sqrt(hd)

    enc = enc_ref[...]                             # (B*Ts, D) bf16
    ekmask = ekmask_ref[...]                       # (B, Ts) f32, hoisted
    rows = jax.lax.broadcasted_iota(jnp.int32, (tgt_len, tgt_len), 0)
    cols = jax.lax.broadcasted_iota(jnp.int32, (tgt_len, tgt_len), 1)
    causal = rows >= cols                          # (Tt, Tt) bool, hoisted

    x = x_ref[...].astype(jnp.float32)

    for l in range(n_layers):
        # --- masked (causal) self attention; no key-pad mask (matches ParlAI) ---
        qkv = _matmul_nt(x.astype(jnp.bfloat16), swqkv_ref[l]) + sbqkv_ref[l]
        q = (qkv[:, 0:D] * scale).astype(jnp.bfloat16)
        k = qkv[:, D:2 * D].astype(jnp.bfloat16)
        v = qkv[:, 2 * D:3 * D].astype(jnp.bfloat16)
        wo = swo_ref[l]
        bo = sbo_ref[l]
        for b in range(B):
            r0 = b * tgt_len
            att_ref[r0:r0 + tgt_len, :] = _mha_rows(
                q[r0:r0 + tgt_len], k[r0:r0 + tgt_len], v[r0:r0 + tgt_len],
                wo, bo, causal, n_heads, hd)
        x = _layernorm_f32(x + att_ref[...], g1_ref[l], b1_ref[l])

        # --- encoder/decoder cross attention (K/V projected once per layer) ---
        cw = cwqkv_ref[l]
        cb = cbqkv_ref[l]
        q = ((_matmul_nt(x.astype(jnp.bfloat16), cw[0:D]) + cb[:, 0:D]) * scale
             ).astype(jnp.bfloat16)                                 # (B*Tt, D)
        kv = _matmul_nt(enc, cw[D:3 * D]) + cb[:, D:3 * D]          # (B*Ts, 2D)
        k = kv[:, 0:D].astype(jnp.bfloat16)
        v = kv[:, D:2 * D].astype(jnp.bfloat16)
        wo = cwo_ref[l]
        bo = cbo_ref[l]
        for b in range(B):
            rq = b * tgt_len
            rk = b * src_len
            valid = ekmask[b:b + 1, :] > 0.5                        # (1, Ts)
            att_ref[rq:rq + tgt_len, :] = _mha_rows(
                q[rq:rq + tgt_len], k[rk:rk + src_len], v[rk:rk + src_len],
                wo, bo, valid, n_heads, hd)
        x = _layernorm_f32(x + att_ref[...], g2_ref[l], b2_ref[l])

        # --- FFN + residual + LayerNorm ---
        h1 = jnp.maximum(_matmul_nt(x.astype(jnp.bfloat16), w1_ref[l]) + bf1_ref[l],
                         0.0)
        y2 = _matmul_nt(h1.astype(jnp.bfloat16), w2_ref[l]) + bf2_ref[l]
        x = _layernorm_f32(x + y2, g3_ref[l], b3_ref[l])

    o_ref[...] = x.astype(o_ref.dtype)


def decoder_forward(params, cfg, inputs, enc_out, enc_mask):
    B, Tt = inputs.shape
    Ts = enc_out.shape[1]
    D, H, L = cfg["embedding_size"], cfg["n_heads"], cfg["n_layers"]
    x = jnp.take(params["emb"], inputs, axis=0) * math.sqrt(D)
    x = x + params["dec_pos"][:Tt][None]
    x_flat = x.reshape(B * Tt, D).astype(jnp.bfloat16)
    enc_flat = enc_out.reshape(B * Ts, D).astype(jnp.bfloat16)

    d = params["dec"]
    args = (x_flat, enc_flat, enc_mask,
            d["s_wqkv"], d["s_bqkv"], d["s_wo"], d["s_bo"], d["ln1g"], d["ln1b"],
            d["c_wqkv"], d["c_bqkv"], d["c_wo"], d["c_bo"], d["ln2g"], d["ln2b"],
            d["w1"], d["b1"], d["w2"], d["b2"], d["ln3g"], d["ln3b"])
    out = pl.pallas_call(
        partial(_decoder_stack_kernel, L, H, Tt, Ts),
        out_shape=jax.ShapeDtypeStruct((B * Tt, D), jnp.bfloat16),
        grid=(1,),
        in_specs=[_full_spec(a.shape) for a in args],
        out_specs=_full_spec((B * Tt, D)),
        scratch_shapes=[pltpu.VMEM((B * Tt, D), jnp.float32)],
        compiler_params=pltpu.CompilerParams(dimension_semantics=("arbitrary",)),
    )(*args)
    return out.reshape(B, Tt, D)


# --------- fused tied vocab projection + cross-entropy + argmax ---------------

def _vocab_ce_kernel(n_valid_vocab, pad_idx,
                     latent_ref, emb_ref, tgt_ref,
                     logits_ref, loss_ref, pred_ref):
    x = latent_ref[...]                                   # (Mb, D) bf16
    w = emb_ref[...]                                      # (Vp, D) bf16 (zero-padded)
    logits = _matmul_nt(x, w)                             # (Mb, Vp) f32, bias-free
    logits_ref[...] = logits.astype(logits_ref.dtype)     # bf16 writeback

    Mb, Vp = logits.shape
    col = jax.lax.broadcasted_iota(jnp.int32, (Mb, Vp), 1)
    lg = jnp.where(col < n_valid_vocab, logits, jnp.float32(-1e30))
    mx = jnp.max(lg, axis=-1, keepdims=True)

    # fused argmax over the valid vocab (first index achieving the max)
    pred_ref[...] = jnp.min(jnp.where(lg >= mx, col, Vp), axis=-1, keepdims=True)

    # cross-entropy with ignore_index=pad_idx, per-row (f32 math)
    lse = jnp.log(jnp.sum(jnp.exp(lg - mx), axis=-1, keepdims=True)) + mx
    tgt = tgt_ref[...]                                    # (Mb, 1) int32
    tgt_logit = jnp.sum(jnp.where(col == tgt, lg, 0.0), axis=-1, keepdims=True)
    notnull = (tgt != pad_idx).astype(jnp.float32)
    loss_ref[...] = (lse - tgt_logit) * notnull           # (Mb, 1)


def _pick_row_block(m):
    # largest row block <= 256 dividing m that still yields >=2 grid steps
    for mb in (256, 128, 64, 32, 16, 8):
        if m % mb == 0 and m // mb >= 2:
            return mb
    return m


def vocab_projection_and_loss(latent, emb_vp, targets, n_vocab, pad_idx):
    """latent (B,T,D) bf16; emb_vp (Vp,D) bf16 padded; targets (B,T) int32."""
    B, T, D = latent.shape
    M = B * T
    Vp = emb_vp.shape[0]
    Mb = _pick_row_block(M)
    lat = latent.reshape(M, D).astype(jnp.bfloat16)
    tgt = targets.reshape(M, 1).astype(jnp.int32)

    logits_p, loss_rows, preds = pl.pallas_call(
        partial(_vocab_ce_kernel, n_vocab, pad_idx),
        out_shape=(jax.ShapeDtypeStruct((M, Vp), jnp.bfloat16),
                   jax.ShapeDtypeStruct((M, 1), jnp.float32),
                   jax.ShapeDtypeStruct((M, 1), jnp.int32)),
        grid=(M // Mb,),
        in_specs=[pl.BlockSpec((Mb, D), lambda i: (i, 0)),
                  pl.BlockSpec((Vp, D), lambda i: (0, 0)),
                  pl.BlockSpec((Mb, 1), lambda i: (i, 0))],
        out_specs=(pl.BlockSpec((Mb, Vp), lambda i: (i, 0)),
                   pl.BlockSpec((Mb, 1), lambda i: (i, 0)),
                   pl.BlockSpec((Mb, 1), lambda i: (i, 0))),
        compiler_params=pltpu.CompilerParams(dimension_semantics=("parallel",)),
    )(lat, emb_vp, tgt)

    logits = logits_p[:, :n_vocab].reshape(B, T, n_vocab)
    preds = preds.reshape(B, T)
    loss_sum = jnp.sum(loss_rows)
    return logits, preds, loss_sum


# ------------------------------- model glue ----------------------------------

def init_params(key, cfg):
    D, F, V, P, L = (cfg["embedding_size"], cfg["ffn_size"], cfg["n_vocab"],
                     cfg["n_positions"], cfg["n_layers"])
    assert D % cfg["n_heads"] == 0
    Vp = ((V + 127) // 128) * 128
    keys = iter(jax.random.split(key, 32))

    def nrm(shape, s=0.02):
        return jax.random.normal(next(keys), shape, jnp.float32) * s

    def zeros(shape):
        return jnp.zeros(shape, jnp.float32)

    def ones(shape):
        return jnp.ones(shape, jnp.float32)

    emb = nrm((V, D), 1.0 / math.sqrt(D))
    emb = emb.at[PAD_IDX].set(0.0)                        # padding_idx row is zero
    emb_vp = jnp.pad(emb, ((0, Vp - V), (0, 0))).astype(jnp.bfloat16)

    def attn_stack():
        # packed [wq; wk; wv] stacked over layers (F.linear convention [out, in])
        return (nrm((L, 3 * D, D)).astype(jnp.bfloat16), zeros((L, 1, 3 * D)),
                nrm((L, D, D)).astype(jnp.bfloat16), zeros((L, 1, D)))

    def ffn_stack():
        return (nrm((L, F, D)).astype(jnp.bfloat16), zeros((L, 1, F)),
                nrm((L, D, F)).astype(jnp.bfloat16), zeros((L, 1, D)))

    e_wqkv, e_bqkv, e_wo, e_bo = attn_stack()
    e_w1, e_b1, e_w2, e_b2 = ffn_stack()
    enc = dict(wqkv=e_wqkv, bqkv=e_bqkv, wo=e_wo, bo=e_bo,
               ln1g=ones((L, 1, D)), ln1b=zeros((L, 1, D)),
               w1=e_w1, b1=e_b1, w2=e_w2, b2=e_b2,
               ln2g=ones((L, 1, D)), ln2b=zeros((L, 1, D)))

    s_wqkv, s_bqkv, s_wo, s_bo = attn_stack()
    c_wqkv, c_bqkv, c_wo, c_bo = attn_stack()
    d_w1, d_b1, d_w2, d_b2 = ffn_stack()
    dec = dict(s_wqkv=s_wqkv, s_bqkv=s_bqkv, s_wo=s_wo, s_bo=s_bo,
               ln1g=ones((L, 1, D)), ln1b=zeros((L, 1, D)),
               c_wqkv=c_wqkv, c_bqkv=c_bqkv, c_wo=c_wo, c_bo=c_bo,
               ln2g=ones((L, 1, D)), ln2b=zeros((L, 1, D)),
               w1=d_w1, b1=d_b1, w2=d_w2, b2=d_b2,
               ln3g=ones((L, 1, D)), ln3b=zeros((L, 1, D)))

    return dict(emb=emb, emb_vp=emb_vp,
                enc_pos=nrm((P, D)), dec_pos=nrm((P, D)), enc=enc, dec=dec)


def decode_forced(params, cfg, encoder_states, ys):
    enc_out, enc_mask = encoder_states
    B, T = ys.shape
    starts = jnp.full((B, 1), START_IDX, dtype=ys.dtype)
    inputs = jnp.concatenate([starts, ys[:, : T - 1]], axis=1)      # [START] + ys[:-1]
    latent = decoder_forward(params, cfg, inputs, enc_out, enc_mask)
    # output(): F.linear(latent, embeddings.weight) — tied projection fused with CE+argmax
    logits, preds, loss_sum = vocab_projection_and_loss(
        latent, params["emb_vp"], ys, cfg["n_vocab"], PAD_IDX)
    return logits, preds, loss_sum


def transformer_forward(params, cfg, xs, ys, mask_ys, test=False):
    """Mirrors TransformerModel.forward (training / test=False path)."""
    encoder_states = encoder_forward(params, cfg, xs)
    if not test:
        scores, preds, loss_sum = decode_forced(params, cfg, encoder_states, mask_ys)
        target_tokens = jnp.sum((mask_ys != PAD_IDX).astype(jnp.float32))
        gen_loss = loss_sum / jnp.maximum(target_tokens, 1.0)       # div-by-zero guard
    else:
        # TODO(synk): greedy decode_greedy loop (test=True path) not implemented here.
        raise NotImplementedError("only the teacher-forced (test=False) path is implemented")
    return scores, preds, None, None, gen_loss, None, None, None


# ---------------------------------- main -------------------------------------

if __name__ == "__main__":
    cfg = dict(n_vocab=50,          # len(dictionary)=46, +4 special tokens
               embedding_size=32,   # opt['embedding_size']
               ffn_size=64,
               n_heads=2,
               n_layers=2,
               n_positions=64)

    key = jax.random.PRNGKey(0)
    pkey, xkey, ykey = jax.random.split(key, 3)
    params = init_params(pkey, cfg)

    B, Ts, Tt = 2, 16, 8
    xs = jax.random.randint(xkey, (B, Ts), 4, cfg["n_vocab"], dtype=jnp.int32)
    xs = xs.at[1, Ts - 3:].set(PAD_IDX)                    # some padding in batch 1

    mask_ys = jax.random.randint(ykey, (B, Tt), 4, cfg["n_vocab"], dtype=jnp.int32)
    mask_ys = mask_ys.at[0, Tt - 1].set(END_IDX)
    mask_ys = mask_ys.at[1, Tt - 3].set(END_IDX)
    mask_ys = mask_ys.at[1, Tt - 2:].set(PAD_IDX)
    ys = mask_ys

    fwd = jax.jit(lambda p, a, b, c: transformer_forward(p, cfg, a, b, c, test=False))
    scores, preds, _, _, gen_loss, _, _, _ = fwd(params, xs, ys, mask_ys)
    jax.block_until_ready((scores, preds, gen_loss))

    assert scores.shape == (B, Tt, cfg["n_vocab"])
    assert preds.shape == (B, Tt)
    assert bool(jnp.isfinite(gen_loss))
    print("KERNEL_OK")
</pallas_src>

<mosaic_0001>
module attributes {stable_mosaic.version = 11 : i64} {
  func.func @_vocab_ce_kernel(%arg0: i32, %arg1: memref<8x32xbf16, #tpu.memory_space<vmem>>, %arg2: memref<128x32xbf16, #tpu.memory_space<vmem>>, %arg3: memref<8x1xi32, #tpu.memory_space<vmem>>, %arg4: memref<8x128xbf16, #tpu.memory_space<vmem>>, %arg5: memref<8x1xf32, #tpu.memory_space<vmem>>, %arg6: memref<8x1xi32, #tpu.memory_space<vmem>>) attributes {dimension_semantics = [#tpu.dimension_semantics<parallel>], iteration_bounds = array<i64: 2>, scalar_prefetch = 0 : i64, scratch_operands = 0 : i64, tpu.core_type = #tpu.core_type<tc>, window_params = [{transform_indices = @transform_0, window_bounds = array<i64: 8, 32>}, {pipeline_mode = #tpu.pipeline_mode<synchronous>, transform_indices = @transform_1, window_bounds = array<i64: 128, 32>}, {transform_indices = @transform_2, window_bounds = array<i64: 8, 1>}, {transform_indices = @transform_3, window_bounds = array<i64: 8, 128>}, {transform_indices = @transform_4, window_bounds = array<i64: 8, 1>}, {transform_indices = @transform_5, window_bounds = array<i64: 8, 1>}]} {
    %c0 = arith.constant 0 : index
    %c0_0 = arith.constant 0 : index
    %0 = vector.load %arg1[%c0, %c0_0] : memref<8x32xbf16, #tpu.memory_space<vmem>>, vector<8x32xbf16>
    %c0_1 = arith.constant 0 : index
    %c0_2 = arith.constant 0 : index
    %1 = vector.load %arg2[%c0_1, %c0_2] : memref<128x32xbf16, #tpu.memory_space<vmem>>, vector<128x32xbf16>
    %cst = arith.constant dense<0.000000e+00> : vector<8x128xf32>
    %2 = tpu.matmul %0, %1, %cst {dimension_numbers = #tpu.dot_dimension_numbers<[1], [1], [0], [0], [0, 0, 1, 0], [], []>} : vector<8x32xbf16>, vector<128x32xbf16>, vector<8x128xf32> -> vector<8x128xf32>
    %3 = arith.truncf %2 : vector<8x128xf32> to vector<8x128xbf16>
    %c0_3 = arith.constant 0 : index
    %c0_4 = arith.constant 0 : index
    %4 = vector.load %arg4[%c0_3, %c0_4] : memref<8x128xbf16, #tpu.memory_space<vmem>>, vector<8x128xbf16>
    tpu.vector_store %arg4[%c0_3, %c0_4], %3 {strides = array<i32>} : memref<8x128xbf16, #tpu.memory_space<vmem>>, vector<8x128xbf16>,
    %5 = tpu.iota {dimensions = array<i32: 1>} : vector<8x128xi32>
    %c50_i32 = arith.constant 50 : i32
    %6 = vector.broadcast %c50_i32 : i32 to vector<8x128xi32>
    %7 = arith.cmpi slt, %5, %6 : vector<8x128xi32>
    %cst_5 = arith.constant -1.000000e+30 : f32
    %8 = vector.broadcast %cst_5 : f32 to vector<8x128xf32>
    %9 = arith.select %7, %2, %8 : vector<8x128xi1>, vector<8x128xf32>
    %cst_6 = arith.constant dense<0xFF800000> : vector<8xf32>
    %10 = vector.multi_reduction <maximumf>, %9, %cst_6 [1] : vector<8x128xf32> to vector<8xf32>
    %11 = vector.shape_cast %10 : vector<8xf32> to vector<8x1xf32>
    %12 = vector.broadcast %11 : vector<8x1xf32> to vector<8x128xf32>
    %13 = arith.cmpf oge, %9, %12 : vector<8x128xf32>
    %c128_i32 = arith.constant 128 : i32
    %14 = vector.broadcast %c128_i32 : i32 to vector<8x128xi32>
    %15 = arith.select %13, %5, %14 : vector<8x128xi1>, vector<8x128xi32>
    %cst_7 = arith.constant dense<2147483647> : vector<8xi32>
    %16 = vector.multi_reduction <minsi>, %15, %cst_7 [1] : vector<8x128xi32> to vector<8xi32>
    %17 = vector.shape_cast %16 : vector<8xi32> to vector<8x1xi32>
    %c0_8 = arith.constant 0 : index
    %c0_9 = arith.constant 0 : index
    %18 = vector.load %arg6[%c0_8, %c0_9] : memref<8x1xi32, #tpu.memory_space<vmem>>, vector<8x1xi32>
    tpu.vector_store %arg6[%c0_8, %c0_9], %17 {strides = array<i32>} : memref<8x1xi32, #tpu.memory_space<vmem>>, vector<8x1xi32>,
    %19 = vector.broadcast %11 : vector<8x1xf32> to vector<8x128xf32>
    %20 = arith.subf %9, %19 : vector<8x128xf32>
    %21 = math.exp %20 : vector<8x128xf32>
    %cst_10 = arith.constant dense<0.000000e+00> : vector<8xf32>
    %22 = vector.multi_reduction <add>, %21, %cst_10 [1] : vector<8x128xf32> to vector<8xf32>
    %23 = vector.shape_cast %22 : vector<8xf32> to vector<8x1xf32>
    %24 = math.log %23 : vector<8x1xf32>
    %25 = arith.addf %24, %11 : vector<8x1xf32>
    %c0_11 = arith.constant 0 : index
    %c0_12 = arith.constant 0 : index
    %26 = vector.load %arg3[%c0_11, %c0_12] : memref<8x1xi32, #tpu.memory_space<vmem>>, vector<8x1xi32>
    %27 = vector.broadcast %26 : vector<8x1xi32> to vector<8x128xi32>
    %28 = arith.cmpi eq, %5, %27 : vector<8x128xi32>
    %cst_13 = arith.constant 0.000000e+00 : f32
    %29 = vector.broadcast %cst_13 : f32 to vector<8x128xf32>
    %30 = arith.select %28, %9, %29 : vector<8x128xi1>, vector<8x128xf32>
    %cst_14 = arith.constant dense<0.000000e+00> : vector<8xf32>
    %31 = vector.multi_reduction <add>, %30, %cst_14 [1] : vector<8x128xf32> to vector<8xf32>
    %32 = vector.shape_cast %31 : vector<8xf32> to vector<8x1xf32>
    %c0_i32 = arith.constant 0 : i32
    %33 = vector.broadcast %c0_i32 : i32 to vector<8x1xi32>
    %34 = arith.cmpi ne, %26, %33 : vector<8x1xi32>
    %35 = arith.extui %34 : vector<8x1xi1> to vector<8x1xi32>
    %36 = arith.sitofp %35 : vector<8x1xi32> to vector<8x1xf32>
    %37 = arith.subf %25, %32 : vector<8x1xf32>
    %38 = arith.mulf %37, %36 : vector<8x1xf32>
    %c0_15 = arith.constant 0 : index
    %c0_16 = arith.constant 0 : index
    %39 = vector.load %arg5[%c0_15, %c0_16] : memref<8x1xf32, #tpu.memory_space<vmem>>, vector<8x1xf32>
    tpu.vector_store %arg5[%c0_15, %c0_16], %38 {strides = array<i32>} : memref<8x1xf32, #tpu.memory_space<vmem>>, vector<8x1xf32>,
    return
  }
  func.func @transform_0(%arg0: i32) -> (i32, i32) {
    %c0_i32 = arith.constant 0 : i32
    %c0_i32_0 = arith.constant 0 : i32
    return %arg0, %c0_i32 : i32, i32
  }
  func.func @transform_1(%arg0: i32) -> (i32, i32) {
    %c0_i32 = arith.constant 0 : i32
    %c0_i32_0 = arith.constant 0 : i32
    %c0_i32_1 = arith.constant 0 : i32
    return %c0_i32, %c0_i32_0 : i32, i32
  }
  func.func @transform_2(%arg0: i32) -> (i32, i32) {
    %c0_i32 = arith.constant 0 : i32
    %c0_i32_0 = arith.constant 0 : i32
    return %arg0, %c0_i32 : i32, i32
  }
  func.func @transform_3(%arg0: i32) -> (i32, i32) {
    %c0_i32 = arith.constant 0 : i32
    %c0_i32_0 = arith.constant 0 : i32
    return %arg0, %c0_i32 : i32, i32
  }
  func.func @transform_4(%arg0: i32) -> (i32, i32) {
    %c0_i32 = arith.constant 0 : i32
    %c0_i32_0 = arith.constant 0 : i32
    return %arg0, %c0_i32 : i32, i32
  }
  func.func @transform_5(%arg0: i32) -> (i32, i32) {
    %c0_i32 = arith.constant 0 : i32
    %c0_i32_0 = arith.constant 0 : i32
    return %arg0, %c0_i32 : i32, i32
  }
}

module attributes {stable_mosaic.version = 11 : i64} {
  func.func @_encoder_stack_kernel(%arg0: i32, %arg1: memref<32x32xbf16, #tpu.memory_space<vmem>>, %arg2: memref<2x16xf32, #tpu.memory_space<vmem>>, %arg3: memref<32x1xf32, #tpu.memory_space<vmem>>, %arg4: memref<2x96x32xbf16, #tpu.memory_space<vmem>>, %arg5: memref<2x1x96xf32, #tpu.memory_space<vmem>>, %arg6: memref<2x32x32xbf16, #tpu.memory_space<vmem>>, %arg7: memref<2x1x32xf32, #tpu.memory_space<vmem>>, %arg8: memref<2x1x32xf32, #tpu.memory_space<vmem>>, %arg9: memref<2x1x32xf32, #tpu.memory_space<vmem>>, %arg10: memref<2x64x32xbf16, #tpu.memory_space<vmem>>, %arg11: memref<2x1x64xf32, #tpu.memory_space<vmem>>, %arg12: memref<2x32x64xbf16, #tpu.memory_space<vmem>>, %arg13: memref<2x1x32xf32, #tpu.memory_space<vmem>>, %arg14: memref<2x1x32xf32, #tpu.memory_space<vmem>>, %arg15: memref<2x1x32xf32, #tpu.memory_space<vmem>>, %arg16: memref<32x32xbf16, #tpu.memory_space<vmem>>, %arg17: memref<32x32xf32, #tpu.memory_space<vmem>>) attributes {dimension_semantics = [#tpu.dimension_semantics<arbitrary>], iteration_bounds = array<i64: 1>, scalar_prefetch = 0 : i64, scratch_operands = 1 : i64, tpu.core_type = #tpu.core_type<tc>, window_params = [{pipeline_mode = #tpu.pipeline_mode<synchronous>, transform_indices = @transform_0, window_bounds = array<i64: 32, 32>}, {pipeline_mode = #tpu.pipeline_mode<synchronous>, transform_indices = @transform_1, window_bounds = array<i64: 2, 16>}, {pipeline_mode = #tpu.pipeline_mode<synchronous>, transform_indices = @transform_2, window_bounds = array<i64: 32, 1>}, {pipeline_mode = #tpu.pipeline_mode<synchronous>, transform_indices = @transform_3, window_bounds = array<i64: 2, 96, 32>}, {pipeline_mode = #tpu.pipeline_mode<synchronous>, transform_indices = @transform_4, window_bounds = array<i64: 2, 1, 96>}, {pipeline_mode = #tpu.pipeline_mode<synchronous>, transform_indices = @transform_5, window_bounds = array<i64: 2, 32, 32>}, {pipeline_mode = #tpu.pipeline_mode<synchronous>, transform_indices = @transform_6, window_bounds = array<i64: 2, 1, 32>}, {pipeline_mode = #tpu.pipeline_mode<synchronous>, transform_indices = @transform_7, window_bounds = array<i64: 2, 1, 32>}, {pipeline_mode = #tpu.pipeline_mode<synchronous>, transform_indices = @transform_8, window_bounds = array<i64: 2, 1, 32>}, {pipeline_mode = #tpu.pipeline_mode<synchronous>, transform_indices = @transform_9, window_bounds = array<i64: 2, 64, 32>}, {pipeline_mode = #tpu.pipeline_mode<synchronous>, transform_indices = @transform_10, window_bounds = array<i64: 2, 1, 64>}, {pipeline_mode = #tpu.pipeline_mode<synchronous>, transform_indices = @transform_11, window_bounds = array<i64: 2, 32, 64>}, {pipeline_mode = #tpu.pipeline_mode<synchronous>, transform_indices = @transform_12, window_bounds = array<i64: 2, 1, 32>}, {pipeline_mode = #tpu.pipeline_mode<synchronous>, transform_indices = @transform_13, window_bounds = array<i64: 2, 1, 32>}, {pipeline_mode = #tpu.pipeline_mode<synchronous>, transform_indices = @transform_14, window_bounds = array<i64: 2, 1, 32>}, {pipeline_mode = #tpu.pipeline_mode<synchronous>, transform_indices = @transform_15, window_bounds = array<i64: 32, 32>}]} {
    %c0 = arith.constant 0 : index
    %c0_0 = arith.constant 0 : index
    %0 = vector.load %arg2[%c0, %c0_0] : memref<2x16xf32, #tpu.memory_space<vmem>>, vector<2x16xf32>
    %c0_1 = arith.constant 0 : index
    %c0_2 = arith.constant 0 : index
    %1 = vector.load %arg3[%c0_1, %c0_2] : memref<32x1xf32, #tpu.memory_space<vmem>>, vector<32x1xf32>
    %c0_3 = arith.constant 0 : index
    %c0_4 = arith.constant 0 : index
    %2 = vector.load %arg1[%c0_3, %c0_4] : memref<32x32xbf16, #tpu.memory_space<vmem>>, vector<32x32xbf16>
    %3 = arith.extf %2 : vector<32x32xbf16> to vector<32x32xf32>
    %4 = arith.truncf %3 : vector<32x32xf32> to vector<32x32xbf16>
    %c0_5 = arith.constant 0 : index
    %c0_6 = arith.constant 0 : index
    %c0_7 = arith.constant 0 : index
    %5 = vector.load %arg4[%c0_5, %c0_6, %c0_7] : memref<2x96x32xbf16, #tpu.memory_space<vmem>>, vector<1x96x32xbf16>
    %6 = vector.shape_cast %5 : vector<1x96x32xbf16> to vector<96x32xbf16>
    %cst = arith.constant dense<0.000000e+00> : vector<32x96xf32>
    %7 = tpu.matmul %4, %6, %cst {dimension_numbers = #tpu.dot_dimension_numbers<[1], [1], [0], [0], [0, 0, 1, 0], [], []>} : vector<32x32xbf16>, vector<96x32xbf16>, vector<32x96xf32> -> vector<32x96xf32>
    %c0_8 = arith.constant 0 : index
    %c0_9 = arith.constant 0 : index
    %c0_10 = arith.constant 0 : index
    %8 = vector.load %arg5[%c0_8, %c0_9, %c0_10] : memref<2x1x96xf32, #tpu.memory_space<vmem>>, vector<1x1x96xf32>
    %9 = vector.shape_cast %8 : vector<1x1x96xf32> to vector<1x96xf32>
    %10 = vector.broadcast %9 : vector<1x96xf32> to vector<32x96xf32>
    %11 = arith.addf %7, %10 : vector<32x96xf32>
    %12 = vector.extract_strided_slice %11 {offsets = [0, 0], sizes = [32, 32], strides = [1, 1]} : vector<32x96xf32> to vector<32x32xf32>
    %cst_11 = arith.constant 2.500000e-01 : f32
    %13 = vector.broadcast %cst_11 : f32 to vector<32x32xf32>
    %14 = arith.mulf %12, %13 : vector<32x32xf32>
    %15 = arith.truncf %14 : vector<32x32xf32> to vector<32x32xbf16>
    %16 = vector.extract_strided_slice %11 {offsets = [0, 32], sizes = [32, 32], strides = [1, 1]} : vector<32x96xf32> to vector<32x32xf32>
    %17 = arith.truncf %16 : vector<32x32xf32> to vector<32x32xbf16>
    %18 = vector.extract_strided_slice %11 {offsets = [0, 64], sizes = [32, 32], strides = [1, 1]} : vector<32x96xf32> to vector<32x32xf32>
    %19 = arith.truncf %18 : vector<32x32xf32> to vector<32x32xbf16>
    %c0_12 = arith.constant 0 : index
    %c0_13 = arith.constant 0 : index
    %c0_14 = arith.constant 0 : index
    %20 = vector.load %arg6[%c0_12, %c0_13, %c0_14] : memref<2x32x32xbf16, #tpu.memory_space<vmem>>, vector<1x32x32xbf16>
    %21 = vector.shape_cast %20 : vector<1x32x32xbf16> to vector<32x32xbf16>
    %c0_15 = arith.constant 0 : index
    %c0_16 = arith.constant 0 : index
    %c0_17 = arith.constant 0 : index
    %22 = vector.load %arg7[%c0_15, %c0_16, %c0_17] : memref<2x1x32xf32, #tpu.memory_space<vmem>>, vector<1x1x32xf32>
    %23 = vector.shape_cast %22 : vector<1x1x32xf32> to vector<1x32xf32>
    %24 = vector.extract_strided_slice %0 {offsets = [0, 0], sizes = [1, 16], strides = [1, 1]} : vector<2x16xf32> to vector<1x16xf32>
    %cst_18 = arith.constant 5.000000e-01 : f32
    %25 = vector.broadcast %cst_18 : f32 to vector<1x16xf32>
    %26 = arith.cmpf ogt, %24, %25 : vector<1x16xf32>
    %27 = vector.extract_strided_slice %15 {offsets = [0, 0], sizes = [16, 32], strides = [1, 1]} : vector<32x32xbf16> to vector<16x32xbf16>
    %28 = vector.extract_strided_slice %17 {offsets = [0, 0], sizes = [16, 32], strides = [1, 1]} : vector<32x32xbf16> to vector<16x32xbf16>
    %29 = vector.extract_strided_slice %19 {offsets = [0, 0], sizes = [16, 32], strides = [1, 1]} : vector<32x32xbf16> to vector<16x32xbf16>
    %30 = vector.extract_strided_slice %27 {offsets = [0, 0], sizes = [16, 16], strides = [1, 1]} : vector<16x32xbf16> to vector<16x16xbf16>
    %31 = vector.extract_strided_slice %28 {offsets = [0, 0], sizes = [16, 16], strides = [1, 1]} : vector<16x32xbf16> to vector<16x16xbf16>
    %32 = vector.extract_strided_slice %29 {offsets = [0, 0], sizes = [16, 16], strides = [1, 1]} : vector<16x32xbf16> to vector<16x16xbf16>
    %cst_19 = arith.constant dense<0.000000e+00> : vector<16x16xf32>
    %33 = tpu.matmul %30, %31, %cst_19 {dimension_numbers = #tpu.dot_dimension_numbers<[1], [1], [0], [0], [0, 0, 1, 0], [], []>} : vector<16x16xbf16>, vector<16x16xbf16>, vector<16x16xf32> -> vector<16x16xf32>
    %cst_20 = arith.constant -1.000000e+30 : f32
    %34 = vector.shape_cast %26 : vector<1x16xi1> to vector<1x16xi1>
    %35 = vector.broadcast %34 : vector<1x16xi1> to vector<16x16xi1>
    %36 = vector.broadcast %cst_20 : f32 to vector<16x16xf32>
    %37 = arith.select %35, %33, %36 : vector<16x16xi1>, vector<16x16xf32>
    %cst_21 = arith.constant dense<0xFF800000> : vector<16xf32>
    %38 = vector.multi_reduction <maximumf>, %37, %cst_21 [1] : vector<16x16xf32> to vector<16xf32>
    %39 = vector.shape_cast %38 : vector<16xf32> to vector<16x1xf32>
    %40 = vector.broadcast %39 : vector<16x1xf32> to vector<16x16xf32>
    %41 = arith.subf %37, %40 : vector<16x16xf32>
    %42 = math.exp %41 : vector<16x16xf32>
    %cst_22 = arith.constant dense<0.000000e+00> : vector<16xf32>
    %43 = vector.multi_reduction <add>, %42, %cst_22 [1] : vector<16x16xf32> to vector<16xf32>
    %44 = vector.shape_cast %43 : vector<16xf32> to vector<16x1xf32>
    %45 = tpu.reciprocal %44 {approx = true} : vector<16x1xf32> -> vector<16x1xf32>
    %46 = vector.broadcast %45 : vector<16x1xf32> to vector<16x16xf32>
    %47 = arith.mulf %42, %46 : vector<16x16xf32>
    %48 = arith.truncf %47 : vector<16x16xf32> to vector<16x16xbf16>
    %cst_23 = arith.constant dense<0.000000e+00> : vector<16x16xf32>
    %49 = tpu.matmul %48, %32, %cst_23 {dimension_numbers = #tpu.dot_dimension_numbers<[1], [0], [0], [1], [0, 0, 1, 1], [], []>} : vector<16x16xbf16>, vector<16x16xbf16>, vector<16x16xf32> -> vector<16x16xf32>
    %50 = arith.truncf %49 : vector<16x16xf32> to vector<16x16xbf16>
    %51 = vector.extract_strided_slice %21 {offsets = [0, 0], sizes = [32, 16], strides = [1, 1]} : vector<32x32xbf16> to vector<32x16xbf16>
    %cst_24 = arith.constant dense<0.000000e+00> : vector<16x32xf32>
    %52 = tpu.matmul %50, %51, %cst_24 {dimension_numbers = #tpu.dot_dimension_numbers<[1], [1], [0], [0], [0, 0, 1, 0], [], []>} : vector<16x16xbf16>, vector<32x16xbf16>, vector<16x32xf32> -> vector<16x32xf32>
    %53 = vector.broadcast %23 : vector<1x32xf32> to vector<16x32xf32>
    %54 = arith.addf %53, %52 : vector<16x32xf32>
    %55 = vector.extract_strided_slice %27 {offsets = [0, 16], sizes = [16, 16], strides = [1, 1]} : vector<16x32xbf16> to vector<16x16xbf16>
    %56 = vector.extract_strided_slice %28 {offsets = [0, 16], sizes = [16, 16], strides = [1, 1]} : vector<16x32xbf16> to vector<16x16xbf16>
    %57 = vector.extract_strided_slice %29 {offsets = [0, 16], sizes = [16, 16], strides = [1, 1]} : vector<16x32xbf16> to vector<16x16xbf16>
    %cst_25 = arith.constant dense<0.000000e+00> : vector<16x16xf32>
    %58 = tpu.matmul %55, %56, %cst_25 {dimension_numbers = #tpu.dot_dimension_numbers<[1], [1], [0], [0], [0, 0, 1, 0], [], []>} : vector<16x16xbf16>, vector<16x16xbf16>, vector<16x16xf32> -> vector<16x16xf32>
    %cst_26 = arith.constant -1.000000e+30 : f32
    %59 = vector.shape_cast %26 : vector<1x16xi1> to vector<1x16xi1>
    %60 = vector.broadcast %59 : vector<1x16xi1> to vector<16x16xi1>
    %61 = vector.broadcast %cst_26 : f32 to vector<16x16xf32>
    %62 = arith.select %60, %58, %61 : vector<16x16xi1>, vector<16x16xf32>
    %cst_27 = arith.constant dense<0xFF800000> : vector<16xf32>
    %63 = vector.multi_reduction <maximumf>, %62, %cst_27 [1] : vector<16x16xf32> to vector<16xf32>
    %64 = vector.shape_cast %63 : vector<16xf32> to vector<16x1xf32>
    %65 = vector.broadcast %64 : vector<16x1xf32> to vector<16x16xf32>
    %66 = arith.subf %62, %65 : vector<16x16xf32>
    %67 = math.exp %66 : vector<16x16xf32>
    %cst_28 = arith.constant dense<0.000000e+00> : vector<16xf32>
    %68 = vector.multi_reduction <add>, %67, %cst_28 [1] : vector<16x16xf32> to vector<16xf32>
    %69 = vector.shape_cast %68 : vector<16xf32> to vector<16x1xf32>
    %70 = tpu.reciprocal %69 {approx = true} : vector<16x1xf32> -> vector<16x1xf32>
    %71 = vector.broadcast %70 : vector<16x1xf32> to vector<16x16xf32>
    %72 = arith.mulf %67, %71 : vector<16x16xf32>
    %73 = arith.truncf %72 : vector<16x16xf32> to vector<16x16xbf16>
    %cst_29 = arith.constant dense<0.000000e+00> : vector<16x16xf32>
    %74 = tpu.matmul %73, %57, %cst_29 {dimension_numbers = #tpu.dot_dimension_numbers<[1], [0], [0], [1], [0, 0, 1, 1], [], []>} : vector<16x16xbf16>, vector<16x16xbf16>, vector<16x16xf32> -> vector<16x16xf32>
    %75 = arith.truncf %74 : vector<16x16xf32> to vector<16x16xbf16>
    %76 = vector.extract_strided_slice %21 {offsets = [0, 16], sizes = [32, 16], strides = [1, 1]} : vector<32x32xbf16> to vector<32x16xbf16>
    %cst_30 = arith.constant dense<0.000000e+00> : vector<16x32xf32>
    %77 = tpu.matmul %75, %76, %cst_30 {dimension_numbers = #tpu.dot_dimension_numbers<[1], [1], [0], [0], [0, 0, 1, 0], [], []>} : vector<16x16xbf16>, vector<32x16xbf16>, vector<16x32xf32> -> vector<16x32xf32>
    %78 = arith.addf %54, %77 : vector<16x32xf32>
    %c0_31 = arith.constant 0 : index
    %c0_32 = arith.constant 0 : index
    %79 = vector.load %arg17[%c0_31, %c0_32] : memref<32x32xf32, #tpu.memory_space<vmem>>, vector<16x32xf32>
    tpu.vector_store %arg17[%c0_31, %c0_32], %78 {strides = array<i32>} : memref<32x32xf32, #tpu.memory_space<vmem>>, vector<16x32xf32>,
    %80 = vector.extract_strided_slice %0 {offsets = [1, 0], sizes = [1, 16], strides = [1, 1]} : vector<2x16xf32> to vector<1x16xf32>
    %cst_33 = arith.constant 5.000000e-01 : f32
    %81 = vector.broadcast %cst_33 : f32 to vector<1x16xf32>
    %82 = arith.cmpf ogt, %80, %81 : vector<1x16xf32>
    %83 = vector.extract_strided_slice %15 {offsets = [16, 0], sizes = [16, 32], strides = [1, 1]} : vector<32x32xbf16> to vector<16x32xbf16>
    %84 = vector.extract_strided_slice %17 {offsets = [16, 0], sizes = [16, 32], strides = [1, 1]} : vector<32x32xbf16> to vector<16x32xbf16>
    %85 = vector.extract_strided_slice %19 {offsets = [16, 0], sizes = [16, 32], strides = [1, 1]} : vector<32x32xbf16> to vector<16x32xbf16>
    %86 = vector.extract_strided_slice %83 {offsets = [0, 0], sizes = [16, 16], strides = [1, 1]} : vector<16x32xbf16> to vector<16x16xbf16>
    %87 = vector.extract_strided_slice %84 {offsets = [0, 0], sizes = [16, 16], strides = [1, 1]} : vector<16x32xbf16> to vector<16x16xbf16>
    %88 = vector.extract_strided_slice %85 {offsets = [0, 0], sizes = [16, 16], strides = [1, 1]} : vector<16x32xbf16> to vector<16x16xbf16>
    %cst_34 = arith.constant dense<0.000000e+00> : vector<16x16xf32>
    %89 = tpu.matmul %86, %87, %cst_34 {dimension_numbers = #tpu.dot_dimension_numbers<[1], [1], [0], [0], [0, 0, 1, 0], [], []>} : vector<16x16xbf16>, vector<16x16xbf16>, vector<16x16xf32> -> vector<16x16xf32>
    %cst_35 = arith.constant -1.000000e+30 : f32
    %90 = vector.shape_cast %82 : vector<1x16xi1> to vector<1x16xi1>
    %91 = vector.broadcast %90 : vector<1x16xi1> to vector<16x16xi1>
    %92 = vector.broadcast %cst_35 : f32 to vector<16x16xf32>
    %93 = arith.select %91, %89, %92 : vector<16x16xi1>, vector<16x16xf32>
    %cst_36 = arith.constant dense<0xFF800000> : vector<16xf32>
    %94 = vector.multi_reduction <maximumf>, %93, %cst_36 [1] : vector<16x16xf32> to vector<16xf32>
    %95 = vector.shape_cast %94 : vector<16xf32> to vector<16x1xf32>
    %96 = vector.broadcast %95 : vector<16x1xf32> to vector<16x16xf32>
    %97 = arith.subf %93, %96 : vector<16x16xf32>
    %98 = math.exp %97 : vector<16x16xf32>
    %cst_37 = arith.constant dense<0.000000e+00> : vector<16xf32>
    %99 = vector.multi_reduction <add>, %98, %cst_37 [1] : vector<16x16xf32> to vector<16xf32>
    %100 = vector.shape_cast %99 : vector<16xf32> to vector<16x1xf32>
    %101 = tpu.reciprocal %100 {approx = true} : vector<16x1xf32> -> vector<16x1xf32>
    %102 = vector.broadcast %101 : vector<16x1xf32> to vector<16x16xf32>
    %103 = arith.mulf %98, %102 : vector<16x16xf32>
    %104 = arith.truncf %103 : vector<16x16xf32> to vector<16x16xbf16>
    %cst_38 = arith.constant dense<0.000000e+00> : vector<16x16xf32>
    %105 = tpu.matmul %104, %88, %cst_38 {dimension_numbers = #tpu.dot_dimension_numbers<[1], [0], [0], [1], [0, 0, 1, 1], [], []>} : vector<16x16xbf16>, vector<16x16xbf16>, vector<16x16xf32> -> vector<16x16xf32>
    %106 = arith.truncf %105 : vector<16x16xf32> to vector<16x16xbf16>
    %107 = vector.extract_strided_slice %21 {offsets = [0, 0], sizes = [32, 16], strides = [1, 1]} : vector<32x32xbf16> to vector<32x16xbf16>
    %cst_39 = arith.constant dense<0.000000e+00> : vector<16x32xf32>
    %108 = tpu.matmul %106, %107, %cst_39 {dimension_numbers = #tpu.dot_dimension_numbers<[1], [1], [0], [0], [0, 0, 1, 0], [], []>} : vector<16x16xbf16>, vector<32x16xbf16>, vector<16x32xf32> -> vector<16x32xf32>
    %109 = vector.broadcast %23 : vector<1x32xf32> to vector<16x32xf32>
    %110 = arith.addf %109, %108 : vector<16x32xf32>
    %111 = vector.extract_strided_slice %83 {offsets = [0, 16], sizes = [16, 16], strides = [1, 1]} : vector<16x32xbf16> to vector<16x16xbf16>
    %112 = vector.extract_strided_slice %84 {offsets = [0, 16], sizes = [16, 16], strides = [1, 1]} : vector<16x32xbf16> to vector<16x16xbf16>
    %113 = vector.extract_strided_slice %85 {offsets = [0, 16], sizes = [16, 16], strides = [1, 1]} : vector<16x32xbf16> to vector<16x16xbf16>
    %cst_40 = arith.constant dense<0.000000e+00> : vector<16x16xf32>
    %114 = tpu.matmul %111, %112, %cst_40 {dimension_numbers = #tpu.dot_dimension_numbers<[1], [1], [0], [0], [0, 0, 1, 0], [], []>} : vector<16x16xbf16>, vector<16x16xbf16>, vector<16x16xf32> -> vector<16x16xf32>
    %cst_41 = arith.constant -1.000000e+30 : f32
    %115 = vector.shape_cast %82 : vector<1x16xi1> to vector<1x16xi1>
    %116 = vector.broadcast %115 : vector<1x16xi1> to vector<16x16xi1>
    %117 = vector.broadcast %cst_41 : f32 to vector<16x16xf32>
    %118 = arith.select %116, %114, %117 : vector<16x16xi1>, vector<16x16xf32>
    %cst_42 = arith.constant dense<0xFF800000> : vector<16xf32>
    %119 = vector.multi_reduction <maximumf>, %118, %cst_42 [1] : vector<16x16xf32> to vector<16xf32>
    %120 = vector.shape_cast %119 : vector<16xf32> to vector<16x1xf32>
    %121 = vector.broadcast %120 : vector<16x1xf32> to vector<16x16xf32>
    %122 = arith.subf %118, %121 : vector<16x16xf32>
    %123 = math.exp %122 : vector<16x16xf32>
    %cst_43 = arith.constant dense<0.000000e+00> : vector<16xf32>
    %124 = vector.multi_reduction <add>, %123, %cst_43 [1] : vector<16x16xf32> to vector<16xf32>
    %125 = vector.shape_cast %124 : vector<16xf32> to vector<16x1xf32>
    %126 = tpu.reciprocal %125 {approx = true} : vector<16x1xf32> -> vector<16x1xf32>
    %127 = vector.broadcast %126 : vector<16x1xf32> to vector<16x16xf32>
    %128 = arith.mulf %123, %127 : vector<16x16xf32>
    %129 = arith.truncf %128 : vector<16x16xf32> to vector<16x16xbf16>
    %cst_44 = arith.constant dense<0.000000e+00> : vector<16x16xf32>
    %130 = tpu.matmul %129, %113, %cst_44 {dimension_numbers = #tpu.dot_dimension_numbers<[1], [0], [0], [1], [0, 0, 1, 1], [], []>} : vector<16x16xbf16>, vector<16x16xbf16>, vector<16x16xf32> -> vector<16x16xf32>
    %131 = arith.truncf %130 : vector<16x16xf32> to vector<16x16xbf16>
    %132 = vector.extract_strided_slice %21 {offsets = [0, 16], sizes = [32, 16], strides = [1, 1]} : vector<32x32xbf16> to vector<32x16xbf16>
    %cst_45 = arith.constant dense<0.000000e+00> : vector<16x32xf32>
    %133 = tpu.matmul %131, %132, %cst_45 {dimension_numbers = #tpu.dot_dimension_numbers<[1], [1], [0], [0], [0, 0, 1, 0], [], []>} : vector<16x16xbf16>, vector<32x16xbf16>, vector<16x32xf32> -> vector<16x32xf32>
    %134 = arith.addf %110, %133 : vector<16x32xf32>
    %c16 = arith.constant 16 : index
    %c0_46 = arith.constant 0 : index
    %135 = vector.load %arg17[%c16, %c0_46] : memref<32x32xf32, #tpu.memory_space<vmem>>, vector<16x32xf32>
    tpu.vector_store %arg17[%c16, %c0_46], %134 {strides = array<i32>} : memref<32x32xf32, #tpu.memory_space<vmem>>, vector<16x32xf32>,
    %c0_47 = arith.constant 0 : index
    %c0_48 = arith.constant 0 : index
    %136 = vector.load %arg17[%c0_47, %c0_48] : memref<32x32xf32, #tpu.memory_space<vmem>>, vector<32x32xf32>
    %137 = arith.addf %3, %136 : vector<32x32xf32>
    %c0_49 = arith.constant 0 : index
    %c0_50 = arith.constant 0 : index
    %c0_51 = arith.constant 0 : index
    %138 = vector.load %arg8[%c0_49, %c0_50, %c0_51] : memref<2x1x32xf32, #tpu.memory_space<vmem>>, vector<1x1x32xf32>
    %139 = vector.shape_cast %138 : vector<1x1x32xf32> to vector<1x32xf32>
    %c0_52 = arith.constant 0 : index
    %c0_53 = arith.constant 0 : index
    %c0_54 = arith.constant 0 : index
    %140 = vector.load %arg9[%c0_52, %c0_53, %c0_54] : memref<2x1x32xf32, #tpu.memory_space<vmem>>, vector<1x1x32xf32>
    %141 = vector.shape_cast %140 : vector<1x1x32xf32> to vector<1x32xf32>
    %cst_55 = arith.constant dense<0.000000e+00> : vector<32xf32>
    %142 = vector.multi_reduction <add>, %137, %cst_55 [1] : vector<32x32xf32> to vector<32xf32>
    %143 = vector.shape_cast %142 : vector<32xf32> to vector<32x1xf32>
    %cst_56 = arith.constant 3.200000e+01 : f32
    %144 = vector.broadcast %cst_56 : f32 to vector<32x1xf32>
    %145 = arith.divf %143, %144 : vector<32x1xf32>
    %146 = vector.broadcast %145 : vector<32x1xf32> to vector<32x32xf32>
    %147 = arith.subf %137, %146 : vector<32x32xf32>
    %148 = arith.mulf %147, %147 : vector<32x32xf32>
    %cst_57 = arith.constant dense<0.000000e+00> : vector<32xf32>
    %149 = vector.multi_reduction <add>, %148, %cst_57 [1] : vector<32x32xf32> to vector<32xf32>
    %150 = vector.shape_cast %149 : vector<32xf32> to vector<32x1xf32>
    %cst_58 = arith.constant 3.200000e+01 : f32
    %151 = vector.broadcast %cst_58 : f32 to vector<32x1xf32>
    %152 = arith.divf %150, %151 : vector<32x1xf32>
    %cst_59 = arith.constant 9.99999974E-6 : f32
    %153 = vector.broadcast %cst_59 : f32 to vector<32x1xf32>
    %154 = arith.addf %152, %153 : vector<32x1xf32>
    %155 = math.rsqrt %154 : vector<32x1xf32>
    %156 = vector.broadcast %155 : vector<32x1xf32> to vector<32x32xf32>
    %157 = arith.mulf %147, %156 : vector<32x32xf32>
    %158 = vector.broadcast %139 : vector<1x32xf32> to vector<32x32xf32>
    %159 = arith.mulf %157, %158 : vector<32x32xf32>
    %160 = vector.broadcast %141 : vector<1x32xf32> to vector<32x32xf32>
    %161 = arith.addf %159, %160 : vector<32x32xf32>
    %162 = arith.truncf %161 : vector<32x32xf32> to vector<32x32xbf16>
    %c0_60 = arith.constant 0 : index
    %c0_61 = arith.constant 0 : index
    %c0_62 = arith.constant 0 : index
    %163 = vector.load %arg10[%c0_60, %c0_61, %c0_62] : memref<2x64x32xbf16, #tpu.memory_space<vmem>>, vector<1x64x32xbf16>
    %164 = vector.shape_cast %163 : vector<1x64x32xbf16> to vector<64x32xbf16>
    %cst_63 = arith.constant dense<0.000000e+00> : vector<32x64xf32>
    %165 = tpu.matmul %162, %164, %cst_63 {dimension_numbers = #tpu.dot_dimension_numbers<[1], [1], [0], [0], [0, 0, 1, 0], [], []>} : vector<32x32xbf16>, vector<64x32xbf16>, vector<32x64xf32> -> vector<32x64xf32>
    %c0_64 = arith.constant 0 : index
    %c0_65 = arith.constant 0 : index
    %c0_66 = arith.constant 0 : index
    %166 = vector.load %arg11[%c0_64, %c0_65, %c0_66] : memref<2x1x64xf32, #tpu.memory_space<vmem>>, vector<1x1x64xf32>
    %167 = vector.shape_cast %166 : vector<1x1x64xf32> to vector<1x64xf32>
    %168 = vector.broadcast %167 : vector<1x64xf32> to vector<32x64xf32>
    %169 = arith.addf %165, %168 : vector<32x64xf32>
    %cst_67 = arith.constant 0.000000e+00 : f32
    %170 = vector.broadcast %cst_67 : f32 to vector<32x64xf32>
    %171 = arith.maximumf %169, %170 : vector<32x64xf32>
    %172 = arith.truncf %171 : vector<32x64xf32> to vector<32x64xbf16>
    %c0_68 = arith.constant 0 : index
    %c0_69 = arith.constant 0 : index
    %c0_70 = arith.constant 0 : index
    %173 = vector.load %arg12[%c0_68, %c0_69, %c0_70] : memref<2x32x64xbf16, #tpu.memory_space<vmem>>, vector<1x32x64xbf16>
    %174 = vector.shape_cast %173 : vector<1x32x64xbf16> to vector<32x64xbf16>
    %cst_71 = arith.constant dense<0.000000e+00> : vector<32x32xf32>
    %175 = tpu.matmul %172, %174, %cst_71 {dimension_numbers = #tpu.dot_dimension_numbers<[1], [1], [0], [0], [0, 0, 1, 0], [], []>} : vector<32x64xbf16>, vector<32x64xbf16>, vector<32x32xf32> -> vector<32x32xf32>
    %c0_72 = arith.constant 0 : index
    %c0_73 = arith.constant 0 : index
    %c0_74 = arith.constant 0 : index
    %176 = vector.load %arg13[%c0_72, %c0_73, %c0_74] : memref<2x1x32xf32, #tpu.memory_space<vmem>>, vector<1x1x32xf32>
    %177 = vector.shape_cast %176 : vector<1x1x32xf32> to vector<1x32xf32>
    %178 = vector.broadcast %177 : vector<1x32xf32> to vector<32x32xf32>
    %179 = arith.addf %175, %178 : vector<32x32xf32>
    %180 = arith.addf %161, %179 : vector<32x32xf32>
    %c0_75 = arith.constant 0 : index
    %c0_76 = arith.constant 0 : index
    %c0_77 = arith.constant 0 : index
    %181 = vector.load %arg14[%c0_75, %c0_76, %c0_77] : memref<2x1x32xf32, #tpu.memory_space<vmem>>, vector<1x1x32xf32>
    %182 = vector.shape_cast %181 : vector<1x1x32xf32> to vector<1x32xf32>
    %c0_78 = arith.constant 0 : index
    %c0_79 = arith.constant 0 : index
    %c0_80 = arith.constant 0 : index
    %183 = vector.load %arg15[%c0_78, %c0_79, %c0_80] : memref<2x1x32xf32, #tpu.memory_space<vmem>>, vector<1x1x32xf32>
    %184 = vector.shape_cast %183 : vector<1x1x32xf32> to vector<1x32xf32>
    %cst_81 = arith.constant dense<0.000000e+00> : vector<32xf32>
    %185 = vector.multi_reduction <add>, %180, %cst_81 [1] : vector<32x32xf32> to vector<32xf32>
    %186 = vector.shape_cast %185 : vector<32xf32> to vector<32x1xf32>
    %cst_82 = arith.constant 3.200000e+01 : f32
    %187 = vector.broadcast %cst_82 : f32 to vector<32x1xf32>
    %188 = arith.divf %186, %187 : vector<32x1xf32>
    %189 = vector.broadcast %188 : vector<32x1xf32> to vector<32x32xf32>
    %190 = arith.subf %180, %189 : vector<32x32xf32>
    %191 = arith.mulf %190, %190 : vector<32x32xf32>
    %cst_83 = arith.constant dense<0.000000e+00> : vector<32xf32>
    %192 = vector.multi_reduction <add>, %191, %cst_83 [1] : vector<32x32xf32> to vector<32xf32>
    %193 = vector.shape_cast %192 : vector<32xf32> to vector<32x1xf32>
    %cst_84 = arith.constant 3.200000e+01 : f32
    %194 = vector.broadcast %cst_84 : f32 to vector<32x1xf32>
    %195 = arith.divf %193, %194 : vector<32x1xf32>
    %cst_85 = arith.constant 9.99999974E-6 : f32
    %196 = vector.broadcast %cst_85 : f32 to vector<32x1xf32>
    %197 = arith.addf %195, %196 : vector<32x1xf32>
    %198 = math.rsqrt %197 : vector<32x1xf32>
    %199 = vector.broadcast %198 : vector<32x1xf32> to vector<32x32xf32>
    %200 = arith.mulf %190, %199 : vector<32x32xf32>
    %201 = vector.broadcast %182 : vector<1x32xf32> to vector<32x32xf32>
    %202 = arith.mulf %200, %201 : vector<32x32xf32>
    %203 = vector.broadcast %184 : vector<1x32xf32> to vector<32x32xf32>
    %204 = arith.addf %202, %203 : vector<32x32xf32>
    %205 = vector.broadcast %1 : vector<32x1xf32> to vector<32x32xf32>
    %206 = arith.mulf %204, %205 : vector<32x32xf32>
    %207 = arith.truncf %206 : vector<32x32xf32> to vector<32x32xbf16>
    %c1 = arith.constant 1 : index
    %c0_86 = arith.constant 0 : index
    %c0_87 = arith.constant 0 : index
    %208 = vector.load %arg4[%c1, %c0_86, %c0_87] : memref<2x96x32xbf16, #tpu.memory_space<vmem>>, vector<1x96x32xbf16>
    %209 = vector.shape_cast %208 : vector<1x96x32xbf16> to vector<96x32xbf16>
    %cst_88 = arith.constant dense<0.000000e+00> : vector<32x96xf32>
    %210 = tpu.matmul %207, %209, %cst_88 {dimension_numbers = #tpu.dot_dimension_numbers<[1], [1], [0], [0], [0, 0, 1, 0], [], []>} : vector<32x32xbf16>, vector<96x32xbf16>, vector<32x96xf32> -> vector<32x96xf32>
    %c1_89 = arith.constant 1 : index
    %c0_90 = arith.constant 0 : index
    %c0_91 = arith.constant 0 : index
    %211 = vector.load %arg5[%c1_89, %c0_90, %c0_91] : memref<2x1x96xf32, #tpu.memory_space<vmem>>, vector<1x1x96xf32>
    %212 = vector.shape_cast %211 : vector<1x1x96xf32> to vector<1x96xf32>
    %213 = vector.broadcast %212 : vector<1x96xf32> to vector<32x96xf32>
    %214 = arith.addf %210, %213 : vector<32x96xf32>
    %215 = vector.extract_strided_slice %214 {offsets = [0, 0], sizes = [32, 32], strides = [1, 1]} : vector<32x96xf32> to vector<32x32xf32>
    %cst_92 = arith.constant 2.500000e-01 : f32
    %216 = vector.broadcast %cst_92 : f32 to vector<32x32xf32>
    %217 = arith.mulf %215, %216 : vector<32x32xf32>
    %218 = arith.truncf %217 : vector<32x32xf32> to vector<32x32xbf16>
    %219 = vector.extract_strided_slice %214 {offsets = [0, 32], sizes = [32, 32], strides = [1, 1]} : vector<32x96xf32> to vector<32x32xf32>
    %220 = arith.truncf %219 : vector<32x32xf32> to vector<32x32xbf16>
    %221 = vector.extract_strided_slice %214 {offsets = [0, 64], sizes = [32, 32], strides = [1, 1]} : vector<32x96xf32> to vector<32x32xf32>
    %222 = arith.truncf %221 : vector<32x32xf32> to vector<32x32xbf16>
    %c1_93 = arith.constant 1 : index
    %c0_94 = arith.constant 0 : index
    %c0_95 = arith.constant 0 : index
    %223 = vector.load %arg6[%c1_93, %c0_94, %c0_95] : memref<2x32x32xbf16, #tpu.memory_space<vmem>>, vector<1x32x32xbf16>
    %224 = vector.shape_cast %223 : vector<1x32x32xbf16> to vector<32x32xbf16>
    %c1_96 = arith.constant 1 : index
    %c0_97 = arith.constant 0 : index
    %c0_98 = arith.constant 0 : index
    %225 = vector.load %arg7[%c1_96, %c0_97, %c0_98] : memref<2x1x32xf32, #tpu.memory_space<vmem>>, vector<1x1x32xf32>
    %226 = vector.shape_cast %225 : vector<1x1x32xf32> to vector<1x32xf32>
    %227 = vector.extract_strided_slice %0 {offsets = [0, 0], sizes = [1, 16], strides = [1, 1]} : vector<2x16xf32> to vector<1x16xf32>
    %cst_99 = arith.constant 5.000000e-01 : f32
    %228 = vector.broadcast %cst_99 : f32 to vector<1x16xf32>
    %229 = arith.cmpf ogt, %227, %228 : vector<1x16xf32>
    %230 = vector.extract_strided_slice %218 {offsets = [0, 0], sizes = [16, 32], strides = [1, 1]} : vector<32x32xbf16> to vector<16x32xbf16>
    %231 = vector.extract_strided_slice %220 {offsets = [0, 0], sizes = [16, 32], strides = [1, 1]} : vector<32x32xbf16> to vector<16x32xbf16>
    %232 = vector.extract_strided_slice %222 {offsets = [0, 0], sizes = [16, 32], strides = [1, 1]} : vector<32x32xbf16> to vector<16x32xbf16>
    %233 = vector.extract_strided_slice %230 {offsets = [0, 0], sizes = [16, 16], strides = [1, 1]} : vector<16x32xbf16> to vector<16x16xbf16>
    %234 = vector.extract_strided_slice %231 {offsets = [0, 0], sizes = [16, 16], strides = [1, 1]} : vector<16x32xbf16> to vector<16x16xbf16>
    %235 = vector.extract_strided_slice %232 {offsets = [0, 0], sizes = [16, 16], strides = [1, 1]} : vector<16x32xbf16> to vector<16x16xbf16>
    %cst_100 = arith.constant dense<0.000000e+00> : vector<16x16xf32>
    %236 = tpu.matmul %233, %234, %cst_100 {dimension_numbers = #tpu.dot_dimension_numbers<[1], [1], [0], [0], [0, 0, 1, 0], [], []>} : vector<16x16xbf16>, vector<16x16xbf16>, vector<16x16xf32> -> vector<16x16xf32>
    %cst_101 = arith.constant -1.000000e+30 : f32
    %237 = vector.shape_cast %229 : vector<1x16xi1> to vector<1x16xi1>
    %238 = vector.broadcast %237 : vector<1x16xi1> to vector<16x16xi1>
    %239 = vector.broadcast %cst_101 : f32 to vector<16x16xf32>
    %240 = arith.select %238, %236, %239 : vector<16x16xi1>, vector<16x16xf32>
    %cst_102 = arith.constant dense<0xFF800000> : vector<16xf32>
    %241 = vector.multi_reduction <maximumf>, %240, %cst_102 [1] : vector<16x16xf32> to vector<16xf32>
    %242 = vector.shape_cast %241 : vector<16xf32> to vector<16x1xf32>
    %243 = vector.broadcast %242 : vector<16x1xf32> to vector<16x16xf32>
    %244 = arith.subf %240, %243 : vector<16x16xf32>
    %245 = math.exp %244 : vector<16x16xf32>
    %cst_103 = arith.constant dense<0.000000e+00> : vector<16xf32>
    %246 = vector.multi_reduction <add>, %245, %cst_103 [1] : vector<16x16xf32> to vector<16xf32>
    %247 = vector.shape_cast %246 : vector<16xf32> to vector<16x1xf32>
    %248 = tpu.reciprocal %247 {approx = true} : vector<16x1xf32> -> vector<16x1xf32>
    %249 = vector.broadcast %248 : vector<16x1xf32> to vector<16x16xf32>
    %250 = arith.mulf %245, %249 : vector<16x16xf32>
    %251 = arith.truncf %250 : vector<16x16xf32> to vector<16x16xbf16>
    %cst_104 = arith.constant dense<0.000000e+00> : vector<16x16xf32>
    %252 = tpu.matmul %251, %235, %cst_104 {dimension_numbers = #tpu.dot_dimension_numbers<[1], [0], [0], [1], [0, 0, 1, 1], [], []>} : vector<16x16xbf16>, vector<16x16xbf16>, vector<16x16xf32> -> vector<16x16xf32>
    %253 = arith.truncf %252 : vector<16x16xf32> to vector<16x16xbf16>
    %254 = vector.extract_strided_slice %224 {offsets = [0, 0], sizes = [32, 16], strides = [1, 1]} : vector<32x32xbf16> to vector<32x16xbf16>
    %cst_105 = arith.constant dense<0.000000e+00> : vector<16x32xf32>
    %255 = tpu.matmul %253, %254, %cst_105 {dimension_numbers = #tpu.dot_dimension_numbers<[1], [1], [0], [0], [0, 0, 1, 0], [], []>} : vector<16x16xbf16>, vector<32x16xbf16>, vector<16x32xf32> -> vector<16x32xf32>
    %256 = vector.broadcast %226 : vector<1x32xf32> to vector<16x32xf32>
    %257 = arith.addf %256, %255 : vector<16x32xf32>
    %258 = vector.extract_strided_slice %230 {offsets = [0, 16], sizes = [16, 16], strides = [1, 1]} : vector<16x32xbf16> to vector<16x16xbf16>
    %259 = vector.extract_strided_slice %231 {offsets = [0, 16], sizes = [16, 16], strides = [1, 1]} : vector<16x32xbf16> to vector<16x16xbf16>
    %260 = vector.extract_strided_slice %232 {offsets = [0, 16], sizes = [16, 16], strides = [1, 1]} : vector<16x32xbf16> to vector<16x16xbf16>
    %cst_106 = arith.constant dense<0.000000e+00> : vector<16x16xf32>
    %261 = tpu.matmul %258, %259, %cst_106 {dimension_numbers = #tpu.dot_dimension_numbers<[1], [1], [0], [0], [0, 0, 1, 0], [], []>} : vector<16x16xbf16>, vector<16x16xbf16>, vector<16x16xf32> -> vector<16x16xf32>
    %cst_107 = arith.constant -1.000000e+30 : f32
    %262 = vector.shape_cast %229 : vector<1x16xi1> to vector<1x16xi1>
    %263 = vector.broadcast %262 : vector<1x16xi1> to vector<16x16xi1>
    %264 = vector.broadcast %cst_107 : f32 to vector<16x16xf32>
    %265 = arith.select %263, %261, %264 : vector<16x16xi1>, vector<16x16xf32>
    %cst_108 = arith.constant dense<0xFF800000> : vector<16xf32>
    %266 = vector.multi_reduction <maximumf>, %265, %cst_108 [1] : vector<16x16xf32> to vector<16xf32>
    %267 = vector.shape_cast %266 : vector<16xf32> to vector<16x1xf32>
    %268 = vector.broadcast %267 : vector<16x1xf32> to vector<16x16xf32>
    %269 = arith.subf %265, %268 : vector<16x16xf32>
    %270 = math.exp %269 : vector<16x16xf32>
    %cst_109 = arith.constant dense<0.000000e+00> : vector<16xf32>
    %271 = vector.multi_reduction <add>, %270, %cst_109 [1] : vector<16x16xf32> to vector<16xf32>
    %272 = vector.shape_cast %271 : vector<16xf32> to vector<16x1xf32>
    %273 = tpu.reciprocal %272 {approx = true} : vector<16x1xf32> -> vector<16x1xf32>
    %274 = vector.broadcast %273 : vector<16x1xf32> to vector<16x16xf32>
    %275 = arith.mulf %270, %274 : vector<16x16xf32>
    %276 = arith.truncf %275 : vector<16x16xf32> to vector<16x16xbf16>
    %cst_110 = arith.constant dense<0.000000e+00> : vector<16x16xf32>
    %277 = tpu.matmul %276, %260, %cst_110 {dimension_numbers = #tpu.dot_dimension_numbers<[1], [0], [0], [1], [0, 0, 1, 1], [], []>} : vector<16x16xbf16>, vector<16x16xbf16>, vector<16x16xf32> -> vector<16x16xf32>
    %278 = arith.truncf %277 : vector<16x16xf32> to vector<16x16xbf16>
    %279 = vector.extract_strided_slice %224 {offsets = [0, 16], sizes = [32, 16], strides = [1, 1]} : vector<32x32xbf16> to vector<32x16xbf16>
    %cst_111 = arith.constant dense<0.000000e+00> : vector<16x32xf32>
    %280 = tpu.matmul %278, %279, %cst_111 {dimension_numbers = #tpu.dot_dimension_numbers<[1], [1], [0], [0], [0, 0, 1, 0], [], []>} : vector<16x16xbf16>, vector<32x16xbf16>, vector<16x32xf32> -> vector<16x32xf32>
    %281 = arith.addf %257, %280 : vector<16x32xf32>
    %c0_112 = arith.constant 0 : index
    %c0_113 = arith.constant 0 : index
    %282 = vector.load %arg17[%c0_112, %c0_113] : memref<32x32xf32, #tpu.memory_space<vmem>>, vector<16x32xf32>
    tpu.vector_store %arg17[%c0_112, %c0_113], %281 {strides = array<i32>} : memref<32x32xf32, #tpu.memory_space<vmem>>, vector<16x32xf32>,
    %283 = vector.extract_strided_slice %0 {offsets = [1, 0], sizes = [1, 16], strides = [1, 1]} : vector<2x16xf32> to vector<1x16xf32>
    %cst_114 = arith.constant 5.000000e-01 : f32
    %284 = vector.broadcast %cst_114 : f32 to vector<1x16xf32>
    %285 = arith.cmpf ogt, %283, %284 : vector<1x16xf32>
    %286 = vector.extract_strided_slice %218 {offsets = [16, 0], sizes = [16, 32], strides = [1, 1]} : vector<32x32xbf16> to vector<16x32xbf16>
    %287 = vector.extract_strided_slice %220 {offsets = [16, 0], sizes = [16, 32], strides = [1, 1]} : vector<32x32xbf16> to vector<16x32xbf16>
    %288 = vector.extract_strided_slice %222 {offsets = [16, 0], sizes = [16, 32], strides = [1, 1]} : vector<32x32xbf16> to vector<16x32xbf16>
    %289 = vector.extract_strided_slice %286 {offsets = [0, 0], sizes = [16, 16], strides = [1, 1]} : vector<16x32xbf16> to vector<16x16xbf16>
    %290 = vector.extract_strided_slice %287 {offsets = [0, 0], sizes = [16, 16], strides = [1, 1]} : vector<16x32xbf16> to vector<16x16xbf16>
    %291 = vector.extract_strided_slice %288 {offsets = [0, 0], sizes = [16, 16], strides = [1, 1]} : vector<16x32xbf16> to vector<16x16xbf16>
    %cst_115 = arith.constant dense<0.000000e+00> : vector<16x16xf32>
    %292 = tpu.matmul %289, %290, %cst_115 {dimension_numbers = #tpu.dot_dimension_numbers<[1], [1], [0], [0], [0, 0, 1, 0], [], []>} : vector<16x16xbf16>, vector<16x16xbf16>, vector<16x16xf32> -> vector<16x16xf32>
    %cst_116 = arith.constant -1.000000e+30 : f32
    %293 = vector.shape_cast %285 : vector<1x16xi1> to vector<1x16xi1>
    %294 = vector.broadcast %293 : vector<1x16xi1> to vector<16x16xi1>
    %295 = vector.broadcast %cst_116 : f32 to vector<16x16xf32>
    %296 = arith.select %294, %292, %295 : vector<16x16xi1>, vector<16x16xf32>
    %cst_117 = arith.constant dense<0xFF800000> : vector<16xf32>
    %297 = vector.multi_reduction <maximumf>, %296, %cst_117 [1] : vector<16x16xf32> to vector<16xf32>
    %298 = vector.shape_cast %297 : vector<16xf32> to vector<16x1xf32>
    %299 = vector.broadcast %298 : vector<16x1xf32> to vector<16x16xf32>
    %300 = arith.subf %296, %299 : vector<16x16xf32>
    %301 = math.exp %300 : vector<16x16xf32>
    %cst_118 = arith.constant dense<0.000000e+00> : vector<16xf32>
    %302 = vector.multi_reduction <add>, %301, %cst_118 [1] : vector<16x16xf32> to vector<16xf32>
    %303 = vector.shape_cast %302 : vector<16xf32> to vector<16x1xf32>
    %304 = tpu.reciprocal %303 {approx = true} : vector<16x1xf32> -> vector<16x1xf32>
    %305 = vector.broadcast %304 : vector<16x1xf32> to vector<16x16xf32>
    %306 = arith.mulf %301, %305 : vector<16x16xf32>
    %307 = arith.truncf %306 : vector<16x16xf32> to vector<16x16xbf16>
    %cst_119 = arith.constant dense<0.000000e+00> : vector<16x16xf32>
    %308 = tpu.matmul %307, %291, %cst_119 {dimension_numbers = #tpu.dot_dimension_numbers<[1], [0], [0], [1], [0, 0, 1, 1], [], []>} : vector<16x16xbf16>, vector<16x16xbf16>, vector<16x16xf32> -> vector<16x16xf32>
    %309 = arith.truncf %308 : vector<16x16xf32> to vector<16x16xbf16>
    %310 = vector.extract_strided_slice %224 {offsets = [0, 0], sizes = [32, 16], strides = [1, 1]} : vector<32x32xbf16> to vector<32x16xbf16>
    %cst_120 = arith.constant dense<0.000000e+00> : vector<16x32xf32>
    %311 = tpu.matmul %309, %310, %cst_120 {dimension_numbers = #tpu.dot_dimension_numbers<[1], [1], [0], [0], [0, 0, 1, 0], [], []>} : vector<16x16xbf16>, vector<32x16xbf16>, vector<16x32xf32> -> vector<16x32xf32>
    %312 = vector.broadcast %226 : vector<1x32xf32> to vector<16x32xf32>
    %313 = arith.addf %312, %311 : vector<16x32xf32>
    %314 = vector.extract_strided_slice %286 {offsets = [0, 16], sizes = [16, 16], strides = [1, 1]} : vector<16x32xbf16> to vector<16x16xbf16>
    %315 = vector.extract_strided_slice %287 {offsets = [0, 16], sizes = [16, 16], strides = [1, 1]} : vector<16x32xbf16> to vector<16x16xbf16>
    %316 = vector.extract_strided_slice %288 {offsets = [0, 16], sizes = [16, 16], strides = [1, 1]} : vector<16x32xbf16> to vector<16x16xbf16>
    %cst_121 = arith.constant dense<0.000000e+00> : vector<16x16xf32>
    %317 = tpu.matmul %314, %315, %cst_121 {dimension_numbers = #tpu.dot_dimension_numbers<[1], [1], [0], [0], [0, 0, 1, 0], [], []>} : vector<16x16xbf16>, vector<16x16xbf16>, vector<16x16xf32> -> vector<16x16xf32>
    %cst_122 = arith.constant -1.000000e+30 : f32
    %318 = vector.shape_cast %285 : vector<1x16xi1> to vector<1x16xi1>
    %319 = vector.broadcast %318 : vector<1x16xi1> to vector<16x16xi1>
    %320 = vector.broadcast %cst_122 : f32 to vector<16x16xf32>
    %321 = arith.select %319, %317, %320 : vector<16x16xi1>, vector<16x16xf32>
    %cst_123 = arith.constant dense<0xFF800000> : vector<16xf32>
    %322 = vector.multi_reduction <maximumf>, %321, %cst_123 [1] : vector<16x16xf32> to vector<16xf32>
    %323 = vector.shape_cast %322 : vector<16xf32> to vector<16x1xf32>
    %324 = vector.broadcast %323 : vector<16x1xf32> to vector<16x16xf32>
    %325 = arith.subf %321, %324 : vector<16x16xf32>
    %326 = math.exp %325 : vector<16x16xf32>
    %cst_124 = arith.constant dense<0.000000e+00> : vector<16xf32>
    %327 = vector.multi_reduction <add>, %326, %cst_124 [1] : vector<16x16xf32> to vector<16xf32>
    %328 = vector.shape_cast %327 : vector<16xf32> to vector<16x1xf32>
    %329 = tpu.reciprocal %328 {approx = true} : vector<16x1xf32> -> vector<16x1xf32>
    %330 = vector.broadcast %329 : vector<16x1xf32> to vector<16x16xf32>
    %331 = arith.mulf %326, %330 : vector<16x16xf32>
    %332 = arith.truncf %331 : vector<16x16xf32> to vector<16x16xbf16>
    %cst_125 = arith.constant dense<0.000000e+00> : vector<16x16xf32>
    %333 = tpu.matmul %332, %316, %cst_125 {dimension_numbers = #tpu.dot_dimension_numbers<[1], [0], [0], [1], [0, 0, 1, 1], [], []>} : vector<16x16xbf16>, vector<16x16xbf16>, vector<16x16xf32> -> vector<16x16xf32>
    %334 = arith.truncf %333 : vector<16x16xf32> to vector<16x16xbf16>
    %335 = vector.extract_strided_slice %224 {offsets = [0, 16], sizes = [32, 16], strides = [1, 1]} : vector<32x32xbf16> to vector<32x16xbf16>
    %cst_126 = arith.constant dense<0.000000e+00> : vector<16x32xf32>
    %336 = tpu.matmul %334, %335, %cst_126 {dimension_numbers = #tpu.dot_dimension_numbers<[1], [1], [0], [0], [0, 0, 1, 0], [], []>} : vector<16x16xbf16>, vector<32x16xbf16>, vector<16x32xf32> -> vector<16x32xf32>
    %337 = arith.addf %313, %336 : vector<16x32xf32>
    %c16_127 = arith.constant 16 : index
    %c0_128 = arith.constant 0 : index
    %338 = vector.load %arg17[%c16_127, %c0_128] : memref<32x32xf32, #tpu.memory_space<vmem>>, vector<16x32xf32>
    tpu.vector_store %arg17[%c16_127, %c0_128], %337 {strides = array<i32>} : memref<32x32xf32, #tpu.memory_space<vmem>>, vector<16x32xf32>,
    %c0_129 = arith.constant 0 : index
    %c0_130 = arith.constant 0 : index
    %339 = vector.load %arg17[%c0_129, %c0_130] : memref<32x32xf32, #tpu.memory_space<vmem>>, vector<32x32xf32>
    %340 = arith.addf %206, %339 : vector<32x32xf32>
    %c1_131 = arith.constant 1 : index
    %c0_132 = arith.constant 0 : index
    %c0_133 = arith.constant 0 : index
    %341 = vector.load %arg8[%c1_131, %c0_132, %c0_133] : memref<2x1x32xf32, #tpu.memory_space<vmem>>, vector<1x1x32xf32>
    %342 = vector.shape_cast %341 : vector<1x1x32xf32> to vector<1x32xf32>
    %c1_134 = arith.constant 1 : index
    %c0_135 = arith.constant 0 : index
    %c0_136 = arith.constant 0 : index
    %343 = vector.load %arg9[%c1_134, %c0_135, %c0_136] : memref<2x1x32xf32, #tpu.memory_space<vmem>>, vector<1x1x32xf32>
    %344 = vector.shape_cast %343 : vector<1x1x32xf32> to vector<1x32xf32>
    %cst_137 = arith.constant dense<0.000000e+00> : vector<32xf32>
    %345 = vector.multi_reduction <add>, %340, %cst_137 [1] : vector<32x32xf32> to vector<32xf32>
    %346 = vector.shape_cast %345 : vector<32xf32> to vector<32x1xf32>
    %cst_138 = arith.constant 3.200000e+01 : f32
    %347 = vector.broadcast %cst_138 : f32 to vector<32x1xf32>
    %348 = arith.divf %346, %347 : vector<32x1xf32>
    %349 = vector.broadcast %348 : vector<32x1xf32> to vector<32x32xf32>
    %350 = arith.subf %340, %349 : vector<32x32xf32>
    %351 = arith.mulf %350, %350 : vector<32x32xf32>
    %cst_139 = arith.constant dense<0.000000e+00> : vector<32xf32>
    %352 = vector.multi_reduction <add>, %351, %cst_139 [1] : vector<32x32xf32> to vector<32xf32>
    %353 = vector.shape_cast %352 : vector<32xf32> to vector<32x1xf32>
    %cst_140 = arith.constant 3.200000e+01 : f32
    %354 = vector.broadcast %cst_140 : f32 to vector<32x1xf32>
    %355 = arith.divf %353, %354 : vector<32x1xf32>
    %cst_141 = arith.constant 9.99999974E-6 : f32
    %356 = vector.broadcast %cst_141 : f32 to vector<32x1xf32>
    %357 = arith.addf %355, %356 : vector<32x1xf32>
    %358 = math.rsqrt %357 : vector<32x1xf32>
    %359 = vector.broadcast %358 : vector<32x1xf32> to vector<32x32xf32>
    %360 = arith.mulf %350, %359 : vector<32x32xf32>
    %361 = vector.broadcast %342 : vector<1x32xf32> to vector<32x32xf32>
    %362 = arith.mulf %360, %361 : vector<32x32xf32>
    %363 = vector.broadcast %344 : vector<1x32xf32> to vector<32x32xf32>
    %364 = arith.addf %362, %363 : vector<32x32xf32>
    %365 = arith.truncf %364 : vector<32x32xf32> to vector<32x32xbf16>
    %c1_142 = arith.constant 1 : index
    %c0_143 = arith.constant 0 : index
    %c0_144 = arith.constant 0 : index
    %366 = vector.load %arg10[%c1_142, %c0_143, %c0_144] : memref<2x64x32xbf16, #tpu.memory_space<vmem>>, vector<1x64x32xbf16>
    %367 = vector.shape_cast %366 : vector<1x64x32xbf16> to vector<64x32xbf16>
    %cst_145 = arith.constant dense<0.000000e+00> : vector<32x64xf32>
    %368 = tpu.matmul %365, %367, %cst_145 {dimension_numbers = #tpu.dot_dimension_numbers<[1], [1], [0], [0], [0, 0, 1, 0], [], []>} : vector<32x32xbf16>, vector<64x32xbf16>, vector<32x64xf32> -> vector<32x64xf32>
    %c1_146 = arith.constant 1 : index
    %c0_147 = arith.constant 0 : index
    %c0_148 = arith.constant 0 : index
    %369 = vector.load %arg11[%c1_146, %c0_147, %c0_148] : memref<2x1x64xf32, #tpu.memory_space<vmem>>, vector<1x1x64xf32>
    %370 = vector.shape_cast %369 : vector<1x1x64xf32> to vector<1x64xf32>
    %371 = vector.broadcast %370 : vector<1x64xf32> to vector<32x64xf32>
    %372 = arith.addf %368, %371 : vector<32x64xf32>
    %cst_149 = arith.constant 0.000000e+00 : f32
    %373 = vector.broadcast %cst_149 : f32 to vector<32x64xf32>
    %374 = arith.maximumf %372, %373 : vector<32x64xf32>
    %375 = arith.truncf %374 : vector<32x64xf32> to vector<32x64xbf16>
    %c1_150 = arith.constant 1 : index
    %c0_151 = arith.constant 0 : index
    %c0_152 = arith.constant 0 : index
    %376 = vector.load %arg12[%c1_150, %c0_151, %c0_152] : memref<2x32x64xbf16, #tpu.memory_space<vmem>>, vector<1x32x64xbf16>
    %377 = vector.shape_cast %376 : vector<1x32x64xbf16> to vector<32x64xbf16>
    %cst_153 = arith.constant dense<0.000000e+00> : vector<32x32xf32>
    %378 = tpu.matmul %375, %377, %cst_153 {dimension_numbers = #tpu.dot_dimension_numbers<[1], [1], [0], [0], [0, 0, 1, 0], [], []>} : vector<32x64xbf16>, vector<32x64xbf16>, vector<32x32xf32> -> vector<32x32xf32>
    %c1_154 = arith.constant 1 : index
    %c0_155 = arith.constant 0 : index
    %c0_156 = arith.constant 0 : index
    %379 = vector.load %arg13[%c1_154, %c0_155, %c0_156] : memref<2x1x32xf32, #tpu.memory_space<vmem>>, vector<1x1x32xf32>
    %380 = vector.shape_cast %379 : vector<1x1x32xf32> to vector<1x32xf32>
    %381 = vector.broadcast %380 : vector<1x32xf32> to vector<32x32xf32>
    %382 = arith.addf %378, %381 : vector<32x32xf32>
    %383 = arith.addf %364, %382 : vector<32x32xf32>
    %c1_157 = arith.constant 1 : index
    %c0_158 = arith.constant 0 : index
    %c0_159 = arith.constant 0 : index
    %384 = vector.load %arg14[%c1_157, %c0_158, %c0_159] : memref<2x1x32xf32, #tpu.memory_space<vmem>>, vector<1x1x32xf32>
    %385 = vector.shape_cast %384 : vector<1x1x32xf32> to vector<1x32xf32>
    %c1_160 = arith.constant 1 : index
    %c0_161 = arith.constant 0 : index
    %c0_162 = arith.constant 0 : index
    %386 = vector.load %arg15[%c1_160, %c0_161, %c0_162] : memref<2x1x32xf32, #tpu.memory_space<vmem>>, vector<1x1x32xf32>
    %387 = vector.shape_cast %386 : vector<1x1x32xf32> to vector<1x32xf32>
    %cst_163 = arith.constant dense<0.000000e+00> : vector<32xf32>
    %388 = vector.multi_reduction <add>, %383, %cst_163 [1] : vector<32x32xf32> to vector<32xf32>
    %389 = vector.shape_cast %388 : vector<32xf32> to vector<32x1xf32>
    %cst_164 = arith.constant 3.200000e+01 : f32
    %390 = vector.broadcast %cst_164 : f32 to vector<32x1xf32>
    %391 = arith.divf %389, %390 : vector<32x1xf32>
    %392 = vector.broadcast %391 : vector<32x1xf32> to vector<32x32xf32>
    %393 = arith.subf %383, %392 : vector<32x32xf32>
    %394 = arith.mulf %393, %393 : vector<32x32xf32>
    %cst_165 = arith.constant dense<0.000000e+00> : vector<32xf32>
    %395 = vector.multi_reduction <add>, %394, %cst_165 [1] : vector<32x32xf32> to vector<32xf32>
    %396 = vector.shape_cast %395 : vector<32xf32> to vector<32x1xf32>
    %cst_166 = arith.constant 3.200000e+01 : f32
    %397 = vector.broadcast %cst_166 : f32 to vector<32x1xf32>
    %398 = arith.divf %396, %397 : vector<32x1xf32>
    %cst_167 = arith.constant 9.99999974E-6 : f32
    %399 = vector.broadcast %cst_167 : f32 to vector<32x1xf32>
    %400 = arith.addf %398, %399 : vector<32x1xf32>
    %401 = math.rsqrt %400 : vector<32x1xf32>
    %402 = vector.broadcast %401 : vector<32x1xf32> to vector<32x32xf32>
    %403 = arith.mulf %393, %402 : vector<32x32xf32>
    %404 = vector.broadcast %385 : vector<1x32xf32> to vector<32x32xf32>
    %405 = arith.mulf %403, %404 : vector<32x32xf32>
    %406 = vector.broadcast %387 : vector<1x32xf32> to vector<32x32xf32>
    %407 = arith.addf %405, %406 : vector<32x32xf32>
    %408 = vector.broadcast %1 : vector<32x1xf32> to vector<32x32xf32>
    %409 = arith.mulf %407, %408 : vector<32x32xf32>
    %410 = arith.truncf %409 : vector<32x32xf32> to vector<32x32xbf16>
    %c0_168 = arith.constant 0 : index
    %c0_169 = arith.constant 0 : index
    %411 = vector.load %arg16[%c0_168, %c0_169] : memref<32x32xbf16, #tpu.memory_space<vmem>>, vector<32x32xbf16>
    tpu.vector_store %arg16[%c0_168, %c0_169], %410 {strides = array<i32>} : memref<32x32xbf16, #tpu.memory_space<vmem>>, vector<32x32xbf16>,
    return
  }
  func.func @transform_0(%arg0: i32) -> (i32, i32) {
    %c0_i32 = arith.constant 0 : i32
    %c0_i32_0 = arith.constant 0 : i32
    %c0_i32_1 = arith.constant 0 : i32
    return %c0_i32, %c0_i32_0 : i32, i32
  }
  func.func @transform_1(%arg0: i32) -> (i32, i32) {
    %c0_i32 = arith.constant 0 : i32
    %c0_i32_0 = arith.constant 0 : i32
    %c0_i32_1 = arith.constant 0 : i32
    return %c0_i32, %c0_i32_0 : i32, i32
  }
  func.func @transform_2(%arg0: i32) -> (i32, i32) {
    %c0_i32 = arith.constant 0 : i32
    %c0_i32_0 = arith.constant 0 : i32
    %c0_i32_1 = arith.constant 0 : i32
    return %c0_i32, %c0_i32_0 : i32, i32
  }
  func.func @transform_3(%arg0: i32) -> (i32, i32, i32) {
    %c0_i32 = arith.constant 0 : i32
    %c0_i32_0 = arith.constant 0 : i32
    %c0_i32_1 = arith.constant 0 : i32
    %c0_i32_2 = arith.constant 0 : i32
    return %c0_i32, %c0_i32_0, %c0_i32_1 : i32, i32, i32
  }
  func.func @transform_4(%arg0: i32) -> (i32, i32, i32) {
    %c0_i32 = arith.constant 0 : i32
    %c0_i32_0 = arith.constant 0 : i32
    %c0_i32_1 = arith.constant 0 : i32
    %c0_i32_2 = arith.constant 0 : i32
    return %c0_i32, %c0_i32_0, %c0_i32_1 : i32, i32, i32
  }
  func.func @transform_5(%arg0: i32) -> (i32, i32, i32) {
    %c0_i32 = arith.constant 0 : i32
    %c0_i32_0 = arith.constant 0 : i32
    %c0_i32_1 = arith.constant 0 : i32
    %c0_i32_2 = arith.constant 0 : i32
    return %c0_i32, %c0_i32_0, %c0_i32_1 : i32, i32, i32
  }
  func.func @transform_6(%arg0: i32) -> (i32, i32, i32) {
    %c0_i32 = arith.constant 0 : i32
    %c0_i32_0 = arith.constant 0 : i32
    %c0_i32_1 = arith.constant 0 : i32
    %c0_i32_2 = arith.constant 0 : i32
    return %c0_i32, %c0_i32_0, %c0_i32_1 : i32, i32, i32
  }
  func.func @transform_7(%arg0: i32) -> (i32, i32, i32) {
    %c0_i32 = arith.constant 0 : i32
    %c0_i32_0 = arith.constant 0 : i32
    %c0_i32_1 = arith.constant 0 : i32
    %c0_i32_2 = arith.constant 0 : i32
    return %c0_i32, %c0_i32_0, %c0_i32_1 : i32, i32, i32
  }
  func.func @transform_8(%arg0: i32) -> (i32, i32, i32) {
    %c0_i32 = arith.constant 0 : i32
    %c0_i32_0 = arith.constant 0 : i32
    %c0_i32_1 = arith.constant 0 : i32
    %c0_i32_2 = arith.constant 0 : i32
    return %c0_i32, %c0_i32_0, %c0_i32_1 : i32, i32, i32
  }
  func.func @transform_9(%arg0: i32) -> (i32, i32, i32) {
    %c0_i32 = arith.constant 0 : i32
    %c0_i32_0 = arith.constant 0 : i32
    %c0_i32_1 = arith.constant 0 : i32
    %c0_i32_2 = arith.constant 0 : i32
    return %c0_i32, %c0_i32_0, %c0_i32_1 : i32, i32, i32
  }
  func.func @transform_10(%arg0: i32) -> (i32, i32, i32) {
    %c0_i32 = arith.constant 0 : i32
    %c0_i32_0 = arith.constant 0 : i32
    %c0_i32_1 = arith.constant 0 : i32
    %c0_i32_2 = arith.constant 0 : i32
    return %c0_i32, %c0_i32_0, %c0_i32_1 : i32, i32, i32
  }
  func.func @transform_11(%arg0: i32) -> (i32, i32, i32) {
    %c0_i32 = arith.constant 0 : i32
    %c0_i32_0 = arith.constant 0 : i32
    %c0_i32_1 = arith.constant 0 : i32
    %c0_i32_2 = arith.constant 0 : i32
    return %c0_i32, %c0_i32_0, %c0_i32_1 : i32, i32, i32
  }
  func.func @transform_12(%arg0: i32) -> (i32, i32, i32) {
    %c0_i32 = arith.constant 0 : i32
    %c0_i32_0 = arith.constant 0 : i32
    %c0_i32_1 = arith.constant 0 : i32
    %c0_i32_2 = arith.constant 0 : i32
    return %c0_i32, %c0_i32_0, %c0_i32_1 : i32, i32, i32
  }
  func.func @transform_13(%arg0: i32) -> (i32, i32, i32) {
    %c0_i32 = arith.constant 0 : i32
    %c0_i32_0 = arith.constant 0 : i32
    %c0_i32_1 = arith.constant 0 : i32
    %c0_i32_2 = arith.constant 0 : i32
    return %c0_i32, %c0_i32_0, %c0_i32_1 : i32, i32, i32
  }
  func.func @transform_14(%arg0: i32) -> (i32, i32, i32) {
    %c0_i32 = arith.constant 0 : i32
    %c0_i32_0 = arith.constant 0 : i32
    %c0_i32_1 = arith.constant 0 : i32
    %c0_i32_2 = arith.constant 0 : i32
    return %c0_i32, %c0_i32_0, %c0_i32_1 : i32, i32, i32
  }
  func.func @transform_15(%arg0: i32) -> (i32, i32) {
    %c0_i32 = arith.constant 0 : i32
    %c0_i32_0 = arith.constant 0 : i32
    %c0_i32_1 = arith.constant 0 : i32
    return %c0_i32, %c0_i32_0 : i32, i32
  }
}

module attributes {stable_mosaic.version = 11 : i64} {
  func.func @_decoder_stack_kernel(%arg0: i32, %arg1: memref<16x32xbf16, #tpu.memory_space<vmem>>, %arg2: memref<32x32xbf16, #tpu.memory_space<vmem>>, %arg3: memref<2x16xf32, #tpu.memory_space<vmem>>, %arg4: memref<2x96x32xbf16, #tpu.memory_space<vmem>>, %arg5: memref<2x1x96xf32, #tpu.memory_space<vmem>>, %arg6: memref<2x32x32xbf16, #tpu.memory_space<vmem>>, %arg7: memref<2x1x32xf32, #tpu.memory_space<vmem>>, %arg8: memref<2x1x32xf32, #tpu.memory_space<vmem>>, %arg9: memref<2x1x32xf32, #tpu.memory_space<vmem>>, %arg10: memref<2x96x32xbf16, #tpu.memory_space<vmem>>, %arg11: memref<2x1x96xf32, #tpu.memory_space<vmem>>, %arg12: memref<2x32x32xbf16, #tpu.memory_space<vmem>>, %arg13: memref<2x1x32xf32, #tpu.memory_space<vmem>>, %arg14: memref<2x1x32xf32, #tpu.memory_space<vmem>>, %arg15: memref<2x1x32xf32, #tpu.memory_space<vmem>>, %arg16: memref<2x64x32xbf16, #tpu.memory_space<vmem>>, %arg17: memref<2x1x64xf32, #tpu.memory_space<vmem>>, %arg18: memref<2x32x64xbf16, #tpu.memory_space<vmem>>, %arg19: memref<2x1x32xf32, #tpu.memory_space<vmem>>, %arg20: memref<2x1x32xf32, #tpu.memory_space<vmem>>, %arg21: memref<2x1x32xf32, #tpu.memory_space<vmem>>, %arg22: memref<16x32xbf16, #tpu.memory_space<vmem>>, %arg23: memref<16x32xf32, #tpu.memory_space<vmem>>) attributes {dimension_semantics = [#tpu.dimension_semantics<arbitrary>], iteration_bounds = array<i64: 1>, scalar_prefetch = 0 : i64, scratch_operands = 1 : i64, tpu.core_type = #tpu.core_type<tc>, window_params = [{pipeline_mode = #tpu.pipeline_mode<synchronous>, transform_indices = @transform_0, window_bounds = array<i64: 16, 32>}, {pipeline_mode = #tpu.pipeline_mode<synchronous>, transform_indices = @transform_1, window_bounds = array<i64: 32, 32>}, {pipeline_mode = #tpu.pipeline_mode<synchronous>, transform_indices = @transform_2, window_bounds = array<i64: 2, 16>}, {pipeline_mode = #tpu.pipeline_mode<synchronous>, transform_indices = @transform_3, window_bounds = array<i64: 2, 96, 32>}, {pipeline_mode = #tpu.pipeline_mode<synchronous>, transform_indices = @transform_4, window_bounds = array<i64: 2, 1, 96>}, {pipeline_mode = #tpu.pipeline_mode<synchronous>, transform_indices = @transform_5, window_bounds = array<i64: 2, 32, 32>}, {pipeline_mode = #tpu.pipeline_mode<synchronous>, transform_indices = @transform_6, window_bounds = array<i64: 2, 1, 32>}, {pipeline_mode = #tpu.pipeline_mode<synchronous>, transform_indices = @transform_7, window_bounds = array<i64: 2, 1, 32>}, {pipeline_mode = #tpu.pipeline_mode<synchronous>, transform_indices = @transform_8, window_bounds = array<i64: 2, 1, 32>}, {pipeline_mode = #tpu.pipeline_mode<synchronous>, transform_indices = @transform_9, window_bounds = array<i64: 2, 96, 32>}, {pipeline_mode = #tpu.pipeline_mode<synchronous>, transform_indices = @transform_10, window_bounds = array<i64: 2, 1, 96>}, {pipeline_mode = #tpu.pipeline_mode<synchronous>, transform_indices = @transform_11, window_bounds = array<i64: 2, 32, 32>}, {pipeline_mode = #tpu.pipeline_mode<synchronous>, transform_indices = @transform_12, window_bounds = array<i64: 2, 1, 32>}, {pipeline_mode = #tpu.pipeline_mode<synchronous>, transform_indices = @transform_13, window_bounds = array<i64: 2, 1, 32>}, {pipeline_mode = #tpu.pipeline_mode<synchronous>, transform_indices = @transform_14, window_bounds = array<i64: 2, 1, 32>}, {pipeline_mode = #tpu.pipeline_mode<synchronous>, transform_indices = @transform_15, window_bounds = array<i64: 2, 64, 32>}, {pipeline_mode = #tpu.pipeline_mode<synchronous>, transform_indices = @transform_16, window_bounds = array<i64: 2, 1, 64>}, {pipeline_mode = #tpu.pipeline_mode<synchronous>, transform_indices = @transform_17, window_bounds = array<i64: 2, 32, 64>}, {pipeline_mode = #tpu.pipeline_mode<synchronous>, transform_indices = @transform_18, window_bounds = array<i64: 2, 1, 32>}, {pipeline_mode = #tpu.pipeline_mode<synchronous>, transform_indices = @transform_19, window_bounds = array<i64: 2, 1, 32>}, {pipeline_mode = #tpu.pipeline_mode<synchronous>, transform_indices = @transform_20, window_bounds = array<i64: 2, 1, 32>}, {pipeline_mode = #tpu.pipeline_mode<synchronous>, transform_indices = @transform_21, window_bounds = array<i64: 16, 32>}]} {
    %c0 = arith.constant 0 : index
    %c0_0 = arith.constant 0 : index
    %0 = vector.load %arg2[%c0, %c0_0] : memref<32x32xbf16, #tpu.memory_space<vmem>>, vector<32x32xbf16>
    %c0_1 = arith.constant 0 : index
    %c0_2 = arith.constant 0 : index
    %1 = vector.load %arg3[%c0_1, %c0_2] : memref<2x16xf32, #tpu.memory_space<vmem>>, vector<2x16xf32>
    %2 = tpu.iota {dimensions = array<i32: 0>} : vector<8x8xi32>
    %3 = tpu.iota {dimensions = array<i32: 1>} : vector<8x8xi32>
    %4 = arith.cmpi sge, %2, %3 : vector<8x8xi32>
    %c0_3 = arith.constant 0 : index
    %c0_4 = arith.constant 0 : index
    %5 = vector.load %arg1[%c0_3, %c0_4] : memref<16x32xbf16, #tpu.memory_space<vmem>>, vector<16x32xbf16>
    %6 = arith.extf %5 : vector<16x32xbf16> to vector<16x32xf32>
    %7 = arith.truncf %6 : vector<16x32xf32> to vector<16x32xbf16>
    %c0_5 = arith.constant 0 : index
    %c0_6 = arith.constant 0 : index
    %c0_7 = arith.constant 0 : index
    %8 = vector.load %arg4[%c0_5, %c0_6, %c0_7] : memref<2x96x32xbf16, #tpu.memory_space<vmem>>, vector<1x96x32xbf16>
    %9 = vector.shape_cast %8 : vector<1x96x32xbf16> to vector<96x32xbf16>
    %cst = arith.constant dense<0.000000e+00> : vector<16x96xf32>
    %10 = tpu.matmul %7, %9, %cst {dimension_numbers = #tpu.dot_dimension_numbers<[1], [1], [0], [0], [0, 0, 1, 0], [], []>} : vector<16x32xbf16>, vector<96x32xbf16>, vector<16x96xf32> -> vector<16x96xf32>
    %c0_8 = arith.constant 0 : index
    %c0_9 = arith.constant 0 : index
    %c0_10 = arith.constant 0 : index
    %11 = vector.load %arg5[%c0_8, %c0_9, %c0_10] : memref<2x1x96xf32, #tpu.memory_space<vmem>>, vector<1x1x96xf32>
    %12 = vector.shape_cast %11 : vector<1x1x96xf32> to vector<1x96xf32>
    %13 = vector.broadcast %12 : vector<1x96xf32> to vector<16x96xf32>
    %14 = arith.addf %10, %13 : vector<16x96xf32>
    %15 = vector.extract_strided_slice %14 {offsets = [0, 0], sizes = [16, 32], strides = [1, 1]} : vector<16x96xf32> to vector<16x32xf32>
    %cst_11 = arith.constant 2.500000e-01 : f32
    %16 = vector.broadcast %cst_11 : f32 to vector<16x32xf32>
    %17 = arith.mulf %15, %16 : vector<16x32xf32>
    %18 = arith.truncf %17 : vector<16x32xf32> to vector<16x32xbf16>
    %19 = vector.extract_strided_slice %14 {offsets = [0, 32], sizes = [16, 32], strides = [1, 1]} : vector<16x96xf32> to vector<16x32xf32>
    %20 = arith.truncf %19 : vector<16x32xf32> to vector<16x32xbf16>
    %21 = vector.extract_strided_slice %14 {offsets = [0, 64], sizes = [16, 32], strides = [1, 1]} : vector<16x96xf32> to vector<16x32xf32>
    %22 = arith.truncf %21 : vector<16x32xf32> to vector<16x32xbf16>
    %c0_12 = arith.constant 0 : index
    %c0_13 = arith.constant 0 : index
    %c0_14 = arith.constant 0 : index
    %23 = vector.load %arg6[%c0_12, %c0_13, %c0_14] : memref<2x32x32xbf16, #tpu.memory_space<vmem>>, vector<1x32x32xbf16>
    %24 = vector.shape_cast %23 : vector<1x32x32xbf16> to vector<32x32xbf16>
    %c0_15 = arith.constant 0 : index
    %c0_16 = arith.constant 0 : index
    %c0_17 = arith.constant 0 : index
    %25 = vector.load %arg7[%c0_15, %c0_16, %c0_17] : memref<2x1x32xf32, #tpu.memory_space<vmem>>, vector<1x1x32xf32>
    %26 = vector.shape_cast %25 : vector<1x1x32xf32> to vector<1x32xf32>
    %27 = vector.extract_strided_slice %18 {offsets = [0, 0], sizes = [8, 32], strides = [1, 1]} : vector<16x32xbf16> to vector<8x32xbf16>
    %28 = vector.extract_strided_slice %20 {offsets = [0, 0], sizes = [8, 32], strides = [1, 1]} : vector<16x32xbf16> to vector<8x32xbf16>
    %29 = vector.extract_strided_slice %22 {offsets = [0, 0], sizes = [8, 32], strides = [1, 1]} : vector<16x32xbf16> to vector<8x32xbf16>
    %30 = vector.extract_strided_slice %27 {offsets = [0, 0], sizes = [8, 16], strides = [1, 1]} : vector<8x32xbf16> to vector<8x16xbf16>
    %31 = vector.extract_strided_slice %28 {offsets = [0, 0], sizes = [8, 16], strides = [1, 1]} : vector<8x32xbf16> to vector<8x16xbf16>
    %32 = vector.extract_strided_slice %29 {offsets = [0, 0], sizes = [8, 16], strides = [1, 1]} : vector<8x32xbf16> to vector<8x16xbf16>
    %cst_18 = arith.constant dense<0.000000e+00> : vector<8x8xf32>
    %33 = tpu.matmul %30, %31, %cst_18 {dimension_numbers = #tpu.dot_dimension_numbers<[1], [1], [0], [0], [0, 0, 1, 0], [], []>} : vector<8x16xbf16>, vector<8x16xbf16>, vector<8x8xf32> -> vector<8x8xf32>
    %cst_19 = arith.constant -1.000000e+30 : f32
    %34 = vector.broadcast %cst_19 : f32 to vector<8x8xf32>
    %35 = arith.select %4, %33, %34 : vector<8x8xi1>, vector<8x8xf32>
    %cst_20 = arith.constant dense<0xFF800000> : vector<8xf32>
    %36 = vector.multi_reduction <maximumf>, %35, %cst_20 [1] : vector<8x8xf32> to vector<8xf32>
    %37 = vector.shape_cast %36 : vector<8xf32> to vector<8x1xf32>
    %38 = vector.broadcast %37 : vector<8x1xf32> to vector<8x8xf32>
    %39 = arith.subf %35, %38 : vector<8x8xf32>
    %40 = math.exp %39 : vector<8x8xf32>
    %cst_21 = arith.constant dense<0.000000e+00> : vector<8xf32>
    %41 = vector.multi_reduction <add>, %40, %cst_21 [1] : vector<8x8xf32> to vector<8xf32>
    %42 = vector.shape_cast %41 : vector<8xf32> to vector<8x1xf32>
    %43 = tpu.reciprocal %42 {approx = true} : vector<8x1xf32> -> vector<8x1xf32>
    %44 = vector.broadcast %43 : vector<8x1xf32> to vector<8x8xf32>
    %45 = arith.mulf %40, %44 : vector<8x8xf32>
    %46 = arith.truncf %45 : vector<8x8xf32> to vector<8x8xbf16>
    %cst_22 = arith.constant dense<0.000000e+00> : vector<8x16xf32>
    %47 = tpu.matmul %46, %32, %cst_22 {dimension_numbers = #tpu.dot_dimension_numbers<[1], [0], [0], [1], [0, 0, 1, 1], [], []>} : vector<8x8xbf16>, vector<8x16xbf16>, vector<8x16xf32> -> vector<8x16xf32>
    %48 = arith.truncf %47 : vector<8x16xf32> to vector<8x16xbf16>
    %49 = vector.extract_strided_slice %24 {offsets = [0, 0], sizes = [32, 16], strides = [1, 1]} : vector<32x32xbf16> to vector<32x16xbf16>
    %cst_23 = arith.constant dense<0.000000e+00> : vector<8x32xf32>
    %50 = tpu.matmul %48, %49, %cst_23 {dimension_numbers = #tpu.dot_dimension_numbers<[1], [1], [0], [0], [0, 0, 1, 0], [], []>} : vector<8x16xbf16>, vector<32x16xbf16>, vector<8x32xf32> -> vector<8x32xf32>
    %51 = vector.broadcast %26 : vector<1x32xf32> to vector<8x32xf32>
    %52 = arith.addf %51, %50 : vector<8x32xf32>
    %53 = vector.extract_strided_slice %27 {offsets = [0, 16], sizes = [8, 16], strides = [1, 1]} : vector<8x32xbf16> to vector<8x16xbf16>
    %54 = vector.extract_strided_slice %28 {offsets = [0, 16], sizes = [8, 16], strides = [1, 1]} : vector<8x32xbf16> to vector<8x16xbf16>
    %55 = vector.extract_strided_slice %29 {offsets = [0, 16], sizes = [8, 16], strides = [1, 1]} : vector<8x32xbf16> to vector<8x16xbf16>
    %cst_24 = arith.constant dense<0.000000e+00> : vector<8x8xf32>
    %56 = tpu.matmul %53, %54, %cst_24 {dimension_numbers = #tpu.dot_dimension_numbers<[1], [1], [0], [0], [0, 0, 1, 0], [], []>} : vector<8x16xbf16>, vector<8x16xbf16>, vector<8x8xf32> -> vector<8x8xf32>
    %cst_25 = arith.constant -1.000000e+30 : f32
    %57 = vector.broadcast %cst_25 : f32 to vector<8x8xf32>
    %58 = arith.select %4, %56, %57 : vector<8x8xi1>, vector<8x8xf32>
    %cst_26 = arith.constant dense<0xFF800000> : vector<8xf32>
    %59 = vector.multi_reduction <maximumf>, %58, %cst_26 [1] : vector<8x8xf32> to vector<8xf32>
    %60 = vector.shape_cast %59 : vector<8xf32> to vector<8x1xf32>
    %61 = vector.broadcast %60 : vector<8x1xf32> to vector<8x8xf32>
    %62 = arith.subf %58, %61 : vector<8x8xf32>
    %63 = math.exp %62 : vector<8x8xf32>
    %cst_27 = arith.constant dense<0.000000e+00> : vector<8xf32>
    %64 = vector.multi_reduction <add>, %63, %cst_27 [1] : vector<8x8xf32> to vector<8xf32>
    %65 = vector.shape_cast %64 : vector<8xf32> to vector<8x1xf32>
    %66 = tpu.reciprocal %65 {approx = true} : vector<8x1xf32> -> vector<8x1xf32>
    %67 = vector.broadcast %66 : vector<8x1xf32> to vector<8x8xf32>
    %68 = arith.mulf %63, %67 : vector<8x8xf32>
    %69 = arith.truncf %68 : vector<8x8xf32> to vector<8x8xbf16>
    %cst_28 = arith.constant dense<0.000000e+00> : vector<8x16xf32>
    %70 = tpu.matmul %69, %55, %cst_28 {dimension_numbers = #tpu.dot_dimension_numbers<[1], [0], [0], [1], [0, 0, 1, 1], [], []>} : vector<8x8xbf16>, vector<8x16xbf16>, vector<8x16xf32> -> vector<8x16xf32>
    %71 = arith.truncf %70 : vector<8x16xf32> to vector<8x16xbf16>
    %72 = vector.extract_strided_slice %24 {offsets = [0, 16], sizes = [32, 16], strides = [1, 1]} : vector<32x32xbf16> to vector<32x16xbf16>
    %cst_29 = arith.constant dense<0.000000e+00> : vector<8x32xf32>
    %73 = tpu.matmul %71, %72, %cst_29 {dimension_numbers = #tpu.dot_dimension_numbers<[1], [1], [0], [0], [0, 0, 1, 0], [], []>} : vector<8x16xbf16>, vector<32x16xbf16>, vector<8x32xf32> -> vector<8x32xf32>
    %74 = arith.addf %52, %73 : vector<8x32xf32>
    %c0_30 = arith.constant 0 : index
    %c0_31 = arith.constant 0 : index
    %75 = vector.load %arg23[%c0_30, %c0_31] : memref<16x32xf32, #tpu.memory_space<vmem>>, vector<8x32xf32>
    tpu.vector_store %arg23[%c0_30, %c0_31], %74 {strides = array<i32>} : memref<16x32xf32, #tpu.memory_space<vmem>>, vector<8x32xf32>,
    %76 = vector.extract_strided_slice %18 {offsets = [8, 0], sizes = [8, 32], strides = [1, 1]} : vector<16x32xbf16> to vector<8x32xbf16>
    %77 = vector.extract_strided_slice %20 {offsets = [8, 0], sizes = [8, 32], strides = [1, 1]} : vector<16x32xbf16> to vector<8x32xbf16>
    %78 = vector.extract_strided_slice %22 {offsets = [8, 0], sizes = [8, 32], strides = [1, 1]} : vector<16x32xbf16> to vector<8x32xbf16>
    %79 = vector.extract_strided_slice %76 {offsets = [0, 0], sizes = [8, 16], strides = [1, 1]} : vector<8x32xbf16> to vector<8x16xbf16>
    %80 = vector.extract_strided_slice %77 {offsets = [0, 0], sizes = [8, 16], strides = [1, 1]} : vector<8x32xbf16> to vector<8x16xbf16>
    %81 = vector.extract_strided_slice %78 {offsets = [0, 0], sizes = [8, 16], strides = [1, 1]} : vector<8x32xbf16> to vector<8x16xbf16>
    %cst_32 = arith.constant dense<0.000000e+00> : vector<8x8xf32>
    %82 = tpu.matmul %79, %80, %cst_32 {dimension_numbers = #tpu.dot_dimension_numbers<[1], [1], [0], [0], [0, 0, 1, 0], [], []>} : vector<8x16xbf16>, vector<8x16xbf16>, vector<8x8xf32> -> vector<8x8xf32>
    %cst_33 = arith.constant -1.000000e+30 : f32
    %83 = vector.broadcast %cst_33 : f32 to vector<8x8xf32>
    %84 = arith.select %4, %82, %83 : vector<8x8xi1>, vector<8x8xf32>
    %cst_34 = arith.constant dense<0xFF800000> : vector<8xf32>
    %85 = vector.multi_reduction <maximumf>, %84, %cst_34 [1] : vector<8x8xf32> to vector<8xf32>
    %86 = vector.shape_cast %85 : vector<8xf32> to vector<8x1xf32>
    %87 = vector.broadcast %86 : vector<8x1xf32> to vector<8x8xf32>
    %88 = arith.subf %84, %87 : vector<8x8xf32>
    %89 = math.exp %88 : vector<8x8xf32>
    %cst_35 = arith.constant dense<0.000000e+00> : vector<8xf32>
    %90 = vector.multi_reduction <add>, %89, %cst_35 [1] : vector<8x8xf32> to vector<8xf32>
    %91 = vector.shape_cast %90 : vector<8xf32> to vector<8x1xf32>
    %92 = tpu.reciprocal %91 {approx = true} : vector<8x1xf32> -> vector<8x1xf32>
    %93 = vector.broadcast %92 : vector<8x1xf32> to vector<8x8xf32>
    %94 = arith.mulf %89, %93 : vector<8x8xf32>
    %95 = arith.truncf %94 : vector<8x8xf32> to vector<8x8xbf16>
    %cst_36 = arith.constant dense<0.000000e+00> : vector<8x16xf32>
    %96 = tpu.matmul %95, %81, %cst_36 {dimension_numbers = #tpu.dot_dimension_numbers<[1], [0], [0], [1], [0, 0, 1, 1], [], []>} : vector<8x8xbf16>, vector<8x16xbf16>, vector<8x16xf32> -> vector<8x16xf32>
    %97 = arith.truncf %96 : vector<8x16xf32> to vector<8x16xbf16>
    %98 = vector.extract_strided_slice %24 {offsets = [0, 0], sizes = [32, 16], strides = [1, 1]} : vector<32x32xbf16> to vector<32x16xbf16>
    %cst_37 = arith.constant dense<0.000000e+00> : vector<8x32xf32>
    %99 = tpu.matmul %97, %98, %cst_37 {dimension_numbers = #tpu.dot_dimension_numbers<[1], [1], [0], [0], [0, 0, 1, 0], [], []>} : vector<8x16xbf16>, vector<32x16xbf16>, vector<8x32xf32> -> vector<8x32xf32>
    %100 = vector.broadcast %26 : vector<1x32xf32> to vector<8x32xf32>
    %101 = arith.addf %100, %99 : vector<8x32xf32>
    %102 = vector.extract_strided_slice %76 {offsets = [0, 16], sizes = [8, 16], strides = [1, 1]} : vector<8x32xbf16> to vector<8x16xbf16>
    %103 = vector.extract_strided_slice %77 {offsets = [0, 16], sizes = [8, 16], strides = [1, 1]} : vector<8x32xbf16> to vector<8x16xbf16>
    %104 = vector.extract_strided_slice %78 {offsets = [0, 16], sizes = [8, 16], strides = [1, 1]} : vector<8x32xbf16> to vector<8x16xbf16>
    %cst_38 = arith.constant dense<0.000000e+00> : vector<8x8xf32>
    %105 = tpu.matmul %102, %103, %cst_38 {dimension_numbers = #tpu.dot_dimension_numbers<[1], [1], [0], [0], [0, 0, 1, 0], [], []>} : vector<8x16xbf16>, vector<8x16xbf16>, vector<8x8xf32> -> vector<8x8xf32>
    %cst_39 = arith.constant -1.000000e+30 : f32
    %106 = vector.broadcast %cst_39 : f32 to vector<8x8xf32>
    %107 = arith.select %4, %105, %106 : vector<8x8xi1>, vector<8x8xf32>
    %cst_40 = arith.constant dense<0xFF800000> : vector<8xf32>
    %108 = vector.multi_reduction <maximumf>, %107, %cst_40 [1] : vector<8x8xf32> to vector<8xf32>
    %109 = vector.shape_cast %108 : vector<8xf32> to vector<8x1xf32>
    %110 = vector.broadcast %109 : vector<8x1xf32> to vector<8x8xf32>
    %111 = arith.subf %107, %110 : vector<8x8xf32>
    %112 = math.exp %111 : vector<8x8xf32>
    %cst_41 = arith.constant dense<0.000000e+00> : vector<8xf32>
    %113 = vector.multi_reduction <add>, %112, %cst_41 [1] : vector<8x8xf32> to vector<8xf32>
    %114 = vector.shape_cast %113 : vector<8xf32> to vector<8x1xf32>
    %115 = tpu.reciprocal %114 {approx = true} : vector<8x1xf32> -> vector<8x1xf32>
    %116 = vector.broadcast %115 : vector<8x1xf32> to vector<8x8xf32>
    %117 = arith.mulf %112, %116 : vector<8x8xf32>
    %118 = arith.truncf %117 : vector<8x8xf32> to vector<8x8xbf16>
    %cst_42 = arith.constant dense<0.000000e+00> : vector<8x16xf32>
    %119 = tpu.matmul %118, %104, %cst_42 {dimension_numbers = #tpu.dot_dimension_numbers<[1], [0], [0], [1], [0, 0, 1, 1], [], []>} : vector<8x8xbf16>, vector<8x16xbf16>, vector<8x16xf32> -> vector<8x16xf32>
    %120 = arith.truncf %119 : vector<8x16xf32> to vector<8x16xbf16>
    %121 = vector.extract_strided_slice %24 {offsets = [0, 16], sizes = [32, 16], strides = [1, 1]} : vector<32x32xbf16> to vector<32x16xbf16>
    %cst_43 = arith.constant dense<0.000000e+00> : vector<8x32xf32>
    %122 = tpu.matmul %120, %121, %cst_43 {dimension_numbers = #tpu.dot_dimension_numbers<[1], [1], [0], [0], [0, 0, 1, 0], [], []>} : vector<8x16xbf16>, vector<32x16xbf16>, vector<8x32xf32> -> vector<8x32xf32>
    %123 = arith.addf %101, %122 : vector<8x32xf32>
    %c8 = arith.constant 8 : index
    %c0_44 = arith.constant 0 : index
    %124 = vector.load %arg23[%c8, %c0_44] : memref<16x32xf32, #tpu.memory_space<vmem>>, vector<8x32xf32>
    tpu.vector_store %arg23[%c8, %c0_44], %123 {strides = array<i32>} : memref<16x32xf32, #tpu.memory_space<vmem>>, vector<8x32xf32>,
    %c0_45 = arith.constant 0 : index
    %c0_46 = arith.constant 0 : index
    %125 = vector.load %arg23[%c0_45, %c0_46] : memref<16x32xf32, #tpu.memory_space<vmem>>, vector<16x32xf32>
    %126 = arith.addf %6, %125 : vector<16x32xf32>
    %c0_47 = arith.constant 0 : index
    %c0_48 = arith.constant 0 : index
    %c0_49 = arith.constant 0 : index
    %127 = vector.load %arg8[%c0_47, %c0_48, %c0_49] : memref<2x1x32xf32, #tpu.memory_space<vmem>>, vector<1x1x32xf32>
    %128 = vector.shape_cast %127 : vector<1x1x32xf32> to vector<1x32xf32>
    %c0_50 = arith.constant 0 : index
    %c0_51 = arith.constant 0 : index
    %c0_52 = arith.constant 0 : index
    %129 = vector.load %arg9[%c0_50, %c0_51, %c0_52] : memref<2x1x32xf32, #tpu.memory_space<vmem>>, vector<1x1x32xf32>
    %130 = vector.shape_cast %129 : vector<1x1x32xf32> to vector<1x32xf32>
    %cst_53 = arith.constant dense<0.000000e+00> : vector<16xf32>
    %131 = vector.multi_reduction <add>, %126, %cst_53 [1] : vector<16x32xf32> to vector<16xf32>
    %132 = vector.shape_cast %131 : vector<16xf32> to vector<16x1xf32>
    %cst_54 = arith.constant 3.200000e+01 : f32
    %133 = vector.broadcast %cst_54 : f32 to vector<16x1xf32>
    %134 = arith.divf %132, %133 : vector<16x1xf32>
    %135 = vector.broadcast %134 : vector<16x1xf32> to vector<16x32xf32>
    %136 = arith.subf %126, %135 : vector<16x32xf32>
    %137 = arith.mulf %136, %136 : vector<16x32xf32>
    %cst_55 = arith.constant dense<0.000000e+00> : vector<16xf32>
    %138 = vector.multi_reduction <add>, %137, %cst_55 [1] : vector<16x32xf32> to vector<16xf32>
    %139 = vector.shape_cast %138 : vector<16xf32> to vector<16x1xf32>
    %cst_56 = arith.constant 3.200000e+01 : f32
    %140 = vector.broadcast %cst_56 : f32 to vector<16x1xf32>
    %141 = arith.divf %139, %140 : vector<16x1xf32>
    %cst_57 = arith.constant 9.99999974E-6 : f32
    %142 = vector.broadcast %cst_57 : f32 to vector<16x1xf32>
    %143 = arith.addf %141, %142 : vector<16x1xf32>
    %144 = math.rsqrt %143 : vector<16x1xf32>
    %145 = vector.broadcast %144 : vector<16x1xf32> to vector<16x32xf32>
    %146 = arith.mulf %136, %145 : vector<16x32xf32>
    %147 = vector.broadcast %128 : vector<1x32xf32> to vector<16x32xf32>
    %148 = arith.mulf %146, %147 : vector<16x32xf32>
    %149 = vector.broadcast %130 : vector<1x32xf32> to vector<16x32xf32>
    %150 = arith.addf %148, %149 : vector<16x32xf32>
    %c0_58 = arith.constant 0 : index
    %c0_59 = arith.constant 0 : index
    %c0_60 = arith.constant 0 : index
    %151 = vector.load %arg10[%c0_58, %c0_59, %c0_60] : memref<2x96x32xbf16, #tpu.memory_space<vmem>>, vector<1x96x32xbf16>
    %152 = vector.shape_cast %151 : vector<1x96x32xbf16> to vector<96x32xbf16>
    %c0_61 = arith.constant 0 : index
    %c0_62 = arith.constant 0 : index
    %c0_63 = arith.constant 0 : index
    %153 = vector.load %arg11[%c0_61, %c0_62, %c0_63] : memref<2x1x96xf32, #tpu.memory_space<vmem>>, vector<1x1x96xf32>
    %154 = vector.shape_cast %153 : vector<1x1x96xf32> to vector<1x96xf32>
    %155 = arith.truncf %150 : vector<16x32xf32> to vector<16x32xbf16>
    %156 = vector.extract_strided_slice %152 {offsets = [0, 0], sizes = [32, 32], strides = [1, 1]} : vector<96x32xbf16> to vector<32x32xbf16>
    %cst_64 = arith.constant dense<0.000000e+00> : vector<16x32xf32>
    %157 = tpu.matmul %155, %156, %cst_64 {dimension_numbers = #tpu.dot_dimension_numbers<[1], [1], [0], [0], [0, 0, 1, 0], [], []>} : vector<16x32xbf16>, vector<32x32xbf16>, vector<16x32xf32> -> vector<16x32xf32>
    %158 = vector.extract_strided_slice %154 {offsets = [0, 0], sizes = [1, 32], strides = [1, 1]} : vector<1x96xf32> to vector<1x32xf32>
    %159 = vector.broadcast %158 : vector<1x32xf32> to vector<16x32xf32>
    %160 = arith.addf %157, %159 : vector<16x32xf32>
    %cst_65 = arith.constant 2.500000e-01 : f32
    %161 = vector.broadcast %cst_65 : f32 to vector<16x32xf32>
    %162 = arith.mulf %160, %161 : vector<16x32xf32>
    %163 = arith.truncf %162 : vector<16x32xf32> to vector<16x32xbf16>
    %164 = vector.extract_strided_slice %152 {offsets = [32, 0], sizes = [64, 32], strides = [1, 1]} : vector<96x32xbf16> to vector<64x32xbf16>
    %cst_66 = arith.constant dense<0.000000e+00> : vector<32x64xf32>
    %165 = tpu.matmul %0, %164, %cst_66 {dimension_numbers = #tpu.dot_dimension_numbers<[1], [1], [0], [0], [0, 0, 1, 0], [], []>} : vector<32x32xbf16>, vector<64x32xbf16>, vector<32x64xf32> -> vector<32x64xf32>
    %166 = vector.extract_strided_slice %154 {offsets = [0, 32], sizes = [1, 64], strides = [1, 1]} : vector<1x96xf32> to vector<1x64xf32>
    %167 = vector.broadcast %166 : vector<1x64xf32> to vector<32x64xf32>
    %168 = arith.addf %165, %167 : vector<32x64xf32>
    %169 = vector.extract_strided_slice %168 {offsets = [0, 0], sizes = [32, 32], strides = [1, 1]} : vector<32x64xf32> to vector<32x32xf32>
    %170 = arith.truncf %169 : vector<32x32xf32> to vector<32x32xbf16>
    %171 = vector.extract_strided_slice %168 {offsets = [0, 32], sizes = [32, 32], strides = [1, 1]} : vector<32x64xf32> to vector<32x32xf32>
    %172 = arith.truncf %171 : vector<32x32xf32> to vector<32x32xbf16>
    %c0_67 = arith.constant 0 : index
    %c0_68 = arith.constant 0 : index
    %c0_69 = arith.constant 0 : index
    %173 = vector.load %arg12[%c0_67, %c0_68, %c0_69] : memref<2x32x32xbf16, #tpu.memory_space<vmem>>, vector<1x32x32xbf16>
    %174 = vector.shape_cast %173 : vector<1x32x32xbf16> to vector<32x32xbf16>
    %c0_70 = arith.constant 0 : index
    %c0_71 = arith.constant 0 : index
    %c0_72 = arith.constant 0 : index
    %175 = vector.load %arg13[%c0_70, %c0_71, %c0_72] : memref<2x1x32xf32, #tpu.memory_space<vmem>>, vector<1x1x32xf32>
    %176 = vector.shape_cast %175 : vector<1x1x32xf32> to vector<1x32xf32>
    %177 = vector.extract_strided_slice %1 {offsets = [0, 0], sizes = [1, 16], strides = [1, 1]} : vector<2x16xf32> to vector<1x16xf32>
    %cst_73 = arith.constant 5.000000e-01 : f32
    %178 = vector.broadcast %cst_73 : f32 to vector<1x16xf32>
    %179 = arith.cmpf ogt, %177, %178 : vector<1x16xf32>
    %180 = vector.extract_strided_slice %163 {offsets = [0, 0], sizes = [8, 32], strides = [1, 1]} : vector<16x32xbf16> to vector<8x32xbf16>
    %181 = vector.extract_strided_slice %170 {offsets = [0, 0], sizes = [16, 32], strides = [1, 1]} : vector<32x32xbf16> to vector<16x32xbf16>
    %182 = vector.extract_strided_slice %172 {offsets = [0, 0], sizes = [16, 32], strides = [1, 1]} : vector<32x32xbf16> to vector<16x32xbf16>
    %183 = vector.extract_strided_slice %180 {offsets = [0, 0], sizes = [8, 16], strides = [1, 1]} : vector<8x32xbf16> to vector<8x16xbf16>
    %184 = vector.extract_strided_slice %181 {offsets = [0, 0], sizes = [16, 16], strides = [1, 1]} : vector<16x32xbf16> to vector<16x16xbf16>
    %185 = vector.extract_strided_slice %182 {offsets = [0, 0], sizes = [16, 16], strides = [1, 1]} : vector<16x32xbf16> to vector<16x16xbf16>
    %cst_74 = arith.constant dense<0.000000e+00> : vector<8x16xf32>
    %186 = tpu.matmul %183, %184, %cst_74 {dimension_numbers = #tpu.dot_dimension_numbers<[1], [1], [0], [0], [0, 0, 1, 0], [], []>} : vector<8x16xbf16>, vector<16x16xbf16>, vector<8x16xf32> -> vector<8x16xf32>
    %cst_75 = arith.constant -1.000000e+30 : f32
    %187 = vector.shape_cast %179 : vector<1x16xi1> to vector<1x16xi1>
    %188 = vector.broadcast %187 : vector<1x16xi1> to vector<8x16xi1>
    %189 = vector.broadcast %cst_75 : f32 to vector<8x16xf32>
    %190 = arith.select %188, %186, %189 : vector<8x16xi1>, vector<8x16xf32>
    %cst_76 = arith.constant dense<0xFF800000> : vector<8xf32>
    %191 = vector.multi_reduction <maximumf>, %190, %cst_76 [1] : vector<8x16xf32> to vector<8xf32>
    %192 = vector.shape_cast %191 : vector<8xf32> to vector<8x1xf32>
    %193 = vector.broadcast %192 : vector<8x1xf32> to vector<8x16xf32>
    %194 = arith.subf %190, %193 : vector<8x16xf32>
    %195 = math.exp %194 : vector<8x16xf32>
    %cst_77 = arith.constant dense<0.000000e+00> : vector<8xf32>
    %196 = vector.multi_reduction <add>, %195, %cst_77 [1] : vector<8x16xf32> to vector<8xf32>
    %197 = vector.shape_cast %196 : vector<8xf32> to vector<8x1xf32>
    %198 = tpu.reciprocal %197 {approx = true} : vector<8x1xf32> -> vector<8x1xf32>
    %199 = vector.broadcast %198 : vector<8x1xf32> to vector<8x16xf32>
    %200 = arith.mulf %195, %199 : vector<8x16xf32>
    %201 = arith.truncf %200 : vector<8x16xf32> to vector<8x16xbf16>
    %cst_78 = arith.constant dense<0.000000e+00> : vector<8x16xf32>
    %202 = tpu.matmul %201, %185, %cst_78 {dimension_numbers = #tpu.dot_dimension_numbers<[1], [0], [0], [1], [0, 0, 1, 1], [], []>} : vector<8x16xbf16>, vector<16x16xbf16>, vector<8x16xf32> -> vector<8x16xf32>
    %203 = arith.truncf %202 : vector<8x16xf32> to vector<8x16xbf16>
    %204 = vector.extract_strided_slice %174 {offsets = [0, 0], sizes = [32, 16], strides = [1, 1]} : vector<32x32xbf16> to vector<32x16xbf16>
    %cst_79 = arith.constant dense<0.000000e+00> : vector<8x32xf32>
    %205 = tpu.matmul %203, %204, %cst_79 {dimension_numbers = #tpu.dot_dimension_numbers<[1], [1], [0], [0], [0, 0, 1, 0], [], []>} : vector<8x16xbf16>, vector<32x16xbf16>, vector<8x32xf32> -> vector<8x32xf32>
    %206 = vector.broadcast %176 : vector<1x32xf32> to vector<8x32xf32>
    %207 = arith.addf %206, %205 : vector<8x32xf32>
    %208 = vector.extract_strided_slice %180 {offsets = [0, 16], sizes = [8, 16], strides = [1, 1]} : vector<8x32xbf16> to vector<8x16xbf16>
    %209 = vector.extract_strided_slice %181 {offsets = [0, 16], sizes = [16, 16], strides = [1, 1]} : vector<16x32xbf16> to vector<16x16xbf16>
    %210 = vector.extract_strided_slice %182 {offsets = [0, 16], sizes = [16, 16], strides = [1, 1]} : vector<16x32xbf16> to vector<16x16xbf16>
    %cst_80 = arith.constant dense<0.000000e+00> : vector<8x16xf32>
    %211 = tpu.matmul %208, %209, %cst_80 {dimension_numbers = #tpu.dot_dimension_numbers<[1], [1], [0], [0], [0, 0, 1, 0], [], []>} : vector<8x16xbf16>, vector<16x16xbf16>, vector<8x16xf32> -> vector<8x16xf32>
    %cst_81 = arith.constant -1.000000e+30 : f32
    %212 = vector.shape_cast %179 : vector<1x16xi1> to vector<1x16xi1>
    %213 = vector.broadcast %212 : vector<1x16xi1> to vector<8x16xi1>
    %214 = vector.broadcast %cst_81 : f32 to vector<8x16xf32>
    %215 = arith.select %213, %211, %214 : vector<8x16xi1>, vector<8x16xf32>
    %cst_82 = arith.constant dense<0xFF800000> : vector<8xf32>
    %216 = vector.multi_reduction <maximumf>, %215, %cst_82 [1] : vector<8x16xf32> to vector<8xf32>
    %217 = vector.shape_cast %216 : vector<8xf32> to vector<8x1xf32>
    %218 = vector.broadcast %217 : vector<8x1xf32> to vector<8x16xf32>
    %219 = arith.subf %215, %218 : vector<8x16xf32>
    %220 = math.exp %219 : vector<8x16xf32>
    %cst_83 = arith.constant dense<0.000000e+00> : vector<8xf32>
    %221 = vector.multi_reduction <add>, %220, %cst_83 [1] : vector<8x16xf32> to vector<8xf32>
    %222 = vector.shape_cast %221 : vector<8xf32> to vector<8x1xf32>
    %223 = tpu.reciprocal %222 {approx = true} : vector<8x1xf32> -> vector<8x1xf32>
    %224 = vector.broadcast %223 : vector<8x1xf32> to vector<8x16xf32>
    %225 = arith.mulf %220, %224 : vector<8x16xf32>
    %226 = arith.truncf %225 : vector<8x16xf32> to vector<8x16xbf16>
    %cst_84 = arith.constant dense<0.000000e+00> : vector<8x16xf32>
    %227 = tpu.matmul %226, %210, %cst_84 {dimension_numbers = #tpu.dot_dimension_numbers<[1], [0], [0], [1], [0, 0, 1, 1], [], []>} : vector<8x16xbf16>, vector<16x16xbf16>, vector<8x16xf32> -> vector<8x16xf32>
    %228 = arith.truncf %227 : vector<8x16xf32> to vector<8x16xbf16>
    %229 = vector.extract_strided_slice %174 {offsets = [0, 16], sizes = [32, 16], strides = [1, 1]} : vector<32x32xbf16> to vector<32x16xbf16>
    %cst_85 = arith.constant dense<0.000000e+00> : vector<8x32xf32>
    %230 = tpu.matmul %228, %229, %cst_85 {dimension_numbers = #tpu.dot_dimension_numbers<[1], [1], [0], [0], [0, 0, 1, 0], [], []>} : vector<8x16xbf16>, vector<32x16xbf16>, vector<8x32xf32> -> vector<8x32xf32>
    %231 = arith.addf %207, %230 : vector<8x32xf32>
    %c0_86 = arith.constant 0 : index
    %c0_87 = arith.constant 0 : index
    %232 = vector.load %arg23[%c0_86, %c0_87] : memref<16x32xf32, #tpu.memory_space<vmem>>, vector<8x32xf32>
    tpu.vector_store %arg23[%c0_86, %c0_87], %231 {strides = array<i32>} : memref<16x32xf32, #tpu.memory_space<vmem>>, vector<8x32xf32>,
    %233 = vector.extract_strided_slice %1 {offsets = [1, 0], sizes = [1, 16], strides = [1, 1]} : vector<2x16xf32> to vector<1x16xf32>
    %cst_88 = arith.constant 5.000000e-01 : f32
    %234 = vector.broadcast %cst_88 : f32 to vector<1x16xf32>
    %235 = arith.cmpf ogt, %233, %234 : vector<1x16xf32>
    %236 = vector.extract_strided_slice %163 {offsets = [8, 0], sizes = [8, 32], strides = [1, 1]} : vector<16x32xbf16> to vector<8x32xbf16>
    %237 = vector.extract_strided_slice %170 {offsets = [16, 0], sizes = [16, 32], strides = [1, 1]} : vector<32x32xbf16> to vector<16x32xbf16>
    %238 = vector.extract_strided_slice %172 {offsets = [16, 0], sizes = [16, 32], strides = [1, 1]} : vector<32x32xbf16> to vector<16x32xbf16>
    %239 = vector.extract_strided_slice %236 {offsets = [0, 0], sizes = [8, 16], strides = [1, 1]} : vector<8x32xbf16> to vector<8x16xbf16>
    %240 = vector.extract_strided_slice %237 {offsets = [0, 0], sizes = [16, 16], strides = [1, 1]} : vector<16x32xbf16> to vector<16x16xbf16>
    %241 = vector.extract_strided_slice %238 {offsets = [0, 0], sizes = [16, 16], strides = [1, 1]} : vector<16x32xbf16> to vector<16x16xbf16>
    %cst_89 = arith.constant dense<0.000000e+00> : vector<8x16xf32>
    %242 = tpu.matmul %239, %240, %cst_89 {dimension_numbers = #tpu.dot_dimension_numbers<[1], [1], [0], [0], [0, 0, 1, 0], [], []>} : vector<8x16xbf16>, vector<16x16xbf16>, vector<8x16xf32> -> vector<8x16xf32>
    %cst_90 = arith.constant -1.000000e+30 : f32
    %243 = vector.shape_cast %235 : vector<1x16xi1> to vector<1x16xi1>
    %244 = vector.broadcast %243 : vector<1x16xi1> to vector<8x16xi1>
    %245 = vector.broadcast %cst_90 : f32 to vector<8x16xf32>
    %246 = arith.select %244, %242, %245 : vector<8x16xi1>, vector<8x16xf32>
    %cst_91 = arith.constant dense<0xFF800000> : vector<8xf32>
    %247 = vector.multi_reduction <maximumf>, %246, %cst_91 [1] : vector<8x16xf32> to vector<8xf32>
    %248 = vector.shape_cast %247 : vector<8xf32> to vector<8x1xf32>
    %249 = vector.broadcast %248 : vector<8x1xf32> to vector<8x16xf32>
    %250 = arith.subf %246, %249 : vector<8x16xf32>
    %251 = math.exp %250 : vector<8x16xf32>
    %cst_92 = arith.constant dense<0.000000e+00> : vector<8xf32>
    %252 = vector.multi_reduction <add>, %251, %cst_92 [1] : vector<8x16xf32> to vector<8xf32>
    %253 = vector.shape_cast %252 : vector<8xf32> to vector<8x1xf32>
    %254 = tpu.reciprocal %253 {approx = true} : vector<8x1xf32> -> vector<8x1xf32>
    %255 = vector.broadcast %254 : vector<8x1xf32> to vector<8x16xf32>
    %256 = arith.mulf %251, %255 : vector<8x16xf32>
    %257 = arith.truncf %256 : vector<8x16xf32> to vector<8x16xbf16>
    %cst_93 = arith.constant dense<0.000000e+00> : vector<8x16xf32>
    %258 = tpu.matmul %257, %241, %cst_93 {dimension_numbers = #tpu.dot_dimension_numbers<[1], [0], [0], [1], [0, 0, 1, 1], [], []>} : vector<8x16xbf16>, vector<16x16xbf16>, vector<8x16xf32> -> vector<8x16xf32>
    %259 = arith.truncf %258 : vector<8x16xf32> to vector<8x16xbf16>
    %260 = vector.extract_strided_slice %174 {offsets = [0, 0], sizes = [32, 16], strides = [1, 1]} : vector<32x32xbf16> to vector<32x16xbf16>
    %cst_94 = arith.constant dense<0.000000e+00> : vector<8x32xf32>
    %261 = tpu.matmul %259, %260, %cst_94 {dimension_numbers = #tpu.dot_dimension_numbers<[1], [1], [0], [0], [0, 0, 1, 0], [], []>} : vector<8x16xbf16>, vector<32x16xbf16>, vector<8x32xf32> -> vector<8x32xf32>
    %262 = vector.broadcast %176 : vector<1x32xf32> to vector<8x32xf32>
    %263 = arith.addf %262, %261 : vector<8x32xf32>
    %264 = vector.extract_strided_slice %236 {offsets = [0, 16], sizes = [8, 16], strides = [1, 1]} : vector<8x32xbf16> to vector<8x16xbf16>
    %265 = vector.extract_strided_slice %237 {offsets = [0, 16], sizes = [16, 16], strides = [1, 1]} : vector<16x32xbf16> to vector<16x16xbf16>
    %266 = vector.extract_strided_slice %238 {offsets = [0, 16], sizes = [16, 16], strides = [1, 1]} : vector<16x32xbf16> to vector<16x16xbf16>
    %cst_95 = arith.constant dense<0.000000e+00> : vector<8x16xf32>
    %267 = tpu.matmul %264, %265, %cst_95 {dimension_numbers = #tpu.dot_dimension_numbers<[1], [1], [0], [0], [0, 0, 1, 0], [], []>} : vector<8x16xbf16>, vector<16x16xbf16>, vector<8x16xf32> -> vector<8x16xf32>
    %cst_96 = arith.constant -1.000000e+30 : f32
    %268 = vector.shape_cast %235 : vector<1x16xi1> to vector<1x16xi1>
    %269 = vector.broadcast %268 : vector<1x16xi1> to vector<8x16xi1>
    %270 = vector.broadcast %cst_96 : f32 to vector<8x16xf32>
    %271 = arith.select %269, %267, %270 : vector<8x16xi1>, vector<8x16xf32>
    %cst_97 = arith.constant dense<0xFF800000> : vector<8xf32>
    %272 = vector.multi_reduction <maximumf>, %271, %cst_97 [1] : vector<8x16xf32> to vector<8xf32>
    %273 = vector.shape_cast %272 : vector<8xf32> to vector<8x1xf32>
    %274 = vector.broadcast %273 : vector<8x1xf32> to vector<8x16xf32>
    %275 = arith.subf %271, %274 : vector<8x16xf32>
    %276 = math.exp %275 : vector<8x16xf32>
    %cst_98 = arith.constant dense<0.000000e+00> : vector<8xf32>
    %277 = vector.multi_reduction <add>, %276, %cst_98 [1] : vector<8x16xf32> to vector<8xf32>
    %278 = vector.shape_cast %277 : vector<8xf32> to vector<8x1xf32>
    %279 = tpu.reciprocal %278 {approx = true} : vector<8x1xf32> -> vector<8x1xf32>
    %280 = vector.broadcast %279 : vector<8x1xf32> to vector<8x16xf32>
    %281 = arith.mulf %276, %280 : vector<8x16xf32>
    %282 = arith.truncf %281 : vector<8x16xf32> to vector<8x16xbf16>
    %cst_99 = arith.constant dense<0.000000e+00> : vector<8x16xf32>
    %283 = tpu.matmul %282, %266, %cst_99 {dimension_numbers = #tpu.dot_dimension_numbers<[1], [0], [0], [1], [0, 0, 1, 1], [], []>} : vector<8x16xbf16>, vector<16x16xbf16>, vector<8x16xf32> -> vector<8x16xf32>
    %284 = arith.truncf %283 : vector<8x16xf32> to vector<8x16xbf16>
    %285 = vector.extract_strided_slice %174 {offsets = [0, 16], sizes = [32, 16], strides = [1, 1]} : vector<32x32xbf16> to vector<32x16xbf16>
    %cst_100 = arith.constant dense<0.000000e+00> : vector<8x32xf32>
    %286 = tpu.matmul %284, %285, %cst_100 {dimension_numbers = #tpu.dot_dimension_numbers<[1], [1], [0], [0], [0, 0, 1, 0], [], []>} : vector<8x16xbf16>, vector<32x16xbf16>, vector<8x32xf32> -> vector<8x32xf32>
    %287 = arith.addf %263, %286 : vector<8x32xf32>
    %c8_101 = arith.constant 8 : index
    %c0_102 = arith.constant 0 : index
    %288 = vector.load %arg23[%c8_101, %c0_102] : memref<16x32xf32, #tpu.memory_space<vmem>>, vector<8x32xf32>
    tpu.vector_store %arg23[%c8_101, %c0_102], %287 {strides = array<i32>} : memref<16x32xf32, #tpu.memory_space<vmem>>, vector<8x32xf32>,
    %c0_103 = arith.constant 0 : index
    %c0_104 = arith.constant 0 : index
    %289 = vector.load %arg23[%c0_103, %c0_104] : memref<16x32xf32, #tpu.memory_space<vmem>>, vector<16x32xf32>
    %290 = arith.addf %150, %289 : vector<16x32xf32>
    %c0_105 = arith.constant 0 : index
    %c0_106 = arith.constant 0 : index
    %c0_107 = arith.constant 0 : index
    %291 = vector.load %arg14[%c0_105, %c0_106, %c0_107] : memref<2x1x32xf32, #tpu.memory_space<vmem>>, vector<1x1x32xf32>
    %292 = vector.shape_cast %291 : vector<1x1x32xf32> to vector<1x32xf32>
    %c0_108 = arith.constant 0 : index
    %c0_109 = arith.constant 0 : index
    %c0_110 = arith.constant 0 : index
    %293 = vector.load %arg15[%c0_108, %c0_109, %c0_110] : memref<2x1x32xf32, #tpu.memory_space<vmem>>, vector<1x1x32xf32>
    %294 = vector.shape_cast %293 : vector<1x1x32xf32> to vector<1x32xf32>
    %cst_111 = arith.constant dense<0.000000e+00> : vector<16xf32>
    %295 = vector.multi_reduction <add>, %290, %cst_111 [1] : vector<16x32xf32> to vector<16xf32>
    %296 = vector.shape_cast %295 : vector<16xf32> to vector<16x1xf32>
    %cst_112 = arith.constant 3.200000e+01 : f32
    %297 = vector.broadcast %cst_112 : f32 to vector<16x1xf32>
    %298 = arith.divf %296, %297 : vector<16x1xf32>
    %299 = vector.broadcast %298 : vector<16x1xf32> to vector<16x32xf32>
    %300 = arith.subf %290, %299 : vector<16x32xf32>
    %301 = arith.mulf %300, %300 : vector<16x32xf32>
    %cst_113 = arith.constant dense<0.000000e+00> : vector<16xf32>
    %302 = vector.multi_reduction <add>, %301, %cst_113 [1] : vector<16x32xf32> to vector<16xf32>
    %303 = vector.shape_cast %302 : vector<16xf32> to vector<16x1xf32>
    %cst_114 = arith.constant 3.200000e+01 : f32
    %304 = vector.broadcast %cst_114 : f32 to vector<16x1xf32>
    %305 = arith.divf %303, %304 : vector<16x1xf32>
    %cst_115 = arith.constant 9.99999974E-6 : f32
    %306 = vector.broadcast %cst_115 : f32 to vector<16x1xf32>
    %307 = arith.addf %305, %306 : vector<16x1xf32>
    %308 = math.rsqrt %307 : vector<16x1xf32>
    %309 = vector.broadcast %308 : vector<16x1xf32> to vector<16x32xf32>
    %310 = arith.mulf %300, %309 : vector<16x32xf32>
    %311 = vector.broadcast %292 : vector<1x32xf32> to vector<16x32xf32>
    %312 = arith.mulf %310, %311 : vector<16x32xf32>
    %313 = vector.broadcast %294 : vector<1x32xf32> to vector<16x32xf32>
    %314 = arith.addf %312, %313 : vector<16x32xf32>
    %315 = arith.truncf %314 : vector<16x32xf32> to vector<16x32xbf16>
    %c0_116 = arith.constant 0 : index
    %c0_117 = arith.constant 0 : index
    %c0_118 = arith.constant 0 : index
    %316 = vector.load %arg16[%c0_116, %c0_117, %c0_118] : memref<2x64x32xbf16, #tpu.memory_space<vmem>>, vector<1x64x32xbf16>
    %317 = vector.shape_cast %316 : vector<1x64x32xbf16> to vector<64x32xbf16>
    %cst_119 = arith.constant dense<0.000000e+00> : vector<16x64xf32>
    %318 = tpu.matmul %315, %317, %cst_119 {dimension_numbers = #tpu.dot_dimension_numbers<[1], [1], [0], [0], [0, 0, 1, 0], [], []>} : vector<16x32xbf16>, vector<64x32xbf16>, vector<16x64xf32> -> vector<16x64xf32>
    %c0_120 = arith.constant 0 : index
    %c0_121 = arith.constant 0 : index
    %c0_122 = arith.constant 0 : index
    %319 = vector.load %arg17[%c0_120, %c0_121, %c0_122] : memref<2x1x64xf32, #tpu.memory_space<vmem>>, vector<1x1x64xf32>
    %320 = vector.shape_cast %319 : vector<1x1x64xf32> to vector<1x64xf32>
    %321 = vector.broadcast %320 : vector<1x64xf32> to vector<16x64xf32>
    %322 = arith.addf %318, %321 : vector<16x64xf32>
    %cst_123 = arith.constant 0.000000e+00 : f32
    %323 = vector.broadcast %cst_123 : f32 to vector<16x64xf32>
    %324 = arith.maximumf %322, %323 : vector<16x64xf32>
    %325 = arith.truncf %324 : vector<16x64xf32> to vector<16x64xbf16>
    %c0_124 = arith.constant 0 : index
    %c0_125 = arith.constant 0 : index
    %c0_126 = arith.constant 0 : index
    %326 = vector.load %arg18[%c0_124, %c0_125, %c0_126] : memref<2x32x64xbf16, #tpu.memory_space<vmem>>, vector<1x32x64xbf16>
    %327 = vector.shape_cast %326 : vector<1x32x64xbf16> to vector<32x64xbf16>
    %cst_127 = arith.constant dense<0.000000e+00> : vector<16x32xf32>
    %328 = tpu.matmul %325, %327, %cst_127 {dimension_numbers = #tpu.dot_dimension_numbers<[1], [1], [0], [0], [0, 0, 1, 0], [], []>} : vector<16x64xbf16>, vector<32x64xbf16>, vector<16x32xf32> -> vector<16x32xf32>
    %c0_128 = arith.constant 0 : index
    %c0_129 = arith.constant 0 : index
    %c0_130 = arith.constant 0 : index
    %329 = vector.load %arg19[%c0_128, %c0_129, %c0_130] : memref<2x1x32xf32, #tpu.memory_space<vmem>>, vector<1x1x32xf32>
    %330 = vector.shape_cast %329 : vector<1x1x32xf32> to vector<1x32xf32>
    %331 = vector.broadcast %330 : vector<1x32xf32> to vector<16x32xf32>
    %332 = arith.addf %328, %331 : vector<16x32xf32>
    %333 = arith.addf %314, %332 : vector<16x32xf32>
    %c0_131 = arith.constant 0 : index
    %c0_132 = arith.constant 0 : index
    %c0_133 = arith.constant 0 : index
    %334 = vector.load %arg20[%c0_131, %c0_132, %c0_133] : memref<2x1x32xf32, #tpu.memory_space<vmem>>, vector<1x1x32xf32>
    %335 = vector.shape_cast %334 : vector<1x1x32xf32> to vector<1x32xf32>
    %c0_134 = arith.constant 0 : index
    %c0_135 = arith.constant 0 : index
    %c0_136 = arith.constant 0 : index
    %336 = vector.load %arg21[%c0_134, %c0_135, %c0_136] : memref<2x1x32xf32, #tpu.memory_space<vmem>>, vector<1x1x32xf32>
    %337 = vector.shape_cast %336 : vector<1x1x32xf32> to vector<1x32xf32>
    %cst_137 = arith.constant dense<0.000000e+00> : vector<16xf32>
    %338 = vector.multi_reduction <add>, %333, %cst_137 [1] : vector<16x32xf32> to vector<16xf32>
    %339 = vector.shape_cast %338 : vector<16xf32> to vector<16x1xf32>
    %cst_138 = arith.constant 3.200000e+01 : f32
    %340 = vector.broadcast %cst_138 : f32 to vector<16x1xf32>
    %341 = arith.divf %339, %340 : vector<16x1xf32>
    %342 = vector.broadcast %341 : vector<16x1xf32> to vector<16x32xf32>
    %343 = arith.subf %333, %342 : vector<16x32xf32>
    %344 = arith.mulf %343, %343 : vector<16x32xf32>
    %cst_139 = arith.constant dense<0.000000e+00> : vector<16xf32>
    %345 = vector.multi_reduction <add>, %344, %cst_139 [1] : vector<16x32xf32> to vector<16xf32>
    %346 = vector.shape_cast %345 : vector<16xf32> to vector<16x1xf32>
    %cst_140 = arith.constant 3.200000e+01 : f32
    %347 = vector.broadcast %cst_140 : f32 to vector<16x1xf32>
    %348 = arith.divf %346, %347 : vector<16x1xf32>
    %cst_141 = arith.constant 9.99999974E-6 : f32
    %349 = vector.broadcast %cst_141 : f32 to vector<16x1xf32>
    %350 = arith.addf %348, %349 : vector<16x1xf32>
    %351 = math.rsqrt %350 : vector<16x1xf32>
    %352 = vector.broadcast %351 : vector<16x1xf32> to vector<16x32xf32>
    %353 = arith.mulf %343, %352 : vector<16x32xf32>
    %354 = vector.broadcast %335 : vector<1x32xf32> to vector<16x32xf32>
    %355 = arith.mulf %353, %354 : vector<16x32xf32>
    %356 = vector.broadcast %337 : vector<1x32xf32> to vector<16x32xf32>
    %357 = arith.addf %355, %356 : vector<16x32xf32>
    %358 = arith.truncf %357 : vector<16x32xf32> to vector<16x32xbf16>
    %c1 = arith.constant 1 : index
    %c0_142 = arith.constant 0 : index
    %c0_143 = arith.constant 0 : index
    %359 = vector.load %arg4[%c1, %c0_142, %c0_143] : memref<2x96x32xbf16, #tpu.memory_space<vmem>>, vector<1x96x32xbf16>
    %360 = vector.shape_cast %359 : vector<1x96x32xbf16> to vector<96x32xbf16>
    %cst_144 = arith.constant dense<0.000000e+00> : vector<16x96xf32>
    %361 = tpu.matmul %358, %360, %cst_144 {dimension_numbers = #tpu.dot_dimension_numbers<[1], [1], [0], [0], [0, 0, 1, 0], [], []>} : vector<16x32xbf16>, vector<96x32xbf16>, vector<16x96xf32> -> vector<16x96xf32>
    %c1_145 = arith.constant 1 : index
    %c0_146 = arith.constant 0 : index
    %c0_147 = arith.constant 0 : index
    %362 = vector.load %arg5[%c1_145, %c0_146, %c0_147] : memref<2x1x96xf32, #tpu.memory_space<vmem>>, vector<1x1x96xf32>
    %363 = vector.shape_cast %362 : vector<1x1x96xf32> to vector<1x96xf32>
    %364 = vector.broadcast %363 : vector<1x96xf32> to vector<16x96xf32>
    %365 = arith.addf %361, %364 : vector<16x96xf32>
    %366 = vector.extract_strided_slice %365 {offsets = [0, 0], sizes = [16, 32], strides = [1, 1]} : vector<16x96xf32> to vector<16x32xf32>
    %cst_148 = arith.constant 2.500000e-01 : f32
    %367 = vector.broadcast %cst_148 : f32 to vector<16x32xf32>
    %368 = arith.mulf %366, %367 : vector<16x32xf32>
    %369 = arith.truncf %368 : vector<16x32xf32> to vector<16x32xbf16>
    %370 = vector.extract_strided_slice %365 {offsets = [0, 32], sizes = [16, 32], strides = [1, 1]} : vector<16x96xf32> to vector<16x32xf32>
    %371 = arith.truncf %370 : vector<16x32xf32> to vector<16x32xbf16>
    %372 = vector.extract_strided_slice %365 {offsets = [0, 64], sizes = [16, 32], strides = [1, 1]} : vector<16x96xf32> to vector<16x32xf32>
    %373 = arith.truncf %372 : vector<16x32xf32> to vector<16x32xbf16>
    %c1_149 = arith.constant 1 : index
    %c0_150 = arith.constant 0 : index
    %c0_151 = arith.constant 0 : index
    %374 = vector.load %arg6[%c1_149, %c0_150, %c0_151] : memref<2x32x32xbf16, #tpu.memory_space<vmem>>, vector<1x32x32xbf16>
    %375 = vector.shape_cast %374 : vector<1x32x32xbf16> to vector<32x32xbf16>
    %c1_152 = arith.constant 1 : index
    %c0_153 = arith.constant 0 : index
    %c0_154 = arith.constant 0 : index
    %376 = vector.load %arg7[%c1_152, %c0_153, %c0_154] : memref<2x1x32xf32, #tpu.memory_space<vmem>>, vector<1x1x32xf32>
    %377 = vector.shape_cast %376 : vector<1x1x32xf32> to vector<1x32xf32>
    %378 = vector.extract_strided_slice %369 {offsets = [0, 0], sizes = [8, 32], strides = [1, 1]} : vector<16x32xbf16> to vector<8x32xbf16>
    %379 = vector.extract_strided_slice %371 {offsets = [0, 0], sizes = [8, 32], strides = [1, 1]} : vector<16x32xbf16> to vector<8x32xbf16>
    %380 = vector.extract_strided_slice %373 {offsets = [0, 0], sizes = [8, 32], strides = [1, 1]} : vector<16x32xbf16> to vector<8x32xbf16>
    %381 = vector.extract_strided_slice %378 {offsets = [0, 0], sizes = [8, 16], strides = [1, 1]} : vector<8x32xbf16> to vector<8x16xbf16>
    %382 = vector.extract_strided_slice %379 {offsets = [0, 0], sizes = [8, 16], strides = [1, 1]} : vector<8x32xbf16> to vector<8x16xbf16>
    %383 = vector.extract_strided_slice %380 {offsets = [0, 0], sizes = [8, 16], strides = [1, 1]} : vector<8x32xbf16> to vector<8x16xbf16>
    %cst_155 = arith.constant dense<0.000000e+00> : vector<8x8xf32>
    %384 = tpu.matmul %381, %382, %cst_155 {dimension_numbers = #tpu.dot_dimension_numbers<[1], [1], [0], [0], [0, 0, 1, 0], [], []>} : vector<8x16xbf16>, vector<8x16xbf16>, vector<8x8xf32> -> vector<8x8xf32>
    %cst_156 = arith.constant -1.000000e+30 : f32
    %385 = vector.broadcast %cst_156 : f32 to vector<8x8xf32>
    %386 = arith.select %4, %384, %385 : vector<8x8xi1>, vector<8x8xf32>
    %cst_157 = arith.constant dense<0xFF800000> : vector<8xf32>
    %387 = vector.multi_reduction <maximumf>, %386, %cst_157 [1] : vector<8x8xf32> to vector<8xf32>
    %388 = vector.shape_cast %387 : vector<8xf32> to vector<8x1xf32>
    %389 = vector.broadcast %388 : vector<8x1xf32> to vector<8x8xf32>
    %390 = arith.subf %386, %389 : vector<8x8xf32>
    %391 = math.exp %390 : vector<8x8xf32>
    %cst_158 = arith.constant dense<0.000000e+00> : vector<8xf32>
    %392 = vector.multi_reduction <add>, %391, %cst_158 [1] : vector<8x8xf32> to vector<8xf32>
    %393 = vector.shape_cast %392 : vector<8xf32> to vector<8x1xf32>
    %394 = tpu.reciprocal %393 {approx = true} : vector<8x1xf32> -> vector<8x1xf32>
    %395 = vector.broadcast %394 : vector<8x1xf32> to vector<8x8xf32>
    %396 = arith.mulf %391, %395 : vector<8x8xf32>
    %397 = arith.truncf %396 : vector<8x8xf32> to vector<8x8xbf16>
    %cst_159 = arith.constant dense<0.000000e+00> : vector<8x16xf32>
    %398 = tpu.matmul %397, %383, %cst_159 {dimension_numbers = #tpu.dot_dimension_numbers<[1], [0], [0], [1], [0, 0, 1, 1], [], []>} : vector<8x8xbf16>, vector<8x16xbf16>, vector<8x16xf32> -> vector<8x16xf32>
    %399 = arith.truncf %398 : vector<8x16xf32> to vector<8x16xbf16>
    %400 = vector.extract_strided_slice %375 {offsets = [0, 0], sizes = [32, 16], strides = [1, 1]} : vector<32x32xbf16> to vector<32x16xbf16>
    %cst_160 = arith.constant dense<0.000000e+00> : vector<8x32xf32>
    %401 = tpu.matmul %399, %400, %cst_160 {dimension_numbers = #tpu.dot_dimension_numbers<[1], [1], [0], [0], [0, 0, 1, 0], [], []>} : vector<8x16xbf16>, vector<32x16xbf16>, vector<8x32xf32> -> vector<8x32xf32>
    %402 = vector.broadcast %377 : vector<1x32xf32> to vector<8x32xf32>
    %403 = arith.addf %402, %401 : vector<8x32xf32>
    %404 = vector.extract_strided_slice %378 {offsets = [0, 16], sizes = [8, 16], strides = [1, 1]} : vector<8x32xbf16> to vector<8x16xbf16>
    %405 = vector.extract_strided_slice %379 {offsets = [0, 16], sizes = [8, 16], strides = [1, 1]} : vector<8x32xbf16> to vector<8x16xbf16>
    %406 = vector.extract_strided_slice %380 {offsets = [0, 16], sizes = [8, 16], strides = [1, 1]} : vector<8x32xbf16> to vector<8x16xbf16>
    %cst_161 = arith.constant dense<0.000000e+00> : vector<8x8xf32>
    %407 = tpu.matmul %404, %405, %cst_161 {dimension_numbers = #tpu.dot_dimension_numbers<[1], [1], [0], [0], [0, 0, 1, 0], [], []>} : vector<8x16xbf16>, vector<8x16xbf16>, vector<8x8xf32> -> vector<8x8xf32>
    %cst_162 = arith.constant -1.000000e+30 : f32
    %408 = vector.broadcast %cst_162 : f32 to vector<8x8xf32>
    %409 = arith.select %4, %407, %408 : vector<8x8xi1>, vector<8x8xf32>
    %cst_163 = arith.constant dense<0xFF800000> : vector<8xf32>
    %410 = vector.multi_reduction <maximumf>, %409, %cst_163 [1] : vector<8x8xf32> to vector<8xf32>
    %411 = vector.shape_cast %410 : vector<8xf32> to vector<8x1xf32>
    %412 = vector.broadcast %411 : vector<8x1xf32> to vector<8x8xf32>
    %413 = arith.subf %409, %412 : vector<8x8xf32>
    %414 = math.exp %413 : vector<8x8xf32>
    %cst_164 = arith.constant dense<0.000000e+00> : vector<8xf32>
    %415 = vector.multi_reduction <add>, %414, %cst_164 [1] : vector<8x8xf32> to vector<8xf32>
    %416 = vector.shape_cast %415 : vector<8xf32> to vector<8x1xf32>
    %417 = tpu.reciprocal %416 {approx = true} : vector<8x1xf32> -> vector<8x1xf32>
    %418 = vector.broadcast %417 : vector<8x1xf32> to vector<8x8xf32>
    %419 = arith.mulf %414, %418 : vector<8x8xf32>
    %420 = arith.truncf %419 : vector<8x8xf32> to vector<8x8xbf16>
    %cst_165 = arith.constant dense<0.000000e+00> : vector<8x16xf32>
    %421 = tpu.matmul %420, %406, %cst_165 {dimension_numbers = #tpu.dot_dimension_numbers<[1], [0], [0], [1], [0, 0, 1, 1], [], []>} : vector<8x8xbf16>, vector<8x16xbf16>, vector<8x16xf32> -> vector<8x16xf32>
    %422 = arith.truncf %421 : vector<8x16xf32> to vector<8x16xbf16>
    %423 = vector.extract_strided_slice %375 {offsets = [0, 16], sizes = [32, 16], strides = [1, 1]} : vector<32x32xbf16> to vector<32x16xbf16>
    %cst_166 = arith.constant dense<0.000000e+00> : vector<8x32xf32>
    %424 = tpu.matmul %422, %423, %cst_166 {dimension_numbers = #tpu.dot_dimension_numbers<[1], [1], [0], [0], [0, 0, 1, 0], [], []>} : vector<8x16xbf16>, vector<32x16xbf16>, vector<8x32xf32> -> vector<8x32xf32>
    %425 = arith.addf %403, %424 : vector<8x32xf32>
    %c0_167 = arith.constant 0 : index
    %c0_168 = arith.constant 0 : index
    %426 = vector.load %arg23[%c0_167, %c0_168] : memref<16x32xf32, #tpu.memory_space<vmem>>, vector<8x32xf32>
    tpu.vector_store %arg23[%c0_167, %c0_168], %425 {strides = array<i32>} : memref<16x32xf32, #tpu.memory_space<vmem>>, vector<8x32xf32>,
    %427 = vector.extract_strided_slice %369 {offsets = [8, 0], sizes = [8, 32], strides = [1, 1]} : vector<16x32xbf16> to vector<8x32xbf16>
    %428 = vector.extract_strided_slice %371 {offsets = [8, 0], sizes = [8, 32], strides = [1, 1]} : vector<16x32xbf16> to vector<8x32xbf16>
    %429 = vector.extract_strided_slice %373 {offsets = [8, 0], sizes = [8, 32], strides = [1, 1]} : vector<16x32xbf16> to vector<8x32xbf16>
    %430 = vector.extract_strided_slice %427 {offsets = [0, 0], sizes = [8, 16], strides = [1, 1]} : vector<8x32xbf16> to vector<8x16xbf16>
    %431 = vector.extract_strided_slice %428 {offsets = [0, 0], sizes = [8, 16], strides = [1, 1]} : vector<8x32xbf16> to vector<8x16xbf16>
    %432 = vector.extract_strided_slice %429 {offsets = [0, 0], sizes = [8, 16], strides = [1, 1]} : vector<8x32xbf16> to vector<8x16xbf16>
    %cst_169 = arith.constant dense<0.000000e+00> : vector<8x8xf32>
    %433 = tpu.matmul %430, %431, %cst_169 {dimension_numbers = #tpu.dot_dimension_numbers<[1], [1], [0], [0], [0, 0, 1, 0], [], []>} : vector<8x16xbf16>, vector<8x16xbf16>, vector<8x8xf32> -> vector<8x8xf32>
    %cst_170 = arith.constant -1.000000e+30 : f32
    %434 = vector.broadcast %cst_170 : f32 to vector<8x8xf32>
    %435 = arith.select %4, %433, %434 : vector<8x8xi1>, vector<8x8xf32>
    %cst_171 = arith.constant dense<0xFF800000> : vector<8xf32>
    %436 = vector.multi_reduction <maximumf>, %435, %cst_171 [1] : vector<8x8xf32> to vector<8xf32>
    %437 = vector.shape_cast %436 : vector<8xf32> to vector<8x1xf32>
    %438 = vector.broadcast %437 : vector<8x1xf32> to vector<8x8xf32>
    %439 = arith.subf %435, %438 : vector<8x8xf32>
    %440 = math.exp %439 : vector<8x8xf32>
    %cst_172 = arith.constant dense<0.000000e+00> : vector<8xf32>
    %441 = vector.multi_reduction <add>, %440, %cst_172 [1] : vector<8x8xf32> to vector<8xf32>
    %442 = vector.shape_cast %441 : vector<8xf32> to vector<8x1xf32>
    %443 = tpu.reciprocal %442 {approx = true} : vector<8x1xf32> -> vector<8x1xf32>
    %444 = vector.broadcast %443 : vector<8x1xf32> to vector<8x8xf32>
    %445 = arith.mulf %440, %444 : vector<8x8xf32>
    %446 = arith.truncf %445 : vector<8x8xf32> to vector<8x8xbf16>
    %cst_173 = arith.constant dense<0.000000e+00> : vector<8x16xf32>
    %447 = tpu.matmul %446, %432, %cst_173 {dimension_numbers = #tpu.dot_dimension_numbers<[1], [0], [0], [1], [0, 0, 1, 1], [], []>} : vector<8x8xbf16>, vector<8x16xbf16>, vector<8x16xf32> -> vector<8x16xf32>
    %448 = arith.truncf %447 : vector<8x16xf32> to vector<8x16xbf16>
    %449 = vector.extract_strided_slice %375 {offsets = [0, 0], sizes = [32, 16], strides = [1, 1]} : vector<32x32xbf16> to vector<32x16xbf16>
    %cst_174 = arith.constant dense<0.000000e+00> : vector<8x32xf32>
    %450 = tpu.matmul %448, %449, %cst_174 {dimension_numbers = #tpu.dot_dimension_numbers<[1], [1], [0], [0], [0, 0, 1, 0], [], []>} : vector<8x16xbf16>, vector<32x16xbf16>, vector<8x32xf32> -> vector<8x32xf32>
    %451 = vector.broadcast %377 : vector<1x32xf32> to vector<8x32xf32>
    %452 = arith.addf %451, %450 : vector<8x32xf32>
    %453 = vector.extract_strided_slice %427 {offsets = [0, 16], sizes = [8, 16], strides = [1, 1]} : vector<8x32xbf16> to vector<8x16xbf16>
    %454 = vector.extract_strided_slice %428 {offsets = [0, 16], sizes = [8, 16], strides = [1, 1]} : vector<8x32xbf16> to vector<8x16xbf16>
    %455 = vector.extract_strided_slice %429 {offsets = [0, 16], sizes = [8, 16], strides = [1, 1]} : vector<8x32xbf16> to vector<8x16xbf16>
    %cst_175 = arith.constant dense<0.000000e+00> : vector<8x8xf32>
    %456 = tpu.matmul %453, %454, %cst_175 {dimension_numbers = #tpu.dot_dimension_numbers<[1], [1], [0], [0], [0, 0, 1, 0], [], []>} : vector<8x16xbf16>, vector<8x16xbf16>, vector<8x8xf32> -> vector<8x8xf32>
    %cst_176 = arith.constant -1.000000e+30 : f32
    %457 = vector.broadcast %cst_176 : f32 to vector<8x8xf32>
    %458 = arith.select %4, %456, %457 : vector<8x8xi1>, vector<8x8xf32>
    %cst_177 = arith.constant dense<0xFF800000> : vector<8xf32>
    %459 = vector.multi_reduction <maximumf>, %458, %cst_177 [1] : vector<8x8xf32> to vector<8xf32>
    %460 = vector.shape_cast %459 : vector<8xf32> to vector<8x1xf32>
    %461 = vector.broadcast %460 : vector<8x1xf32> to vector<8x8xf32>
    %462 = arith.subf %458, %461 : vector<8x8xf32>
    %463 = math.exp %462 : vector<8x8xf32>
    %cst_178 = arith.constant dense<0.000000e+00> : vector<8xf32>
    %464 = vector.multi_reduction <add>, %463, %cst_178 [1] : vector<8x8xf32> to vector<8xf32>
    %465 = vector.shape_cast %464 : vector<8xf32> to vector<8x1xf32>
    %466 = tpu.reciprocal %465 {approx = true} : vector<8x1xf32> -> vector<8x1xf32>
    %467 = vector.broadcast %466 : vector<8x1xf32> to vector<8x8xf32>
    %468 = arith.mulf %463, %467 : vector<8x8xf32>
    %469 = arith.truncf %468 : vector<8x8xf32> to vector<8x8xbf16>
    %cst_179 = arith.constant dense<0.000000e+00> : vector<8x16xf32>
    %470 = tpu.matmul %469, %455, %cst_179 {dimension_numbers = #tpu.dot_dimension_numbers<[1], [0], [0], [1], [0, 0, 1, 1], [], []>} : vector<8x8xbf16>, vector<8x16xbf16>, vector<8x16xf32> -> vector<8x16xf32>
    %471 = arith.truncf %470 : vector<8x16xf32> to vector<8x16xbf16>
    %472 = vector.extract_strided_slice %375 {offsets = [0, 16], sizes = [32, 16], strides = [1, 1]} : vector<32x32xbf16> to vector<32x16xbf16>
    %cst_180 = arith.constant dense<0.000000e+00> : vector<8x32xf32>
    %473 = tpu.matmul %471, %472, %cst_180 {dimension_numbers = #tpu.dot_dimension_numbers<[1], [1], [0], [0], [0, 0, 1, 0], [], []>} : vector<8x16xbf16>, vector<32x16xbf16>, vector<8x32xf32> -> vector<8x32xf32>
    %474 = arith.addf %452, %473 : vector<8x32xf32>
    %c8_181 = arith.constant 8 : index
    %c0_182 = arith.constant 0 : index
    %475 = vector.load %arg23[%c8_181, %c0_182] : memref<16x32xf32, #tpu.memory_space<vmem>>, vector<8x32xf32>
    tpu.vector_store %arg23[%c8_181, %c0_182], %474 {strides = array<i32>} : memref<16x32xf32, #tpu.memory_space<vmem>>, vector<8x32xf32>,
    %c0_183 = arith.constant 0 : index
    %c0_184 = arith.constant 0 : index
    %476 = vector.load %arg23[%c0_183, %c0_184] : memref<16x32xf32, #tpu.memory_space<vmem>>, vector<16x32xf32>
    %477 = arith.addf %357, %476 : vector<16x32xf32>
    %c1_185 = arith.constant 1 : index
    %c0_186 = arith.constant 0 : index
    %c0_187 = arith.constant 0 : index
    %478 = vector.load %arg8[%c1_185, %c0_186, %c0_187] : memref<2x1x32xf32, #tpu.memory_space<vmem>>, vector<1x1x32xf32>
    %479 = vector.shape_cast %478 : vector<1x1x32xf32> to vector<1x32xf32>
    %c1_188 = arith.constant 1 : index
    %c0_189 = arith.constant 0 : index
    %c0_190 = arith.constant 0 : index
    %480 = vector.load %arg9[%c1_188, %c0_189, %c0_190] : memref<2x1x32xf32, #tpu.memory_space<vmem>>, vector<1x1x32xf32>
    %481 = vector.shape_cast %480 : vector<1x1x32xf32> to vector<1x32xf32>
    %cst_191 = arith.constant dense<0.000000e+00> : vector<16xf32>
    %482 = vector.multi_reduction <add>, %477, %cst_191 [1] : vector<16x32xf32> to vector<16xf32>
    %483 = vector.shape_cast %482 : vector<16xf32> to vector<16x1xf32>
    %cst_192 = arith.constant 3.200000e+01 : f32
    %484 = vector.broadcast %cst_192 : f32 to vector<16x1xf32>
    %485 = arith.divf %483, %484 : vector<16x1xf32>
    %486 = vector.broadcast %485 : vector<16x1xf32> to vector<16x32xf32>
    %487 = arith.subf %477, %486 : vector<16x32xf32>
    %488 = arith.mulf %487, %487 : vector<16x32xf32>
    %cst_193 = arith.constant dense<0.000000e+00> : vector<16xf32>
    %489 = vector.multi_reduction <add>, %488, %cst_193 [1] : vector<16x32xf32> to vector<16xf32>
    %490 = vector.shape_cast %489 : vector<16xf32> to vector<16x1xf32>
    %cst_194 = arith.constant 3.200000e+01 : f32
    %491 = vector.broadcast %cst_194 : f32 to vector<16x1xf32>
    %492 = arith.divf %490, %491 : vector<16x1xf32>
    %cst_195 = arith.constant 9.99999974E-6 : f32
    %493 = vector.broadcast %cst_195 : f32 to vector<16x1xf32>
    %494 = arith.addf %492, %493 : vector<16x1xf32>
    %495 = math.rsqrt %494 : vector<16x1xf32>
    %496 = vector.broadcast %495 : vector<16x1xf32> to vector<16x32xf32>
    %497 = arith.mulf %487, %496 : vector<16x32xf32>
    %498 = vector.broadcast %479 : vector<1x32xf32> to vector<16x32xf32>
    %499 = arith.mulf %497, %498 : vector<16x32xf32>
    %500 = vector.broadcast %481 : vector<1x32xf32> to vector<16x32xf32>
    %501 = arith.addf %499, %500 : vector<16x32xf32>
    %c1_196 = arith.constant 1 : index
    %c0_197 = arith.constant 0 : index
    %c0_198 = arith.constant 0 : index
    %502 = vector.load %arg10[%c1_196, %c0_197, %c0_198] : memref<2x96x32xbf16, #tpu.memory_space<vmem>>, vector<1x96x32xbf16>
    %503 = vector.shape_cast %502 : vector<1x96x32xbf16> to vector<96x32xbf16>
    %c1_199 = arith.constant 1 : index
    %c0_200 = arith.constant 0 : index
    %c0_201 = arith.constant 0 : index
    %504 = vector.load %arg11[%c1_199, %c0_200, %c0_201] : memref<2x1x96xf32, #tpu.memory_space<vmem>>, vector<1x1x96xf32>
    %505 = vector.shape_cast %504 : vector<1x1x96xf32> to vector<1x96xf32>
    %506 = arith.truncf %501 : vector<16x32xf32> to vector<16x32xbf16>
    %507 = vector.extract_strided_slice %503 {offsets = [0, 0], sizes = [32, 32], strides = [1, 1]} : vector<96x32xbf16> to vector<32x32xbf16>
    %cst_202 = arith.constant dense<0.000000e+00> : vector<16x32xf32>
    %508 = tpu.matmul %506, %507, %cst_202 {dimension_numbers = #tpu.dot_dimension_numbers<[1], [1], [0], [0], [0, 0, 1, 0], [], []>} : vector<16x32xbf16>, vector<32x32xbf16>, vector<16x32xf32> -> vector<16x32xf32>
    %509 = vector.extract_strided_slice %505 {offsets = [0, 0], sizes = [1, 32], strides = [1, 1]} : vector<1x96xf32> to vector<1x32xf32>
    %510 = vector.broadcast %509 : vector<1x32xf32> to vector<16x32xf32>
    %511 = arith.addf %508, %510 : vector<16x32xf32>
    %cst_203 = arith.constant 2.500000e-01 : f32
    %512 = vector.broadcast %cst_203 : f32 to vector<16x32xf32>
    %513 = arith.mulf %511, %512 : vector<16x32xf32>
    %514 = arith.truncf %513 : vector<16x32xf32> to vector<16x32xbf16>
    %515 = vector.extract_strided_slice %503 {offsets = [32, 0], sizes = [64, 32], strides = [1, 1]} : vector<96x32xbf16> to vector<64x32xbf16>
    %cst_204 = arith.constant dense<0.000000e+00> : vector<32x64xf32>
    %516 = tpu.matmul %0, %515, %cst_204 {dimension_numbers = #tpu.dot_dimension_numbers<[1], [1], [0], [0], [0, 0, 1, 0], [], []>} : vector<32x32xbf16>, vector<64x32xbf16>, vector<32x64xf32> -> vector<32x64xf32>
    %517 = vector.extract_strided_slice %505 {offsets = [0, 32], sizes = [1, 64], strides = [1, 1]} : vector<1x96xf32> to vector<1x64xf32>
    %518 = vector.broadcast %517 : vector<1x64xf32> to vector<32x64xf32>
    %519 = arith.addf %516, %518 : vector<32x64xf32>
    %520 = vector.extract_strided_slice %519 {offsets = [0, 0], sizes = [32, 32], strides = [1, 1]} : vector<32x64xf32> to vector<32x32xf32>
    %521 = arith.truncf %520 : vector<32x32xf32> to vector<32x32xbf16>
    %522 = vector.extract_strided_slice %519 {offsets = [0, 32], sizes = [32, 32], strides = [1, 1]} : vector<32x64xf32> to vector<32x32xf32>
    %523 = arith.truncf %522 : vector<32x32xf32> to vector<32x32xbf16>
    %c1_205 = arith.constant 1 : index
    %c0_206 = arith.constant 0 : index
    %c0_207 = arith.constant 0 : index
    %524 = vector.load %arg12[%c1_205, %c0_206, %c0_207] : memref<2x32x32xbf16, #tpu.memory_space<vmem>>, vector<1x32x32xbf16>
    %525 = vector.shape_cast %524 : vector<1x32x32xbf16> to vector<32x32xbf16>
    %c1_208 = arith.constant 1 : index
    %c0_209 = arith.constant 0 : index
    %c0_210 = arith.constant 0 : index
    %526 = vector.load %arg13[%c1_208, %c0_209, %c0_210] : memref<2x1x32xf32, #tpu.memory_space<vmem>>, vector<1x1x32xf32>
    %527 = vector.shape_cast %526 : vector<1x1x32xf32> to vector<1x32xf32>
    %528 = vector.extract_strided_slice %1 {offsets = [0, 0], sizes = [1, 16], strides = [1, 1]} : vector<2x16xf32> to vector<1x16xf32>
    %cst_211 = arith.constant 5.000000e-01 : f32
    %529 = vector.broadcast %cst_211 : f32 to vector<1x16xf32>
    %530 = arith.cmpf ogt, %528, %529 : vector<1x16xf32>
    %531 = vector.extract_strided_slice %514 {offsets = [0, 0], sizes = [8, 32], strides = [1, 1]} : vector<16x32xbf16> to vector<8x32xbf16>
    %532 = vector.extract_strided_slice %521 {offsets = [0, 0], sizes = [16, 32], strides = [1, 1]} : vector<32x32xbf16> to vector<16x32xbf16>
    %533 = vector.extract_strided_slice %523 {offsets = [0, 0], sizes = [16, 32], strides = [1, 1]} : vector<32x32xbf16> to vector<16x32xbf16>
    %534 = vector.extract_strided_slice %531 {offsets = [0, 0], sizes = [8, 16], strides = [1, 1]} : vector<8x32xbf16> to vector<8x16xbf16>
    %535 = vector.extract_strided_slice %532 {offsets = [0, 0], sizes = [16, 16], strides = [1, 1]} : vector<16x32xbf16> to vector<16x16xbf16>
    %536 = vector.extract_strided_slice %533 {offsets = [0, 0], sizes = [16, 16], strides = [1, 1]} : vector<16x32xbf16> to vector<16x16xbf16>
    %cst_212 = arith.constant dense<0.000000e+00> : vector<8x16xf32>
    %537 = tpu.matmul %534, %535, %cst_212 {dimension_numbers = #tpu.dot_dimension_numbers<[1], [1], [0], [0], [0, 0, 1, 0], [], []>} : vector<8x16xbf16>, vector<16x16xbf16>, vector<8x16xf32> -> vector<8x16xf32>
    %cst_213 = arith.constant -1.000000e+30 : f32
    %538 = vector.shape_cast %530 : vector<1x16xi1> to vector<1x16xi1>
    %539 = vector.broadcast %538 : vector<1x16xi1> to vector<8x16xi1>
    %540 = vector.broadcast %cst_213 : f32 to vector<8x16xf32>
    %541 = arith.select %539, %537, %540 : vector<8x16xi1>, vector<8x16xf32>
    %cst_214 = arith.constant dense<0xFF800000> : vector<8xf32>
    %542 = vector.multi_reduction <maximumf>, %541, %cst_214 [1] : vector<8x16xf32> to vector<8xf32>
    %543 = vector.shape_cast %542 : vector<8xf32> to vector<8x1xf32>
    %544 = vector.broadcast %543 : vector<8x1xf32> to vector<8x16xf32>
    %545 = arith.subf %541, %544 : vector<8x16xf32>
    %546 = math.exp %545 : vector<8x16xf32>
    %cst_215 = arith.constant dense<0.000000e+00> : vector<8xf32>
    %547 = vector.multi_reduction <add>, %546, %cst_215 [1] : vector<8x16xf32> to vector<8xf32>
    %548 = vector.shape_cast %547 : vector<8xf32> to vector<8x1xf32>
    %549 = tpu.reciprocal %548 {approx = true} : vector<8x1xf32> -> vector<8x1xf32>
    %550 = vector.broadcast %549 : vector<8x1xf32> to vector<8x16xf32>
    %551 = arith.mulf %546, %550 : vector<8x16xf32>
    %552 = arith.truncf %551 : vector<8x16xf32> to vector<8x16xbf16>
    %cst_216 = arith.constant dense<0.000000e+00> : vector<8x16xf32>
    %553 = tpu.matmul %552, %536, %cst_216 {dimension_numbers = #tpu.dot_dimension_numbers<[1], [0], [0], [1], [0, 0, 1, 1], [], []>} : vector<8x16xbf16>, vector<16x16xbf16>, vector<8x16xf32> -> vector<8x16xf32>
    %554 = arith.truncf %553 : vector<8x16xf32> to vector<8x16xbf16>
    %555 = vector.extract_strided_slice %525 {offsets = [0, 0], sizes = [32, 16], strides = [1, 1]} : vector<32x32xbf16> to vector<32x16xbf16>
    %cst_217 = arith.constant dense<0.000000e+00> : vector<8x32xf32>
    %556 = tpu.matmul %554, %555, %cst_217 {dimension_numbers = #tpu.dot_dimension_numbers<[1], [1], [0], [0], [0, 0, 1, 0], [], []>} : vector<8x16xbf16>, vector<32x16xbf16>, vector<8x32xf32> -> vector<8x32xf32>
    %557 = vector.broadcast %527 : vector<1x32xf32> to vector<8x32xf32>
    %558 = arith.addf %557, %556 : vector<8x32xf32>
    %559 = vector.extract_strided_slice %531 {offsets = [0, 16], sizes = [8, 16], strides = [1, 1]} : vector<8x32xbf16> to vector<8x16xbf16>
    %560 = vector.extract_strided_slice %532 {offsets = [0, 16], sizes = [16, 16], strides = [1, 1]} : vector<16x32xbf16> to vector<16x16xbf16>
    %561 = vector.extract_strided_slice %533 {offsets = [0, 16], sizes = [16, 16], strides = [1, 1]} : vector<16x32xbf16> to vector<16x16xbf16>
    %cst_218 = arith.constant dense<0.000000e+00> : vector<8x16xf32>
    %562 = tpu.matmul %559, %560, %cst_218 {dimension_numbers = #tpu.dot_dimension_numbers<[1], [1], [0], [0], [0, 0, 1, 0], [], []>} : vector<8x16xbf16>, vector<16x16xbf16>, vector<8x16xf32> -> vector<8x16xf32>
    %cst_219 = arith.constant -1.000000e+30 : f32
    %563 = vector.shape_cast %530 : vector<1x16xi1> to vector<1x16xi1>
    %564 = vector.broadcast %563 : vector<1x16xi1> to vector<8x16xi1>
    %565 = vector.broadcast %cst_219 : f32 to vector<8x16xf32>
    %566 = arith.select %564, %562, %565 : vector<8x16xi1>, vector<8x16xf32>
    %cst_220 = arith.constant dense<0xFF800000> : vector<8xf32>
    %567 = vector.multi_reduction <maximumf>, %566, %cst_220 [1] : vector<8x16xf32> to vector<8xf32>
    %568 = vector.shape_cast %567 : vector<8xf32> to vector<8x1xf32>
    %569 = vector.broadcast %568 : vector<8x1xf32> to vector<8x16xf32>
    %570 = arith.subf %566, %569 : vector<8x16xf32>
    %571 = math.exp %570 : vector<8x16xf32>
    %cst_221 = arith.constant dense<0.000000e+00> : vector<8xf32>
    %572 = vector.multi_reduction <add>, %571, %cst_221 [1] : vector<8x16xf32> to vector<8xf32>
    %573 = vector.shape_cast %572 : vector<8xf32> to vector<8x1xf32>
    %574 = tpu.reciprocal %573 {approx = true} : vector<8x1xf32> -> vector<8x1xf32>
    %575 = vector.broadcast %574 : vector<8x1xf32> to vector<8x16xf32>
    %576 = arith.mulf %571, %575 : vector<8x16xf32>
    %577 = arith.truncf %576 : vector<8x16xf32> to vector<8x16xbf16>
    %cst_222 = arith.constant dense<0.000000e+00> : vector<8x16xf32>
    %578 = tpu.matmul %577, %561, %cst_222 {dimension_numbers = #tpu.dot_dimension_numbers<[1], [0], [0], [1], [0, 0, 1, 1], [], []>} : vector<8x16xbf16>, vector<16x16xbf16>, vector<8x16xf32> -> vector<8x16xf32>
    %579 = arith.truncf %578 : vector<8x16xf32> to vector<8x16xbf16>
    %580 = vector.extract_strided_slice %525 {offsets = [0, 16], sizes = [32, 16], strides = [1, 1]} : vector<32x32xbf16> to vector<32x16xbf16>
    %cst_223 = arith.constant dense<0.000000e+00> : vector<8x32xf32>
    %581 = tpu.matmul %579, %580, %cst_223 {dimension_numbers = #tpu.dot_dimension_numbers<[1], [1], [0], [0], [0, 0, 1, 0], [], []>} : vector<8x16xbf16>, vector<32x16xbf16>, vector<8x32xf32> -> vector<8x32xf32>
    %582 = arith.addf %558, %581 : vector<8x32xf32>
    %c0_224 = arith.constant 0 : index
    %c0_225 = arith.constant 0 : index
    %583 = vector.load %arg23[%c0_224, %c0_225] : memref<16x32xf32, #tpu.memory_space<vmem>>, vector<8x32xf32>
    tpu.vector_store %arg23[%c0_224, %c0_225], %582 {strides = array<i32>} : memref<16x32xf32, #tpu.memory_space<vmem>>, vector<8x32xf32>,
    %584 = vector.extract_strided_slice %1 {offsets = [1, 0], sizes = [1, 16], strides = [1, 1]} : vector<2x16xf32> to vector<1x16xf32>
    %cst_226 = arith.constant 5.000000e-01 : f32
    %585 = vector.broadcast %cst_226 : f32 to vector<1x16xf32>
    %586 = arith.cmpf ogt, %584, %585 : vector<1x16xf32>
    %587 = vector.extract_strided_slice %514 {offsets = [8, 0], sizes = [8, 32], strides = [1, 1]} : vector<16x32xbf16> to vector<8x32xbf16>
    %588 = vector.extract_strided_slice %521 {offsets = [16, 0], sizes = [16, 32], strides = [1, 1]} : vector<32x32xbf16> to vector<16x32xbf16>
    %589 = vector.extract_strided_slice %523 {offsets = [16, 0], sizes = [16, 32], strides = [1, 1]} : vector<32x32xbf16> to vector<16x32xbf16>
    %590 = vector.extract_strided_slice %587 {offsets = [0, 0], sizes = [8, 16], strides = [1, 1]} : vector<8x32xbf16> to vector<8x16xbf16>
    %591 = vector.extract_strided_slice %588 {offsets = [0, 0], sizes = [16, 16], strides = [1, 1]} : vector<16x32xbf16> to vector<16x16xbf16>
    %592 = vector.extract_strided_slice %589 {offsets = [0, 0], sizes = [16, 16], strides = [1, 1]} : vector<16x32xbf16> to vector<16x16xbf16>
    %cst_227 = arith.constant dense<0.000000e+00> : vector<8x16xf32>
    %593 = tpu.matmul %590, %591, %cst_227 {dimension_numbers = #tpu.dot_dimension_numbers<[1], [1], [0], [0], [0, 0, 1, 0], [], []>} : vector<8x16xbf16>, vector<16x16xbf16>, vector<8x16xf32> -> vector<8x16xf32>
    %cst_228 = arith.constant -1.000000e+30 : f32
    %594 = vector.shape_cast %586 : vector<1x16xi1> to vector<1x16xi1>
    %595 = vector.broadcast %594 : vector<1x16xi1> to vector<8x16xi1>
    %596 = vector.broadcast %cst_228 : f32 to vector<8x16xf32>
    %597 = arith.select %595, %593, %596 : vector<8x16xi1>, vector<8x16xf32>
    %cst_229 = arith.constant dense<0xFF800000> : vector<8xf32>
    %598 = vector.multi_reduction <maximumf>, %597, %cst_229 [1] : vector<8x16xf32> to vector<8xf32>
    %599 = vector.shape_cast %598 : vector<8xf32> to vector<8x1xf32>
    %600 = vector.broadcast %599 : vector<8x1xf32> to vector<8x16xf32>
    %601 = arith.subf %597, %600 : vector<8x16xf32>
    %602 = math.exp %601 : vector<8x16xf32>
    %cst_230 = arith.constant dense<0.000000e+00> : vector<8xf32>
    %603 = vector.multi_reduction <add>, %602, %cst_230 [1] : vector<8x16xf32> to vector<8xf32>
    %604 = vector.shape_cast %603 : vector<8xf32> to vector<8x1xf32>
    %605 = tpu.reciprocal %604 {approx = true} : vector<8x1xf32> -> vector<8x1xf32>
    %606 = vector.broadcast %605 : vector<8x1xf32> to vector<8x16xf32>
    %607 = arith.mulf %602, %606 : vector<8x16xf32>
    %608 = arith.truncf %607 : vector<8x16xf32> to vector<8x16xbf16>
    %cst_231 = arith.constant dense<0.000000e+00> : vector<8x16xf32>
    %609 = tpu.matmul %608, %592, %cst_231 {dimension_numbers = #tpu.dot_dimension_numbers<[1], [0], [0], [1], [0, 0, 1, 1], [], []>} : vector<8x16xbf16>, vector<16x16xbf16>, vector<8x16xf32> -> vector<8x16xf32>
    %610 = arith.truncf %609 : vector<8x16xf32> to vector<8x16xbf16>
    %611 = vector.extract_strided_slice %525 {offsets = [0, 0], sizes = [32, 16], strides = [1, 1]} : vector<32x32xbf16> to vector<32x16xbf16>
    %cst_232 = arith.constant dense<0.000000e+00> : vector<8x32xf32>
    %612 = tpu.matmul %610, %611, %cst_232 {dimension_numbers = #tpu.dot_dimension_numbers<[1], [1], [0], [0], [0, 0, 1, 0], [], []>} : vector<8x16xbf16>, vector<32x16xbf16>, vector<8x32xf32> -> vector<8x32xf32>
    %613 = vector.broadcast %527 : vector<1x32xf32> to vector<8x32xf32>
    %614 = arith.addf %613, %612 : vector<8x32xf32>
    %615 = vector.extract_strided_slice %587 {offsets = [0, 16], sizes = [8, 16], strides = [1, 1]} : vector<8x32xbf16> to vector<8x16xbf16>
    %616 = vector.extract_strided_slice %588 {offsets = [0, 16], sizes = [16, 16], strides = [1, 1]} : vector<16x32xbf16> to vector<16x16xbf16>
    %617 = vector.extract_strided_slice %589 {offsets = [0, 16], sizes = [16, 16], strides = [1, 1]} : vector<16x32xbf16> to vector<16x16xbf16>
    %cst_233 = arith.constant dense<0.000000e+00> : vector<8x16xf32>
    %618 = tpu.matmul %615, %616, %cst_233 {dimension_numbers = #tpu.dot_dimension_numbers<[1], [1], [0], [0], [0, 0, 1, 0], [], []>} : vector<8x16xbf16>, vector<16x16xbf16>, vector<8x16xf32> -> vector<8x16xf32>
    %cst_234 = arith.constant -1.000000e+30 : f32
    %619 = vector.shape_cast %586 : vector<1x16xi1> to vector<1x16xi1>
    %620 = vector.broadcast %619 : vector<1x16xi1> to vector<8x16xi1>
    %621 = vector.broadcast %cst_234 : f32 to vector<8x16xf32>
    %622 = arith.select %620, %618, %621 : vector<8x16xi1>, vector<8x16xf32>
    %cst_235 = arith.constant dense<0xFF800000> : vector<8xf32>
    %623 = vector.multi_reduction <maximumf>, %622, %cst_235 [1] : vector<8x16xf32> to vector<8xf32>
    %624 = vector.shape_cast %623 : vector<8xf32> to vector<8x1xf32>
    %625 = vector.broadcast %624 : vector<8x1xf32> to vector<8x16xf32>
    %626 = arith.subf %622, %625 : vector<8x16xf32>
    %627 = math.exp %626 : vector<8x16xf32>
    %cst_236 = arith.constant dense<0.000000e+00> : vector<8xf32>
    %628 = vector.multi_reduction <add>, %627, %cst_236 [1] : vector<8x16xf32> to vector<8xf32>
    %629 = vector.shape_cast %628 : vector<8xf32> to vector<8x1xf32>
    %630 = tpu.reciprocal %629 {approx = true} : vector<8x1xf32> -> vector<8x1xf32>
    %631 = vector.broadcast %630 : vector<8x1xf32> to vector<8x16xf32>
    %632 = arith.mulf %627, %631 : vector<8x16xf32>
    %633 = arith.truncf %632 : vector<8x16xf32> to vector<8x16xbf16>
    %cst_237 = arith.constant dense<0.000000e+00> : vector<8x16xf32>
    %634 = tpu.matmul %633, %617, %cst_237 {dimension_numbers = #tpu.dot_dimension_numbers<[1], [0], [0], [1], [0, 0, 1, 1], [], []>} : vector<8x16xbf16>, vector<16x16xbf16>, vector<8x16xf32> -> vector<8x16xf32>
    %635 = arith.truncf %634 : vector<8x16xf32> to vector<8x16xbf16>
    %636 = vector.extract_strided_slice %525 {offsets = [0, 16], sizes = [32, 16], strides = [1, 1]} : vector<32x32xbf16> to vector<32x16xbf16>
    %cst_238 = arith.constant dense<0.000000e+00> : vector<8x32xf32>
    %637 = tpu.matmul %635, %636, %cst_238 {dimension_numbers = #tpu.dot_dimension_numbers<[1], [1], [0], [0], [0, 0, 1, 0], [], []>} : vector<8x16xbf16>, vector<32x16xbf16>, vector<8x32xf32> -> vector<8x32xf32>
    %638 = arith.addf %614, %637 : vector<8x32xf32>
    %c8_239 = arith.constant 8 : index
    %c0_240 = arith.constant 0 : index
    %639 = vector.load %arg23[%c8_239, %c0_240] : memref<16x32xf32, #tpu.memory_space<vmem>>, vector<8x32xf32>
    tpu.vector_store %arg23[%c8_239, %c0_240], %638 {strides = array<i32>} : memref<16x32xf32, #tpu.memory_space<vmem>>, vector<8x32xf32>,
    %c0_241 = arith.constant 0 : index
    %c0_242 = arith.constant 0 : index
    %640 = vector.load %arg23[%c0_241, %c0_242] : memref<16x32xf32, #tpu.memory_space<vmem>>, vector<16x32xf32>
    %641 = arith.addf %501, %640 : vector<16x32xf32>
    %c1_243 = arith.constant 1 : index
    %c0_244 = arith.constant 0 : index
    %c0_245 = arith.constant 0 : index
    %642 = vector.load %arg14[%c1_243, %c0_244, %c0_245] : memref<2x1x32xf32, #tpu.memory_space<vmem>>, vector<1x1x32xf32>
    %643 = vector.shape_cast %642 : vector<1x1x32xf32> to vector<1x32xf32>
    %c1_246 = arith.constant 1 : index
    %c0_247 = arith.constant 0 : index
    %c0_248 = arith.constant 0 : index
    %644 = vector.load %arg15[%c1_246, %c0_247, %c0_248] : memref<2x1x32xf32, #tpu.memory_space<vmem>>, vector<1x1x32xf32>
    %645 = vector.shape_cast %644 : vector<1x1x32xf32> to vector<1x32xf32>
    %cst_249 = arith.constant dense<0.000000e+00> : vector<16xf32>
    %646 = vector.multi_reduction <add>, %641, %cst_249 [1] : vector<16x32xf32> to vector<16xf32>
    %647 = vector.shape_cast %646 : vector<16xf32> to vector<16x1xf32>
    %cst_250 = arith.constant 3.200000e+01 : f32
    %648 = vector.broadcast %cst_250 : f32 to vector<16x1xf32>
    %649 = arith.divf %647, %648 : vector<16x1xf32>
    %650 = vector.broadcast %649 : vector<16x1xf32> to vector<16x32xf32>
    %651 = arith.subf %641, %650 : vector<16x32xf32>
    %652 = arith.mulf %651, %651 : vector<16x32xf32>
    %cst_251 = arith.constant dense<0.000000e+00> : vector<16xf32>
    %653 = vector.multi_reduction <add>, %652, %cst_251 [1] : vector<16x32xf32> to vector<16xf32>
    %654 = vector.shape_cast %653 : vector<16xf32> to vector<16x1xf32>
    %cst_252 = arith.constant 3.200000e+01 : f32
    %655 = vector.broadcast %cst_252 : f32 to vector<16x1xf32>
    %656 = arith.divf %654, %655 : vector<16x1xf32>
    %cst_253 = arith.constant 9.99999974E-6 : f32
    %657 = vector.broadcast %cst_253 : f32 to vector<16x1xf32>
    %658 = arith.addf %656, %657 : vector<16x1xf32>
    %659 = math.rsqrt %658 : vector<16x1xf32>
    %660 = vector.broadcast %659 : vector<16x1xf32> to vector<16x32xf32>
    %661 = arith.mulf %651, %660 : vector<16x32xf32>
    %662 = vector.broadcast %643 : vector<1x32xf32> to vector<16x32xf32>
    %663 = arith.mulf %661, %662 : vector<16x32xf32>
    %664 = vector.broadcast %645 : vector<1x32xf32> to vector<16x32xf32>
    %665 = arith.addf %663, %664 : vector<16x32xf32>
    %666 = arith.truncf %665 : vector<16x32xf32> to vector<16x32xbf16>
    %c1_254 = arith.constant 1 : index
    %c0_255 = arith.constant 0 : index
    %c0_256 = arith.constant 0 : index
    %667 = vector.load %arg16[%c1_254, %c0_255, %c0_256] : memref<2x64x32xbf16, #tpu.memory_space<vmem>>, vector<1x64x32xbf16>
    %668 = vector.shape_cast %667 : vector<1x64x32xbf16> to vector<64x32xbf16>
    %cst_257 = arith.constant dense<0.000000e+00> : vector<16x64xf32>
    %669 = tpu.matmul %666, %668, %cst_257 {dimension_numbers = #tpu.dot_dimension_numbers<[1], [1], [0], [0], [0, 0, 1, 0], [], []>} : vector<16x32xbf16>, vector<64x32xbf16>, vector<16x64xf32> -> vector<16x64xf32>
    %c1_258 = arith.constant 1 : index
    %c0_259 = arith.constant 0 : index
    %c0_260 = arith.constant 0 : index
    %670 = vector.load %arg17[%c1_258, %c0_259, %c0_260] : memref<2x1x64xf32, #tpu.memory_space<vmem>>, vector<1x1x64xf32>
    %671 = vector.shape_cast %670 : vector<1x1x64xf32> to vector<1x64xf32>
    %672 = vector.broadcast %671 : vector<1x64xf32> to vector<16x64xf32>
    %673 = arith.addf %669, %672 : vector<16x64xf32>
    %cst_261 = arith.constant 0.000000e+00 : f32
    %674 = vector.broadcast %cst_261 : f32 to vector<16x64xf32>
    %675 = arith.maximumf %673, %674 : vector<16x64xf32>
    %676 = arith.truncf %675 : vector<16x64xf32> to vector<16x64xbf16>
    %c1_262 = arith.constant 1 : index
    %c0_263 = arith.constant 0 : index
    %c0_264 = arith.constant 0 : index
    %677 = vector.load %arg18[%c1_262, %c0_263, %c0_264] : memref<2x32x64xbf16, #tpu.memory_space<vmem>>, vector<1x32x64xbf16>
    %678 = vector.shape_cast %677 : vector<1x32x64xbf16> to vector<32x64xbf16>
    %cst_265 = arith.constant dense<0.000000e+00> : vector<16x32xf32>
    %679 = tpu.matmul %676, %678, %cst_265 {dimension_numbers = #tpu.dot_dimension_numbers<[1], [1], [0], [0], [0, 0, 1, 0], [], []>} : vector<16x64xbf16>, vector<32x64xbf16>, vector<16x32xf32> -> vector<16x32xf32>
    %c1_266 = arith.constant 1 : index
    %c0_267 = arith.constant 0 : index
    %c0_268 = arith.constant 0 : index
    %680 = vector.load %arg19[%c1_266, %c0_267, %c0_268] : memref<2x1x32xf32, #tpu.memory_space<vmem>>, vector<1x1x32xf32>
    %681 = vector.shape_cast %680 : vector<1x1x32xf32> to vector<1x32xf32>
    %682 = vector.broadcast %681 : vector<1x32xf32> to vector<16x32xf32>
    %683 = arith.addf %679, %682 : vector<16x32xf32>
    %684 = arith.addf %665, %683 : vector<16x32xf32>
    %c1_269 = arith.constant 1 : index
    %c0_270 = arith.constant 0 : index
    %c0_271 = arith.constant 0 : index
    %685 = vector.load %arg20[%c1_269, %c0_270, %c0_271] : memref<2x1x32xf32, #tpu.memory_space<vmem>>, vector<1x1x32xf32>
    %686 = vector.shape_cast %685 : vector<1x1x32xf32> to vector<1x32xf32>
    %c1_272 = arith.constant 1 : index
    %c0_273 = arith.constant 0 : index
    %c0_274 = arith.constant 0 : index
    %687 = vector.load %arg21[%c1_272, %c0_273, %c0_274] : memref<2x1x32xf32, #tpu.memory_space<vmem>>, vector<1x1x32xf32>
    %688 = vector.shape_cast %687 : vector<1x1x32xf32> to vector<1x32xf32>
    %cst_275 = arith.constant dense<0.000000e+00> : vector<16xf32>
    %689 = vector.multi_reduction <add>, %684, %cst_275 [1] : vector<16x32xf32> to vector<16xf32>
    %690 = vector.shape_cast %689 : vector<16xf32> to vector<16x1xf32>
    %cst_276 = arith.constant 3.200000e+01 : f32
    %691 = vector.broadcast %cst_276 : f32 to vector<16x1xf32>
    %692 = arith.divf %690, %691 : vector<16x1xf32>
    %693 = vector.broadcast %692 : vector<16x1xf32> to vector<16x32xf32>
    %694 = arith.subf %684, %693 : vector<16x32xf32>
    %695 = arith.mulf %694, %694 : vector<16x32xf32>
    %cst_277 = arith.constant dense<0.000000e+00> : vector<16xf32>
    %696 = vector.multi_reduction <add>, %695, %cst_277 [1] : vector<16x32xf32> to vector<16xf32>
    %697 = vector.shape_cast %696 : vector<16xf32> to vector<16x1xf32>
    %cst_278 = arith.constant 3.200000e+01 : f32
    %698 = vector.broadcast %cst_278 : f32 to vector<16x1xf32>
    %699 = arith.divf %697, %698 : vector<16x1xf32>
    %cst_279 = arith.constant 9.99999974E-6 : f32
    %700 = vector.broadcast %cst_279 : f32 to vector<16x1xf32>
    %701 = arith.addf %699, %700 : vector<16x1xf32>
    %702 = math.rsqrt %701 : vector<16x1xf32>
    %703 = vector.broadcast %702 : vector<16x1xf32> to vector<16x32xf32>
    %704 = arith.mulf %694, %703 : vector<16x32xf32>
    %705 = vector.broadcast %686 : vector<1x32xf32> to vector<16x32xf32>
    %706 = arith.mulf %704, %705 : vector<16x32xf32>
    %707 = vector.broadcast %688 : vector<1x32xf32> to vector<16x32xf32>
    %708 = arith.addf %706, %707 : vector<16x32xf32>
    %709 = arith.truncf %708 : vector<16x32xf32> to vector<16x32xbf16>
    %c0_280 = arith.constant 0 : index
    %c0_281 = arith.constant 0 : index
    %710 = vector.load %arg22[%c0_280, %c0_281] : memref<16x32xbf16, #tpu.memory_space<vmem>>, vector<16x32xbf16>
    tpu.vector_store %arg22[%c0_280, %c0_281], %709 {strides = array<i32>} : memref<16x32xbf16, #tpu.memory_space<vmem>>, vector<16x32xbf16>,
    return
  }
  func.func @transform_0(%arg0: i32) -> (i32, i32) {
    %c0_i32 = arith.constant 0 : i32
    %c0_i32_0 = arith.constant 0 : i32
    %c0_i32_1 = arith.constant 0 : i32
    return %c0_i32, %c0_i32_0 : i32, i32
  }
  func.func @transform_1(%arg0: i32) -> (i32, i32) {
    %c0_i32 = arith.constant 0 : i32
    %c0_i32_0 = arith.constant 0 : i32
    %c0_i32_1 = arith.constant 0 : i32
    return %c0_i32, %c0_i32_0 : i32, i32
  }
  func.func @transform_2(%arg0: i32) -> (i32, i32) {
    %c0_i32 = arith.constant 0 : i32
    %c0_i32_0 = arith.constant 0 : i32
    %c0_i32_1 = arith.constant 0 : i32
    return %c0_i32, %c0_i32_0 : i32, i32
  }
  func.func @transform_3(%arg0: i32) -> (i32, i32, i32) {
    %c0_i32 = arith.constant 0 : i32
    %c0_i32_0 = arith.constant 0 : i32
    %c0_i32_1 = arith.constant 0 : i32
    %c0_i32_2 = arith.constant 0 : i32
    return %c0_i32, %c0_i32_0, %c0_i32_1 : i32, i32, i32
  }
  func.func @transform_4(%arg0: i32) -> (i32, i32, i32) {
    %c0_i32 = arith.constant 0 : i32
    %c0_i32_0 = arith.constant 0 : i32
    %c0_i32_1 = arith.constant 0 : i32
    %c0_i32_2 = arith.constant 0 : i32
    return %c0_i32, %c0_i32_0, %c0_i32_1 : i32, i32, i32
  }
  func.func @transform_5(%arg0: i32) -> (i32, i32, i32) {
    %c0_i32 = arith.constant 0 : i32
    %c0_i32_0 = arith.constant 0 : i32
    %c0_i32_1 = arith.constant 0 : i32
    %c0_i32_2 = arith.constant 0 : i32
    return %c0_i32, %c0_i32_0, %c0_i32_1 : i32, i32, i32
  }
  func.func @transform_6(%arg0: i32) -> (i32, i32, i32) {
    %c0_i32 = arith.constant 0 : i32
    %c0_i32_0 = arith.constant 0 : i32
    %c0_i32_1 = arith.constant 0 : i32
    %c0_i32_2 = arith.constant 0 : i32
    return %c0_i32, %c0_i32_0, %c0_i32_1 : i32, i32, i32
  }
  func.func @transform_7(%arg0: i32) -> (i32, i32, i32) {
    %c0_i32 = arith.constant 0 : i32
    %c0_i32_0 = arith.constant 0 : i32
    %c0_i32_1 = arith.constant 0 : i32
    %c0_i32_2 = arith.constant 0 : i32
    return %c0_i32, %c0_i32_0, %c0_i32_1 : i32, i32, i32
  }
  func.func @transform_8(%arg0: i32) -> (i32, i32, i32) {
    %c0_i32 = arith.constant 0 : i32
    %c0_i32_0 = arith.constant 0 : i32
    %c0_i32_1 = arith.constant 0 : i32
    %c0_i32_2 = arith.constant 0 : i32
    return %c0_i32, %c0_i32_0, %c0_i32_1 : i32, i32, i32
  }
  func.func @transform_9(%arg0: i32) -> (i32, i32, i32) {
    %c0_i32 = arith.constant 0 : i32
    %c0_i32_0 = arith.constant 0 : i32
    %c0_i32_1 = arith.constant 0 : i32
    %c0_i32_2 = arith.constant 0 : i32
    return %c0_i32, %c0_i32_0, %c0_i32_1 : i32, i32, i32
  }
  func.func @transform_10(%arg0: i32) -> (i32, i32, i32) {
    %c0_i32 = arith.constant 0 : i32
    %c0_i32_0 = arith.constant 0 : i32
    %c0_i32_1 = arith.constant 0 : i32
    %c0_i32_2 = arith.constant 0 : i32
    return %c0_i32, %c0_i32_0, %c0_i32_1 : i32, i32, i32
  }
  func.func @transform_11(%arg0: i32) -> (i32, i32, i32) {
    %c0_i32 = arith.constant 0 : i32
    %c0_i32_0 = arith.constant 0 : i32
    %c0_i32_1 = arith.constant 0 : i32
    %c0_i32_2 = arith.constant 0 : i32
    return %c0_i32, %c0_i32_0, %c0_i32_1 : i32, i32, i32
  }
  func.func @transform_12(%arg0: i32) -> (i32, i32, i32) {
    %c0_i32 = arith.constant 0 : i32
    %c0_i32_0 = arith.constant 0 : i32
    %c0_i32_1 = arith.constant 0 : i32
    %c0_i32_2 = arith.constant 0 : i32
    return %c0_i32, %c0_i32_0, %c0_i32_1 : i32, i32, i32
  }
  func.func @transform_13(%arg0: i32) -> (i32, i32, i32) {
    %c0_i32 = arith.constant 0 : i32
    %c0_i32_0 = arith.constant 0 : i32
    %c0_i32_1 = arith.constant 0 : i32
    %c0_i32_2 = arith.constant 0 : i32
    return %c0_i32, %c0_i32_0, %c0_i32_1 : i32, i32, i32
  }
  func.func @transform_14(%arg0: i32) -> (i32, i32, i32) {
    %c0_i32 = arith.constant 0 : i32
    %c0_i32_0 = arith.constant 0 : i32
    %c0_i32_1 = arith.constant 0 : i32
    %c0_i32_2 = arith.constant 0 : i32
    return %c0_i32, %c0_i32_0, %c0_i32_1 : i32, i32, i32
  }
  func.func @transform_15(%arg0: i32) -> (i32, i32, i32) {
    %c0_i32 = arith.constant 0 : i32
    %c0_i32_0 = arith.constant 0 : i32
    %c0_i32_1 = arith.constant 0 : i32
    %c0_i32_2 = arith.constant 0 : i32
    return %c0_i32, %c0_i32_0, %c0_i32_1 : i32, i32, i32
  }
  func.func @transform_16(%arg0: i32) -> (i32, i32, i32) {
    %c0_i32 = arith.constant 0 : i32
    %c0_i32_0 = arith.constant 0 : i32
    %c0_i32_1 = arith.constant 0 : i32
    %c0_i32_2 = arith.constant 0 : i32
    return %c0_i32, %c0_i32_0, %c0_i32_1 : i32, i32, i32
  }
  func.func @transform_17(%arg0: i32) -> (i32, i32, i32) {
    %c0_i32 = arith.constant 0 : i32
    %c0_i32_0 = arith.constant 0 : i32
    %c0_i32_1 = arith.constant 0 : i32
    %c0_i32_2 = arith.constant 0 : i32
    return %c0_i32, %c0_i32_0, %c0_i32_1 : i32, i32, i32
  }
  func.func @transform_18(%arg0: i32) -> (i32, i32, i32) {
    %c0_i32 = arith.constant 0 : i32
    %c0_i32_0 = arith.constant 0 : i32
    %c0_i32_1 = arith.constant 0 : i32
    %c0_i32_2 = arith.constant 0 : i32
    return %c0_i32, %c0_i32_0, %c0_i32_1 : i32, i32, i32
  }
  func.func @transform_19(%arg0: i32) -> (i32, i32, i32) {
    %c0_i32 = arith.constant 0 : i32
    %c0_i32_0 = arith.constant 0 : i32
    %c0_i32_1 = arith.constant 0 : i32
    %c0_i32_2 = arith.constant 0 : i32
    return %c0_i32, %c0_i32_0, %c0_i32_1 : i32, i32, i32
  }
  func.func @transform_20(%arg0: i32) -> (i32, i32, i32) {
    %c0_i32 = arith.constant 0 : i32
    %c0_i32_0 = arith.constant 0 : i32
    %c0_i32_1 = arith.constant 0 : i32
    %c0_i32_2 = arith.constant 0 : i32
    return %c0_i32, %c0_i32_0, %c0_i32_1 : i32, i32, i32
  }
  func.func @transform_21(%arg0: i32) -> (i32, i32) {
    %c0_i32 = arith.constant 0 : i32
    %c0_i32_0 = arith.constant 0 : i32
    %c0_i32_1 = arith.constant 0 : i32
    return %c0_i32, %c0_i32_0 : i32, i32
  }
}

</mosaic_0001>

<llo_original>
// kernel: _lambda_.5
$region0: #{_lambda_.5}
  #allocation0 [shape = 'u32[]', space=smem, size = 0x4, offset = 0x4, fixed_abs, tag = 'smem constant byte address 0x4 - core index']
  #allocation1 [shape = 'u32[144,128]{1,0:T(1,128)}', space=vmem, size = 0x12000, scoped, tag = 'internal scratch']
  %s0 = inlined_call_operand.vmem [shape: bf16[16,32], index: 0, kind: input, shape index: {}]
  %s1 = inlined_call_operand.vmem [shape: bf16[128,32], index: 1, kind: input, shape index: {}]
  %s2 = inlined_call_operand.vmem [shape: s32[16,1], index: 2, kind: input, shape index: {}]
  %s3 = inlined_call_operand.vmem [shape: bf16[16,128], index: 3, kind: output, shape index: {0}]
  %s4 = inlined_call_operand.vmem [shape: f32[16,1], index: 4, kind: output, shape index: {1}]
  %s5 = inlined_call_operand.vmem [shape: s32[16,1], index: 5, kind: output, shape index: {2}]
  %6 = xla_tuple %s3, %s4, %s5
  %s7 = sld [smem:[#allocation0]]
  $region61: #{_lambda_.5} parent=0
    _
  %s9 = ssub.s32 1, %s7
  %s10 = scalar_select 0, %s9, %s7
  loop: start=0, step=1, limit=4
  $region2: #{_lambda_.5} parent=0 // loop_pre_header
    _
  $region3: #{_lambda_.5} parent=0 // loop_header
    %s12 = sphi 0, %s16
    %p13 = scmp.ge.s32.totalorder %s12, 4
    %s22 = sphi 0, %s24
    %s25 = sphi 0, %s22
    %s26 = sphi 0, %s25
    %s42 = sphi 0, %s26
    %s46 = sphi 0, %s46
    %s48 = sphi 0, %s46
    %s49 = sphi 0, %s48
    %s63 = sphi 0, %s49
    %s69 = sphi 0, %s71
    %s72 = sphi 0, %s69
    %s73 = sphi 0, %s72
    %s89 = sphi 0, %s73
    %s95 = sphi 0, %s97
    %s98 = sphi 0, %s95
    %s99 = sphi 0, %s98
    %s115 = sphi 0, %s99
    %s121 = sphi 0, %s123
    %s124 = sphi 0, %s121
    %s125 = sphi 0, %s124
    %s141 = sphi 0, %s125
    %s147 = sphi 0, %s149
    %s150 = sphi 0, %s147
    %s151 = sphi 0, %s150
    %s167 = sphi 0, %s151
  $region4: #{_lambda_.5} parent=0 // loop_header_branch
    %15 = sbr.rel (%p13) target = $region8
  $region5: #{_lambda_.5} parent=0 // loop_body
    %s17 = ssub.s32 %s12, 1
    %s18 = ssub.s32 %s12, 2
    %s19 = sadd.s32 %s12, 1
    %s20 = ssub.s32 %s12, %s19
    %p21 = scmp.eq.s32.totalorder %s20, 0
    %s23 = sadd.s32 %s22, 1
    %s24 = scalar_select %p21, %s22, %s23
    %p27 = pneg %p21
    %p28 = scmp.eq.s32.totalorder %s12, 1
    %p29 = por %p27, %p28
    %p30 = scmp.ne.s32.totalorder %s22, %s25
    %p31 = scmp.eq.s32.totalorder %s12, 0
    %p32 = por %p30, %p31
    %p33 = scmp.ne.s32.totalorder %s22, %s25
    %p34 = scmp.eq.s32.totalorder %s17, 1
    %p35 = por %p33, %p34
    %p36 = scmp.ne.s32.totalorder %s25, %s26
    %p37 = scmp.eq.s32.totalorder %s17, 0
    %p38 = por %p36, %p37
    %p39 = scmp.ne.s32.totalorder %s25, %s26
    %p40 = scmp.eq.s32.totalorder %s18, 1
    %p41 = por %p39, %p40
    %p43 = scmp.ne.s32.totalorder %s26, %s42
    %p44 = scmp.eq.s32.totalorder %s18, 0
    %p45 = por %p43, %p44
    %s47 = sadd.s32 %s46, 1
    %p50 = scmp.eq.s32.totalorder %s12, 1
    %p51 = scmp.ne.s32.totalorder %s46, %s48
    %p52 = scmp.eq.s32.totalorder %s12, 0
    %p53 = por %p51, %p52
    %p54 = scmp.ne.s32.totalorder %s46, %s48
    %p55 = scmp.eq.s32.totalorder %s17, 1
    %p56 = por %p54, %p55
    %p57 = scmp.ne.s32.totalorder %s48, %s49
    %p58 = scmp.eq.s32.totalorder %s17, 0
    %p59 = por %p57, %p58
    %p60 = scmp.ne.s32.totalorder %s48, %s49
    %p61 = scmp.eq.s32.totalorder %s18, 1
    %p62 = por %p60, %p61
    %p64 = scmp.ne.s32.totalorder %s49, %s63
    %p65 = scmp.eq.s32.totalorder %s18, 0
    %p66 = por %p64, %p65
    %s67 = ssub.s32 %s12, %s19
    %p68 = scmp.eq.s32.totalorder %s67, 0
    %s70 = sadd.s32 %s69, 1
    %s71 = scalar_select %p68, %s69, %s70
    %p74 = pneg %p68
    %p75 = scmp.eq.s32.totalorder %s12, 1
    %p76 = por %p74, %p75
    %p77 = scmp.ne.s32.totalorder %s69, %s72
    %p78 = scmp.eq.s32.totalorder %s12, 0
    %p79 = por %p77, %p78
    %p80 = scmp.ne.s32.totalorder %s69, %s72
    %p81 = scmp.eq.s32.totalorder %s17, 1
    %p82 = por %p80, %p81
    %p83 = scmp.ne.s32.totalorder %s72, %s73
    %p84 = scmp.eq.s32.totalorder %s17, 0
    %p85 = por %p83, %p84
    %p86 = scmp.ne.s32.totalorder %s72, %s73
    %p87 = scmp.eq.s32.totalorder %s18, 1
    %p88 = por %p86, %p87
    %p90 = scmp.ne.s32.totalorder %s73, %s89
    %p91 = scmp.eq.s32.totalorder %s18, 0
    %p92 = por %p90, %p91
    %s93 = ssub.s32 %s12, %s19
    %p94 = scmp.eq.s32.totalorder %s93, 0
    %s96 = sadd.s32 %s95, 1
    %s97 = scalar_select %p94, %s95, %s96
    %p100 = pneg %p94
    %p101 = scmp.eq.s32.totalorder %s12, 1
    %p102 = por %p100, %p101
    %p103 = scmp.ne.s32.totalorder %s95, %s98
    %p104 = scmp.eq.s32.totalorder %s12, 0
    %p105 = por %p103, %p104
    %p106 = scmp.ne.s32.totalorder %s95, %s98
    %p107 = scmp.eq.s32.totalorder %s17, 1
    %p108 = por %p106, %p107
    %p109 = scmp.ne.s32.totalorder %s98, %s99
    %p110 = scmp.eq.s32.totalorder %s17, 0
    %p111 = por %p109, %p110
    %p112 = scmp.ne.s32.totalorder %s98, %s99
    %p113 = scmp.eq.s32.totalorder %s18, 1
    %p114 = por %p112, %p113
    %p116 = scmp.ne.s32.totalorder %s99, %s115
    %p117 = scmp.eq.s32.totalorder %s18, 0
    %p118 = por %p116, %p117
    %s119 = ssub.s32 %s12, %s19
    %p120 = scmp.eq.s32.totalorder %s119, 0
    %s122 = sadd.s32 %s121, 1
    %s123 = scalar_select %p120, %s121, %s122
    %p126 = pneg %p120
    %p127 = scmp.eq.s32.totalorder %s12, 1
    %p128 = por %p126, %p127
    %p129 = scmp.ne.s32.totalorder %s121, %s124
    %p130 = scmp.eq.s32.totalorder %s12, 0
    %p131 = por %p129, %p130
    %p132 = scmp.ne.s32.totalorder %s121, %s124
    %p133 = scmp.eq.s32.totalorder %s17, 1
    %p134 = por %p132, %p133
    %p135 = scmp.ne.s32.totalorder %s124, %s125
    %p136 = scmp.eq.s32.totalorder %s17, 0
    %p137 = por %p135, %p136
    %p138 = scmp.ne.s32.totalorder %s124, %s125
    %p139 = scmp.eq.s32.totalorder %s18, 1
    %p140 = por %p138, %p139
    %p142 = scmp.ne.s32.totalorder %s125, %s141
    %p143 = scmp.eq.s32.totalorder %s18, 0
    %p144 = por %p142, %p143
    %s145 = ssub.s32 %s12, %s19
    %p146 = scmp.eq.s32.totalorder %s145, 0
    %s148 = sadd.s32 %s147, 1
    %s149 = scalar_select %p146, %s147, %s148
    %p152 = pneg %p146
    %p153 = scmp.eq.s32.totalorder %s12, 1
    %p154 = por %p152, %p153
    %p155 = scmp.ne.s32.totalorder %s147, %s150
    %p156 = scmp.eq.s32.totalorder %s12, 0
    %p157 = por %p155, %p156
    %p158 = scmp.ne.s32.totalorder %s147, %s150
    %p159 = scmp.eq.s32.totalorder %s17, 1
    %p160 = por %p158, %p159
    %p161 = scmp.ne.s32.totalorder %s150, %s151
    %p162 = scmp.eq.s32.totalorder %s17, 0
    %p163 = por %p161, %p162
    %p164 = scmp.ne.s32.totalorder %s150, %s151
    %p165 = scmp.eq.s32.totalorder %s18, 1
    %p166 = por %p164, %p165
    %p168 = scmp.ne.s32.totalorder %s151, %s167
    %p169 = scmp.eq.s32.totalorder %s18, 0
    %p170 = por %p168, %p169
    %p171 = scmp.le.s32.totalorder 1, %s12
    %p172 = scmp.lt.s32.totalorder %s12, 3
    %p173 = pnand %p171, %p172
    %p174 = pneg %p173
    // Predicated region
    $region9: #{_lambda_.5} parent=5 // pred_check
      _
    $region10: #{_lambda_.5} parent=5 // pred_check_branch
      %176 = sbr.rel (%p173) target = $region12
    $region11: #{_lambda_.5} parent=5 // pred_region
      %s177 = ssub.s32 %s12, 1
      // Predicated region
      $region13: #{_lambda_.5} parent=11 // pred_check
        %p178 = pneg %p59
      $region14: #{_lambda_.5} parent=11 // pred_check_branch
        %180 = sbr.rel (%p178) target = $region16
      $region15: #{_lambda_.5} parent=11 // pred_region
        _
      $region16: #{_lambda_.5} parent=11 // pred_fallthru
        _
    $region12: #{_lambda_.5} parent=5 // pred_fallthru
      _
    %p181 = scmp.lt.s32.totalorder %s12, 2
    // Predicated region
    $region17: #{_lambda_.5} parent=5 // pred_check
      %p182 = pneg %p181
    $region18: #{_lambda_.5} parent=5 // pred_check_branch
      %184 = sbr.rel (%p182) target = $region20
    $region19: #{_lambda_.5} parent=5 // pred_region
      // Predicated region
      $region21: #{_lambda_.5} parent=19 // pred_check
        %p185 = pneg %p32
      $region22: #{_lambda_.5} parent=19 // pred_check_branch
        %187 = sbr.rel (%p185) target = $region24
      $region23: #{_lambda_.5} parent=19 // pred_region
        %p188 = scmp.lt.s32.totalorder %s12, 1
        %s189 = scalar_select %p188, %s12, 1
        %s190 = smul.addr %s189, 4
        %s191 = scalar_lea.vmem %s0, %s190
      $region24: #{_lambda_.5} parent=19 // pred_fallthru
        _
      // Predicated region
      $region25: #{_lambda_.5} parent=19 // pred_check
        %p192 = pneg %p79
      $region26: #{_lambda_.5} parent=19 // pred_check_branch
        %194 = sbr.rel (%p192) target = $region28
      $region27: #{_lambda_.5} parent=19 // pred_region
        %p195 = scmp.lt.s32.totalorder %s12, 1
        %s196 = scalar_select %p195, %s12, 1
        %s197 = smul.addr %s196, 8
        %s198 = scalar_lea.vmem %s2, %s197
      $region28: #{_lambda_.5} parent=19 // pred_fallthru
        _
    $region20: #{_lambda_.5} parent=5 // pred_fallthru
      _
    %p199 = scmp.le.s32.totalorder 1, %s12
    %p200 = scmp.lt.s32.totalorder %s12, 3
    %p201 = pnand %p199, %p200
    %p202 = pneg %p201
    // Predicated region
    $region29: #{_lambda_.5} parent=5 // pred_check
      _
    $region30: #{_lambda_.5} parent=5 // pred_check_branch
      %204 = sbr.rel (%p201) target = $region32
    $region31: #{_lambda_.5} parent=5 // pred_region
      %s205 = ssub.s32 %s12, 1
      %p206 = scmp.lt.s32.totalorder %s17, 1
      %s207 = scalar_select %p206, %s17, 1
      %s208 = smul.addr %s207, 4
      %s209 = scalar_lea.vmem %s0, %s208
      %p210 = pneg %p38
      %p211 = pneg %p35
      %p212 = pneg %p59
      %p213 = pneg %p56
      %p214 = scmp.lt.s32.totalorder %s17, 1
      %s215 = scalar_select %p214, %s17, 1
      %s216 = smul.addr %s215, 8
      %s217 = scalar_lea.vmem %s2, %s216
      %p218 = pneg %p85
      %p219 = pneg %p82
      %p220 = pneg %p111
      %p221 = pneg %p108
      %p222 = scmp.lt.s32.totalorder %s17, 1
      %s223 = scalar_select %p222, %s17, 1
      %s224 = smul.addr %s223, 4
      %s225 = scalar_lea.vmem %s3, %s224
      %p226 = pneg %p137
      %p227 = pneg %p134
      %p228 = scmp.lt.s32.totalorder %s17, 1
      %s229 = scalar_select %p228, %s17, 1
      %s230 = smul.addr %s229, 8
      %s231 = scalar_lea.vmem %s4, %s230
      %p232 = pneg %p163
      %p233 = pneg %p160
      %p234 = scmp.lt.s32.totalorder %s17, 1
      %s235 = scalar_select %p234, %s17, 1
      %s236 = smul.addr %s235, 8
      %s237 = scalar_lea.vmem %s5, %s236
      %p238 = scmp.lt.s32.totalorder %s17, 1
      %s239 = scalar_select %p238, %s17, 1
      %s240 = smul.addr %s239, 4
      %s241 = scalar_lea.vmem %s0, %s240
      %p242 = scmp.lt.s32.totalorder %s17, 1
      %s243 = scalar_select %p242, %s17, 1
      %s244 = smul.addr %s243, 8
      %s245 = scalar_lea.vmem %s2, %s244
      %p246 = scmp.lt.s32.totalorder %s17, 1
      %s247 = scalar_select %p246, %s17, 1
      %s248 = smul.addr %s247, 4
      %s249 = scalar_lea.vmem %s3, %s248
      %p250 = scmp.lt.s32.totalorder %s17, 1
      %s251 = scalar_select %p250, %s17, 1
      %s252 = smul.addr %s251, 8
      %s253 = scalar_lea.vmem %s4, %s252
      %p254 = scmp.lt.s32.totalorder %s17, 1
      %s255 = scalar_select %p254, %s17, 1
      %s256 = smul.addr %s255, 8
      %s257 = scalar_lea.vmem %s5, %s256
      %v259 = vld [vmem:[%s241] sm:$0xf]
      %v260 = vld [vmem:[%s1] sm:$0xf]
      %v261 = vld [vmem:[%s1 + $0x4] sm:$0xf]
      %v262 = vld [vmem:[%s1 + $0x8] sm:$0xf]
      %v263 = vld [vmem:[%s1 + $0xc] sm:$0xf]
      %v264 = vld [vmem:[%s1 + $0x10] sm:$0xf]
      %v265 = vld [vmem:[%s1 + $0x14] sm:$0xf]
      %v266 = vld [vmem:[%s1 + $0x18] sm:$0xf]
      %v267 = vld [vmem:[%s1 + $0x1c] sm:$0xf]
      %v268 = vld [vmem:[%s1 + $0x20] sm:$0xf]
      %v269 = vld [vmem:[%s1 + $0x24] sm:$0xf]
      %v270 = vld [vmem:[%s1 + $0x28] sm:$0xf]
      %v271 = vld [vmem:[%s1 + $0x2c] sm:$0xf]
      %v272 = vld [vmem:[%s1 + $0x30] sm:$0xf]
      %v273 = vld [vmem:[%s1 + $0x34] sm:$0xf]
      %v274 = vld [vmem:[%s1 + $0x38] sm:$0xf]
      %v275 = vld [vmem:[%s1 + $0x3c] sm:$0xf]
      %v292 = vunpack.c.l.b16 %v260
      %v293 = vunpack.c.l.b16 %v261
      %v294 = vunpack.c.l.b16 %v262
      %v295 = vunpack.c.l.b16 %v263
      %v296 = vunpack.c.l.b16 %v264
      %v297 = vunpack.c.l.b16 %v265
      %v298 = vunpack.c.l.b16 %v266
      %v299 = vunpack.c.l.b16 %v267
      %v300 = vunpack.c.l.b16 %v268
      %v301 = vunpack.c.l.b16 %v269
      %v302 = vunpack.c.l.b16 %v270
      %v303 = vunpack.c.l.b16 %v271
      %v304 = vunpack.c.l.b16 %v272
      %v305 = vunpack.c.l.b16 %v273
      %v306 = vunpack.c.l.b16 %v274
      %v307 = vunpack.c.l.b16 %v275
      %v308 = vpack.c.b16 %v293, %v292
      %v309 = vpack.c.b16 %v295, %v294
      %v310 = vpack.c.b16 %v297, %v296
      %v311 = vpack.c.b16 %v299, %v298
      %v312 = vpack.c.b16 %v301, %v300
      %v313 = vpack.c.b16 %v303, %v302
      %v314 = vpack.c.b16 %v305, %v304
      %v315 = vpack.c.b16 %v307, %v306
      %vm316 = vcmask 261120
      %v318 = vsel %vm316, %v259, 0
      %v321 = vsel %vm316, %v308, 0
      %v324 = vsel %vm316, %v309, 0
      %v327 = vsel %vm316, %v310, 0
      %v330 = vsel %vm316, %v311, 0
      %v333 = vsel %vm316, %v312, 0
      %v336 = vsel %vm316, %v313, 0
      %v339 = vsel %vm316, %v314, 0
      %v342 = vsel %vm316, %v315, 0
      %344 = vmatprep.subr.bf16.mxu0 0
      %345 = vmatpush1.bf16.xpose.msra.mxu0 %v321
      %346 = vmatprep.subr.bf16.mxu0 0
      %347 = vmatpush1.bf16.xpose.msra.mxu0 %v324
      %348 = vmatprep.subr.bf16.mxu0 0
      %349 = vmatpush1.bf16.xpose.msra.mxu0 %v327
      %350 = vmatprep.subr.bf16.mxu0 0
      %351 = vmatpush1.bf16.xpose.msra.mxu0 %v330
      %352 = vmatprep.subr.bf16.mxu0 0
      %353 = vmatpush1.bf16.xpose.msra.mxu0 %v333
      %354 = vmatprep.subr.bf16.mxu0 0
      %355 = vmatpush1.bf16.xpose.msra.mxu0 %v336
      %356 = vmatprep.subr.bf16.mxu0 0
      %357 = vmatpush1.bf16.xpose.msra.mxu0 %v339
      %358 = vmatprep.subr.bf16.mxu0 0
      %359 = vmatpush1.bf16.xpose.msra.mxu0 %v342
      %360 = vmatprep.subr.bf16.mxu0 0
      %361 = vmatpush1.bf16.xpose.msra.mxu0 0
      %362 = vmatprep.subr.bf16.mxu0 0
      %363 = vmatpush1.bf16.xpose.msra.mxu0 0
      %364 = vmatprep.subr.bf16.mxu0 0
      %365 = vmatpush1.bf16.xpose.msra.mxu0 0
      %366 = vmatprep.subr.bf16.mxu0 0
      %367 = vmatpush1.bf16.xpose.msra.mxu0 0
      %368 = vmatprep.subr.bf16.mxu0 0
      %369 = vmatpush1.bf16.xpose.msra.mxu0 0
      %370 = vmatprep.subr.bf16.mxu0 0
      %371 = vmatpush1.bf16.xpose.msra.mxu0 0
      %372 = vmatprep.subr.bf16.mxu0 0
      %373 = vmatpush1.bf16.xpose.msra.mxu0 0
      %374 = vmatprep.subr.bf16.mxu0 0
      %375 = vmatpush1.bf16.xpose.msra.mxu0 0
      %376 = vmatprep.mubr.bf16.mxu0 0
      %377 = vmatmul.mubr.bf16.gmra.mrb[0].mxu0 %v318
      %v378 = vpop.f32.mrb[0].mxu0
      %v379 = vadd.f32 0.0, %v378
      %v380 = vpop.f32.mrb[0].mxu0
      %v381 = vpop.f32.mrb[0].mxu0
      %v382 = vpop.f32.mrb[0].mxu0
      %383 = vdwg.mxu0
      %v384 = vpack.c.bf16 %v379, %v379
      %385 = vst [vmem:[%s249] sm:$0xf] %v384
      %v386 = vlaneseq
      %v387 = vand.u32 %v386, 127
      %vm388 = vcmp.lt.s32.totalorder %v387, 50
      %v389 = vsel %vm388, %v379, -1e+30
      %390 = vmax.xlane.f32.xlu0 %v389
      %v391 = vpop.xlane.xlu0 %390
      %vm392 = vcmp.ge.f32.partialorder %v389, %v391
      %v393 = vsel %vm392, %v387, 128
      %v394 = vand.u32 %v393, 65535
      %v395 = vshra.s32 %v393, 16
      %v396 = vcvt.s32.f32 %v394
      %v397 = vcvt.s32.f32 %v395
      %398 = vmin.xlane.f32.xlu0 %v397
      %v399 = vpop.xlane.xlu0 %398
      %vm400 = vcmp.eq.f32.partialorder %v397, %v399
      %v401 = vsel %vm400, %v396, inf
      %402 = vmin.xlane.f32.xlu0 %v401
      %v403 = vpop.xlane.xlu0 %402
      %v404 = vcvt.f32.s32 %v403
      %v405 = vcvt.f32.s32 %v399
      %v406 = vshll.u32 %v405, 16
      %v407 = vadd.s32 %v406, %v404
      %vm408 = vcmask 7168
      %409 = vst.msk [vmem:[%s257] sm:$0xff] %vm408, %v407
      %v410 = vsub.f32 %v389, %v391
      %v411 = vmul.f32 %v410, 1.442695
      %v412 = vpow.pop %v411
      %413 = vadd.xlane.f32.xlu0 %v412
      %v414 = vpop.xlane.xlu0 %413
      %v415 = vlog2.pop %v414
      %v416 = vmul.f32 %v415, 0.6931472
      %v417 = vadd.f32 %v416, %v391
      %v418 = vld [vmem:[%s245] sm:$0xff]
      %419 = vset.pattern.permute.xlu0 0
      %420 = vperm.xlu0 %419, %v418
      %v421 = vpop.permute.xlu0 %420
      %vm422 = vcmp.eq.s32.totalorder %v387, %v421
      %v423 = vsel %vm422, %v389, 0.0
      %424 = vadd.xlane.f32.xlu0 %v423
      %v425 = vpop.xlane.xlu0 %424
      %vm426 = vcmp.ne.s32.totalorder %v418, 0
      %v427 = vsel %vm426, 1, 0
      %v428 = vcvt.s32.f32 %v427
      %v429 = vsub.f32 %v417, %v425
      %v430 = vmul.f32 %v429, %v428
      %431 = vst.msk [vmem:[%s253] sm:$0xff] %vm408, %v430
      %p432 = scmp.lt.s32.totalorder %s17, 1
      %s433 = scalar_select %p432, %s17, 1
      %s434 = smul.addr %s433, 4
      %s435 = scalar_lea.vmem %s3, %s434
      %p436 = scmp.lt.s32.totalorder %s17, 1
      %s437 = scalar_select %p436, %s17, 1
      %s438 = smul.addr %s437, 8
      %s439 = scalar_lea.vmem %s4, %s438
      %p440 = scmp.lt.s32.totalorder %s17, 1
      %s441 = scalar_select %p440, %s17, 1
      %s442 = smul.addr %s441, 8
      %s443 = scalar_lea.vmem %s5, %s442
      // Predicated region
      $region33: #{_lambda_.5} parent=31 // pred_check
        %p444 = pneg %p108
      $region34: #{_lambda_.5} parent=31 // pred_check_branch
        %446 = sbr.rel (%p444) target = $region36
      $region35: #{_lambda_.5} parent=31 // pred_region
        _
      $region36: #{_lambda_.5} parent=31 // pred_fallthru
        _
      // Predicated region
      $region37: #{_lambda_.5} parent=31 // pred_check
        %p447 = pneg %p134
      $region38: #{_lambda_.5} parent=31 // pred_check_branch
        %449 = sbr.rel (%p447) target = $region40
      $region39: #{_lambda_.5} parent=31 // pred_region
        _
      $region40: #{_lambda_.5} parent=31 // pred_fallthru
        _
      // Predicated region
      $region41: #{_lambda_.5} parent=31 // pred_check
        %p450 = pneg %p160
      $region42: #{_lambda_.5} parent=31 // pred_check_branch
        %452 = sbr.rel (%p450) target = $region44
      $region43: #{_lambda_.5} parent=31 // pred_region
        _
      $region44: #{_lambda_.5} parent=31 // pred_fallthru
        _
    $region32: #{_lambda_.5} parent=5 // pred_fallthru
      _
    %p453 = scmp.le.s32.totalorder 2, %s12
    // Predicated region
    $region45: #{_lambda_.5} parent=5 // pred_check
      %p454 = pneg %p453
    $region46: #{_lambda_.5} parent=5 // pred_check_branch
      %456 = sbr.rel (%p454) target = $region48
    $region47: #{_lambda_.5} parent=5 // pred_region
      %s457 = ssub.s32 %s12, 2
      // Predicated region
      $region49: #{_lambda_.5} parent=47 // pred_check
        %p458 = pneg %p114
      $region50: #{_lambda_.5} parent=47 // pred_check_branch
        %460 = sbr.rel (%p458) target = $region52
      $region51: #{_lambda_.5} parent=47 // pred_region
        %p461 = scmp.lt.s32.totalorder %s18, 1
        %s462 = scalar_select %p461, %s18, 1
        %s463 = smul.addr %s462, 4
        %s464 = scalar_lea.vmem %s3, %s463
      $region52: #{_lambda_.5} parent=47 // pred_fallthru
        _
      // Predicated region
      $region53: #{_lambda_.5} parent=47 // pred_check
        %p465 = pneg %p140
      $region54: #{_lambda_.5} parent=47 // pred_check_branch
        %467 = sbr.rel (%p465) target = $region56
      $region55: #{_lambda_.5} parent=47 // pred_region
        %p468 = scmp.lt.s32.totalorder %s18, 1
        %s469 = scalar_select %p468, %s18, 1
        %s470 = smul.addr %s469, 8
        %s471 = scalar_lea.vmem %s4, %s470
      $region56: #{_lambda_.5} parent=47 // pred_fallthru
        _
      // Predicated region
      $region57: #{_lambda_.5} parent=47 // pred_check
        %p472 = pneg %p166
      $region58: #{_lambda_.5} parent=47 // pred_check_branch
        %474 = sbr.rel (%p472) target = $region60
      $region59: #{_lambda_.5} parent=47 // pred_region
        %p475 = scmp.lt.s32.totalorder %s18, 1
        %s476 = scalar_select %p475, %s18, 1
        %s477 = smul.addr %s476, 8
        %s478 = scalar_lea.vmem %s5, %s477
      $region60: #{_lambda_.5} parent=47 // pred_fallthru
        _
    $region48: #{_lambda_.5} parent=5 // pred_fallthru
      _
  $region6: #{_lambda_.5} parent=0 // loop_footer
    %s16 = sadd.s32 1, %s12
  $region7: #{_lambda_.5} parent=0 // loop_footer_branch
    %11 = sbr.rel target = $region3
  $region8: #{_lambda_.5} parent=0 // loop_exit
    _

// kernel: _lambda_.3
$region0: #{_lambda_.3}
  #allocation0 [shape = 'u32[]', space=smem, size = 0x4, offset = 0x4, fixed_abs, tag = 'smem constant byte address 0x4 - core index']
  #allocation1 [shape = 'u32[144,128]{1,0:T(1,128)}', space=vmem, size = 0x12000, scoped, tag = 'internal scratch']
  #allocation2 [shape = 'f32[32,32]{1,0:T(8,128)}', space=vmem, size = 0x4000, scoped, tag = 'scratch operand']
  %s0 = inlined_call_operand.vmem [shape: bf16[32,32], index: 0, kind: input, shape index: {}]
  %s1 = inlined_call_operand.vmem [shape: f32[2,16], index: 1, kind: input, shape index: {}]
  %s2 = inlined_call_operand.vmem [shape: f32[32,1], index: 2, kind: input, shape index: {}]
  %s3 = inlined_call_operand.vmem [shape: bf16[2,96,32], index: 3, kind: input, shape index: {}]
  %s4 = inlined_call_operand.vmem [shape: f32[2,1,96], index: 4, kind: input, shape index: {}]
  %s5 = inlined_call_operand.vmem [shape: bf16[2,32,32], index: 5, kind: input, shape index: {}]
  %s6 = inlined_call_operand.vmem [shape: f32[2,1,32], index: 6, kind: input, shape index: {}]
  %s7 = inlined_call_operand.vmem [shape: f32[2,1,32], index: 7, kind: input, shape index: {}]
  %s8 = inlined_call_operand.vmem [shape: f32[2,1,32], index: 8, kind: input, shape index: {}]
  %s9 = inlined_call_operand.vmem [shape: bf16[2,64,32], index: 9, kind: input, shape index: {}]
  %s10 = inlined_call_operand.vmem [shape: f32[2,1,64], index: 10, kind: input, shape index: {}]
  %s11 = inlined_call_operand.vmem [shape: bf16[2,32,64], index: 11, kind: input, shape index: {}]
  %s12 = inlined_call_operand.vmem [shape: f32[2,1,32], index: 12, kind: input, shape index: {}]
  %s13 = inlined_call_operand.vmem [shape: f32[2,1,32], index: 13, kind: input, shape index: {}]
  %s14 = inlined_call_operand.vmem [shape: f32[2,1,32], index: 14, kind: input, shape index: {}]
  %s15 = inlined_call_operand.vmem [shape: bf16[32,32], index: 15, kind: output, shape index: {}]
  %s16 = sld [smem:[#allocation0]]
  $region70: #{_lambda_.3} parent=0
    _
  %s18 = ssub.s32 1, %s16
  %s19 = scalar_select 0, %s18, %s16
  // Predicated region
  $region2: #{_lambda_.3} parent=0 // pred_check
    _
  $region3: #{_lambda_.3} parent=0 // pred_check_branch
    %21 = sbr.rel (0) target = $region5
  $region4: #{_lambda_.3} parent=0 // pred_region
    _
  $region5: #{_lambda_.3} parent=0 // pred_fallthru
    _
  // Predicated region
  $region6: #{_lambda_.3} parent=0 // pred_check
    _
  $region7: #{_lambda_.3} parent=0 // pred_check_branch
    %23 = sbr.rel (0) target = $region9
  $region8: #{_lambda_.3} parent=0 // pred_region
    _
  $region9: #{_lambda_.3} parent=0 // pred_fallthru
    _
  // Predicated region
  $region10: #{_lambda_.3} parent=0 // pred_check
    _
  $region11: #{_lambda_.3} parent=0 // pred_check_branch
    %25 = sbr.rel (0) target = $region13
  $region12: #{_lambda_.3} parent=0 // pred_region
    _
  $region13: #{_lambda_.3} parent=0 // pred_fallthru
    _
  // Predicated region
  $region14: #{_lambda_.3} parent=0 // pred_check
    _
  $region15: #{_lambda_.3} parent=0 // pred_check_branch
    %27 = sbr.rel (0) target = $region17
  $region16: #{_lambda_.3} parent=0 // pred_region
    _
  $region17: #{_lambda_.3} parent=0 // pred_fallthru
    _
  // Predicated region
  $region18: #{_lambda_.3} parent=0 // pred_check
    _
  $region19: #{_lambda_.3} parent=0 // pred_check_branch
    %29 = sbr.rel (0) target = $region21
  $region20: #{_lambda_.3} parent=0 // pred_region
    _
  $region21: #{_lambda_.3} parent=0 // pred_fallthru
    _
  // Predicated region
  $region22: #{_lambda_.3} parent=0 // pred_check
    _
  $region23: #{_lambda_.3} parent=0 // pred_check_branch
    %31 = sbr.rel (0) target = $region25
  $region24: #{_lambda_.3} parent=0 // pred_region
    _
  $region25: #{_lambda_.3} parent=0 // pred_fallthru
    _
  // Predicated region
  $region26: #{_lambda_.3} parent=0 // pred_check
    _
  $region27: #{_lambda_.3} parent=0 // pred_check_branch
    %33 = sbr.rel (0) target = $region29
  $region28: #{_lambda_.3} parent=0 // pred_region
    _
  $region29: #{_lambda_.3} parent=0 // pred_fallthru
    _
  // Predicated region
  $region30: #{_lambda_.3} parent=0 // pred_check
    _
  $region31: #{_lambda_.3} parent=0 // pred_check_branch
    %35 = sbr.rel (0) target = $region33
  $region32: #{_lambda_.3} parent=0 // pred_region
    _
  $region33: #{_lambda_.3} parent=0 // pred_fallthru
    _
  // Predicated region
  $region34: #{_lambda_.3} parent=0 // pred_check
    _
  $region35: #{_lambda_.3} parent=0 // pred_check_branch
    %37 = sbr.rel (0) target = $region37
  $region36: #{_lambda_.3} parent=0 // pred_region
    _
  $region37: #{_lambda_.3} parent=0 // pred_fallthru
    _
  // Predicated region
  $region38: #{_lambda_.3} parent=0 // pred_check
    _
  $region39: #{_lambda_.3} parent=0 // pred_check_branch
    %39 = sbr.rel (0) target = $region41
  $region40: #{_lambda_.3} parent=0 // pred_region
    _
  $region41: #{_lambda_.3} parent=0 // pred_fallthru
    _
  // Predicated region
  $region42: #{_lambda_.3} parent=0 // pred_check
    _
  $region43: #{_lambda_.3} parent=0 // pred_check_branch
    %41 = sbr.rel (0) target = $region45
  $region44: #{_lambda_.3} parent=0 // pred_region
    _
  $region45: #{_lambda_.3} parent=0 // pred_fallthru
    _
  // Predicated region
  $region46: #{_lambda_.3} parent=0 // pred_check
    _
  $region47: #{_lambda_.3} parent=0 // pred_check_branch
    %43 = sbr.rel (0) target = $region49
  $region48: #{_lambda_.3} parent=0 // pred_region
    _
  $region49: #{_lambda_.3} parent=0 // pred_fallthru
    _
  // Predicated region
  $region50: #{_lambda_.3} parent=0 // pred_check
    _
  $region51: #{_lambda_.3} parent=0 // pred_check_branch
    %45 = sbr.rel (0) target = $region53
  $region52: #{_lambda_.3} parent=0 // pred_region
    _
  $region53: #{_lambda_.3} parent=0 // pred_fallthru
    _
  // Predicated region
  $region54: #{_lambda_.3} parent=0 // pred_check
    _
  $region55: #{_lambda_.3} parent=0 // pred_check_branch
    %47 = sbr.rel (0) target = $region57
  $region56: #{_lambda_.3} parent=0 // pred_region
    _
  $region57: #{_lambda_.3} parent=0 // pred_fallthru
    _
  // Predicated region
  $region58: #{_lambda_.3} parent=0 // pred_check
    _
  $region59: #{_lambda_.3} parent=0 // pred_check_branch
    %49 = sbr.rel (0) target = $region61
  $region60: #{_lambda_.3} parent=0 // pred_region
    _
  $region61: #{_lambda_.3} parent=0 // pred_fallthru
    _
  %v51 = vld [vmem:[%s1] sm:$0x3]
  %v52 = vld [vmem:[%s2] sm:$0xff]
  %v53 = vld [vmem:[%s2 + $0x8] sm:$0xff]
  %v54 = vld [vmem:[%s2 + $0x10] sm:$0xff]
  %v55 = vld [vmem:[%s2 + $0x18] sm:$0xff]
  %v56 = vld [vmem:[%s0] sm:$0xf]
  %v57 = vld [vmem:[%s0 + $0x4] sm:$0xf]
  %v58 = vld [vmem:[%s0 + $0x8] sm:$0xf]
  %v59 = vld [vmem:[%s0 + $0xc] sm:$0xf]
  %v60 = vunpack.c.l.bf16 %v56
  %v61 = vunpack.c.l.bf16 %v57
  %v62 = vunpack.c.l.bf16 %v58
  %v63 = vunpack.c.l.bf16 %v59
  %v64 = vld [vmem:[%s3] sm:$0xf]
  %v65 = vld [vmem:[%s3 + $0x4] sm:$0xf]
  %v66 = vld [vmem:[%s3 + $0x8] sm:$0xf]
  %v67 = vld [vmem:[%s3 + $0xc] sm:$0xf]
  %v68 = vld [vmem:[%s3 + $0x10] sm:$0xf]
  %v69 = vld [vmem:[%s3 + $0x14] sm:$0xf]
  %v70 = vld [vmem:[%s3 + $0x18] sm:$0xf]
  %v71 = vld [vmem:[%s3 + $0x1c] sm:$0xf]
  %v72 = vld [vmem:[%s3 + $0x20] sm:$0xf]
  %v73 = vld [vmem:[%s3 + $0x24] sm:$0xf]
  %v74 = vld [vmem:[%s3 + $0x28] sm:$0xf]
  %v75 = vld [vmem:[%s3 + $0x2c] sm:$0xf]
  %v76 = vld [vmem:[%s4] sm:$0x1]
  %v78 = vlaneseq
  %v79 = vshrl.u32 %v78, 7
  %v80 = vsub.s32 0, %v79
  %v81 = vrot.slane %v76, %v80
  %v87 = vunpack.c.l.b16 %v56
  %v88 = vunpack.c.l.b16 %v57
  %v89 = vunpack.c.l.b16 %v58
  %v90 = vunpack.c.l.b16 %v59
  %v91 = vpack.c.b16 %v88, %v87
  %v92 = vpack.c.b16 %v90, %v89
  %v105 = vunpack.c.l.b16 %v64
  %v106 = vunpack.c.l.b16 %v65
  %v107 = vunpack.c.l.b16 %v66
  %v108 = vunpack.c.l.b16 %v67
  %v109 = vunpack.c.l.b16 %v68
  %v110 = vunpack.c.l.b16 %v69
  %v111 = vunpack.c.l.b16 %v70
  %v112 = vunpack.c.l.b16 %v71
  %v113 = vunpack.c.l.b16 %v72
  %v114 = vunpack.c.l.b16 %v73
  %v115 = vunpack.c.l.b16 %v74
  %v116 = vunpack.c.l.b16 %v75
  %v117 = vpack.c.b16 %v106, %v105
  %v118 = vpack.c.b16 %v108, %v107
  %v119 = vpack.c.b16 %v110, %v109
  %v120 = vpack.c.b16 %v112, %v111
  %v121 = vpack.c.b16 %v114, %v113
  %v122 = vpack.c.b16 %v116, %v115
  %vm123 = vcmask 261120
  %v125 = vsel %vm123, %v91, 0
  %v128 = vsel %vm123, %v92, 0
  %v131 = vsel %vm123, %v117, 0
  %v134 = vsel %vm123, %v118, 0
  %v137 = vsel %vm123, %v119, 0
  %v140 = vsel %vm123, %v120, 0
  %v143 = vsel %vm123, %v121, 0
  %v146 = vsel %vm123, %v122, 0
  %148 = vmatprep.subr.bf16.mxu0 0
  %149 = vmatpush1.bf16.xpose.msra.mxu0 %v131
  %150 = vmatprep.subr.bf16.mxu0 0
  %151 = vmatpush1.bf16.xpose.msra.mxu0 %v134
  %152 = vmatprep.subr.bf16.mxu0 0
  %153 = vmatpush1.bf16.xpose.msra.mxu0 %v137
  %154 = vmatprep.subr.bf16.mxu0 0
  %155 = vmatpush1.bf16.xpose.msra.mxu0 %v140
  %156 = vmatprep.subr.bf16.mxu0 0
  %157 = vmatpush1.bf16.xpose.msra.mxu0 %v143
  %158 = vmatprep.subr.bf16.mxu0 0
  %159 = vmatpush1.bf16.xpose.msra.mxu0 %v146
  %160 = vmatprep.subr.bf16.mxu0 0
  %161 = vmatpush1.bf16.xpose.msra.mxu0 0
  %162 = vmatprep.subr.bf16.mxu0 0
  %163 = vmatpush1.bf16.xpose.msra.mxu0 0
  %164 = vmatprep.subr.bf16.mxu0 0
  %165 = vmatpush1.bf16.xpose.msra.mxu0 0
  %166 = vmatprep.subr.bf16.mxu0 0
  %167 = vmatpush1.bf16.xpose.msra.mxu0 0
  %168 = vmatprep.subr.bf16.mxu0 0
  %169 = vmatpush1.bf16.xpose.msra.mxu0 0
  %170 = vmatprep.subr.bf16.mxu0 0
  %171 = vmatpush1.bf16.xpose.msra.mxu0 0
  %172 = vmatprep.subr.bf16.mxu0 0
  %173 = vmatpush1.bf16.xpose.msra.mxu0 0
  %174 = vmatprep.subr.bf16.mxu0 0
  %175 = vmatpush1.bf16.xpose.msra.mxu0 0
  %176 = vmatprep.subr.bf16.mxu0 0
  %177 = vmatpush1.bf16.xpose.msra.mxu0 0
  %178 = vmatprep.subr.bf16.mxu0 0
  %179 = vmatpush1.bf16.xpose.msra.mxu0 0
  %180 = vmatprep.mubr.bf16.mxu0 0
  %181 = vmatmul.mubr.bf16.gmra.mrb[0].mxu0 %v125
  %v182 = vpop.f32.mrb[0].mxu0
  %v183 = vadd.f32 %v81, %v182
  %v184 = vpop.f32.mrb[0].mxu0
  %v185 = vpop.f32.mrb[0].mxu0
  %v186 = vadd.f32 %v81, %v185
  %v187 = vpop.f32.mrb[0].mxu0
  %188 = vmatprep.mubr.bf16.mxu0 0
  %189 = vmatmul.mubr.bf16.gmra.mrb[0].mxu0 %v128
  %v190 = vpop.f32.mrb[0].mxu0
  %v191 = vadd.f32 %v81, %v190
  %v192 = vpop.f32.mrb[0].mxu0
  %v193 = vpop.f32.mrb[0].mxu0
  %v194 = vadd.f32 %v81, %v193
  %v195 = vpop.f32.mrb[0].mxu0
  %196 = vdwg.mxu0
  %v197 = vmul.f32 %v183, 0.25
  %v198 = vmul.f32 %v186, 0.25
  %v199 = vmul.f32 %v191, 0.25
  %v200 = vmul.f32 %v194, 0.25
  %v201 = vpack.c.bf16 %v198, %v197
  %v202 = vpack.c.bf16 %v200, %v199
  %v203 = vpack.c.bf16 %v186, %v183
  %v204 = vpack.c.bf16 %v194, %v191
  %v205 = vld [vmem:[%s5] sm:$0xf]
  %v206 = vld [vmem:[%s5 + $0x4] sm:$0xf]
  %v207 = vld [vmem:[%s5 + $0x8] sm:$0xf]
  %v208 = vld [vmem:[%s5 + $0xc] sm:$0xf]
  %v209 = vld [vmem:[%s6] sm:$0x1]
  %vm210 = vcmp.gt.f32.partialorder %v51, 0.5
  %212 = vrot.lane.b32.xlu0 %v203, 96
  %v213 = vpop.permute.xlu0 %212
  %vm214 = vcmask 130048
  %v216 = vsel %vm214, %v201, 0
  %v219 = vsel %vm214, %v213, 0
  %221 = vmatprep.subr.bf16.mxu0 0
  %222 = vmatpush1.bf16.xpose.msra.mxu0 %v219
  %223 = vmatprep.subr.bf16.mxu0 0
  %224 = vmatpush1.bf16.xpose.msra.mxu0 0
  %225 = vmatprep.subr.bf16.mxu0 0
  %226 = vmatpush1.bf16.xpose.msra.mxu0 0
  %227 = vmatprep.subr.bf16.mxu0 0
  %228 = vmatpush1.bf16.xpose.msra.mxu0 0
  %229 = vmatprep.subr.bf16.mxu0 0
  %230 = vmatpush1.bf16.xpose.msra.mxu0 0
  %231 = vmatprep.subr.bf16.mxu0 0
  %232 = vmatpush1.bf16.xpose.msra.mxu0 0
  %233 = vmatprep.subr.bf16.mxu0 0
  %234 = vmatpush1.bf16.xpose.msra.mxu0 0
  %235 = vmatprep.subr.bf16.mxu0 0
  %236 = vmatpush1.bf16.xpose.msra.mxu0 0
  %237 = vmatprep.subr.bf16.mxu0 0
  %238 = vmatpush1.bf16.xpose.msra.mxu0 0
  %239 = vmatprep.subr.bf16.mxu0 0
  %240 = vmatpush1.bf16.xpose.msra.mxu0 0
  %241 = vmatprep.subr.bf16.mxu0 0
  %242 = vmatpush1.bf16.xpose.msra.mxu0 0
  %243 = vmatprep.subr.bf16.mxu0 0
  %244 = vmatpush1.bf16.xpose.msra.mxu0 0
  %245 = vmatprep.subr.bf16.mxu0 0
  %246 = vmatpush1.bf16.xpose.msra.mxu0 0
  %247 = vmatprep.subr.bf16.mxu0 0
  %248 = vmatpush1.bf16.xpose.msra.mxu0 0
  %249 = vmatprep.subr.bf16.mxu0 0
  %250 = vmatpush1.bf16.xpose.msra.mxu0 0
  %251 = vmatprep.subr.bf16.mxu0 0
  %252 = vmatpush1.bf16.xpose.msra.mxu0 0
  %253 = vmatprep.mubr.bf16.mxu0 0
  %254 = vmatmul.mubr.bf16.gmra.mrb[0].mxu0 %v216
  %v255 = vpop.f32.mrb[0].mxu0
  %v256 = vadd.f32 0.0, %v255
  %v257 = vpop.f32.mrb[0].mxu0
  %v258 = vpop.f32.mrb[0].mxu0
  %v259 = vadd.f32 0.0, %v258
  %v260 = vpop.f32.mrb[0].mxu0
  %261 = vdwg.mxu0
  %v262 = vsel %vm210, 1, 0
  %v263 = vlaneseq
  %v264 = vshrl.u32 %v263, 7
  %v265 = vsub.s32 0, %v264
  %v266 = vrot.slane %v262, %v265
  %vm267 = vcmp.eq.s32.totalorder %v266, 1
  %v268 = vsel %vm267, %v256, -1e+30
  %v269 = vsel %vm267, %v259, -1e+30
  %v270 = vsel %vm214, %v268, -inf
  %271 = vmax.xlane.f32.xlu0 %v270
  %v272 = vpop.xlane.xlu0 %271
  %v273 = vsel %vm214, %v269, -inf
  %274 = vmax.xlane.f32.xlu0 %v273
  %v275 = vpop.xlane.xlu0 %274
  %v276 = vsub.f32 %v268, %v272
  %v277 = vsub.f32 %v269, %v275
  %v278 = vmul.f32 %v276, 1.442695
  %v279 = vpow.pop %v278
  %v280 = vmul.f32 %v277, 1.442695
  %v281 = vpow.pop %v280
  %v282 = vsel %vm214, %v279, 0.0
  %283 = vadd.xlane.f32.xlu0 %v282
  %v284 = vpop.xlane.xlu0 %283
  %v285 = vsel %vm214, %v281, 0.0
  %286 = vadd.xlane.f32.xlu0 %v285
  %v287 = vpop.xlane.xlu0 %286
  %v288 = vrcp.pop %v284
  %v289 = vrcp.pop %v287
  %v290 = vmul.f32 %v279, %v288
  %v291 = vmul.f32 %v281, %v289
  %v292 = vpack.c.bf16 %v291, %v290
  %293 = vrot.lane.b32.xlu0 %v203, 64
  %v294 = vpop.permute.xlu0 %293
  %v297 = vsel %vm214, %v292, 0
  %299 = vmatprep.subr.bf16.mxu0 0
  %300 = vmatpush1.bf16.msra.mxu0 %v294
  %301 = vmatprep.subr.bf16.mxu0 0
  %302 = vmatpush1.bf16.msra.mxu0 0
  %303 = vmatprep.subr.bf16.mxu0 0
  %304 = vmatpush1.bf16.msra.mxu0 0
  %305 = vmatprep.subr.bf16.mxu0 0
  %306 = vmatpush1.bf16.msra.mxu0 0
  %307 = vmatprep.subr.bf16.mxu0 0
  %308 = vmatpush1.bf16.msra.mxu0 0
  %309 = vmatprep.subr.bf16.mxu0 0
  %310 = vmatpush1.bf16.msra.mxu0 0
  %311 = vmatprep.subr.bf16.mxu0 0
  %312 = vmatpush1.bf16.msra.mxu0 0
  %313 = vmatprep.subr.bf16.mxu0 0
  %314 = vmatpush1.bf16.msra.mxu0 0
  %315 = vmatprep.subr.bf16.mxu0 0
  %316 = vmatpush1.bf16.msra.mxu0 0
  %317 = vmatprep.subr.bf16.mxu0 0
  %318 = vmatpush1.bf16.msra.mxu0 0
  %319 = vmatprep.subr.bf16.mxu0 0
  %320 = vmatpush1.bf16.msra.mxu0 0
  %321 = vmatprep.subr.bf16.mxu0 0
  %322 = vmatpush1.bf16.msra.mxu0 0
  %323 = vmatprep.subr.bf16.mxu0 0
  %324 = vmatpush1.bf16.msra.mxu0 0
  %325 = vmatprep.subr.bf16.mxu0 0
  %326 = vmatpush1.bf16.msra.mxu0 0
  %327 = vmatprep.subr.bf16.mxu0 0
  %328 = vmatpush1.bf16.msra.mxu0 0
  %329 = vmatprep.subr.bf16.mxu0 0
  %330 = vmatpush1.bf16.msra.mxu0 0
  %331 = vmatprep.mubr.bf16.mxu0 0
  %332 = vmatmul.mubr.bf16.gmra.mrb[0].mxu0 %v297
  %v333 = vpop.f32.mrb[0].mxu0
  %v334 = vadd.f32 0.0, %v333
  %v335 = vpop.f32.mrb[0].mxu0
  %v336 = vpop.f32.mrb[0].mxu0
  %v337 = vadd.f32 0.0, %v336
  %v338 = vpop.f32.mrb[0].mxu0
  %339 = vdwg.mxu0
  %v340 = vpack.c.bf16 %v337, %v334
  %v345 = vunpack.c.l.b16 %v205
  %v346 = vunpack.c.l.b16 %v206
  %v347 = vunpack.c.l.b16 %v207
  %v348 = vunpack.c.l.b16 %v208
  %v349 = vpack.c.b16 %v346, %v345
  %v350 = vpack.c.b16 %v348, %v347
  %v352 = vsel %vm214, %v340, 0
  %v355 = vsel %vm214, %v349, 0
  %v358 = vsel %vm214, %v350, 0
  %360 = vmatprep.subr.bf16.mxu0 0
  %361 = vmatpush1.bf16.xpose.msra.mxu0 %v355
  %362 = vmatprep.subr.bf16.mxu0 0
  %363 = vmatpush1.bf16.xpose.msra.mxu0 %v358
  %364 = vmatprep.subr.bf16.mxu0 0
  %365 = vmatpush1.bf16.xpose.msra.mxu0 0
  %366 = vmatprep.subr.bf16.mxu0 0
  %367 = vmatpush1.bf16.xpose.msra.mxu0 0
  %368 = vmatprep.subr.bf16.mxu0 0
  %369 = vmatpush1.bf16.xpose.msra.mxu0 0
  %370 = vmatprep.subr.bf16.mxu0 0
  %371 = vmatpush1.bf16.xpose.msra.mxu0 0
  %372 = vmatprep.subr.bf16.mxu0 0
  %373 = vmatpush1.bf16.xpose.msra.mxu0 0
  %374 = vmatprep.subr.bf16.mxu0 0
  %375 = vmatpush1.bf16.xpose.msra.mxu0 0
  %376 = vmatprep.subr.bf16.mxu0 0
  %377 = vmatpush1.bf16.xpose.msra.mxu0 0
  %378 = vmatprep.subr.bf16.mxu0 0
  %379 = vmatpush1.bf16.xpose.msra.mxu0 0
  %380 = vmatprep.subr.bf16.mxu0 0
  %381 = vmatpush1.bf16.xpose.msra.mxu0 0
  %382 = vmatprep.subr.bf16.mxu0 0
  %383 = vmatpush1.bf16.xpose.msra.mxu0 0
  %384 = vmatprep.subr.bf16.mxu0 0
  %385 = vmatpush1.bf16.xpose.msra.mxu0 0
  %386 = vmatprep.subr.bf16.mxu0 0
  %387 = vmatpush1.bf16.xpose.msra.mxu0 0
  %388 = vmatprep.subr.bf16.mxu0 0
  %389 = vmatpush1.bf16.xpose.msra.mxu0 0
  %390 = vmatprep.subr.bf16.mxu0 0
  %391 = vmatpush1.bf16.xpose.msra.mxu0 0
  %392 = vmatprep.mubr.bf16.mxu0 0
  %393 = vmatmul.mubr.bf16.gmra.mrb[0].mxu0 %v352
  %v394 = vpop.f32.mrb[0].mxu0
  %v395 = vadd.f32 0.0, %v394
  %v396 = vpop.f32.mrb[0].mxu0
  %v397 = vpop.f32.mrb[0].mxu0
  %v398 = vadd.f32 0.0, %v397
  %v399 = vpop.f32.mrb[0].mxu0
  %400 = vdwg.mxu0
  %v402 = vlaneseq
  %v403 = vshrl.u32 %v402, 7
  %v404 = vsub.s32 0, %v403
  %v405 = vrot.slane %v209, %v404
  %v407 = vadd.f32 %v405, %v395
  %v408 = vadd.f32 %v405, %v398
  %410 = vrot.lane.b32.xlu0 %v201, 112
  %v411 = vpop.permute.xlu0 %410
  %412 = vrot.lane.b32.xlu0 %v203, 80
  %v413 = vpop.permute.xlu0 %412
  %v415 = vsel %vm214, %v411, 0
  %v418 = vsel %vm214, %v413, 0
  %420 = vmatprep.subr.bf16.mxu0 0
  %421 = vmatpush1.bf16.xpose.msra.mxu0 %v418
  %422 = vmatprep.subr.bf16.mxu0 0
  %423 = vmatpush1.bf16.xpose.msra.mxu0 0
  %424 = vmatprep.subr.bf16.mxu0 0
  %425 = vmatpush1.bf16.xpose.msra.mxu0 0
  %426 = vmatprep.subr.bf16.mxu0 0
  %427 = vmatpush1.bf16.xpose.msra.mxu0 0
  %428 = vmatprep.subr.bf16.mxu0 0
  %429 = vmatpush1.bf16.xpose.msra.mxu0 0
  %430 = vmatprep.subr.bf16.mxu0 0
  %431 = vmatpush1.bf16.xpose.msra.mxu0 0
  %432 = vmatprep.subr.bf16.mxu0 0
  %433 = vmatpush1.bf16.xpose.msra.mxu0 0
  %434 = vmatprep.subr.bf16.mxu0 0
  %435 = vmatpush1.bf16.xpose.msra.mxu0 0
  %436 = vmatprep.subr.bf16.mxu0 0
  %437 = vmatpush1.bf16.xpose.msra.mxu0 0
  %438 = vmatprep.subr.bf16.mxu0 0
  %439 = vmatpush1.bf16.xpose.msra.mxu0 0
  %440 = vmatprep.subr.bf16.mxu0 0
  %441 = vmatpush1.bf16.xpose.msra.mxu0 0
  %442 = vmatprep.subr.bf16.mxu0 0
  %443 = vmatpush1.bf16.xpose.msra.mxu0 0
  %444 = vmatprep.subr.bf16.mxu0 0
  %445 = vmatpush1.bf16.xpose.msra.mxu0 0
  %446 = vmatprep.subr.bf16.mxu0 0
  %447 = vmatpush1.bf16.xpose.msra.mxu0 0
  %448 = vmatprep.subr.bf16.mxu0 0
  %449 = vmatpush1.bf16.xpose.msra.mxu0 0
  %450 = vmatprep.subr.bf16.mxu0 0
  %451 = vmatpush1.bf16.xpose.msra.mxu0 0
  %452 = vmatprep.mubr.bf16.mxu0 0
  %453 = vmatmul.mubr.bf16.gmra.mrb[0].mxu0 %v415
  %v454 = vpop.f32.mrb[0].mxu0
  %v455 = vadd.f32 0.0, %v454
  %v456 = vpop.f32.mrb[0].mxu0
  %v457 = vpop.f32.mrb[0].mxu0
  %v458 = vadd.f32 0.0, %v457
  %v459 = vpop.f32.mrb[0].mxu0
  %460 = vdwg.mxu0
  %v461 = vsel %vm267, %v455, -1e+30
  %v462 = vsel %vm267, %v458, -1e+30
  %v463 = vsel %vm214, %v461, -inf
  %464 = vmax.xlane.f32.xlu0 %v463
  %v465 = vpop.xlane.xlu0 %464
  %v466 = vsel %vm214, %v462, -inf
  %467 = vmax.xlane.f32.xlu0 %v466
  %v468 = vpop.xlane.xlu0 %467
  %v469 = vsub.f32 %v461, %v465
  %v470 = vsub.f32 %v462, %v468
  %v471 = vmul.f32 %v469, 1.442695
  %v472 = vpow.pop %v471
  %v473 = vmul.f32 %v470, 1.442695
  %v474 = vpow.pop %v473
  %v475 = vsel %vm214, %v472, 0.0
  %476 = vadd.xlane.f32.xlu0 %v475
  %v477 = vpop.xlane.xlu0 %476
  %v478 = vsel %vm214, %v474, 0.0
  %479 = vadd.xlane.f32.xlu0 %v478
  %v480 = vpop.xlane.xlu0 %479
  %v481 = vrcp.pop %v477
  %v482 = vrcp.pop %v480
  %v483 = vmul.f32 %v472, %v481
  %v484 = vmul.f32 %v474, %v482
  %v485 = vpack.c.bf16 %v484, %v483
  %486 = vrot.lane.b32.xlu0 %v203, 48
  %v487 = vpop.permute.xlu0 %486
  %v490 = vsel %vm214, %v485, 0
  %492 = vmatprep.subr.bf16.mxu0 0
  %493 = vmatpush1.bf16.msra.mxu0 %v487
  %494 = vmatprep.subr.bf16.mxu0 0
  %495 = vmatpush1.bf16.msra.mxu0 0
  %496 = vmatprep.subr.bf16.mxu0 0
  %497 = vmatpush1.bf16.msra.mxu0 0
  %498 = vmatprep.subr.bf16.mxu0 0
  %499 = vmatpush1.bf16.msra.mxu0 0
  %500 = vmatprep.subr.bf16.mxu0 0
  %501 = vmatpush1.bf16.msra.mxu0 0
  %502 = vmatprep.subr.bf16.mxu0 0
  %503 = vmatpush1.bf16.msra.mxu0 0
  %504 = vmatprep.subr.bf16.mxu0 0
  %505 = vmatpush1.bf16.msra.mxu0 0
  %506 = vmatprep.subr.bf16.mxu0 0
  %507 = vmatpush1.bf16.msra.mxu0 0
  %508 = vmatprep.subr.bf16.mxu0 0
  %509 = vmatpush1.bf16.msra.mxu0 0
  %510 = vmatprep.subr.bf16.mxu0 0
  %511 = vmatpush1.bf16.msra.mxu0 0
  %512 = vmatprep.subr.bf16.mxu0 0
  %513 = vmatpush1.bf16.msra.mxu0 0
  %514 = vmatprep.subr.bf16.mxu0 0
  %515 = vmatpush1.bf16.msra.mxu0 0
  %516 = vmatprep.subr.bf16.mxu0 0
  %517 = vmatpush1.bf16.msra.mxu0 0
  %518 = vmatprep.subr.bf16.mxu0 0
  %519 = vmatpush1.bf16.msra.mxu0 0
  %520 = vmatprep.subr.bf16.mxu0 0
  %521 = vmatpush1.bf16.msra.mxu0 0
  %522 = vmatprep.subr.bf16.mxu0 0
  %523 = vmatpush1.bf16.msra.mxu0 0
  %524 = vmatprep.mubr.bf16.mxu0 0
  %525 = vmatmul.mubr.bf16.gmra.mrb[0].mxu0 %v490
  %v526 = vpop.f32.mrb[0].mxu0
  %v527 = vadd.f32 0.0, %v526
  %v528 = vpop.f32.mrb[0].mxu0
  %v529 = vpop.f32.mrb[0].mxu0
  %v530 = vadd.f32 0.0, %v529
  %v531 = vpop.f32.mrb[0].mxu0
  %532 = vdwg.mxu0
  %v533 = vpack.c.bf16 %v530, %v527
  %534 = vrot.lane.b32.xlu0 %v349, 112
  %v535 = vpop.permute.xlu0 %534
  %536 = vrot.lane.b32.xlu0 %v350, 112
  %v537 = vpop.permute.xlu0 %536
  %v539 = vsel %vm214, %v533, 0
  %v542 = vsel %vm214, %v535, 0
  %v545 = vsel %vm214, %v537, 0
  %547 = vmatprep.subr.bf16.mxu0 0
  %548 = vmatpush1.bf16.xpose.msra.mxu0 %v542
  %549 = vmatprep.subr.bf16.mxu0 0
  %550 = vmatpush1.bf16.xpose.msra.mxu0 %v545
  %551 = vmatprep.subr.bf16.mxu0 0
  %552 = vmatpush1.bf16.xpose.msra.mxu0 0
  %553 = vmatprep.subr.bf16.mxu0 0
  %554 = vmatpush1.bf16.xpose.msra.mxu0 0
  %555 = vmatprep.subr.bf16.mxu0 0
  %556 = vmatpush1.bf16.xpose.msra.mxu0 0
  %557 = vmatprep.subr.bf16.mxu0 0
  %558 = vmatpush1.bf16.xpose.msra.mxu0 0
  %559 = vmatprep.subr.bf16.mxu0 0
  %560 = vmatpush1.bf16.xpose.msra.mxu0 0
  %561 = vmatprep.subr.bf16.mxu0 0
  %562 = vmatpush1.bf16.xpose.msra.mxu0 0
  %563 = vmatprep.subr.bf16.mxu0 0
  %564 = vmatpush1.bf16.xpose.msra.mxu0 0
  %565 = vmatprep.subr.bf16.mxu0 0
  %566 = vmatpush1.bf16.xpose.msra.mxu0 0
  %567 = vmatprep.subr.bf16.mxu0 0
  %568 = vmatpush1.bf16.xpose.msra.mxu0 0
  %569 = vmatprep.subr.bf16.mxu0 0
  %570 = vmatpush1.bf16.xpose.msra.mxu0 0
  %571 = vmatprep.subr.bf16.mxu0 0
  %572 = vmatpush1.bf16.xpose.msra.mxu0 0
  %573 = vmatprep.subr.bf16.mxu0 0
  %574 = vmatpush1.bf16.xpose.msra.mxu0 0
  %575 = vmatprep.subr.bf16.mxu0 0
  %576 = vmatpush1.bf16.xpose.msra.mxu0 0
  %577 = vmatprep.subr.bf16.mxu0 0
  %578 = vmatpush1.bf16.xpose.msra.mxu0 0
  %579 = vmatprep.mubr.bf16.mxu0 0
  %580 = vmatmul.mubr.bf16.gmra.mrb[0].mxu0 %v539
  %v581 = vpop.f32.mrb[0].mxu0
  %v582 = vadd.f32 0.0, %v581
  %v583 = vpop.f32.mrb[0].mxu0
  %v584 = vpop.f32.mrb[0].mxu0
  %v585 = vadd.f32 0.0, %v584
  %v586 = vpop.f32.mrb[0].mxu0
  %587 = vdwg.mxu0
  %v588 = vadd.f32 %v407, %v582
  %v589 = vadd.f32 %v408, %v585
  %590 = vst.msk [vmem:[#allocation2] sm:$0xff] %vm123, %v588
  %591 = vst.msk [vmem:[#allocation2 + $0x8] sm:$0xff] %vm123, %v589
  %593 = vrot.lane.b32.xlu0 %v204, 96
  %v594 = vpop.permute.xlu0 %593
  %v596 = vsel %vm214, %v202, 0
  %v599 = vsel %vm214, %v594, 0
  %601 = vmatprep.subr.bf16.mxu0 0
  %602 = vmatpush1.bf16.xpose.msra.mxu0 %v599
  %603 = vmatprep.subr.bf16.mxu0 0
  %604 = vmatpush1.bf16.xpose.msra.mxu0 0
  %605 = vmatprep.subr.bf16.mxu0 0
  %606 = vmatpush1.bf16.xpose.msra.mxu0 0
  %607 = vmatprep.subr.bf16.mxu0 0
  %608 = vmatpush1.bf16.xpose.msra.mxu0 0
  %609 = vmatprep.subr.bf16.mxu0 0
  %610 = vmatpush1.bf16.xpose.msra.mxu0 0
  %611 = vmatprep.subr.bf16.mxu0 0
  %612 = vmatpush1.bf16.xpose.msra.mxu0 0
  %613 = vmatprep.subr.bf16.mxu0 0
  %614 = vmatpush1.bf16.xpose.msra.mxu0 0
  %615 = vmatprep.subr.bf16.mxu0 0
  %616 = vmatpush1.bf16.xpose.msra.mxu0 0
  %617 = vmatprep.subr.bf16.mxu0 0
  %618 = vmatpush1.bf16.xpose.msra.mxu0 0
  %619 = vmatprep.subr.bf16.mxu0 0
  %620 = vmatpush1.bf16.xpose.msra.mxu0 0
  %621 = vmatprep.subr.bf16.mxu0 0
  %622 = vmatpush1.bf16.xpose.msra.mxu0 0
  %623 = vmatprep.subr.bf16.mxu0 0
  %624 = vmatpush1.bf16.xpose.msra.mxu0 0
  %625 = vmatprep.subr.bf16.mxu0 0
  %626 = vmatpush1.bf16.xpose.msra.mxu0 0
  %627 = vmatprep.subr.bf16.mxu0 0
  %628 = vmatpush1.bf16.xpose.msra.mxu0 0
  %629 = vmatprep.subr.bf16.mxu0 0
  %630 = vmatpush1.bf16.xpose.msra.mxu0 0
  %631 = vmatprep.subr.bf16.mxu0 0
  %632 = vmatpush1.bf16.xpose.msra.mxu0 0
  %633 = vmatprep.mubr.bf16.mxu0 0
  %634 = vmatmul.mubr.bf16.gmra.mrb[0].mxu0 %v596
  %v635 = vpop.f32.mrb[0].mxu0
  %v636 = vadd.f32 0.0, %v635
  %v637 = vpop.f32.mrb[0].mxu0
  %v638 = vpop.f32.mrb[0].mxu0
  %v639 = vadd.f32 0.0, %v638
  %v640 = vpop.f32.mrb[0].mxu0
  %641 = vdwg.mxu0
  %v642 = vlaneseq
  %v643 = vshrl.u32 %v642, 7
  %v644 = vsub.s32 1, %v643
  %v645 = vrot.slane %v262, %v644
  %vm646 = vcmp.eq.s32.totalorder %v645, 1
  %v647 = vsel %vm646, %v636, -1e+30
  %v648 = vsel %vm646, %v639, -1e+30
  %v649 = vsel %vm214, %v647, -inf
  %650 = vmax.xlane.f32.xlu0 %v649
  %v651 = vpop.xlane.xlu0 %650
  %v652 = vsel %vm214, %v648, -inf
  %653 = vmax.xlane.f32.xlu0 %v652
  %v654 = vpop.xlane.xlu0 %653
  %v655 = vsub.f32 %v647, %v651
  %v656 = vsub.f32 %v648, %v654
  %v657 = vmul.f32 %v655, 1.442695
  %v658 = vpow.pop %v657
  %v659 = vmul.f32 %v656, 1.442695
  %v660 = vpow.pop %v659
  %v661 = vsel %vm214, %v658, 0.0
  %662 = vadd.xlane.f32.xlu0 %v661
  %v663 = vpop.xlane.xlu0 %662
  %v664 = vsel %vm214, %v660, 0.0
  %665 = vadd.xlane.f32.xlu0 %v664
  %v666 = vpop.xlane.xlu0 %665
  %v667 = vrcp.pop %v663
  %v668 = vrcp.pop %v666
  %v669 = vmul.f32 %v658, %v667
  %v670 = vmul.f32 %v660, %v668
  %v671 = vpack.c.bf16 %v670, %v669
  %672 = vrot.lane.b32.xlu0 %v204, 64
  %v673 = vpop.permute.xlu0 %672
  %v676 = vsel %vm214, %v671, 0
  %678 = vmatprep.subr.bf16.mxu0 0
  %679 = vmatpush1.bf16.msra.mxu0 %v673
  %680 = vmatprep.subr.bf16.mxu0 0
  %681 = vmatpush1.bf16.msra.mxu0 0
  %682 = vmatprep.subr.bf16.mxu0 0
  %683 = vmatpush1.bf16.msra.mxu0 0
  %684 = vmatprep.subr.bf16.mxu0 0
  %685 = vmatpush1.bf16.msra.mxu0 0
  %686 = vmatprep.subr.bf16.mxu0 0
  %687 = vmatpush1.bf16.msra.mxu0 0
  %688 = vmatprep.subr.bf16.mxu0 0
  %689 = vmatpush1.bf16.msra.mxu0 0
  %690 = vmatprep.subr.bf16.mxu0 0
  %691 = vmatpush1.bf16.msra.mxu0 0
  %692 = vmatprep.subr.bf16.mxu0 0
  %693 = vmatpush1.bf16.msra.mxu0 0
  %694 = vmatprep.subr.bf16.mxu0 0
  %695 = vmatpush1.bf16.msra.mxu0 0
  %696 = vmatprep.subr.bf16.mxu0 0
  %697 = vmatpush1.bf16.msra.mxu0 0
  %698 = vmatprep.subr.bf16.mxu0 0
  %699 = vmatpush1.bf16.msra.mxu0 0
  %700 = vmatprep.subr.bf16.mxu0 0
  %701 = vmatpush1.bf16.msra.mxu0 0
  %702 = vmatprep.subr.bf16.mxu0 0
  %703 = vmatpush1.bf16.msra.mxu0 0
  %704 = vmatprep.subr.bf16.mxu0 0
  %705 = vmatpush1.bf16.msra.mxu0 0
  %706 = vmatprep.subr.bf16.mxu0 0
  %707 = vmatpush1.bf16.msra.mxu0 0
  %708 = vmatprep.subr.bf16.mxu0 0
  %709 = vmatpush1.bf16.msra.mxu0 0
  %710 = vmatprep.mubr.bf16.mxu0 0
  %711 = vmatmul.mubr.bf16.gmra.mrb[0].mxu0 %v676
  %v712 = vpop.f32.mrb[0].mxu0
  %v713 = vadd.f32 0.0, %v712
  %v714 = vpop.f32.mrb[0].mxu0
  %v715 = vpop.f32.mrb[0].mxu0
  %v716 = vadd.f32 0.0, %v715
  %v717 = vpop.f32.mrb[0].mxu0
  %718 = vdwg.mxu0
  %v719 = vpack.c.bf16 %v716, %v713
  %v721 = vsel %vm214, %v719, 0
  %723 = vmatprep.subr.bf16.mxu0 0
  %724 = vmatpush1.bf16.xpose.msra.mxu0 %v355
  %725 = vmatprep.subr.bf16.mxu0 0
  %726 = vmatpush1.bf16.xpose.msra.mxu0 %v358
  %727 = vmatprep.subr.bf16.mxu0 0
  %728 = vmatpush1.bf16.xpose.msra.mxu0 0
  %729 = vmatprep.subr.bf16.mxu0 0
  %730 = vmatpush1.bf16.xpose.msra.mxu0 0
  %731 = vmatprep.subr.bf16.mxu0 0
  %732 = vmatpush1.bf16.xpose.msra.mxu0 0
  %733 = vmatprep.subr.bf16.mxu0 0
  %734 = vmatpush1.bf16.xpose.msra.mxu0 0
  %735 = vmatprep.subr.bf16.mxu0 0
  %736 = vmatpush1.bf16.xpose.msra.mxu0 0
  %737 = vmatprep.subr.bf16.mxu0 0
  %738 = vmatpush1.bf16.xpose.msra.mxu0 0
  %739 = vmatprep.subr.bf16.mxu0 0
  %740 = vmatpush1.bf16.xpose.msra.mxu0 0
  %741 = vmatprep.subr.bf16.mxu0 0
  %742 = vmatpush1.bf16.xpose.msra.mxu0 0
  %743 = vmatprep.subr.bf16.mxu0 0
  %744 = vmatpush1.bf16.xpose.msra.mxu0 0
  %745 = vmatprep.subr.bf16.mxu0 0
  %746 = vmatpush1.bf16.xpose.msra.mxu0 0
  %747 = vmatprep.subr.bf16.mxu0 0
  %748 = vmatpush1.bf16.xpose.msra.mxu0 0
  %749 = vmatprep.subr.bf16.mxu0 0
  %750 = vmatpush1.bf16.xpose.msra.mxu0 0
  %751 = vmatprep.subr.bf16.mxu0 0
  %752 = vmatpush1.bf16.xpose.msra.mxu0 0
  %753 = vmatprep.subr.bf16.mxu0 0
  %754 = vmatpush1.bf16.xpose.msra.mxu0 0
  %755 = vmatprep.mubr.bf16.mxu0 0
  %756 = vmatmul.mubr.bf16.gmra.mrb[0].mxu0 %v721
  %v757 = vpop.f32.mrb[0].mxu0
  %v758 = vadd.f32 0.0, %v757
  %v759 = vpop.f32.mrb[0].mxu0
  %v760 = vpop.f32.mrb[0].mxu0
  %v761 = vadd.f32 0.0, %v760
  %v762 = vpop.f32.mrb[0].mxu0
  %763 = vdwg.mxu0
  %v764 = vadd.f32 %v405, %v758
  %v765 = vadd.f32 %v405, %v761
  %767 = vrot.lane.b32.xlu0 %v202, 112
  %v768 = vpop.permute.xlu0 %767
  %769 = vrot.lane.b32.xlu0 %v204, 80
  %v770 = vpop.permute.xlu0 %769
  %v772 = vsel %vm214, %v768, 0
  %v775 = vsel %vm214, %v770, 0
  %777 = vmatprep.subr.bf16.mxu0 0
  %778 = vmatpush1.bf16.xpose.msra.mxu0 %v775
  %779 = vmatprep.subr.bf16.mxu0 0
  %780 = vmatpush1.bf16.xpose.msra.mxu0 0
  %781 = vmatprep.subr.bf16.mxu0 0
  %782 = vmatpush1.bf16.xpose.msra.mxu0 0
  %783 = vmatprep.subr.bf16.mxu0 0
  %784 = vmatpush1.bf16.xpose.msra.mxu0 0
  %785 = vmatprep.subr.bf16.mxu0 0
  %786 = vmatpush1.bf16.xpose.msra.mxu0 0
  %787 = vmatprep.subr.bf16.mxu0 0
  %788 = vmatpush1.bf16.xpose.msra.mxu0 0
  %789 = vmatprep.subr.bf16.mxu0 0
  %790 = vmatpush1.bf16.xpose.msra.mxu0 0
  %791 = vmatprep.subr.bf16.mxu0 0
  %792 = vmatpush1.bf16.xpose.msra.mxu0 0
  %793 = vmatprep.subr.bf16.mxu0 0
  %794 = vmatpush1.bf16.xpose.msra.mxu0 0
  %795 = vmatprep.subr.bf16.mxu0 0
  %796 = vmatpush1.bf16.xpose.msra.mxu0 0
  %797 = vmatprep.subr.bf16.mxu0 0
  %798 = vmatpush1.bf16.xpose.msra.mxu0 0
  %799 = vmatprep.subr.bf16.mxu0 0
  %800 = vmatpush1.bf16.xpose.msra.mxu0 0
  %801 = vmatprep.subr.bf16.mxu0 0
  %802 = vmatpush1.bf16.xpose.msra.mxu0 0
  %803 = vmatprep.subr.bf16.mxu0 0
  %804 = vmatpush1.bf16.xpose.msra.mxu0 0
  %805 = vmatprep.subr.bf16.mxu0 0
  %806 = vmatpush1.bf16.xpose.msra.mxu0 0
  %807 = vmatprep.subr.bf16.mxu0 0
  %808 = vmatpush1.bf16.xpose.msra.mxu0 0
  %809 = vmatprep.mubr.bf16.mxu0 0
  %810 = vmatmul.mubr.bf16.gmra.mrb[0].mxu0 %v772
  %v811 = vpop.f32.mrb[0].mxu0
  %v812 = vadd.f32 0.0, %v811
  %v813 = vpop.f32.mrb[0].mxu0
  %v814 = vpop.f32.mrb[0].mxu0
  %v815 = vadd.f32 0.0, %v814
  %v816 = vpop.f32.mrb[0].mxu0
  %817 = vdwg.mxu0
  %v818 = vsel %vm646, %v812, -1e+30
  %v819 = vsel %vm646, %v815, -1e+30
  %v820 = vsel %vm214, %v818, -inf
  %821 = vmax.xlane.f32.xlu0 %v820
  %v822 = vpop.xlane.xlu0 %821
  %v823 = vsel %vm214, %v819, -inf
  %824 = vmax.xlane.f32.xlu0 %v823
  %v825 = vpop.xlane.xlu0 %824
  %v826 = vsub.f32 %v818, %v822
  %v827 = vsub.f32 %v819, %v825
  %v828 = vmul.f32 %v826, 1.442695
  %v829 = vpow.pop %v828
  %v830 = vmul.f32 %v827, 1.442695
  %v831 = vpow.pop %v830
  %v832 = vsel %vm214, %v829, 0.0
  %833 = vadd.xlane.f32.xlu0 %v832
  %v834 = vpop.xlane.xlu0 %833
  %v835 = vsel %vm214, %v831, 0.0
  %836 = vadd.xlane.f32.xlu0 %v835
  %v837 = vpop.xlane.xlu0 %836
  %v838 = vrcp.pop %v834
  %v839 = vrcp.pop %v837
  %v840 = vmul.f32 %v829, %v838
  %v841 = vmul.f32 %v831, %v839
  %v842 = vpack.c.bf16 %v841, %v840
  %843 = vrot.lane.b32.xlu0 %v204, 48
  %v844 = vpop.permute.xlu0 %843
  %v847 = vsel %vm214, %v842, 0
  %849 = vmatprep.subr.bf16.mxu0 0
  %850 = vmatpush1.bf16.msra.mxu0 %v844
  %851 = vmatprep.subr.bf16.mxu0 0
  %852 = vmatpush1.bf16.msra.mxu0 0
  %853 = vmatprep.subr.bf16.mxu0 0
  %854 = vmatpush1.bf16.msra.mxu0 0
  %855 = vmatprep.subr.bf16.mxu0 0
  %856 = vmatpush1.bf16.msra.mxu0 0
  %857 = vmatprep.subr.bf16.mxu0 0
  %858 = vmatpush1.bf16.msra.mxu0 0
  %859 = vmatprep.subr.bf16.mxu0 0
  %860 = vmatpush1.bf16.msra.mxu0 0
  %861 = vmatprep.subr.bf16.mxu0 0
  %862 = vmatpush1.bf16.msra.mxu0 0
  %863 = vmatprep.subr.bf16.mxu0 0
  %864 = vmatpush1.bf16.msra.mxu0 0
  %865 = vmatprep.subr.bf16.mxu0 0
  %866 = vmatpush1.bf16.msra.mxu0 0
  %867 = vmatprep.subr.bf16.mxu0 0
  %868 = vmatpush1.bf16.msra.mxu0 0
  %869 = vmatprep.subr.bf16.mxu0 0
  %870 = vmatpush1.bf16.msra.mxu0 0
  %871 = vmatprep.subr.bf16.mxu0 0
  %872 = vmatpush1.bf16.msra.mxu0 0
  %873 = vmatprep.subr.bf16.mxu0 0
  %874 = vmatpush1.bf16.msra.mxu0 0
  %875 = vmatprep.subr.bf16.mxu0 0
  %876 = vmatpush1.bf16.msra.mxu0 0
  %877 = vmatprep.subr.bf16.mxu0 0
  %878 = vmatpush1.bf16.msra.mxu0 0
  %879 = vmatprep.subr.bf16.mxu0 0
  %880 = vmatpush1.bf16.msra.mxu0 0
  %881 = vmatprep.mubr.bf16.mxu0 0
  %882 = vmatmul.mubr.bf16.gmra.mrb[0].mxu0 %v847
  %v883 = vpop.f32.mrb[0].mxu0
  %v884 = vadd.f32 0.0, %v883
  %v885 = vpop.f32.mrb[0].mxu0
  %v886 = vpop.f32.mrb[0].mxu0
  %v887 = vadd.f32 0.0, %v886
  %v888 = vpop.f32.mrb[0].mxu0
  %889 = vdwg.mxu0
  %v890 = vpack.c.bf16 %v887, %v884
  %v892 = vsel %vm214, %v890, 0
  %894 = vmatprep.subr.bf16.mxu0 0
  %895 = vmatpush1.bf16.xpose.msra.mxu0 %v542
  %896 = vmatprep.subr.bf16.mxu0 0
  %897 = vmatpush1.bf16.xpose.msra.mxu0 %v545
  %898 = vmatprep.subr.bf16.mxu0 0
  %899 = vmatpush1.bf16.xpose.msra.mxu0 0
  %900 = vmatprep.subr.bf16.mxu0 0
  %901 = vmatpush1.bf16.xpose.msra.mxu0 0
  %902 = vmatprep.subr.bf16.mxu0 0
  %903 = vmatpush1.bf16.xpose.msra.mxu0 0
  %904 = vmatprep.subr.bf16.mxu0 0
  %905 = vmatpush1.bf16.xpose.msra.mxu0 0
  %906 = vmatprep.subr.bf16.mxu0 0
  %907 = vmatpush1.bf16.xpose.msra.mxu0 0
  %908 = vmatprep.subr.bf16.mxu0 0
  %909 = vmatpush1.bf16.xpose.msra.mxu0 0
  %910 = vmatprep.subr.bf16.mxu0 0
  %911 = vmatpush1.bf16.xpose.msra.mxu0 0
  %912 = vmatprep.subr.bf16.mxu0 0
  %913 = vmatpush1.bf16.xpose.msra.mxu0 0
  %914 = vmatprep.subr.bf16.mxu0 0
  %915 = vmatpush1.bf16.xpose.msra.mxu0 0
  %916 = vmatprep.subr.bf16.mxu0 0
  %917 = vmatpush1.bf16.xpose.msra.mxu0 0
  %918 = vmatprep.subr.bf16.mxu0 0
  %919 = vmatpush1.bf16.xpose.msra.mxu0 0
  %920 = vmatprep.subr.bf16.mxu0 0
  %921 = vmatpush1.bf16.xpose.msra.mxu0 0
  %922 = vmatprep.subr.bf16.mxu0 0
  %923 = vmatpush1.bf16.xpose.msra.mxu0 0
  %924 = vmatprep.subr.bf16.mxu0 0
  %925 = vmatpush1.bf16.xpose.msra.mxu0 0
  %926 = vmatprep.mubr.bf16.mxu0 0
  %927 = vmatmul.mubr.bf16.gmra.mrb[0].mxu0 %v892
  %v928 = vpop.f32.mrb[0].mxu0
  %v929 = vadd.f32 0.0, %v928
  %v930 = vpop.f32.mrb[0].mxu0
  %v931 = vpop.f32.mrb[0].mxu0
  %v932 = vadd.f32 0.0, %v931
  %v933 = vpop.f32.mrb[0].mxu0
  %934 = vdwg.mxu0
  %v935 = vadd.f32 %v764, %v929
  %v936 = vadd.f32 %v765, %v932
  %937 = vst.msk [vmem:[#allocation2 + $0x10] sm:$0xff] %vm123, %v935
  %938 = vst.msk [vmem:[#allocation2 + $0x18] sm:$0xff] %vm123, %v936
  %v939 = vld [vmem:[#allocation2] sm:$0xff]
  %v940 = vld [vmem:[#allocation2 + $0x8] sm:$0xff]
  %v941 = vld [vmem:[#allocation2 + $0x10] sm:$0xff]
  %v942 = vld [vmem:[#allocation2 + $0x18] sm:$0xff]
  %v943 = vadd.f32 %v60, %v939
  %v944 = vadd.f32 %v61, %v940
  %v945 = vadd.f32 %v62, %v941
  %v946 = vadd.f32 %v63, %v942
  %v947 = vld [vmem:[%s7] sm:$0x1]
  %v948 = vld [vmem:[%s8] sm:$0x1]
  %v949 = vsel %vm123, %v943, 0.0
  %950 = vadd.xlane.f32.xlu0 %v949
  %v951 = vpop.xlane.xlu0 %950
  %v952 = vsel %vm123, %v944, 0.0
  %953 = vadd.xlane.f32.xlu0 %v952
  %v954 = vpop.xlane.xlu0 %953
  %v955 = vsel %vm123, %v945, 0.0
  %956 = vadd.xlane.f32.xlu0 %v955
  %v957 = vpop.xlane.xlu0 %956
  %v958 = vsel %vm123, %v946, 0.0
  %959 = vadd.xlane.f32.xlu0 %v958
  %v960 = vpop.xlane.xlu0 %959
  %v961 = vrcp.pop 32.0
  %v962 = vmul.f32 %v951, %v961
  %v963 = vmul.f32 %v954, %v961
  %v964 = vmul.f32 %v957, %v961
  %v965 = vmul.f32 %v960, %v961
  %v966 = vsub.f32 %v943, %v962
  %v967 = vsub.f32 %v944, %v963
  %v968 = vsub.f32 %v945, %v964
  %v969 = vsub.f32 %v946, %v965
  %v970 = vmul.f32 %v966, %v966
  %v971 = vmul.f32 %v967, %v967
  %v972 = vmul.f32 %v968, %v968
  %v973 = vmul.f32 %v969, %v969
  %v974 = vsel %vm123, %v970, 0.0
  %975 = vadd.xlane.f32.xlu0 %v974
  %v976 = vpop.xlane.xlu0 %975
  %v977 = vsel %vm123, %v971, 0.0
  %978 = vadd.xlane.f32.xlu0 %v977
  %v979 = vpop.xlane.xlu0 %978
  %v980 = vsel %vm123, %v972, 0.0
  %981 = vadd.xlane.f32.xlu0 %v980
  %v982 = vpop.xlane.xlu0 %981
  %v983 = vsel %vm123, %v973, 0.0
  %984 = vadd.xlane.f32.xlu0 %v983
  %v985 = vpop.xlane.xlu0 %984
  %v986 = vmul.f32 %v976, %v961
  %v987 = vmul.f32 %v979, %v961
  %v988 = vmul.f32 %v982, %v961
  %v989 = vmul.f32 %v985, %v961
  %v990 = vadd.f32 %v986, 1e-05
  %v991 = vadd.f32 %v987, 1e-05
  %v992 = vadd.f32 %v988, 1e-05
  %v993 = vadd.f32 %v989, 1e-05
  %v994 = vrsqrt.pop %v990
  %v995 = vrsqrt.pop %v991
  %v996 = vrsqrt.pop %v992
  %v997 = vrsqrt.pop %v993
  %v998 = vmul.f32 %v966, %v994
  %v999 = vmul.f32 %v967, %v995
  %v1000 = vmul.f32 %v968, %v996
  %v1001 = vmul.f32 %v969, %v997
  %v1003 = vlaneseq
  %v1004 = vshrl.u32 %v1003, 7
  %v1005 = vsub.s32 0, %v1004
  %v1006 = vrot.slane %v947, %v1005
  %v1008 = vmul.f32 %v998, %v1006
  %v1009 = vmul.f32 %v999, %v1006
  %v1010 = vmul.f32 %v1000, %v1006
  %v1011 = vmul.f32 %v1001, %v1006
  %v1013 = vlaneseq
  %v1014 = vshrl.u32 %v1013, 7
  %v1015 = vsub.s32 0, %v1014
  %v1016 = vrot.slane %v948, %v1015
  %v1018 = vadd.f32 %v1008, %v1016
  %v1019 = vadd.f32 %v1009, %v1016
  %v1020 = vadd.f32 %v1010, %v1016
  %v1021 = vadd.f32 %v1011, %v1016
  %v1022 = vpack.c.bf16 %v1019, %v1018
  %v1023 = vpack.c.bf16 %v1021, %v1020
  %v1024 = vld [vmem:[%s9] sm:$0xf]
  %v1025 = vld [vmem:[%s9 + $0x4] sm:$0xf]
  %v1026 = vld [vmem:[%s9 + $0x8] sm:$0xf]
  %v1027 = vld [vmem:[%s9 + $0xc] sm:$0xf]
  %v1028 = vld [vmem:[%s9 + $0x10] sm:$0xf]
  %v1029 = vld [vmem:[%s9 + $0x14] sm:$0xf]
  %v1030 = vld [vmem:[%s9 + $0x18] sm:$0xf]
  %v1031 = vld [vmem:[%s9 + $0x1c] sm:$0xf]
  %v1032 = vld [vmem:[%s10] sm:$0x1]
  %v1034 = vlaneseq
  %v1035 = vshrl.u32 %v1034, 7
  %v1036 = vsub.s32 0, %v1035
  %v1037 = vrot.slane %v1032, %v1036
  %v1047 = vunpack.c.l.b16 %v1024
  %v1048 = vunpack.c.l.b16 %v1025
  %v1049 = vunpack.c.l.b16 %v1026
  %v1050 = vunpack.c.l.b16 %v1027
  %v1051 = vunpack.c.l.b16 %v1028
  %v1052 = vunpack.c.l.b16 %v1029
  %v1053 = vunpack.c.l.b16 %v1030
  %v1054 = vunpack.c.l.b16 %v1031
  %v1055 = vpack.c.b16 %v1048, %v1047
  %v1056 = vpack.c.b16 %v1050, %v1049
  %v1057 = vpack.c.b16 %v1052, %v1051
  %v1058 = vpack.c.b16 %v1054, %v1053
  %v1060 = vsel %vm123, %v1022, 0
  %v1063 = vsel %vm123, %v1023, 0
  %v1066 = vsel %vm123, %v1055, 0
  %v1069 = vsel %vm123, %v1056, 0
  %v1072 = vsel %vm123, %v1057, 0
  %v1075 = vsel %vm123, %v1058, 0
  %1077 = vmatprep.subr.bf16.mxu0 0
  %1078 = vmatpush1.bf16.xpose.msra.mxu0 %v1066
  %1079 = vmatprep.subr.bf16.mxu0 0
  %1080 = vmatpush1.bf16.xpose.msra.mxu0 %v1069
  %1081 = vmatprep.subr.bf16.mxu0 0
  %1082 = vmatpush1.bf16.xpose.msra.mxu0 %v1072
  %1083 = vmatprep.subr.bf16.mxu0 0
  %1084 = vmatpush1.bf16.xpose.msra.mxu0 %v1075
  %1085 = vmatprep.subr.bf16.mxu0 0
  %1086 = vmatpush1.bf16.xpose.msra.mxu0 0
  %1087 = vmatprep.subr.bf16.mxu0 0
  %1088 = vmatpush1.bf16.xpose.msra.mxu0 0
  %1089 = vmatprep.subr.bf16.mxu0 0
  %1090 = vmatpush1.bf16.xpose.msra.mxu0 0
  %1091 = vmatprep.subr.bf16.mxu0 0
  %1092 = vmatpush1.bf16.xpose.msra.mxu0 0
  %1093 = vmatprep.subr.bf16.mxu0 0
  %1094 = vmatpush1.bf16.xpose.msra.mxu0 0
  %1095 = vmatprep.subr.bf16.mxu0 0
  %1096 = vmatpush1.bf16.xpose.msra.mxu0 0
  %1097 = vmatprep.subr.bf16.mxu0 0
  %1098 = vmatpush1.bf16.xpose.msra.mxu0 0
  %1099 = vmatprep.subr.bf16.mxu0 0
  %1100 = vmatpush1.bf16.xpose.msra.mxu0 0
  %1101 = vmatprep.subr.bf16.mxu0 0
  %1102 = vmatpush1.bf16.xpose.msra.mxu0 0
  %1103 = vmatprep.subr.bf16.mxu0 0
  %1104 = vmatpush1.bf16.xpose.msra.mxu0 0
  %1105 = vmatprep.subr.bf16.mxu0 0
  %1106 = vmatpush1.bf16.xpose.msra.mxu0 0
  %1107 = vmatprep.subr.bf16.mxu0 0
  %1108 = vmatpush1.bf16.xpose.msra.mxu0 0
  %1109 = vmatprep.mubr.bf16.mxu0 0
  %1110 = vmatmul.mubr.bf16.gmra.mrb[0].mxu0 %v1060
  %v1111 = vpop.f32.mrb[0].mxu0
  %v1112 = vadd.f32 %v1037, %v1111
  %v1113 = vpop.f32.mrb[0].mxu0
  %v1114 = vpop.f32.mrb[0].mxu0
  %v1115 = vadd.f32 %v1037, %v1114
  %v1116 = vpop.f32.mrb[0].mxu0
  %1117 = vmatprep.mubr.bf16.mxu0 0
  %1118 = vmatmul.mubr.bf16.gmra.mrb[0].mxu0 %v1063
  %v1119 = vpop.f32.mrb[0].mxu0
  %v1120 = vadd.f32 %v1037, %v1119
  %v1121 = vpop.f32.mrb[0].mxu0
  %v1122 = vpop.f32.mrb[0].mxu0
  %v1123 = vadd.f32 %v1037, %v1122
  %v1124 = vpop.f32.mrb[0].mxu0
  %1125 = vdwg.mxu0
  %v1126 = vmax.f32 %v1112, 0.0
  %v1127 = vmax.f32 %v1115, 0.0
  %v1128 = vmax.f32 %v1120, 0.0
  %v1129 = vmax.f32 %v1123, 0.0
  %v1130 = vpack.c.bf16 %v1127, %v1126
  %v1131 = vpack.c.bf16 %v1129, %v1128
  %v1132 = vld [vmem:[%s11] sm:$0xf]
  %v1133 = vld [vmem:[%s11 + $0x4] sm:$0xf]
  %v1134 = vld [vmem:[%s11 + $0x8] sm:$0xf]
  %v1135 = vld [vmem:[%s11 + $0xc] sm:$0xf]
  %v1136 = vld [vmem:[%s12] sm:$0x1]
  %v1138 = vlaneseq
  %v1139 = vshrl.u32 %v1138, 7
  %v1140 = vsub.s32 0, %v1139
  %v1141 = vrot.slane %v1136, %v1140
  %v1147 = vunpack.c.l.b16 %v1132
  %v1148 = vunpack.c.l.b16 %v1133
  %v1149 = vunpack.c.l.b16 %v1134
  %v1150 = vunpack.c.l.b16 %v1135
  %v1151 = vpack.c.b16 %v1148, %v1147
  %v1152 = vpack.c.b16 %v1150, %v1149
  %vm1153 = vcmask 523264
  %v1155 = vsel %vm1153, %v1130, 0
  %v1158 = vsel %vm1153, %v1131, 0
  %v1161 = vsel %vm1153, %v1151, 0
  %v1164 = vsel %vm1153, %v1152, 0
  %1166 = vmatprep.subr.bf16.mxu0 0
  %1167 = vmatpush1.bf16.xpose.msra.mxu0 %v1161
  %1168 = vmatprep.subr.bf16.mxu0 0
  %1169 = vmatpush1.bf16.xpose.msra.mxu0 %v1164
  %1170 = vmatprep.subr.bf16.mxu0 0
  %1171 = vmatpush1.bf16.xpose.msra.mxu0 0
  %1172 = vmatprep.subr.bf16.mxu0 0
  %1173 = vmatpush1.bf16.xpose.msra.mxu0 0
  %1174 = vmatprep.subr.bf16.mxu0 0
  %1175 = vmatpush1.bf16.xpose.msra.mxu0 0
  %1176 = vmatprep.subr.bf16.mxu0 0
  %1177 = vmatpush1.bf16.xpose.msra.mxu0 0
  %1178 = vmatprep.subr.bf16.mxu0 0
  %1179 = vmatpush1.bf16.xpose.msra.mxu0 0
  %1180 = vmatprep.subr.bf16.mxu0 0
  %1181 = vmatpush1.bf16.xpose.msra.mxu0 0
  %1182 = vmatprep.subr.bf16.mxu0 0
  %1183 = vmatpush1.bf16.xpose.msra.mxu0 0
  %1184 = vmatprep.subr.bf16.mxu0 0
  %1185 = vmatpush1.bf16.xpose.msra.mxu0 0
  %1186 = vmatprep.subr.bf16.mxu0 0
  %1187 = vmatpush1.bf16.xpose.msra.mxu0 0
  %1188 = vmatprep.subr.bf16.mxu0 0
  %1189 = vmatpush1.bf16.xpose.msra.mxu0 0
  %1190 = vmatprep.subr.bf16.mxu0 0
  %1191 = vmatpush1.bf16.xpose.msra.mxu0 0
  %1192 = vmatprep.subr.bf16.mxu0 0
  %1193 = vmatpush1.bf16.xpose.msra.mxu0 0
  %1194 = vmatprep.subr.bf16.mxu0 0
  %1195 = vmatpush1.bf16.xpose.msra.mxu0 0
  %1196 = vmatprep.subr.bf16.mxu0 0
  %1197 = vmatpush1.bf16.xpose.msra.mxu0 0
  %1198 = vmatprep.mubr.bf16.mxu0 0
  %1199 = vmatmul.mubr.bf16.gmra.mrb[0].mxu0 %v1155
  %v1200 = vpop.f32.mrb[0].mxu0
  %v1201 = vadd.f32 %v1141, %v1200
  %v1202 = vpop.f32.mrb[0].mxu0
  %v1203 = vpop.f32.mrb[0].mxu0
  %v1204 = vadd.f32 %v1141, %v1203
  %v1205 = vpop.f32.mrb[0].mxu0
  %1206 = vmatprep.mubr.bf16.mxu0 0
  %1207 = vmatmul.mubr.bf16.gmra.mrb[0].mxu0 %v1158
  %v1208 = vpop.f32.mrb[0].mxu0
  %v1209 = vadd.f32 %v1141, %v1208
  %v1210 = vpop.f32.mrb[0].mxu0
  %v1211 = vpop.f32.mrb[0].mxu0
  %v1212 = vadd.f32 %v1141, %v1211
  %v1213 = vpop.f32.mrb[0].mxu0
  %1214 = vdwg.mxu0
  %v1215 = vadd.f32 %v1018, %v1201
  %v1216 = vadd.f32 %v1019, %v1204
  %v1217 = vadd.f32 %v1020, %v1209
  %v1218 = vadd.f32 %v1021, %v1212
  %v1219 = vld [vmem:[%s13] sm:$0x1]
  %v1220 = vld [vmem:[%s14] sm:$0x1]
  %v1221 = vsel %vm123, %v1215, 0.0
  %1222 = vadd.xlane.f32.xlu0 %v1221
  %v1223 = vpop.xlane.xlu0 %1222
  %v1224 = vsel %vm123, %v1216, 0.0
  %1225 = vadd.xlane.f32.xlu0 %v1224
  %v1226 = vpop.xlane.xlu0 %1225
  %v1227 = vsel %vm123, %v1217, 0.0
  %1228 = vadd.xlane.f32.xlu0 %v1227
  %v1229 = vpop.xlane.xlu0 %1228
  %v1230 = vsel %vm123, %v1218, 0.0
  %1231 = vadd.xlane.f32.xlu0 %v1230
  %v1232 = vpop.xlane.xlu0 %1231
  %v1233 = vmul.f32 %v1223, %v961
  %v1234 = vmul.f32 %v1226, %v961
  %v1235 = vmul.f32 %v1229, %v961
  %v1236 = vmul.f32 %v1232, %v961
  %v1237 = vsub.f32 %v1215, %v1233
  %v1238 = vsub.f32 %v1216, %v1234
  %v1239 = vsub.f32 %v1217, %v1235
  %v1240 = vsub.f32 %v1218, %v1236
  %v1241 = vmul.f32 %v1237, %v1237
  %v1242 = vmul.f32 %v1238, %v1238
  %v1243 = vmul.f32 %v1239, %v1239
  %v1244 = vmul.f32 %v1240, %v1240
  %v1245 = vsel %vm123, %v1241, 0.0
  %1246 = vadd.xlane.f32.xlu0 %v1245
  %v1247 = vpop.xlane.xlu0 %1246
  %v1248 = vsel %vm123, %v1242, 0.0
  %1249 = vadd.xlane.f32.xlu0 %v1248
  %v1250 = vpop.xlane.xlu0 %1249
  %v1251 = vsel %vm123, %v1243, 0.0
  %1252 = vadd.xlane.f32.xlu0 %v1251
  %v1253 = vpop.xlane.xlu0 %1252
  %v1254 = vsel %vm123, %v1244, 0.0
  %1255 = vadd.xlane.f32.xlu0 %v1254
  %v1256 = vpop.xlane.xlu0 %1255
  %v1257 = vmul.f32 %v1247, %v961
  %v1258 = vmul.f32 %v1250, %v961
  %v1259 = vmul.f32 %v1253, %v961
  %v1260 = vmul.f32 %v1256, %v961
  %v1261 = vadd.f32 %v1257, 1e-05
  %v1262 = vadd.f32 %v1258, 1e-05
  %v1263 = vadd.f32 %v1259, 1e-05
  %v1264 = vadd.f32 %v1260, 1e-05
  %v1265 = vrsqrt.pop %v1261
  %v1266 = vrsqrt.pop %v1262
  %v1267 = vrsqrt.pop %v1263
  %v1268 = vrsqrt.pop %v1264
  %v1269 = vmul.f32 %v1237, %v1265
  %v1270 = vmul.f32 %v1238, %v1266
  %v1271 = vmul.f32 %v1239, %v1267
  %v1272 = vmul.f32 %v1240, %v1268
  %v1274 = vlaneseq
  %v1275 = vshrl.u32 %v1274, 7
  %v1276 = vsub.s32 0, %v1275
  %v1277 = vrot.slane %v1219, %v1276
  %v1279 = vmul.f32 %v1269, %v1277
  %v1280 = vmul.f32 %v1270, %v1277
  %v1281 = vmul.f32 %v1271, %v1277
  %v1282 = vmul.f32 %v1272, %v1277
  %v1284 = vlaneseq
  %v1285 = vshrl.u32 %v1284, 7
  %v1286 = vsub.s32 0, %v1285
  %v1287 = vrot.slane %v1220, %v1286
  %v1289 = vadd.f32 %v1279, %v1287
  %v1290 = vadd.f32 %v1280, %v1287
  %v1291 = vadd.f32 %v1281, %v1287
  %v1292 = vadd.f32 %v1282, %v1287
  %1294 = vset.pattern.permute.xlu0 0
  %1295 = vperm.xlu0 %1294, %v52
  %v1296 = vpop.permute.xlu0 %1295
  %1299 = vset.pattern.permute.xlu0 0
  %1300 = vperm.xlu0 %1299, %v53
  %v1301 = vpop.permute.xlu0 %1300
  %1304 = vset.pattern.permute.xlu0 0
  %1305 = vperm.xlu0 %1304, %v54
  %v1306 = vpop.permute.xlu0 %1305
  %1309 = vset.pattern.permute.xlu0 0
  %1310 = vperm.xlu0 %1309, %v55
  %v1311 = vpop.permute.xlu0 %1310
  %v1313 = vmul.f32 %v1289, %v1296
  %v1314 = vmul.f32 %v1290, %v1301
  %v1315 = vmul.f32 %v1291, %v1306
  %v1316 = vmul.f32 %v1292, %v1311
  %v1317 = vpack.c.bf16 %v1314, %v1313
  %v1318 = vpack.c.bf16 %v1316, %v1315
  %s1319 = scalar_lea.vmem %s3, 48
  %v1320 = vld [vmem:[%s1319] sm:$0xf]
  %v1321 = vld [vmem:[%s1319 + $0x4] sm:$0xf]
  %v1322 = vld [vmem:[%s1319 + $0x8] sm:$0xf]
  %v1323 = vld [vmem:[%s1319 + $0xc] sm:$0xf]
  %v1324 = vld [vmem:[%s1319 + $0x10] sm:$0xf]
  %v1325 = vld [vmem:[%s1319 + $0x14] sm:$0xf]
  %v1326 = vld [vmem:[%s1319 + $0x18] sm:$0xf]
  %v1327 = vld [vmem:[%s1319 + $0x1c] sm:$0xf]
  %v1328 = vld [vmem:[%s1319 + $0x20] sm:$0xf]
  %v1329 = vld [vmem:[%s1319 + $0x24] sm:$0xf]
  %v1330 = vld [vmem:[%s1319 + $0x28] sm:$0xf]
  %v1331 = vld [vmem:[%s1319 + $0x2c] sm:$0xf]
  %s1332 = scalar_lea.vmem %s4, 1
  %v1333 = vld [vmem:[%s1332] sm:$0x1]
  %v1335 = vlaneseq
  %v1336 = vshrl.u32 %v1335, 7
  %v1337 = vsub.s32 0, %v1336
  %v1338 = vrot.slane %v1333, %v1337
  %v1352 = vunpack.c.l.b16 %v1320
  %v1353 = vunpack.c.l.b16 %v1321
  %v1354 = vunpack.c.l.b16 %v1322
  %v1355 = vunpack.c.l.b16 %v1323
  %v1356 = vunpack.c.l.b16 %v1324
  %v1357 = vunpack.c.l.b16 %v1325
  %v1358 = vunpack.c.l.b16 %v1326
  %v1359 = vunpack.c.l.b16 %v1327
  %v1360 = vunpack.c.l.b16 %v1328
  %v1361 = vunpack.c.l.b16 %v1329
  %v1362 = vunpack.c.l.b16 %v1330
  %v1363 = vunpack.c.l.b16 %v1331
  %v1364 = vpack.c.b16 %v1353, %v1352
  %v1365 = vpack.c.b16 %v1355, %v1354
  %v1366 = vpack.c.b16 %v1357, %v1356
  %v1367 = vpack.c.b16 %v1359, %v1358
  %v1368 = vpack.c.b16 %v1361, %v1360
  %v1369 = vpack.c.b16 %v1363, %v1362
  %v1371 = vsel %vm123, %v1317, 0
  %v1374 = vsel %vm123, %v1318, 0
  %v1377 = vsel %vm123, %v1364, 0
  %v1380 = vsel %vm123, %v1365, 0
  %v1383 = vsel %vm123, %v1366, 0
  %v1386 = vsel %vm123, %v1367, 0
  %v1389 = vsel %vm123, %v1368, 0
  %v1392 = vsel %vm123, %v1369, 0
  %1394 = vmatprep.subr.bf16.mxu0 0
  %1395 = vmatpush1.bf16.xpose.msra.mxu0 %v1377
  %1396 = vmatprep.subr.bf16.mxu0 0
  %1397 = vmatpush1.bf16.xpose.msra.mxu0 %v1380
  %1398 = vmatprep.subr.bf16.mxu0 0
  %1399 = vmatpush1.bf16.xpose.msra.mxu0 %v1383
  %1400 = vmatprep.subr.bf16.mxu0 0
  %1401 = vmatpush1.bf16.xpose.msra.mxu0 %v1386
  %1402 = vmatprep.subr.bf16.mxu0 0
  %1403 = vmatpush1.bf16.xpose.msra.mxu0 %v1389
  %1404 = vmatprep.subr.bf16.mxu0 0
  %1405 = vmatpush1.bf16.xpose.msra.mxu0 %v1392
  %1406 = vmatprep.subr.bf16.mxu0 0
  %1407 = vmatpush1.bf16.xpose.msra.mxu0 0
  %1408 = vmatprep.subr.bf16.mxu0 0
  %1409 = vmatpush1.bf16.xpose.msra.mxu0 0
  %1410 = vmatprep.subr.bf16.mxu0 0
  %1411 = vmatpush1.bf16.xpose.msra.mxu0 0
  %1412 = vmatprep.subr.bf16.mxu0 0
  %1413 = vmatpush1.bf16.xpose.msra.mxu0 0
  %1414 = vmatprep.subr.bf16.mxu0 0
  %1415 = vmatpush1.bf16.xpose.msra.mxu0 0
  %1416 = vmatprep.subr.bf16.mxu0 0
  %1417 = vmatpush1.bf16.xpose.msra.mxu0 0
  %1418 = vmatprep.subr.bf16.mxu0 0
  %1419 = vmatpush1.bf16.xpose.msra.mxu0 0
  %1420 = vmatprep.subr.bf16.mxu0 0
  %1421 = vmatpush1.bf16.xpose.msra.mxu0 0
  %1422 = vmatprep.subr.bf16.mxu0 0
  %1423 = vmatpush1.bf16.xpose.msra.mxu0 0
  %1424 = vmatprep.subr.bf16.mxu0 0
  %1425 = vmatpush1.bf16.xpose.msra.mxu0 0
  %1426 = vmatprep.mubr.bf16.mxu0 0
  %1427 = vmatmul.mubr.bf16.gmra.mrb[0].mxu0 %v1371
  %v1428 = vpop.f32.mrb[0].mxu0
  %v1429 = vadd.f32 %v1338, %v1428
  %v1430 = vpop.f32.mrb[0].mxu0
  %v1431 = vpop.f32.mrb[0].mxu0
  %v1432 = vadd.f32 %v1338, %v1431
  %v1433 = vpop.f32.mrb[0].mxu0
  %1434 = vmatprep.mubr.bf16.mxu0 0
  %1435 = vmatmul.mubr.bf16.gmra.mrb[0].mxu0 %v1374
  %v1436 = vpop.f32.mrb[0].mxu0
  %v1437 = vadd.f32 %v1338, %v1436
  %v1438 = vpop.f32.mrb[0].mxu0
  %v1439 = vpop.f32.mrb[0].mxu0
  %v1440 = vadd.f32 %v1338, %v1439
  %v1441 = vpop.f32.mrb[0].mxu0
  %1442 = vdwg.mxu0
  %v1443 = vmul.f32 %v1429, 0.25
  %v1444 = vmul.f32 %v1432, 0.25
  %v1445 = vmul.f32 %v1437, 0.25
  %v1446 = vmul.f32 %v1440, 0.25
  %v1447 = vpack.c.bf16 %v1444, %v1443
  %v1448 = vpack.c.bf16 %v1446, %v1445
  %v1449 = vpack.c.bf16 %v1432, %v1429
  %v1450 = vpack.c.bf16 %v1440, %v1437
  %s1451 = scalar_lea.vmem %s5, 16
  %v1452 = vld [vmem:[%s1451] sm:$0xf]
  %v1453 = vld [vmem:[%s1451 + $0x4] sm:$0xf]
  %v1454 = vld [vmem:[%s1451 + $0x8] sm:$0xf]
  %v1455 = vld [vmem:[%s1451 + $0xc] sm:$0xf]
  %s1456 = scalar_lea.vmem %s6, 1
  %v1457 = vld [vmem:[%s1456] sm:$0x1]
  %1459 = vrot.lane.b32.xlu0 %v1449, 96
  %v1460 = vpop.permute.xlu0 %1459
  %v1462 = vsel %vm214, %v1447, 0
  %v1465 = vsel %vm214, %v1460, 0
  %1467 = vmatprep.subr.bf16.mxu0 0
  %1468 = vmatpush1.bf16.xpose.msra.mxu0 %v1465
  %1469 = vmatprep.subr.bf16.mxu0 0
  %1470 = vmatpush1.bf16.xpose.msra.mxu0 0
  %1471 = vmatprep.subr.bf16.mxu0 0
  %1472 = vmatpush1.bf16.xpose.msra.mxu0 0
  %1473 = vmatprep.subr.bf16.mxu0 0
  %1474 = vmatpush1.bf16.xpose.msra.mxu0 0
  %1475 = vmatprep.subr.bf16.mxu0 0
  %1476 = vmatpush1.bf16.xpose.msra.mxu0 0
  %1477 = vmatprep.subr.bf16.mxu0 0
  %1478 = vmatpush1.bf16.xpose.msra.mxu0 0
  %1479 = vmatprep.subr.bf16.mxu0 0
  %1480 = vmatpush1.bf16.xpose.msra.mxu0 0
  %1481 = vmatprep.subr.bf16.mxu0 0
  %1482 = vmatpush1.bf16.xpose.msra.mxu0 0
  %1483 = vmatprep.subr.bf16.mxu0 0
  %1484 = vmatpush1.bf16.xpose.msra.mxu0 0
  %1485 = vmatprep.subr.bf16.mxu0 0
  %1486 = vmatpush1.bf16.xpose.msra.mxu0 0
  %1487 = vmatprep.subr.bf16.mxu0 0
  %1488 = vmatpush1.bf16.xpose.msra.mxu0 0
  %1489 = vmatprep.subr.bf16.mxu0 0
  %1490 = vmatpush1.bf16.xpose.msra.mxu0 0
  %1491 = vmatprep.subr.bf16.mxu0 0
  %1492 = vmatpush1.bf16.xpose.msra.mxu0 0
  %1493 = vmatprep.subr.bf16.mxu0 0
  %1494 = vmatpush1.bf16.xpose.msra.mxu0 0
  %1495 = vmatprep.subr.bf16.mxu0 0
  %1496 = vmatpush1.bf16.xpose.msra.mxu0 0
  %1497 = vmatprep.subr.bf16.mxu0 0
  %1498 = vmatpush1.bf16.xpose.msra.mxu0 0
  %1499 = vmatprep.mubr.bf16.mxu0 0
  %1500 = vmatmul.mubr.bf16.gmra.mrb[0].mxu0 %v1462
  %v1501 = vpop.f32.mrb[0].mxu0
  %v1502 = vadd.f32 0.0, %v1501
  %v1503 = vpop.f32.mrb[0].mxu0
  %v1504 = vpop.f32.mrb[0].mxu0
  %v1505 = vadd.f32 0.0, %v1504
  %v1506 = vpop.f32.mrb[0].mxu0
  %1507 = vdwg.mxu0
  %v1508 = vsel %vm267, %v1502, -1e+30
  %v1509 = vsel %vm267, %v1505, -1e+30
  %v1510 = vsel %vm214, %v1508, -inf
  %1511 = vmax.xlane.f32.xlu0 %v1510
  %v1512 = vpop.xlane.xlu0 %1511
  %v1513 = vsel %vm214, %v1509, -inf
  %1514 = vmax.xlane.f32.xlu0 %v1513
  %v1515 = vpop.xlane.xlu0 %1514
  %v1516 = vsub.f32 %v1508, %v1512
  %v1517 = vsub.f32 %v1509, %v1515
  %v1518 = vmul.f32 %v1516, 1.442695
  %v1519 = vpow.pop %v1518
  %v1520 = vmul.f32 %v1517, 1.442695
  %v1521 = vpow.pop %v1520
  %v1522 = vsel %vm214, %v1519, 0.0
  %1523 = vadd.xlane.f32.xlu0 %v1522
  %v1524 = vpop.xlane.xlu0 %1523
  %v1525 = vsel %vm214, %v1521, 0.0
  %1526 = vadd.xlane.f32.xlu0 %v1525
  %v1527 = vpop.xlane.xlu0 %1526
  %v1528 = vrcp.pop %v1524
  %v1529 = vrcp.pop %v1527
  %v1530 = vmul.f32 %v1519, %v1528
  %v1531 = vmul.f32 %v1521, %v1529
  %v1532 = vpack.c.bf16 %v1531, %v1530
  %1533 = vrot.lane.b32.xlu0 %v1449, 64
  %v1534 = vpop.permute.xlu0 %1533
  %v1537 = vsel %vm214, %v1532, 0
  %1539 = vmatprep.subr.bf16.mxu0 0
  %1540 = vmatpush1.bf16.msra.mxu0 %v1534
  %1541 = vmatprep.subr.bf16.mxu0 0
  %1542 = vmatpush1.bf16.msra.mxu0 0
  %1543 = vmatprep.subr.bf16.mxu0 0
  %1544 = vmatpush1.bf16.msra.mxu0 0
  %1545 = vmatprep.subr.bf16.mxu0 0
  %1546 = vmatpush1.bf16.msra.mxu0 0
  %1547 = vmatprep.subr.bf16.mxu0 0
  %1548 = vmatpush1.bf16.msra.mxu0 0
  %1549 = vmatprep.subr.bf16.mxu0 0
  %1550 = vmatpush1.bf16.msra.mxu0 0
  %1551 = vmatprep.subr.bf16.mxu0 0
  %1552 = vmatpush1.bf16.msra.mxu0 0
  %1553 = vmatprep.subr.bf16.mxu0 0
  %1554 = vmatpush1.bf16.msra.mxu0 0
  %1555 = vmatprep.subr.bf16.mxu0 0
  %1556 = vmatpush1.bf16.msra.mxu0 0
  %1557 = vmatprep.subr.bf16.mxu0 0
  %1558 = vmatpush1.bf16.msra.mxu0 0
  %1559 = vmatprep.subr.bf16.mxu0 0
  %1560 = vmatpush1.bf16.msra.mxu0 0
  %1561 = vmatprep.subr.bf16.mxu0 0
  %1562 = vmatpush1.bf16.msra.mxu0 0
  %1563 = vmatprep.subr.bf16.mxu0 0
  %1564 = vmatpush1.bf16.msra.mxu0 0
  %1565 = vmatprep.subr.bf16.mxu0 0
  %1566 = vmatpush1.bf16.msra.mxu0 0
  %1567 = vmatprep.subr.bf16.mxu0 0
  %1568 = vmatpush1.bf16.msra.mxu0 0
  %1569 = vmatprep.subr.bf16.mxu0 0
  %1570 = vmatpush1.bf16.msra.mxu0 0
  %1571 = vmatprep.mubr.bf16.mxu0 0
  %1572 = vmatmul.mubr.bf16.gmra.mrb[0].mxu0 %v1537
  %v1573 = vpop.f32.mrb[0].mxu0
  %v1574 = vadd.f32 0.0, %v1573
  %v1575 = vpop.f32.mrb[0].mxu0
  %v1576 = vpop.f32.mrb[0].mxu0
  %v1577 = vadd.f32 0.0, %v1576
  %v1578 = vpop.f32.mrb[0].mxu0
  %1579 = vdwg.mxu0
  %v1580 = vpack.c.bf16 %v1577, %v1574
  %v1585 = vunpack.c.l.b16 %v1452
  %v1586 = vunpack.c.l.b16 %v1453
  %v1587 = vunpack.c.l.b16 %v1454
  %v1588 = vunpack.c.l.b16 %v1455
  %v1589 = vpack.c.b16 %v1586, %v1585
  %v1590 = vpack.c.b16 %v1588, %v1587
  %v1592 = vsel %vm214, %v1580, 0
  %v1595 = vsel %vm214, %v1589, 0
  %v1598 = vsel %vm214, %v1590, 0
  %1600 = vmatprep.subr.bf16.mxu0 0
  %1601 = vmatpush1.bf16.xpose.msra.mxu0 %v1595
  %1602 = vmatprep.subr.bf16.mxu0 0
  %1603 = vmatpush1.bf16.xpose.msra.mxu0 %v1598
  %1604 = vmatprep.subr.bf16.mxu0 0
  %1605 = vmatpush1.bf16.xpose.msra.mxu0 0
  %1606 = vmatprep.subr.bf16.mxu0 0
  %1607 = vmatpush1.bf16.xpose.msra.mxu0 0
  %1608 = vmatprep.subr.bf16.mxu0 0
  %1609 = vmatpush1.bf16.xpose.msra.mxu0 0
  %1610 = vmatprep.subr.bf16.mxu0 0
  %1611 = vmatpush1.bf16.xpose.msra.mxu0 0
  %1612 = vmatprep.subr.bf16.mxu0 0
  %1613 = vmatpush1.bf16.xpose.msra.mxu0 0
  %1614 = vmatprep.subr.bf16.mxu0 0
  %1615 = vmatpush1.bf16.xpose.msra.mxu0 0
  %1616 = vmatprep.subr.bf16.mxu0 0
  %1617 = vmatpush1.bf16.xpose.msra.mxu0 0
  %1618 = vmatprep.subr.bf16.mxu0 0
  %1619 = vmatpush1.bf16.xpose.msra.mxu0 0
  %1620 = vmatprep.subr.bf16.mxu0 0
  %1621 = vmatpush1.bf16.xpose.msra.mxu0 0
  %1622 = vmatprep.subr.bf16.mxu0 0
  %1623 = vmatpush1.bf16.xpose.msra.mxu0 0
  %1624 = vmatprep.subr.bf16.mxu0 0
  %1625 = vmatpush1.bf16.xpose.msra.mxu0 0
  %1626 = vmatprep.subr.bf16.mxu0 0
  %1627 = vmatpush1.bf16.xpose.msra.mxu0 0
  %1628 = vmatprep.subr.bf16.mxu0 0
  %1629 = vmatpush1.bf16.xpose.msra.mxu0 0
  %1630 = vmatprep.subr.bf16.mxu0 0
  %1631 = vmatpush1.bf16.xpose.msra.mxu0 0
  %1632 = vmatprep.mubr.bf16.mxu0 0
  %1633 = vmatmul.mubr.bf16.gmra.mrb[0].mxu0 %v1592
  %v1634 = vpop.f32.mrb[0].mxu0
  %v1635 = vadd.f32 0.0, %v1634
  %v1636 = vpop.f32.mrb[0].mxu0
  %v1637 = vpop.f32.mrb[0].mxu0
  %v1638 = vadd.f32 0.0, %v1637
  %v1639 = vpop.f32.mrb[0].mxu0
  %1640 = vdwg.mxu0
  %v1642 = vlaneseq
  %v1643 = vshrl.u32 %v1642, 7
  %v1644 = vsub.s32 0, %v1643
  %v1645 = vrot.slane %v1457, %v1644
  %v1647 = vadd.f32 %v1645, %v1635
  %v1648 = vadd.f32 %v1645, %v1638
  %1650 = vrot.lane.b32.xlu0 %v1447, 112
  %v1651 = vpop.permute.xlu0 %1650
  %1652 = vrot.lane.b32.xlu0 %v1449, 80
  %v1653 = vpop.permute.xlu0 %1652
  %v1655 = vsel %vm214, %v1651, 0
  %v1658 = vsel %vm214, %v1653, 0
  %1660 = vmatprep.subr.bf16.mxu0 0
  %1661 = vmatpush1.bf16.xpose.msra.mxu0 %v1658
  %1662 = vmatprep.subr.bf16.mxu0 0
  %1663 = vmatpush1.bf16.xpose.msra.mxu0 0
  %1664 = vmatprep.subr.bf16.mxu0 0
  %1665 = vmatpush1.bf16.xpose.msra.mxu0 0
  %1666 = vmatprep.subr.bf16.mxu0 0
  %1667 = vmatpush1.bf16.xpose.msra.mxu0 0
  %1668 = vmatprep.subr.bf16.mxu0 0
  %1669 = vmatpush1.bf16.xpose.msra.mxu0 0
  %1670 = vmatprep.subr.bf16.mxu0 0
  %1671 = vmatpush1.bf16.xpose.msra.mxu0 0
  %1672 = vmatprep.subr.bf16.mxu0 0
  %1673 = vmatpush1.bf16.xpose.msra.mxu0 0
  %1674 = vmatprep.subr.bf16.mxu0 0
  %1675 = vmatpush1.bf16.xpose.msra.mxu0 0
  %1676 = vmatprep.subr.bf16.mxu0 0
  %1677 = vmatpush1.bf16.xpose.msra.mxu0 0
  %1678 = vmatprep.subr.bf16.mxu0 0
  %1679 = vmatpush1.bf16.xpose.msra.mxu0 0
  %1680 = vmatprep.subr.bf16.mxu0 0
  %1681 = vmatpush1.bf16.xpose.msra.mxu0 0
  %1682 = vmatprep.subr.bf16.mxu0 0
  %1683 = vmatpush1.bf16.xpose.msra.mxu0 0
  %1684 = vmatprep.subr.bf16.mxu0 0
  %1685 = vmatpush1.bf16.xpose.msra.mxu0 0
  %1686 = vmatprep.subr.bf16.mxu0 0
  %1687 = vmatpush1.bf16.xpose.msra.mxu0 0
  %1688 = vmatprep.subr.bf16.mxu0 0
  %1689 = vmatpush1.bf16.xpose.msra.mxu0 0
  %1690 = vmatprep.subr.bf16.mxu0 0
  %1691 = vmatpush1.bf16.xpose.msra.mxu0 0
  %1692 = vmatprep.mubr.bf16.mxu0 0
  %1693 = vmatmul.mubr.bf16.gmra.mrb[0].mxu0 %v1655
  %v1694 = vpop.f32.mrb[0].mxu0
  %v1695 = vadd.f32 0.0, %v1694
  %v1696 = vpop.f32.mrb[0].mxu0
  %v1697 = vpop.f32.mrb[0].mxu0
  %v1698 = vadd.f32 0.0, %v1697
  %v1699 = vpop.f32.mrb[0].mxu0
  %1700 = vdwg.mxu0
  %v1701 = vsel %vm267, %v1695, -1e+30
  %v1702 = vsel %vm267, %v1698, -1e+30
  %v1703 = vsel %vm214, %v1701, -inf
  %1704 = vmax.xlane.f32.xlu0 %v1703
  %v1705 = vpop.xlane.xlu0 %1704
  %v1706 = vsel %vm214, %v1702, -inf
  %1707 = vmax.xlane.f32.xlu0 %v1706
  %v1708 = vpop.xlane.xlu0 %1707
  %v1709 = vsub.f32 %v1701, %v1705
  %v1710 = vsub.f32 %v1702, %v1708
  %v1711 = vmul.f32 %v1709, 1.442695
  %v1712 = vpow.pop %v1711
  %v1713 = vmul.f32 %v1710, 1.442695
  %v1714 = vpow.pop %v1713
  %v1715 = vsel %vm214, %v1712, 0.0
  %1716 = vadd.xlane.f32.xlu0 %v1715
  %v1717 = vpop.xlane.xlu0 %1716
  %v1718 = vsel %vm214, %v1714, 0.0
  %1719 = vadd.xlane.f32.xlu0 %v1718
  %v1720 = vpop.xlane.xlu0 %1719
  %v1721 = vrcp.pop %v1717
  %v1722 = vrcp.pop %v1720
  %v1723 = vmul.f32 %v1712, %v1721
  %v1724 = vmul.f32 %v1714, %v1722
  %v1725 = vpack.c.bf16 %v1724, %v1723
  %1726 = vrot.lane.b32.xlu0 %v1449, 48
  %v1727 = vpop.permute.xlu0 %1726
  %v1730 = vsel %vm214, %v1725, 0
  %1732 = vmatprep.subr.bf16.mxu0 0
  %1733 = vmatpush1.bf16.msra.mxu0 %v1727
  %1734 = vmatprep.subr.bf16.mxu0 0
  %1735 = vmatpush1.bf16.msra.mxu0 0
  %1736 = vmatprep.subr.bf16.mxu0 0
  %1737 = vmatpush1.bf16.msra.mxu0 0
  %1738 = vmatprep.subr.bf16.mxu0 0
  %1739 = vmatpush1.bf16.msra.mxu0 0
  %1740 = vmatprep.subr.bf16.mxu0 0
  %1741 = vmatpush1.bf16.msra.mxu0 0
  %1742 = vmatprep.subr.bf16.mxu0 0
  %1743 = vmatpush1.bf16.msra.mxu0 0
  %1744 = vmatprep.subr.bf16.mxu0 0
  %1745 = vmatpush1.bf16.msra.mxu0 0
  %1746 = vmatprep.subr.bf16.mxu0 0
  %1747 = vmatpush1.bf16.msra.mxu0 0
  %1748 = vmatprep.subr.bf16.mxu0 0
  %1749 = vmatpush1.bf16.msra.mxu0 0
  %1750 = vmatprep.subr.bf16.mxu0 0
  %1751 = vmatpush1.bf16.msra.mxu0 0
  %1752 = vmatprep.subr.bf16.mxu0 0
  %1753 = vmatpush1.bf16.msra.mxu0 0
  %1754 = vmatprep.subr.bf16.mxu0 0
  %1755 = vmatpush1.bf16.msra.mxu0 0
  %1756 = vmatprep.subr.bf16.mxu0 0
  %1757 = vmatpush1.bf16.msra.mxu0 0
  %1758 = vmatprep.subr.bf16.mxu0 0
  %1759 = vmatpush1.bf16.msra.mxu0 0
  %1760 = vmatprep.subr.bf16.mxu0 0
  %1761 = vmatpush1.bf16.msra.mxu0 0
  %1762 = vmatprep.subr.bf16.mxu0 0
  %1763 = vmatpush1.bf16.msra.mxu0 0
  %1764 = vmatprep.mubr.bf16.mxu0 0
  %1765 = vmatmul.mubr.bf16.gmra.mrb[0].mxu0 %v1730
  %v1766 = vpop.f32.mrb[0].mxu0
  %v1767 = vadd.f32 0.0, %v1766
  %v1768 = vpop.f32.mrb[0].mxu0
  %v1769 = vpop.f32.mrb[0].mxu0
  %v1770 = vadd.f32 0.0, %v1769
  %v1771 = vpop.f32.mrb[0].mxu0
  %1772 = vdwg.mxu0
  %v1773 = vpack.c.bf16 %v1770, %v1767
  %1774 = vrot.lane.b32.xlu0 %v1589, 112
  %v1775 = vpop.permute.xlu0 %1774
  %1776 = vrot.lane.b32.xlu0 %v1590, 112
  %v1777 = vpop.permute.xlu0 %1776
  %v1779 = vsel %vm214, %v1773, 0
  %v1782 = vsel %vm214, %v1775, 0
  %v1785 = vsel %vm214, %v1777, 0
  %1787 = vmatprep.subr.bf16.mxu0 0
  %1788 = vmatpush1.bf16.xpose.msra.mxu0 %v1782
  %1789 = vmatprep.subr.bf16.mxu0 0
  %1790 = vmatpush1.bf16.xpose.msra.mxu0 %v1785
  %1791 = vmatprep.subr.bf16.mxu0 0
  %1792 = vmatpush1.bf16.xpose.msra.mxu0 0
  %1793 = vmatprep.subr.bf16.mxu0 0
  %1794 = vmatpush1.bf16.xpose.msra.mxu0 0
  %1795 = vmatprep.subr.bf16.mxu0 0
  %1796 = vmatpush1.bf16.xpose.msra.mxu0 0
  %1797 = vmatprep.subr.bf16.mxu0 0
  %1798 = vmatpush1.bf16.xpose.msra.mxu0 0
  %1799 = vmatprep.subr.bf16.mxu0 0
  %1800 = vmatpush1.bf16.xpose.msra.mxu0 0
  %1801 = vmatprep.subr.bf16.mxu0 0
  %1802 = vmatpush1.bf16.xpose.msra.mxu0 0
  %1803 = vmatprep.subr.bf16.mxu0 0
  %1804 = vmatpush1.bf16.xpose.msra.mxu0 0
  %1805 = vmatprep.subr.bf16.mxu0 0
  %1806 = vmatpush1.bf16.xpose.msra.mxu0 0
  %1807 = vmatprep.subr.bf16.mxu0 0
  %1808 = vmatpush1.bf16.xpose.msra.mxu0 0
  %1809 = vmatprep.subr.bf16.mxu0 0
  %1810 = vmatpush1.bf16.xpose.msra.mxu0 0
  %1811 = vmatprep.subr.bf16.mxu0 0
  %1812 = vmatpush1.bf16.xpose.msra.mxu0 0
  %1813 = vmatprep.subr.bf16.mxu0 0
  %1814 = vmatpush1.bf16.xpose.msra.mxu0 0
  %1815 = vmatprep.subr.bf16.mxu0 0
  %1816 = vmatpush1.bf16.xpose.msra.mxu0 0
  %1817 = vmatprep.subr.bf16.mxu0 0
  %1818 = vmatpush1.bf16.xpose.msra.mxu0 0
  %1819 = vmatprep.mubr.bf16.mxu0 0
  %1820 = vmatmul.mubr.bf16.gmra.mrb[0].mxu0 %v1779
  %v1821 = vpop.f32.mrb[0].mxu0
  %v1822 = vadd.f32 0.0, %v1821
  %v1823 = vpop.f32.mrb[0].mxu0
  %v1824 = vpop.f32.mrb[0].mxu0
  %v1825 = vadd.f32 0.0, %v1824
  %v1826 = vpop.f32.mrb[0].mxu0
  %1827 = vdwg.mxu0
  %v1828 = vadd.f32 %v1647, %v1822
  %v1829 = vadd.f32 %v1648, %v1825
  %1830 = vst.msk [vmem:[#allocation2] sm:$0xff] %vm123, %v1828
  %1831 = vst.msk [vmem:[#allocation2 + $0x8] sm:$0xff] %vm123, %v1829
  %1833 = vrot.lane.b32.xlu0 %v1450, 96
  %v1834 = vpop.permute.xlu0 %1833
  %v1836 = vsel %vm214, %v1448, 0
  %v1839 = vsel %vm214, %v1834, 0
  %1841 = vmatprep.subr.bf16.mxu0 0
  %1842 = vmatpush1.bf16.xpose.msra.mxu0 %v1839
  %1843 = vmatprep.subr.bf16.mxu0 0
  %1844 = vmatpush1.bf16.xpose.msra.mxu0 0
  %1845 = vmatprep.subr.bf16.mxu0 0
  %1846 = vmatpush1.bf16.xpose.msra.mxu0 0
  %1847 = vmatprep.subr.bf16.mxu0 0
  %1848 = vmatpush1.bf16.xpose.msra.mxu0 0
  %1849 = vmatprep.subr.bf16.mxu0 0
  %1850 = vmatpush1.bf16.xpose.msra.mxu0 0
  %1851 = vmatprep.subr.bf16.mxu0 0
  %1852 = vmatpush1.bf16.xpose.msra.mxu0 0
  %1853 = vmatprep.subr.bf16.mxu0 0
  %1854 = vmatpush1.bf16.xpose.msra.mxu0 0
  %1855 = vmatprep.subr.bf16.mxu0 0
  %1856 = vmatpush1.bf16.xpose.msra.mxu0 0
  %1857 = vmatprep.subr.bf16.mxu0 0
  %1858 = vmatpush1.bf16.xpose.msra.mxu0 0
  %1859 = vmatprep.subr.bf16.mxu0 0
  %1860 = vmatpush1.bf16.xpose.msra.mxu0 0
  %1861 = vmatprep.subr.bf16.mxu0 0
  %1862 = vmatpush1.bf16.xpose.msra.mxu0 0
  %1863 = vmatprep.subr.bf16.mxu0 0
  %1864 = vmatpush1.bf16.xpose.msra.mxu0 0
  %1865 = vmatprep.subr.bf16.mxu0 0
  %1866 = vmatpush1.bf16.xpose.msra.mxu0 0
  %1867 = vmatprep.subr.bf16.mxu0 0
  %1868 = vmatpush1.bf16.xpose.msra.mxu0 0
  %1869 = vmatprep.subr.bf16.mxu0 0
  %1870 = vmatpush1.bf16.xpose.msra.mxu0 0
  %1871 = vmatprep.subr.bf16.mxu0 0
  %1872 = vmatpush1.bf16.xpose.msra.mxu0 0
  %1873 = vmatprep.mubr.bf16.mxu0 0
  %1874 = vmatmul.mubr.bf16.gmra.mrb[0].mxu0 %v1836
  %v1875 = vpop.f32.mrb[0].mxu0
  %v1876 = vadd.f32 0.0, %v1875
  %v1877 = vpop.f32.mrb[0].mxu0
  %v1878 = vpop.f32.mrb[0].mxu0
  %v1879 = vadd.f32 0.0, %v1878
  %v1880 = vpop.f32.mrb[0].mxu0
  %1881 = vdwg.mxu0
  %v1882 = vsel %vm646, %v1876, -1e+30
  %v1883 = vsel %vm646, %v1879, -1e+30
  %v1884 = vsel %vm214, %v1882, -inf
  %1885 = vmax.xlane.f32.xlu0 %v1884
  %v1886 = vpop.xlane.xlu0 %1885
  %v1887 = vsel %vm214, %v1883, -inf
  %1888 = vmax.xlane.f32.xlu0 %v1887
  %v1889 = vpop.xlane.xlu0 %1888
  %v1890 = vsub.f32 %v1882, %v1886
  %v1891 = vsub.f32 %v1883, %v1889
  %v1892 = vmul.f32 %v1890, 1.442695
  %v1893 = vpow.pop %v1892
  %v1894 = vmul.f32 %v1891, 1.442695
  %v1895 = vpow.pop %v1894
  %v1896 = vsel %vm214, %v1893, 0.0
  %1897 = vadd.xlane.f32.xlu0 %v1896
  %v1898 = vpop.xlane.xlu0 %1897
  %v1899 = vsel %vm214, %v1895, 0.0
  %1900 = vadd.xlane.f32.xlu0 %v1899
  %v1901 = vpop.xlane.xlu0 %1900
  %v1902 = vrcp.pop %v1898
  %v1903 = vrcp.pop %v1901
  %v1904 = vmul.f32 %v1893, %v1902
  %v1905 = vmul.f32 %v1895, %v1903
  %v1906 = vpack.c.bf16 %v1905, %v1904
  %1907 = vrot.lane.b32.xlu0 %v1450, 64
  %v1908 = vpop.permute.xlu0 %1907
  %v1911 = vsel %vm214, %v1906, 0
  %1913 = vmatprep.subr.bf16.mxu0 0
  %1914 = vmatpush1.bf16.msra.mxu0 %v1908
  %1915 = vmatprep.subr.bf16.mxu0 0
  %1916 = vmatpush1.bf16.msra.mxu0 0
  %1917 = vmatprep.subr.bf16.mxu0 0
  %1918 = vmatpush1.bf16.msra.mxu0 0
  %1919 = vmatprep.subr.bf16.mxu0 0
  %1920 = vmatpush1.bf16.msra.mxu0 0
  %1921 = vmatprep.subr.bf16.mxu0 0
  %1922 = vmatpush1.bf16.msra.mxu0 0
  %1923 = vmatprep.subr.bf16.mxu0 0
  %1924 = vmatpush1.bf16.msra.mxu0 0
  %1925 = vmatprep.subr.bf16.mxu0 0
  %1926 = vmatpush1.bf16.msra.mxu0 0
  %1927 = vmatprep.subr.bf16.mxu0 0
  %1928 = vmatpush1.bf16.msra.mxu0 0
  %1929 = vmatprep.subr.bf16.mxu0 0
  %1930 = vmatpush1.bf16.msra.mxu0 0
  %1931 = vmatprep.subr.bf16.mxu0 0
  %1932 = vmatpush1.bf16.msra.mxu0 0
  %1933 = vmatprep.subr.bf16.mxu0 0
  %1934 = vmatpush1.bf16.msra.mxu0 0
  %1935 = vmatprep.subr.bf16.mxu0 0
  %1936 = vmatpush1.bf16.msra.mxu0 0
  %1937 = vmatprep.subr.bf16.mxu0 0
  %1938 = vmatpush1.bf16.msra.mxu0 0
  %1939 = vmatprep.subr.bf16.mxu0 0
  %1940 = vmatpush1.bf16.msra.mxu0 0
  %1941 = vmatprep.subr.bf16.mxu0 0
  %1942 = vmatpush1.bf16.msra.mxu0 0
  %1943 = vmatprep.subr.bf16.mxu0 0
  %1944 = vmatpush1.bf16.msra.mxu0 0
  %1945 = vmatprep.mubr.bf16.mxu0 0
  %1946 = vmatmul.mubr.bf16.gmra.mrb[0].mxu0 %v1911
  %v1947 = vpop.f32.mrb[0].mxu0
  %v1948 = vadd.f32 0.0, %v1947
  %v1949 = vpop.f32.mrb[0].mxu0
  %v1950 = vpop.f32.mrb[0].mxu0
  %v1951 = vadd.f32 0.0, %v1950
  %v1952 = vpop.f32.mrb[0].mxu0
  %1953 = vdwg.mxu0
  %v1954 = vpack.c.bf16 %v1951, %v1948
  %v1956 = vsel %vm214, %v1954, 0
  %1958 = vmatprep.subr.bf16.mxu0 0
  %1959 = vmatpush1.bf16.xpose.msra.mxu0 %v1595
  %1960 = vmatprep.subr.bf16.mxu0 0
  %1961 = vmatpush1.bf16.xpose.msra.mxu0 %v1598
  %1962 = vmatprep.subr.bf16.mxu0 0
  %1963 = vmatpush1.bf16.xpose.msra.mxu0 0
  %1964 = vmatprep.subr.bf16.mxu0 0
  %1965 = vmatpush1.bf16.xpose.msra.mxu0 0
  %1966 = vmatprep.subr.bf16.mxu0 0
  %1967 = vmatpush1.bf16.xpose.msra.mxu0 0
  %1968 = vmatprep.subr.bf16.mxu0 0
  %1969 = vmatpush1.bf16.xpose.msra.mxu0 0
  %1970 = vmatprep.subr.bf16.mxu0 0
  %1971 = vmatpush1.bf16.xpose.msra.mxu0 0
  %1972 = vmatprep.subr.bf16.mxu0 0
  %1973 = vmatpush1.bf16.xpose.msra.mxu0 0
  %1974 = vmatprep.subr.bf16.mxu0 0
  %1975 = vmatpush1.bf16.xpose.msra.mxu0 0
  %1976 = vmatprep.subr.bf16.mxu0 0
  %1977 = vmatpush1.bf16.xpose.msra.mxu0 0
  %1978 = vmatprep.subr.bf16.mxu0 0
  %1979 = vmatpush1.bf16.xpose.msra.mxu0 0
  %1980 = vmatprep.subr.bf16.mxu0 0
  %1981 = vmatpush1.bf16.xpose.msra.mxu0 0
  %1982 = vmatprep.subr.bf16.mxu0 0
  %1983 = vmatpush1.bf16.xpose.msra.mxu0 0
  %1984 = vmatprep.subr.bf16.mxu0 0
  %1985 = vmatpush1.bf16.xpose.msra.mxu0 0
  %1986 = vmatprep.subr.bf16.mxu0 0
  %1987 = vmatpush1.bf16.xpose.msra.mxu0 0
  %1988 = vmatprep.subr.bf16.mxu0 0
  %1989 = vmatpush1.bf16.xpose.msra.mxu0 0
  %1990 = vmatprep.mubr.bf16.mxu0 0
  %1991 = vmatmul.mubr.bf16.gmra.mrb[0].mxu0 %v1956
  %v1992 = vpop.f32.mrb[0].mxu0
  %v1993 = vadd.f32 0.0, %v1992
  %v1994 = vpop.f32.mrb[0].mxu0
  %v1995 = vpop.f32.mrb[0].mxu0
  %v1996 = vadd.f32 0.0, %v1995
  %v1997 = vpop.f32.mrb[0].mxu0
  %1998 = vdwg.mxu0
  %v1999 = vadd.f32 %v1645, %v1993
  %v2000 = vadd.f32 %v1645, %v1996
  %2002 = vrot.lane.b32.xlu0 %v1448, 112
  %v2003 = vpop.permute.xlu0 %2002
  %2004 = vrot.lane.b32.xlu0 %v1450, 80
  %v2005 = vpop.permute.xlu0 %2004
  %v2007 = vsel %vm214, %v2003, 0
  %v2010 = vsel %vm214, %v2005, 0
  %2012 = vmatprep.subr.bf16.mxu0 0
  %2013 = vmatpush1.bf16.xpose.msra.mxu0 %v2010
  %2014 = vmatprep.subr.bf16.mxu0 0
  %2015 = vmatpush1.bf16.xpose.msra.mxu0 0
  %2016 = vmatprep.subr.bf16.mxu0 0
  %2017 = vmatpush1.bf16.xpose.msra.mxu0 0
  %2018 = vmatprep.subr.bf16.mxu0 0
  %2019 = vmatpush1.bf16.xpose.msra.mxu0 0
  %2020 = vmatprep.subr.bf16.mxu0 0
  %2021 = vmatpush1.bf16.xpose.msra.mxu0 0
  %2022 = vmatprep.subr.bf16.mxu0 0
  %2023 = vmatpush1.bf16.xpose.msra.mxu0 0
  %2024 = vmatprep.subr.bf16.mxu0 0
  %2025 = vmatpush1.bf16.xpose.msra.mxu0 0
  %2026 = vmatprep.subr.bf16.mxu0 0
  %2027 = vmatpush1.bf16.xpose.msra.mxu0 0
  %2028 = vmatprep.subr.bf16.mxu0 0
  %2029 = vmatpush1.bf16.xpose.msra.mxu0 0
  %2030 = vmatprep.subr.bf16.mxu0 0
  %2031 = vmatpush1.bf16.xpose.msra.mxu0 0
  %2032 = vmatprep.subr.bf16.mxu0 0
  %2033 = vmatpush1.bf16.xpose.msra.mxu0 0
  %2034 = vmatprep.subr.bf16.mxu0 0
  %2035 = vmatpush1.bf16.xpose.msra.mxu0 0
  %2036 = vmatprep.subr.bf16.mxu0 0
  %2037 = vmatpush1.bf16.xpose.msra.mxu0 0
  %2038 = vmatprep.subr.bf16.mxu0 0
  %2039 = vmatpush1.bf16.xpose.msra.mxu0 0
  %2040 = vmatprep.subr.bf16.mxu0 0
  %2041 = vmatpush1.bf16.xpose.msra.mxu0 0
  %2042 = vmatprep.subr.bf16.mxu0 0
  %2043 = vmatpush1.bf16.xpose.msra.mxu0 0
  %2044 = vmatprep.mubr.bf16.mxu0 0
  %2045 = vmatmul.mubr.bf16.gmra.mrb[0].mxu0 %v2007
  %v2046 = vpop.f32.mrb[0].mxu0
  %v2047 = vadd.f32 0.0, %v2046
  %v2048 = vpop.f32.mrb[0].mxu0
  %v2049 = vpop.f32.mrb[0].mxu0
  %v2050 = vadd.f32 0.0, %v2049
  %v2051 = vpop.f32.mrb[0].mxu0
  %2052 = vdwg.mxu0
  %v2053 = vsel %vm646, %v2047, -1e+30
  %v2054 = vsel %vm646, %v2050, -1e+30
  %v2055 = vsel %vm214, %v2053, -inf
  %2056 = vmax.xlane.f32.xlu0 %v2055
  %v2057 = vpop.xlane.xlu0 %2056
  %v2058 = vsel %vm214, %v2054, -inf
  %2059 = vmax.xlane.f32.xlu0 %v2058
  %v2060 = vpop.xlane.xlu0 %2059
  %v2061 = vsub.f32 %v2053, %v2057
  %v2062 = vsub.f32 %v2054, %v2060
  %v2063 = vmul.f32 %v2061, 1.442695
  %v2064 = vpow.pop %v2063
  %v2065 = vmul.f32 %v2062, 1.442695
  %v2066 = vpow.pop %v2065
  %v2067 = vsel %vm214, %v2064, 0.0
  %2068 = vadd.xlane.f32.xlu0 %v2067
  %v2069 = vpop.xlane.xlu0 %2068
  %v2070 = vsel %vm214, %v2066, 0.0
  %2071 = vadd.xlane.f32.xlu0 %v2070
  %v2072 = vpop.xlane.xlu0 %2071
  %v2073 = vrcp.pop %v2069
  %v2074 = vrcp.pop %v2072
  %v2075 = vmul.f32 %v2064, %v2073
  %v2076 = vmul.f32 %v2066, %v2074
  %v2077 = vpack.c.bf16 %v2076, %v2075
  %2078 = vrot.lane.b32.xlu0 %v1450, 48
  %v2079 = vpop.permute.xlu0 %2078
  %v2082 = vsel %vm214, %v2077, 0
  %2084 = vmatprep.subr.bf16.mxu0 0
  %2085 = vmatpush1.bf16.msra.mxu0 %v2079
  %2086 = vmatprep.subr.bf16.mxu0 0
  %2087 = vmatpush1.bf16.msra.mxu0 0
  %2088 = vmatprep.subr.bf16.mxu0 0
  %2089 = vmatpush1.bf16.msra.mxu0 0
  %2090 = vmatprep.subr.bf16.mxu0 0
  %2091 = vmatpush1.bf16.msra.mxu0 0
  %2092 = vmatprep.subr.bf16.mxu0 0
  %2093 = vmatpush1.bf16.msra.mxu0 0
  %2094 = vmatprep.subr.bf16.mxu0 0
  %2095 = vmatpush1.bf16.msra.mxu0 0
  %2096 = vmatprep.subr.bf16.mxu0 0
  %2097 = vmatpush1.bf16.msra.mxu0 0
  %2098 = vmatprep.subr.bf16.mxu0 0
  %2099 = vmatpush1.bf16.msra.mxu0 0
  %2100 = vmatprep.subr.bf16.mxu0 0
  %2101 = vmatpush1.bf16.msra.mxu0 0
  %2102 = vmatprep.subr.bf16.mxu0 0
  %2103 = vmatpush1.bf16.msra.mxu0 0
  %2104 = vmatprep.subr.bf16.mxu0 0
  %2105 = vmatpush1.bf16.msra.mxu0 0
  %2106 = vmatprep.subr.bf16.mxu0 0
  %2107 = vmatpush1.bf16.msra.mxu0 0
  %2108 = vmatprep.subr.bf16.mxu0 0
  %2109 = vmatpush1.bf16.msra.mxu0 0
  %2110 = vmatprep.subr.bf16.mxu0 0
  %2111 = vmatpush1.bf16.msra.mxu0 0
  %2112 = vmatprep.subr.bf16.mxu0 0
  %2113 = vmatpush1.bf16.msra.mxu0 0
  %2114 = vmatprep.subr.bf16.mxu0 0
  %2115 = vmatpush1.bf16.msra.mxu0 0
  %2116 = vmatprep.mubr.bf16.mxu0 0
  %2117 = vmatmul.mubr.bf16.gmra.mrb[0].mxu0 %v2082
  %v2118 = vpop.f32.mrb[0].mxu0
  %v2119 = vadd.f32 0.0, %v2118
  %v2120 = vpop.f32.mrb[0].mxu0
  %v2121 = vpop.f32.mrb[0].mxu0
  %v2122 = vadd.f32 0.0, %v2121
  %v2123 = vpop.f32.mrb[0].mxu0
  %2124 = vdwg.mxu0
  %v2125 = vpack.c.bf16 %v2122, %v2119
  %v2127 = vsel %vm214, %v2125, 0
  %2129 = vmatprep.subr.bf16.mxu0 0
  %2130 = vmatpush1.bf16.xpose.msra.mxu0 %v1782
  %2131 = vmatprep.subr.bf16.mxu0 0
  %2132 = vmatpush1.bf16.xpose.msra.mxu0 %v1785
  %2133 = vmatprep.subr.bf16.mxu0 0
  %2134 = vmatpush1.bf16.xpose.msra.mxu0 0
  %2135 = vmatprep.subr.bf16.mxu0 0
  %2136 = vmatpush1.bf16.xpose.msra.mxu0 0
  %2137 = vmatprep.subr.bf16.mxu0 0
  %2138 = vmatpush1.bf16.xpose.msra.mxu0 0
  %2139 = vmatprep.subr.bf16.mxu0 0
  %2140 = vmatpush1.bf16.xpose.msra.mxu0 0
  %2141 = vmatprep.subr.bf16.mxu0 0
  %2142 = vmatpush1.bf16.xpose.msra.mxu0 0
  %2143 = vmatprep.subr.bf16.mxu0 0
  %2144 = vmatpush1.bf16.xpose.msra.mxu0 0
  %2145 = vmatprep.subr.bf16.mxu0 0
  %2146 = vmatpush1.bf16.xpose.msra.mxu0 0
  %2147 = vmatprep.subr.bf16.mxu0 0
  %2148 = vmatpush1.bf16.xpose.msra.mxu0 0
  %2149 = vmatprep.subr.bf16.mxu0 0
  %2150 = vmatpush1.bf16.xpose.msra.mxu0 0
  %2151 = vmatprep.subr.bf16.mxu0 0
  %2152 = vmatpush1.bf16.xpose.msra.mxu0 0
  %2153 = vmatprep.subr.bf16.mxu0 0
  %2154 = vmatpush1.bf16.xpose.msra.mxu0 0
  %2155 = vmatprep.subr.bf16.mxu0 0
  %2156 = vmatpush1.bf16.xpose.msra.mxu0 0
  %2157 = vmatprep.subr.bf16.mxu0 0
  %2158 = vmatpush1.bf16.xpose.msra.mxu0 0
  %2159 = vmatprep.subr.bf16.mxu0 0
  %2160 = vmatpush1.bf16.xpose.msra.mxu0 0
  %2161 = vmatprep.mubr.bf16.mxu0 0
  %2162 = vmatmul.mubr.bf16.gmra.mrb[0].mxu0 %v2127
  %v2163 = vpop.f32.mrb[0].mxu0
  %v2164 = vadd.f32 0.0, %v2163
  %v2165 = vpop.f32.mrb[0].mxu0
  %v2166 = vpop.f32.mrb[0].mxu0
  %v2167 = vadd.f32 0.0, %v2166
  %v2168 = vpop.f32.mrb[0].mxu0
  %2169 = vdwg.mxu0
  %v2170 = vadd.f32 %v1999, %v2164
  %v2171 = vadd.f32 %v2000, %v2167
  %2172 = vst.msk [vmem:[#allocation2 + $0x10] sm:$0xff] %vm123, %v2170
  %2173 = vst.msk [vmem:[#allocation2 + $0x18] sm:$0xff] %vm123, %v2171
  %v2174 = vld [vmem:[#allocation2] sm:$0xff]
  %v2175 = vld [vmem:[#allocation2 + $0x8] sm:$0xff]
  %v2176 = vld [vmem:[#allocation2 + $0x10] sm:$0xff]
  %v2177 = vld [vmem:[#allocation2 + $0x18] sm:$0xff]
  %v2178 = vadd.f32 %v1313, %v2174
  %v2179 = vadd.f32 %v1314, %v2175
  %v2180 = vadd.f32 %v1315, %v2176
  %v2181 = vadd.f32 %v1316, %v2177
  %s2182 = scalar_lea.vmem %s7, 1
  %v2183 = vld [vmem:[%s2182] sm:$0x1]
  %s2184 = scalar_lea.vmem %s8, 1
  %v2185 = vld [vmem:[%s2184] sm:$0x1]
  %v2186 = vsel %vm123, %v2178, 0.0
  %2187 = vadd.xlane.f32.xlu0 %v2186
  %v2188 = vpop.xlane.xlu0 %2187
  %v2189 = vsel %vm123, %v2179, 0.0
  %2190 = vadd.xlane.f32.xlu0 %v2189
  %v2191 = vpop.xlane.xlu0 %2190
  %v2192 = vsel %vm123, %v2180, 0.0
  %2193 = vadd.xlane.f32.xlu0 %v2192
  %v2194 = vpop.xlane.xlu0 %2193
  %v2195 = vsel %vm123, %v2181, 0.0
  %2196 = vadd.xlane.f32.xlu0 %v2195
  %v2197 = vpop.xlane.xlu0 %2196
  %v2198 = vmul.f32 %v2188, %v961
  %v2199 = vmul.f32 %v2191, %v961
  %v2200 = vmul.f32 %v2194, %v961
  %v2201 = vmul.f32 %v2197, %v961
  %v2202 = vsub.f32 %v2178, %v2198
  %v2203 = vsub.f32 %v2179, %v2199
  %v2204 = vsub.f32 %v2180, %v2200
  %v2205 = vsub.f32 %v2181, %v2201
  %v2206 = vmul.f32 %v2202, %v2202
  %v2207 = vmul.f32 %v2203, %v2203
  %v2208 = vmul.f32 %v2204, %v2204
  %v2209 = vmul.f32 %v2205, %v2205
  %v2210 = vsel %vm123, %v2206, 0.0
  %2211 = vadd.xlane.f32.xlu0 %v2210
  %v2212 = vpop.xlane.xlu0 %2211
  %v2213 = vsel %vm123, %v2207, 0.0
  %2214 = vadd.xlane.f32.xlu0 %v2213
  %v2215 = vpop.xlane.xlu0 %2214
  %v2216 = vsel %vm123, %v2208, 0.0
  %2217 = vadd.xlane.f32.xlu0 %v2216
  %v2218 = vpop.xlane.xlu0 %2217
  %v2219 = vsel %vm123, %v2209, 0.0
  %2220 = vadd.xlane.f32.xlu0 %v2219
  %v2221 = vpop.xlane.xlu0 %2220
  %v2222 = vmul.f32 %v2212, %v961
  %v2223 = vmul.f32 %v2215, %v961
  %v2224 = vmul.f32 %v2218, %v961
  %v2225 = vmul.f32 %v2221, %v961
  %v2226 = vadd.f32 %v2222, 1e-05
  %v2227 = vadd.f32 %v2223, 1e-05
  %v2228 = vadd.f32 %v2224, 1e-05
  %v2229 = vadd.f32 %v2225, 1e-05
  %v2230 = vrsqrt.pop %v2226
  %v2231 = vrsqrt.pop %v2227
  %v2232 = vrsqrt.pop %v2228
  %v2233 = vrsqrt.pop %v2229
  %v2234 = vmul.f32 %v2202, %v2230
  %v2235 = vmul.f32 %v2203, %v2231
  %v2236 = vmul.f32 %v2204, %v2232
  %v2237 = vmul.f32 %v2205, %v2233
  %v2239 = vlaneseq
  %v2240 = vshrl.u32 %v2239, 7
  %v2241 = vsub.s32 0, %v2240
  %v2242 = vrot.slane %v2183, %v2241
  %v2244 = vmul.f32 %v2234, %v2242
  %v2245 = vmul.f32 %v2235, %v2242
  %v2246 = vmul.f32 %v2236, %v2242
  %v2247 = vmul.f32 %v2237, %v2242
  %v2249 = vlaneseq
  %v2250 = vshrl.u32 %v2249, 7
  %v2251 = vsub.s32 0, %v2250
  %v2252 = vrot.slane %v2185, %v2251
  %v2254 = vadd.f32 %v2244, %v2252
  %v2255 = vadd.f32 %v2245, %v2252
  %v2256 = vadd.f32 %v2246, %v2252
  %v2257 = vadd.f32 %v2247, %v2252
  %v2258 = vpack.c.bf16 %v2255, %v2254
  %v2259 = vpack.c.bf16 %v2257, %v2256
  %s2260 = scalar_lea.vmem %s9, 32
  %v2261 = vld [vmem:[%s2260] sm:$0xf]
  %v2262 = vld [vmem:[%s2260 + $0x4] sm:$0xf]
  %v2263 = vld [vmem:[%s2260 + $0x8] sm:$0xf]
  %v2264 = vld [vmem:[%s2260 + $0xc] sm:$0xf]
  %v2265 = vld [vmem:[%s2260 + $0x10] sm:$0xf]
  %v2266 = vld [vmem:[%s2260 + $0x14] sm:$0xf]
  %v2267 = vld [vmem:[%s2260 + $0x18] sm:$0xf]
  %v2268 = vld [vmem:[%s2260 + $0x1c] sm:$0xf]
  %s2269 = scalar_lea.vmem %s10, 1
  %v2270 = vld [vmem:[%s2269] sm:$0x1]
  %v2272 = vlaneseq
  %v2273 = vshrl.u32 %v2272, 7
  %v2274 = vsub.s32 0, %v2273
  %v2275 = vrot.slane %v2270, %v2274
  %v2285 = vunpack.c.l.b16 %v2261
  %v2286 = vunpack.c.l.b16 %v2262
  %v2287 = vunpack.c.l.b16 %v2263
  %v2288 = vunpack.c.l.b16 %v2264
  %v2289 = vunpack.c.l.b16 %v2265
  %v2290 = vunpack.c.l.b16 %v2266
  %v2291 = vunpack.c.l.b16 %v2267
  %v2292 = vunpack.c.l.b16 %v2268
  %v2293 = vpack.c.b16 %v2286, %v2285
  %v2294 = vpack.c.b16 %v2288, %v2287
  %v2295 = vpack.c.b16 %v2290, %v2289
  %v2296 = vpack.c.b16 %v2292, %v2291
  %v2298 = vsel %vm123, %v2258, 0
  %v2301 = vsel %vm123, %v2259, 0
  %v2304 = vsel %vm123, %v2293, 0
  %v2307 = vsel %vm123, %v2294, 0
  %v2310 = vsel %vm123, %v2295, 0
  %v2313 = vsel %vm123, %v2296, 0
  %2315 = vmatprep.subr.bf16.mxu0 0
  %2316 = vmatpush1.bf16.xpose.msra.mxu0 %v2304
  %2317 = vmatprep.subr.bf16.mxu0 0
  %2318 = vmatpush1.bf16.xpose.msra.mxu0 %v2307
  %2319 = vmatprep.subr.bf16.mxu0 0
  %2320 = vmatpush1.bf16.xpose.msra.mxu0 %v2310
  %2321 = vmatprep.subr.bf16.mxu0 0
  %2322 = vmatpush1.bf16.xpose.msra.mxu0 %v2313
  %2323 = vmatprep.subr.bf16.mxu0 0
  %2324 = vmatpush1.bf16.xpose.msra.mxu0 0
  %2325 = vmatprep.subr.bf16.mxu0 0
  %2326 = vmatpush1.bf16.xpose.msra.mxu0 0
  %2327 = vmatprep.subr.bf16.mxu0 0
  %2328 = vmatpush1.bf16.xpose.msra.mxu0 0
  %2329 = vmatprep.subr.bf16.mxu0 0
  %2330 = vmatpush1.bf16.xpose.msra.mxu0 0
  %2331 = vmatprep.subr.bf16.mxu0 0
  %2332 = vmatpush1.bf16.xpose.msra.mxu0 0
  %2333 = vmatprep.subr.bf16.mxu0 0
  %2334 = vmatpush1.bf16.xpose.msra.mxu0 0
  %2335 = vmatprep.subr.bf16.mxu0 0
  %2336 = vmatpush1.bf16.xpose.msra.mxu0 0
  %2337 = vmatprep.subr.bf16.mxu0 0
  %2338 = vmatpush1.bf16.xpose.msra.mxu0 0
  %2339 = vmatprep.subr.bf16.mxu0 0
  %2340 = vmatpush1.bf16.xpose.msra.mxu0 0
  %2341 = vmatprep.subr.bf16.mxu0 0
  %2342 = vmatpush1.bf16.xpose.msra.mxu0 0
  %2343 = vmatprep.subr.bf16.mxu0 0
  %2344 = vmatpush1.bf16.xpose.msra.mxu0 0
  %2345 = vmatprep.subr.bf16.mxu0 0
  %2346 = vmatpush1.bf16.xpose.msra.mxu0 0
  %2347 = vmatprep.mubr.bf16.mxu0 0
  %2348 = vmatmul.mubr.bf16.gmra.mrb[0].mxu0 %v2298
  %v2349 = vpop.f32.mrb[0].mxu0
  %v2350 = vadd.f32 %v2275, %v2349
  %v2351 = vpop.f32.mrb[0].mxu0
  %v2352 = vpop.f32.mrb[0].mxu0
  %v2353 = vadd.f32 %v2275, %v2352
  %v2354 = vpop.f32.mrb[0].mxu0
  %2355 = vmatprep.mubr.bf16.mxu0 0
  %2356 = vmatmul.mubr.bf16.gmra.mrb[0].mxu0 %v2301
  %v2357 = vpop.f32.mrb[0].mxu0
  %v2358 = vadd.f32 %v2275, %v2357
  %v2359 = vpop.f32.mrb[0].mxu0
  %v2360 = vpop.f32.mrb[0].mxu0
  %v2361 = vadd.f32 %v2275, %v2360
  %v2362 = vpop.f32.mrb[0].mxu0
  %2363 = vdwg.mxu0
  %v2364 = vmax.f32 %v2350, 0.0
  %v2365 = vmax.f32 %v2353, 0.0
  %v2366 = vmax.f32 %v2358, 0.0
  %v2367 = vmax.f32 %v2361, 0.0
  %v2368 = vpack.c.bf16 %v2365, %v2364
  %v2369 = vpack.c.bf16 %v2367, %v2366
  %s2370 = scalar_lea.vmem %s11, 16
  %v2371 = vld [vmem:[%s2370] sm:$0xf]
  %v2372 = vld [vmem:[%s2370 + $0x4] sm:$0xf]
  %v2373 = vld [vmem:[%s2370 + $0x8] sm:$0xf]
  %v2374 = vld [vmem:[%s2370 + $0xc] sm:$0xf]
  %s2375 = scalar_lea.vmem %s12, 1
  %v2376 = vld [vmem:[%s2375] sm:$0x1]
  %v2378 = vlaneseq
  %v2379 = vshrl.u32 %v2378, 7
  %v2380 = vsub.s32 0, %v2379
  %v2381 = vrot.slane %v2376, %v2380
  %v2387 = vunpack.c.l.b16 %v2371
  %v2388 = vunpack.c.l.b16 %v2372
  %v2389 = vunpack.c.l.b16 %v2373
  %v2390 = vunpack.c.l.b16 %v2374
  %v2391 = vpack.c.b16 %v2388, %v2387
  %v2392 = vpack.c.b16 %v2390, %v2389
  %v2394 = vsel %vm1153, %v2368, 0
  %v2397 = vsel %vm1153, %v2369, 0
  %v2400 = vsel %vm1153, %v2391, 0
  %v2403 = vsel %vm1153, %v2392, 0
  %2405 = vmatprep.subr.bf16.mxu0 0
  %2406 = vmatpush1.bf16.xpose.msra.mxu0 %v2400
  %2407 = vmatprep.subr.bf16.mxu0 0
  %2408 = vmatpush1.bf16.xpose.msra.mxu0 %v2403
  %2409 = vmatprep.subr.bf16.mxu0 0
  %2410 = vmatpush1.bf16.xpose.msra.mxu0 0
  %2411 = vmatprep.subr.bf16.mxu0 0
  %2412 = vmatpush1.bf16.xpose.msra.mxu0 0
  %2413 = vmatprep.subr.bf16.mxu0 0
  %2414 = vmatpush1.bf16.xpose.msra.mxu0 0
  %2415 = vmatprep.subr.bf16.mxu0 0
  %2416 = vmatpush1.bf16.xpose.msra.mxu0 0
  %2417 = vmatprep.subr.bf16.mxu0 0
  %2418 = vmatpush1.bf16.xpose.msra.mxu0 0
  %2419 = vmatprep.subr.bf16.mxu0 0
  %2420 = vmatpush1.bf16.xpose.msra.mxu0 0
  %2421 = vmatprep.subr.bf16.mxu0 0
  %2422 = vmatpush1.bf16.xpose.msra.mxu0 0
  %2423 = vmatprep.subr.bf16.mxu0 0
  %2424 = vmatpush1.bf16.xpose.msra.mxu0 0
  %2425 = vmatprep.subr.bf16.mxu0 0
  %2426 = vmatpush1.bf16.xpose.msra.mxu0 0
  %2427 = vmatprep.subr.bf16.mxu0 0
  %2428 = vmatpush1.bf16.xpose.msra.mxu0 0
  %2429 = vmatprep.subr.bf16.mxu0 0
  %2430 = vmatpush1.bf16.xpose.msra.mxu0 0
  %2431 = vmatprep.subr.bf16.mxu0 0
  %2432 = vmatpush1.bf16.xpose.msra.mxu0 0
  %2433 = vmatprep.subr.bf16.mxu0 0
  %2434 = vmatpush1.bf16.xpose.msra.mxu0 0
  %2435 = vmatprep.subr.bf16.mxu0 0
  %2436 = vmatpush1.bf16.xpose.msra.mxu0 0
  %2437 = vmatprep.mubr.bf16.mxu0 0
  %2438 = vmatmul.mubr.bf16.gmra.mrb[0].mxu0 %v2394
  %v2439 = vpop.f32.mrb[0].mxu0
  %v2440 = vadd.f32 %v2381, %v2439
  %v2441 = vpop.f32.mrb[0].mxu0
  %v2442 = vpop.f32.mrb[0].mxu0
  %v2443 = vadd.f32 %v2381, %v2442
  %v2444 = vpop.f32.mrb[0].mxu0
  %2445 = vmatprep.mubr.bf16.mxu0 0
  %2446 = vmatmul.mubr.bf16.gmra.mrb[0].mxu0 %v2397
  %v2447 = vpop.f32.mrb[0].mxu0
  %v2448 = vadd.f32 %v2381, %v2447
  %v2449 = vpop.f32.mrb[0].mxu0
  %v2450 = vpop.f32.mrb[0].mxu0
  %v2451 = vadd.f32 %v2381, %v2450
  %v2452 = vpop.f32.mrb[0].mxu0
  %2453 = vdwg.mxu0
  %v2454 = vadd.f32 %v2254, %v2440
  %v2455 = vadd.f32 %v2255, %v2443
  %v2456 = vadd.f32 %v2256, %v2448
  %v2457 = vadd.f32 %v2257, %v2451
  %s2458 = scalar_lea.vmem %s13, 1
  %v2459 = vld [vmem:[%s2458] sm:$0x1]
  %s2460 = scalar_lea.vmem %s14, 1
  %v2461 = vld [vmem:[%s2460] sm:$0x1]
  %v2462 = vsel %vm123, %v2454, 0.0
  %2463 = vadd.xlane.f32.xlu0 %v2462
  %v2464 = vpop.xlane.xlu0 %2463
  %v2465 = vsel %vm123, %v2455, 0.0
  %2466 = vadd.xlane.f32.xlu0 %v2465
  %v2467 = vpop.xlane.xlu0 %2466
  %v2468 = vsel %vm123, %v2456, 0.0
  %2469 = vadd.xlane.f32.xlu0 %v2468
  %v2470 = vpop.xlane.xlu0 %2469
  %v2471 = vsel %vm123, %v2457, 0.0
  %2472 = vadd.xlane.f32.xlu0 %v2471
  %v2473 = vpop.xlane.xlu0 %2472
  %v2474 = vmul.f32 %v2464, %v961
  %v2475 = vmul.f32 %v2467, %v961
  %v2476 = vmul.f32 %v2470, %v961
  %v2477 = vmul.f32 %v2473, %v961
  %v2478 = vsub.f32 %v2454, %v2474
  %v2479 = vsub.f32 %v2455, %v2475
  %v2480 = vsub.f32 %v2456, %v2476
  %v2481 = vsub.f32 %v2457, %v2477
  %v2482 = vmul.f32 %v2478, %v2478
  %v2483 = vmul.f32 %v2479, %v2479
  %v2484 = vmul.f32 %v2480, %v2480
  %v2485 = vmul.f32 %v2481, %v2481
  %v2486 = vsel %vm123, %v2482, 0.0
  %2487 = vadd.xlane.f32.xlu0 %v2486
  %v2488 = vpop.xlane.xlu0 %2487
  %v2489 = vsel %vm123, %v2483, 0.0
  %2490 = vadd.xlane.f32.xlu0 %v2489
  %v2491 = vpop.xlane.xlu0 %2490
  %v2492 = vsel %vm123, %v2484, 0.0
  %2493 = vadd.xlane.f32.xlu0 %v2492
  %v2494 = vpop.xlane.xlu0 %2493
  %v2495 = vsel %vm123, %v2485, 0.0
  %2496 = vadd.xlane.f32.xlu0 %v2495
  %v2497 = vpop.xlane.xlu0 %2496
  %v2498 = vmul.f32 %v2488, %v961
  %v2499 = vmul.f32 %v2491, %v961
  %v2500 = vmul.f32 %v2494, %v961
  %v2501 = vmul.f32 %v2497, %v961
  %v2502 = vadd.f32 %v2498, 1e-05
  %v2503 = vadd.f32 %v2499, 1e-05
  %v2504 = vadd.f32 %v2500, 1e-05
  %v2505 = vadd.f32 %v2501, 1e-05
  %v2506 = vrsqrt.pop %v2502
  %v2507 = vrsqrt.pop %v2503
  %v2508 = vrsqrt.pop %v2504
  %v2509 = vrsqrt.pop %v2505
  %v2510 = vmul.f32 %v2478, %v2506
  %v2511 = vmul.f32 %v2479, %v2507
  %v2512 = vmul.f32 %v2480, %v2508
  %v2513 = vmul.f32 %v2481, %v2509
  %v2515 = vlaneseq
  %v2516 = vshrl.u32 %v2515, 7
  %v2517 = vsub.s32 0, %v2516
  %v2518 = vrot.slane %v2459, %v2517
  %v2520 = vmul.f32 %v2510, %v2518
  %v2521 = vmul.f32 %v2511, %v2518
  %v2522 = vmul.f32 %v2512, %v2518
  %v2523 = vmul.f32 %v2513, %v2518
  %v2525 = vlaneseq
  %v2526 = vshrl.u32 %v2525, 7
  %v2527 = vsub.s32 0, %v2526
  %v2528 = vrot.slane %v2461, %v2527
  %v2530 = vadd.f32 %v2520, %v2528
  %v2531 = vadd.f32 %v2521, %v2528
  %v2532 = vadd.f32 %v2522, %v2528
  %v2533 = vadd.f32 %v2523, %v2528
  %v2534 = vmul.f32 %v2530, %v1296
  %v2535 = vmul.f32 %v2531, %v1301
  %v2536 = vmul.f32 %v2532, %v1306
  %v2537 = vmul.f32 %v2533, %v1311
  %v2538 = vpack.c.bf16 %v2535, %v2534
  %v2539 = vpack.c.bf16 %v2537, %v2536
  %v2542 = vunpack.c.l.b16 %v2538
  %v2543 = vunpack.c.h.b16 %v2538
  %v2544 = vunpack.c.l.b16 %v2539
  %v2545 = vunpack.c.h.b16 %v2539
  %v2546 = vpack.c.b16 %v2542, %v2542
  %v2547 = vpack.c.b16 %v2543, %v2543
  %v2548 = vpack.c.b16 %v2544, %v2544
  %v2549 = vpack.c.b16 %v2545, %v2545
  %vm2554 = vcmask 257024
  %2555 = vst.msk [vmem:[%s15] sm:$0xf] %vm2554, %v2546
  %2556 = vst.msk [vmem:[%s15 + $0x4] sm:$0xf] %vm2554, %v2547
  %2557 = vst.msk [vmem:[%s15 + $0x8] sm:$0xf] %vm2554, %v2548
  %2558 = vst.msk [vmem:[%s15 + $0xc] sm:$0xf] %vm2554, %v2549
  // Predicated region
  $region62: #{_lambda_.3} parent=0 // pred_check
    _
  $region63: #{_lambda_.3} parent=0 // pred_check_branch
    %2560 = sbr.rel (0) target = $region65
  $region64: #{_lambda_.3} parent=0 // pred_region
    _
  $region65: #{_lambda_.3} parent=0 // pred_fallthru
    _
  // Predicated region
  $region66: #{_lambda_.3} parent=0 // pred_check
    _
  $region67: #{_lambda_.3} parent=0 // pred_check_branch
    %2562 = sbr.rel (0) target = $region69
  $region68: #{_lambda_.3} parent=0 // pred_region
    _
  $region69: #{_lambda_.3} parent=0 // pred_fallthru
    _

// kernel: _lambda_.4
$region0: #{_lambda_.4}
  #allocation0 [shape = 'u32[]', space=smem, size = 0x4, offset = 0x4, fixed_abs, tag = 'smem constant byte address 0x4 - core index']
  #allocation1 [shape = 'u32[144,128]{1,0:T(1,128)}', space=vmem, size = 0x12000, scoped, tag = 'internal scratch']
  #allocation2 [shape = 'f32[16,32]{1,0:T(8,128)}', space=vmem, size = 0x2000, scoped, tag = 'scratch operand']
  %s0 = inlined_call_operand.vmem [shape: bf16[16,32], index: 0, kind: input, shape index: {}]
  %s1 = inlined_call_operand.vmem [shape: bf16[32,32], index: 1, kind: input, shape index: {}]
  %s2 = inlined_call_operand.vmem [shape: f32[2,16], index: 2, kind: input, shape index: {}]
  %s3 = inlined_call_operand.vmem [shape: bf16[2,96,32], index: 3, kind: input, shape index: {}]
  %s4 = inlined_call_operand.vmem [shape: f32[2,1,96], index: 4, kind: input, shape index: {}]
  %s5 = inlined_call_operand.vmem [shape: bf16[2,32,32], index: 5, kind: input, shape index: {}]
  %s6 = inlined_call_operand.vmem [shape: f32[2,1,32], index: 6, kind: input, shape index: {}]
  %s7 = inlined_call_operand.vmem [shape: f32[2,1,32], index: 7, kind: input, shape index: {}]
  %s8 = inlined_call_operand.vmem [shape: f32[2,1,32], index: 8, kind: input, shape index: {}]
  %s9 = inlined_call_operand.vmem [shape: bf16[2,96,32], index: 9, kind: input, shape index: {}]
  %s10 = inlined_call_operand.vmem [shape: f32[2,1,96], index: 10, kind: input, shape index: {}]
  %s11 = inlined_call_operand.vmem [shape: bf16[2,32,32], index: 11, kind: input, shape index: {}]
  %s12 = inlined_call_operand.vmem [shape: f32[2,1,32], index: 12, kind: input, shape index: {}]
  %s13 = inlined_call_operand.vmem [shape: f32[2,1,32], index: 13, kind: input, shape index: {}]
  %s14 = inlined_call_operand.vmem [shape: f32[2,1,32], index: 14, kind: input, shape index: {}]
  %s15 = inlined_call_operand.vmem [shape: bf16[2,64,32], index: 15, kind: input, shape index: {}]
  %s16 = inlined_call_operand.vmem [shape: f32[2,1,64], index: 16, kind: input, shape index: {}]
  %s17 = inlined_call_operand.vmem [shape: bf16[2,32,64], index: 17, kind: input, shape index: {}]
  %s18 = inlined_call_operand.vmem [shape: f32[2,1,32], index: 18, kind: input, shape index: {}]
  %s19 = inlined_call_operand.vmem [shape: f32[2,1,32], index: 19, kind: input, shape index: {}]
  %s20 = inlined_call_operand.vmem [shape: f32[2,1,32], index: 20, kind: input, shape index: {}]
  %s21 = inlined_call_operand.vmem [shape: bf16[16,32], index: 21, kind: output, shape index: {}]
  %s22 = sld [smem:[#allocation0]]
  $region94: #{_lambda_.4} parent=0
    _
  %s24 = ssub.s32 1, %s22
  %s25 = scalar_select 0, %s24, %s22
  // Predicated region
  $region2: #{_lambda_.4} parent=0 // pred_check
    _
  $region3: #{_lambda_.4} parent=0 // pred_check_branch
    %27 = sbr.rel (0) target = $region5
  $region4: #{_lambda_.4} parent=0 // pred_region
    _
  $region5: #{_lambda_.4} parent=0 // pred_fallthru
    _
  // Predicated region
  $region6: #{_lambda_.4} parent=0 // pred_check
    _
  $region7: #{_lambda_.4} parent=0 // pred_check_branch
    %29 = sbr.rel (0) target = $region9
  $region8: #{_lambda_.4} parent=0 // pred_region
    _
  $region9: #{_lambda_.4} parent=0 // pred_fallthru
    _
  // Predicated region
  $region10: #{_lambda_.4} parent=0 // pred_check
    _
  $region11: #{_lambda_.4} parent=0 // pred_check_branch
    %31 = sbr.rel (0) target = $region13
  $region12: #{_lambda_.4} parent=0 // pred_region
    _
  $region13: #{_lambda_.4} parent=0 // pred_fallthru
    _
  // Predicated region
  $region14: #{_lambda_.4} parent=0 // pred_check
    _
  $region15: #{_lambda_.4} parent=0 // pred_check_branch
    %33 = sbr.rel (0) target = $region17
  $region16: #{_lambda_.4} parent=0 // pred_region
    _
  $region17: #{_lambda_.4} parent=0 // pred_fallthru
    _
  // Predicated region
  $region18: #{_lambda_.4} parent=0 // pred_check
    _
  $region19: #{_lambda_.4} parent=0 // pred_check_branch
    %35 = sbr.rel (0) target = $region21
  $region20: #{_lambda_.4} parent=0 // pred_region
    _
  $region21: #{_lambda_.4} parent=0 // pred_fallthru
    _
  // Predicated region
  $region22: #{_lambda_.4} parent=0 // pred_check
    _
  $region23: #{_lambda_.4} parent=0 // pred_check_branch
    %37 = sbr.rel (0) target = $region25
  $region24: #{_lambda_.4} parent=0 // pred_region
    _
  $region25: #{_lambda_.4} parent=0 // pred_fallthru
    _
  // Predicated region
  $region26: #{_lambda_.4} parent=0 // pred_check
    _
  $region27: #{_lambda_.4} parent=0 // pred_check_branch
    %39 = sbr.rel (0) target = $region29
  $region28: #{_lambda_.4} parent=0 // pred_region
    _
  $region29: #{_lambda_.4} parent=0 // pred_fallthru
    _
  // Predicated region
  $region30: #{_lambda_.4} parent=0 // pred_check
    _
  $region31: #{_lambda_.4} parent=0 // pred_check_branch
    %41 = sbr.rel (0) target = $region33
  $region32: #{_lambda_.4} parent=0 // pred_region
    _
  $region33: #{_lambda_.4} parent=0 // pred_fallthru
    _
  // Predicated region
  $region34: #{_lambda_.4} parent=0 // pred_check
    _
  $region35: #{_lambda_.4} parent=0 // pred_check_branch
    %43 = sbr.rel (0) target = $region37
  $region36: #{_lambda_.4} parent=0 // pred_region
    _
  $region37: #{_lambda_.4} parent=0 // pred_fallthru
    _
  // Predicated region
  $region38: #{_lambda_.4} parent=0 // pred_check
    _
  $region39: #{_lambda_.4} parent=0 // pred_check_branch
    %45 = sbr.rel (0) target = $region41
  $region40: #{_lambda_.4} parent=0 // pred_region
    _
  $region41: #{_lambda_.4} parent=0 // pred_fallthru
    _
  // Predicated region
  $region42: #{_lambda_.4} parent=0 // pred_check
    _
  $region43: #{_lambda_.4} parent=0 // pred_check_branch
    %47 = sbr.rel (0) target = $region45
  $region44: #{_lambda_.4} parent=0 // pred_region
    _
  $region45: #{_lambda_.4} parent=0 // pred_fallthru
    _
  // Predicated region
  $region46: #{_lambda_.4} parent=0 // pred_check
    _
  $region47: #{_lambda_.4} parent=0 // pred_check_branch
    %49 = sbr.rel (0) target = $region49
  $region48: #{_lambda_.4} parent=0 // pred_region
    _
  $region49: #{_lambda_.4} parent=0 // pred_fallthru
    _
  // Predicated region
  $region50: #{_lambda_.4} parent=0 // pred_check
    _
  $region51: #{_lambda_.4} parent=0 // pred_check_branch
    %51 = sbr.rel (0) target = $region53
  $region52: #{_lambda_.4} parent=0 // pred_region
    _
  $region53: #{_lambda_.4} parent=0 // pred_fallthru
    _
  // Predicated region
  $region54: #{_lambda_.4} parent=0 // pred_check
    _
  $region55: #{_lambda_.4} parent=0 // pred_check_branch
    %53 = sbr.rel (0) target = $region57
  $region56: #{_lambda_.4} parent=0 // pred_region
    _
  $region57: #{_lambda_.4} parent=0 // pred_fallthru
    _
  // Predicated region
  $region58: #{_lambda_.4} parent=0 // pred_check
    _
  $region59: #{_lambda_.4} parent=0 // pred_check_branch
    %55 = sbr.rel (0) target = $region61
  $region60: #{_lambda_.4} parent=0 // pred_region
    _
  $region61: #{_lambda_.4} parent=0 // pred_fallthru
    _
  // Predicated region
  $region62: #{_lambda_.4} parent=0 // pred_check
    _
  $region63: #{_lambda_.4} parent=0 // pred_check_branch
    %57 = sbr.rel (0) target = $region65
  $region64: #{_lambda_.4} parent=0 // pred_region
    _
  $region65: #{_lambda_.4} parent=0 // pred_fallthru
    _
  // Predicated region
  $region66: #{_lambda_.4} parent=0 // pred_check
    _
  $region67: #{_lambda_.4} parent=0 // pred_check_branch
    %59 = sbr.rel (0) target = $region69
  $region68: #{_lambda_.4} parent=0 // pred_region
    _
  $region69: #{_lambda_.4} parent=0 // pred_fallthru
    _
  // Predicated region
  $region70: #{_lambda_.4} parent=0 // pred_check
    _
  $region71: #{_lambda_.4} parent=0 // pred_check_branch
    %61 = sbr.rel (0) target = $region73
  $region72: #{_lambda_.4} parent=0 // pred_region
    _
  $region73: #{_lambda_.4} parent=0 // pred_fallthru
    _
  // Predicated region
  $region74: #{_lambda_.4} parent=0 // pred_check
    _
  $region75: #{_lambda_.4} parent=0 // pred_check_branch
    %63 = sbr.rel (0) target = $region77
  $region76: #{_lambda_.4} parent=0 // pred_region
    _
  $region77: #{_lambda_.4} parent=0 // pred_fallthru
    _
  // Predicated region
  $region78: #{_lambda_.4} parent=0 // pred_check
    _
  $region79: #{_lambda_.4} parent=0 // pred_check_branch
    %65 = sbr.rel (0) target = $region81
  $region80: #{_lambda_.4} parent=0 // pred_region
    _
  $region81: #{_lambda_.4} parent=0 // pred_fallthru
    _
  // Predicated region
  $region82: #{_lambda_.4} parent=0 // pred_check
    _
  $region83: #{_lambda_.4} parent=0 // pred_check_branch
    %67 = sbr.rel (0) target = $region85
  $region84: #{_lambda_.4} parent=0 // pred_region
    _
  $region85: #{_lambda_.4} parent=0 // pred_fallthru
    _
  %v69 = vld [vmem:[%s1] sm:$0xf]
  %v70 = vld [vmem:[%s1 + $0x4] sm:$0xf]
  %v71 = vld [vmem:[%s1 + $0x8] sm:$0xf]
  %v72 = vld [vmem:[%s1 + $0xc] sm:$0xf]
  %v73 = vld [vmem:[%s2] sm:$0x3]
  %v74 = vlaneseq
  %v75 = vshrl.u32 %v74, 7
  %v76 = vlaneseq
  %v77 = vand.u32 %v76, 127
  %vm78 = vcmp.ge.s32.totalorder %v75, %v77
  %v79 = vld [vmem:[%s0] sm:$0xf]
  %v80 = vld [vmem:[%s0 + $0x4] sm:$0xf]
  %v81 = vunpack.c.l.bf16 %v79
  %v82 = vunpack.c.l.bf16 %v80
  %v83 = vld [vmem:[%s3] sm:$0xf]
  %v84 = vld [vmem:[%s3 + $0x4] sm:$0xf]
  %v85 = vld [vmem:[%s3 + $0x8] sm:$0xf]
  %v86 = vld [vmem:[%s3 + $0xc] sm:$0xf]
  %v87 = vld [vmem:[%s3 + $0x10] sm:$0xf]
  %v88 = vld [vmem:[%s3 + $0x14] sm:$0xf]
  %v89 = vld [vmem:[%s3 + $0x18] sm:$0xf]
  %v90 = vld [vmem:[%s3 + $0x1c] sm:$0xf]
  %v91 = vld [vmem:[%s3 + $0x20] sm:$0xf]
  %v92 = vld [vmem:[%s3 + $0x24] sm:$0xf]
  %v93 = vld [vmem:[%s3 + $0x28] sm:$0xf]
  %v94 = vld [vmem:[%s3 + $0x2c] sm:$0xf]
  %v95 = vld [vmem:[%s4] sm:$0x1]
  %v97 = vlaneseq
  %v98 = vshrl.u32 %v97, 7
  %v99 = vsub.s32 0, %v98
  %v100 = vrot.slane %v95, %v99
  %v104 = vunpack.c.l.b16 %v79
  %v105 = vunpack.c.l.b16 %v80
  %v106 = vpack.c.b16 %v105, %v104
  %v119 = vunpack.c.l.b16 %v83
  %v120 = vunpack.c.l.b16 %v84
  %v121 = vunpack.c.l.b16 %v85
  %v122 = vunpack.c.l.b16 %v86
  %v123 = vunpack.c.l.b16 %v87
  %v124 = vunpack.c.l.b16 %v88
  %v125 = vunpack.c.l.b16 %v89
  %v126 = vunpack.c.l.b16 %v90
  %v127 = vunpack.c.l.b16 %v91
  %v128 = vunpack.c.l.b16 %v92
  %v129 = vunpack.c.l.b16 %v93
  %v130 = vunpack.c.l.b16 %v94
  %v131 = vpack.c.b16 %v120, %v119
  %v132 = vpack.c.b16 %v122, %v121
  %v133 = vpack.c.b16 %v124, %v123
  %v134 = vpack.c.b16 %v126, %v125
  %v135 = vpack.c.b16 %v128, %v127
  %v136 = vpack.c.b16 %v130, %v129
  %vm137 = vcmask 261120
  %v139 = vsel %vm137, %v106, 0
  %v142 = vsel %vm137, %v131, 0
  %v145 = vsel %vm137, %v132, 0
  %v148 = vsel %vm137, %v133, 0
  %v151 = vsel %vm137, %v134, 0
  %v154 = vsel %vm137, %v135, 0
  %v157 = vsel %vm137, %v136, 0
  %159 = vmatprep.subr.bf16.mxu0 0
  %160 = vmatpush1.bf16.xpose.msra.mxu0 %v142
  %161 = vmatprep.subr.bf16.mxu0 0
  %162 = vmatpush1.bf16.xpose.msra.mxu0 %v145
  %163 = vmatprep.subr.bf16.mxu0 0
  %164 = vmatpush1.bf16.xpose.msra.mxu0 %v148
  %165 = vmatprep.subr.bf16.mxu0 0
  %166 = vmatpush1.bf16.xpose.msra.mxu0 %v151
  %167 = vmatprep.subr.bf16.mxu0 0
  %168 = vmatpush1.bf16.xpose.msra.mxu0 %v154
  %169 = vmatprep.subr.bf16.mxu0 0
  %170 = vmatpush1.bf16.xpose.msra.mxu0 %v157
  %171 = vmatprep.subr.bf16.mxu0 0
  %172 = vmatpush1.bf16.xpose.msra.mxu0 0
  %173 = vmatprep.subr.bf16.mxu0 0
  %174 = vmatpush1.bf16.xpose.msra.mxu0 0
  %175 = vmatprep.subr.bf16.mxu0 0
  %176 = vmatpush1.bf16.xpose.msra.mxu0 0
  %177 = vmatprep.subr.bf16.mxu0 0
  %178 = vmatpush1.bf16.xpose.msra.mxu0 0
  %179 = vmatprep.subr.bf16.mxu0 0
  %180 = vmatpush1.bf16.xpose.msra.mxu0 0
  %181 = vmatprep.subr.bf16.mxu0 0
  %182 = vmatpush1.bf16.xpose.msra.mxu0 0
  %183 = vmatprep.subr.bf16.mxu0 0
  %184 = vmatpush1.bf16.xpose.msra.mxu0 0
  %185 = vmatprep.subr.bf16.mxu0 0
  %186 = vmatpush1.bf16.xpose.msra.mxu0 0
  %187 = vmatprep.subr.bf16.mxu0 0
  %188 = vmatpush1.bf16.xpose.msra.mxu0 0
  %189 = vmatprep.subr.bf16.mxu0 0
  %190 = vmatpush1.bf16.xpose.msra.mxu0 0
  %191 = vmatprep.mubr.bf16.mxu0 0
  %192 = vmatmul.mubr.bf16.gmra.mrb[0].mxu0 %v139
  %v193 = vpop.f32.mrb[0].mxu0
  %v194 = vadd.f32 %v100, %v193
  %v195 = vpop.f32.mrb[0].mxu0
  %v196 = vpop.f32.mrb[0].mxu0
  %v197 = vadd.f32 %v100, %v196
  %v198 = vpop.f32.mrb[0].mxu0
  %199 = vdwg.mxu0
  %v200 = vmul.f32 %v194, 0.25
  %v201 = vmul.f32 %v197, 0.25
  %v202 = vpack.c.bf16 %v201, %v200
  %v203 = vpack.c.bf16 %v197, %v194
  %v204 = vld [vmem:[%s5] sm:$0xf]
  %v205 = vld [vmem:[%s5 + $0x4] sm:$0xf]
  %v206 = vld [vmem:[%s5 + $0x8] sm:$0xf]
  %v207 = vld [vmem:[%s5 + $0xc] sm:$0xf]
  %v208 = vld [vmem:[%s6] sm:$0x1]
  %210 = vrot.lane.b32.xlu0 %v203, 96
  %v211 = vpop.permute.xlu0 %210
  %vm212 = vcmask 130048
  %v214 = vsel %vm212, %v202, 0
  %v217 = vsel %vm212, %v211, 0
  %219 = vmatprep.subr.bf16.mxu0 0
  %220 = vmatpush1.bf16.xpose.msra.mxu0 %v217
  %221 = vmatprep.subr.bf16.mxu0 0
  %222 = vmatpush1.bf16.xpose.msra.mxu0 0
  %223 = vmatprep.subr.bf16.mxu0 0
  %224 = vmatpush1.bf16.xpose.msra.mxu0 0
  %225 = vmatprep.subr.bf16.mxu0 0
  %226 = vmatpush1.bf16.xpose.msra.mxu0 0
  %227 = vmatprep.subr.bf16.mxu0 0
  %228 = vmatpush1.bf16.xpose.msra.mxu0 0
  %229 = vmatprep.subr.bf16.mxu0 0
  %230 = vmatpush1.bf16.xpose.msra.mxu0 0
  %231 = vmatprep.subr.bf16.mxu0 0
  %232 = vmatpush1.bf16.xpose.msra.mxu0 0
  %233 = vmatprep.subr.bf16.mxu0 0
  %234 = vmatpush1.bf16.xpose.msra.mxu0 0
  %235 = vmatprep.subr.bf16.mxu0 0
  %236 = vmatpush1.bf16.xpose.msra.mxu0 0
  %237 = vmatprep.subr.bf16.mxu0 0
  %238 = vmatpush1.bf16.xpose.msra.mxu0 0
  %239 = vmatprep.subr.bf16.mxu0 0
  %240 = vmatpush1.bf16.xpose.msra.mxu0 0
  %241 = vmatprep.subr.bf16.mxu0 0
  %242 = vmatpush1.bf16.xpose.msra.mxu0 0
  %243 = vmatprep.subr.bf16.mxu0 0
  %244 = vmatpush1.bf16.xpose.msra.mxu0 0
  %245 = vmatprep.subr.bf16.mxu0 0
  %246 = vmatpush1.bf16.xpose.msra.mxu0 0
  %247 = vmatprep.subr.bf16.mxu0 0
  %248 = vmatpush1.bf16.xpose.msra.mxu0 0
  %249 = vmatprep.subr.bf16.mxu0 0
  %250 = vmatpush1.bf16.xpose.msra.mxu0 0
  %251 = vmatprep.mubr.bf16.mxu0 0
  %252 = vmatmul.mubr.bf16.gmra.mrb[0].mxu0 %v214
  %v253 = vpop.f32.mrb[0].mxu0
  %v254 = vadd.f32 0.0, %v253
  %v255 = vpop.f32.mrb[0].mxu0
  %v256 = vpop.f32.mrb[0].mxu0
  %v257 = vpop.f32.mrb[0].mxu0
  %258 = vdwg.mxu0
  %v259 = vsel %vm78, %v254, -1e+30
  %vm260 = vcmask 64512
  %v261 = vsel %vm260, %v259, -inf
  %262 = vmax.xlane.f32.xlu0 %v261
  %v263 = vpop.xlane.xlu0 %262
  %v264 = vsub.f32 %v259, %v263
  %v265 = vmul.f32 %v264, 1.442695
  %v266 = vpow.pop %v265
  %v267 = vsel %vm260, %v266, 0.0
  %268 = vadd.xlane.f32.xlu0 %v267
  %v269 = vpop.xlane.xlu0 %268
  %v270 = vrcp.pop %v269
  %v271 = vmul.f32 %v266, %v270
  %v272 = vpack.c.bf16 %v271, %v271
  %273 = vrot.lane.b32.xlu0 %v203, 64
  %v274 = vpop.permute.xlu0 %273
  %v276 = vsel %vm260, %v272, 0
  %vm278 = vcmask 1043456
  %v280 = vsel %vm278, %v274, 0
  %282 = vmatprep.subr.bf16.mxu0 0
  %283 = vmatpush1.bf16.msra.mxu0 %v280
  %284 = vmatprep.subr.bf16.mxu0 0
  %285 = vmatpush1.bf16.msra.mxu0 0
  %286 = vmatprep.subr.bf16.mxu0 0
  %287 = vmatpush1.bf16.msra.mxu0 0
  %288 = vmatprep.subr.bf16.mxu0 0
  %289 = vmatpush1.bf16.msra.mxu0 0
  %290 = vmatprep.subr.bf16.mxu0 0
  %291 = vmatpush1.bf16.msra.mxu0 0
  %292 = vmatprep.subr.bf16.mxu0 0
  %293 = vmatpush1.bf16.msra.mxu0 0
  %294 = vmatprep.subr.bf16.mxu0 0
  %295 = vmatpush1.bf16.msra.mxu0 0
  %296 = vmatprep.subr.bf16.mxu0 0
  %297 = vmatpush1.bf16.msra.mxu0 0
  %298 = vmatprep.subr.bf16.mxu0 0
  %299 = vmatpush1.bf16.msra.mxu0 0
  %300 = vmatprep.subr.bf16.mxu0 0
  %301 = vmatpush1.bf16.msra.mxu0 0
  %302 = vmatprep.subr.bf16.mxu0 0
  %303 = vmatpush1.bf16.msra.mxu0 0
  %304 = vmatprep.subr.bf16.mxu0 0
  %305 = vmatpush1.bf16.msra.mxu0 0
  %306 = vmatprep.subr.bf16.mxu0 0
  %307 = vmatpush1.bf16.msra.mxu0 0
  %308 = vmatprep.subr.bf16.mxu0 0
  %309 = vmatpush1.bf16.msra.mxu0 0
  %310 = vmatprep.subr.bf16.mxu0 0
  %311 = vmatpush1.bf16.msra.mxu0 0
  %312 = vmatprep.subr.bf16.mxu0 0
  %313 = vmatpush1.bf16.msra.mxu0 0
  %314 = vmatprep.mubr.bf16.mxu0 0
  %315 = vmatmul.mubr.bf16.gmra.mrb[0].mxu0 %v276
  %v316 = vpop.f32.mrb[0].mxu0
  %v317 = vadd.f32 0.0, %v316
  %v318 = vpop.f32.mrb[0].mxu0
  %v319 = vpop.f32.mrb[0].mxu0
  %v320 = vpop.f32.mrb[0].mxu0
  %321 = vdwg.mxu0
  %v322 = vpack.c.bf16 %v317, %v317
  %v327 = vunpack.c.l.b16 %v204
  %v328 = vunpack.c.l.b16 %v205
  %v329 = vunpack.c.l.b16 %v206
  %v330 = vunpack.c.l.b16 %v207
  %v331 = vpack.c.b16 %v328, %v327
  %v332 = vpack.c.b16 %v330, %v329
  %v334 = vsel %vm212, %v322, 0
  %v337 = vsel %vm212, %v331, 0
  %v340 = vsel %vm212, %v332, 0
  %342 = vmatprep.subr.bf16.mxu0 0
  %343 = vmatpush1.bf16.xpose.msra.mxu0 %v337
  %344 = vmatprep.subr.bf16.mxu0 0
  %345 = vmatpush1.bf16.xpose.msra.mxu0 %v340
  %346 = vmatprep.subr.bf16.mxu0 0
  %347 = vmatpush1.bf16.xpose.msra.mxu0 0
  %348 = vmatprep.subr.bf16.mxu0 0
  %349 = vmatpush1.bf16.xpose.msra.mxu0 0
  %350 = vmatprep.subr.bf16.mxu0 0
  %351 = vmatpush1.bf16.xpose.msra.mxu0 0
  %352 = vmatprep.subr.bf16.mxu0 0
  %353 = vmatpush1.bf16.xpose.msra.mxu0 0
  %354 = vmatprep.subr.bf16.mxu0 0
  %355 = vmatpush1.bf16.xpose.msra.mxu0 0
  %356 = vmatprep.subr.bf16.mxu0 0
  %357 = vmatpush1.bf16.xpose.msra.mxu0 0
  %358 = vmatprep.subr.bf16.mxu0 0
  %359 = vmatpush1.bf16.xpose.msra.mxu0 0
  %360 = vmatprep.subr.bf16.mxu0 0
  %361 = vmatpush1.bf16.xpose.msra.mxu0 0
  %362 = vmatprep.subr.bf16.mxu0 0
  %363 = vmatpush1.bf16.xpose.msra.mxu0 0
  %364 = vmatprep.subr.bf16.mxu0 0
  %365 = vmatpush1.bf16.xpose.msra.mxu0 0
  %366 = vmatprep.subr.bf16.mxu0 0
  %367 = vmatpush1.bf16.xpose.msra.mxu0 0
  %368 = vmatprep.subr.bf16.mxu0 0
  %369 = vmatpush1.bf16.xpose.msra.mxu0 0
  %370 = vmatprep.subr.bf16.mxu0 0
  %371 = vmatpush1.bf16.xpose.msra.mxu0 0
  %372 = vmatprep.subr.bf16.mxu0 0
  %373 = vmatpush1.bf16.xpose.msra.mxu0 0
  %374 = vmatprep.mubr.bf16.mxu0 0
  %375 = vmatmul.mubr.bf16.gmra.mrb[0].mxu0 %v334
  %v376 = vpop.f32.mrb[0].mxu0
  %v377 = vadd.f32 0.0, %v376
  %v378 = vpop.f32.mrb[0].mxu0
  %v379 = vpop.f32.mrb[0].mxu0
  %v380 = vpop.f32.mrb[0].mxu0
  %381 = vdwg.mxu0
  %v383 = vlaneseq
  %v384 = vshrl.u32 %v383, 7
  %v385 = vsub.s32 0, %v384
  %v386 = vrot.slane %v208, %v385
  %v388 = vadd.f32 %v386, %v377
  %390 = vrot.lane.b32.xlu0 %v202, 112
  %v391 = vpop.permute.xlu0 %390
  %392 = vrot.lane.b32.xlu0 %v203, 80
  %v393 = vpop.permute.xlu0 %392
  %v395 = vsel %vm212, %v391, 0
  %v398 = vsel %vm212, %v393, 0
  %400 = vmatprep.subr.bf16.mxu0 0
  %401 = vmatpush1.bf16.xpose.msra.mxu0 %v398
  %402 = vmatprep.subr.bf16.mxu0 0
  %403 = vmatpush1.bf16.xpose.msra.mxu0 0
  %404 = vmatprep.subr.bf16.mxu0 0
  %405 = vmatpush1.bf16.xpose.msra.mxu0 0
  %406 = vmatprep.subr.bf16.mxu0 0
  %407 = vmatpush1.bf16.xpose.msra.mxu0 0
  %408 = vmatprep.subr.bf16.mxu0 0
  %409 = vmatpush1.bf16.xpose.msra.mxu0 0
  %410 = vmatprep.subr.bf16.mxu0 0
  %411 = vmatpush1.bf16.xpose.msra.mxu0 0
  %412 = vmatprep.subr.bf16.mxu0 0
  %413 = vmatpush1.bf16.xpose.msra.mxu0 0
  %414 = vmatprep.subr.bf16.mxu0 0
  %415 = vmatpush1.bf16.xpose.msra.mxu0 0
  %416 = vmatprep.subr.bf16.mxu0 0
  %417 = vmatpush1.bf16.xpose.msra.mxu0 0
  %418 = vmatprep.subr.bf16.mxu0 0
  %419 = vmatpush1.bf16.xpose.msra.mxu0 0
  %420 = vmatprep.subr.bf16.mxu0 0
  %421 = vmatpush1.bf16.xpose.msra.mxu0 0
  %422 = vmatprep.subr.bf16.mxu0 0
  %423 = vmatpush1.bf16.xpose.msra.mxu0 0
  %424 = vmatprep.subr.bf16.mxu0 0
  %425 = vmatpush1.bf16.xpose.msra.mxu0 0
  %426 = vmatprep.subr.bf16.mxu0 0
  %427 = vmatpush1.bf16.xpose.msra.mxu0 0
  %428 = vmatprep.subr.bf16.mxu0 0
  %429 = vmatpush1.bf16.xpose.msra.mxu0 0
  %430 = vmatprep.subr.bf16.mxu0 0
  %431 = vmatpush1.bf16.xpose.msra.mxu0 0
  %432 = vmatprep.mubr.bf16.mxu0 0
  %433 = vmatmul.mubr.bf16.gmra.mrb[0].mxu0 %v395
  %v434 = vpop.f32.mrb[0].mxu0
  %v435 = vadd.f32 0.0, %v434
  %v436 = vpop.f32.mrb[0].mxu0
  %v437 = vpop.f32.mrb[0].mxu0
  %v438 = vpop.f32.mrb[0].mxu0
  %439 = vdwg.mxu0
  %v440 = vsel %vm78, %v435, -1e+30
  %v441 = vsel %vm260, %v440, -inf
  %442 = vmax.xlane.f32.xlu0 %v441
  %v443 = vpop.xlane.xlu0 %442
  %v444 = vsub.f32 %v440, %v443
  %v445 = vmul.f32 %v444, 1.442695
  %v446 = vpow.pop %v445
  %v447 = vsel %vm260, %v446, 0.0
  %448 = vadd.xlane.f32.xlu0 %v447
  %v449 = vpop.xlane.xlu0 %448
  %v450 = vrcp.pop %v449
  %v451 = vmul.f32 %v446, %v450
  %v452 = vpack.c.bf16 %v451, %v451
  %453 = vrot.lane.b32.xlu0 %v203, 48
  %v454 = vpop.permute.xlu0 %453
  %v456 = vsel %vm260, %v452, 0
  %v459 = vsel %vm278, %v454, 0
  %461 = vmatprep.subr.bf16.mxu0 0
  %462 = vmatpush1.bf16.msra.mxu0 %v459
  %463 = vmatprep.subr.bf16.mxu0 0
  %464 = vmatpush1.bf16.msra.mxu0 0
  %465 = vmatprep.subr.bf16.mxu0 0
  %466 = vmatpush1.bf16.msra.mxu0 0
  %467 = vmatprep.subr.bf16.mxu0 0
  %468 = vmatpush1.bf16.msra.mxu0 0
  %469 = vmatprep.subr.bf16.mxu0 0
  %470 = vmatpush1.bf16.msra.mxu0 0
  %471 = vmatprep.subr.bf16.mxu0 0
  %472 = vmatpush1.bf16.msra.mxu0 0
  %473 = vmatprep.subr.bf16.mxu0 0
  %474 = vmatpush1.bf16.msra.mxu0 0
  %475 = vmatprep.subr.bf16.mxu0 0
  %476 = vmatpush1.bf16.msra.mxu0 0
  %477 = vmatprep.subr.bf16.mxu0 0
  %478 = vmatpush1.bf16.msra.mxu0 0
  %479 = vmatprep.subr.bf16.mxu0 0
  %480 = vmatpush1.bf16.msra.mxu0 0
  %481 = vmatprep.subr.bf16.mxu0 0
  %482 = vmatpush1.bf16.msra.mxu0 0
  %483 = vmatprep.subr.bf16.mxu0 0
  %484 = vmatpush1.bf16.msra.mxu0 0
  %485 = vmatprep.subr.bf16.mxu0 0
  %486 = vmatpush1.bf16.msra.mxu0 0
  %487 = vmatprep.subr.bf16.mxu0 0
  %488 = vmatpush1.bf16.msra.mxu0 0
  %489 = vmatprep.subr.bf16.mxu0 0
  %490 = vmatpush1.bf16.msra.mxu0 0
  %491 = vmatprep.subr.bf16.mxu0 0
  %492 = vmatpush1.bf16.msra.mxu0 0
  %493 = vmatprep.mubr.bf16.mxu0 0
  %494 = vmatmul.mubr.bf16.gmra.mrb[0].mxu0 %v456
  %v495 = vpop.f32.mrb[0].mxu0
  %v496 = vadd.f32 0.0, %v495
  %v497 = vpop.f32.mrb[0].mxu0
  %v498 = vpop.f32.mrb[0].mxu0
  %v499 = vpop.f32.mrb[0].mxu0
  %500 = vdwg.mxu0
  %v501 = vpack.c.bf16 %v496, %v496
  %502 = vrot.lane.b32.xlu0 %v331, 112
  %v503 = vpop.permute.xlu0 %502
  %504 = vrot.lane.b32.xlu0 %v332, 112
  %v505 = vpop.permute.xlu0 %504
  %v507 = vsel %vm212, %v501, 0
  %v510 = vsel %vm212, %v503, 0
  %v513 = vsel %vm212, %v505, 0
  %515 = vmatprep.subr.bf16.mxu0 0
  %516 = vmatpush1.bf16.xpose.msra.mxu0 %v510
  %517 = vmatprep.subr.bf16.mxu0 0
  %518 = vmatpush1.bf16.xpose.msra.mxu0 %v513
  %519 = vmatprep.subr.bf16.mxu0 0
  %520 = vmatpush1.bf16.xpose.msra.mxu0 0
  %521 = vmatprep.subr.bf16.mxu0 0
  %522 = vmatpush1.bf16.xpose.msra.mxu0 0
  %523 = vmatprep.subr.bf16.mxu0 0
  %524 = vmatpush1.bf16.xpose.msra.mxu0 0
  %525 = vmatprep.subr.bf16.mxu0 0
  %526 = vmatpush1.bf16.xpose.msra.mxu0 0
  %527 = vmatprep.subr.bf16.mxu0 0
  %528 = vmatpush1.bf16.xpose.msra.mxu0 0
  %529 = vmatprep.subr.bf16.mxu0 0
  %530 = vmatpush1.bf16.xpose.msra.mxu0 0
  %531 = vmatprep.subr.bf16.mxu0 0
  %532 = vmatpush1.bf16.xpose.msra.mxu0 0
  %533 = vmatprep.subr.bf16.mxu0 0
  %534 = vmatpush1.bf16.xpose.msra.mxu0 0
  %535 = vmatprep.subr.bf16.mxu0 0
  %536 = vmatpush1.bf16.xpose.msra.mxu0 0
  %537 = vmatprep.subr.bf16.mxu0 0
  %538 = vmatpush1.bf16.xpose.msra.mxu0 0
  %539 = vmatprep.subr.bf16.mxu0 0
  %540 = vmatpush1.bf16.xpose.msra.mxu0 0
  %541 = vmatprep.subr.bf16.mxu0 0
  %542 = vmatpush1.bf16.xpose.msra.mxu0 0
  %543 = vmatprep.subr.bf16.mxu0 0
  %544 = vmatpush1.bf16.xpose.msra.mxu0 0
  %545 = vmatprep.subr.bf16.mxu0 0
  %546 = vmatpush1.bf16.xpose.msra.mxu0 0
  %547 = vmatprep.mubr.bf16.mxu0 0
  %548 = vmatmul.mubr.bf16.gmra.mrb[0].mxu0 %v507
  %v549 = vpop.f32.mrb[0].mxu0
  %v550 = vadd.f32 0.0, %v549
  %v551 = vpop.f32.mrb[0].mxu0
  %v552 = vpop.f32.mrb[0].mxu0
  %v553 = vpop.f32.mrb[0].mxu0
  %554 = vdwg.mxu0
  %v555 = vadd.f32 %v388, %v550
  %556 = vst.msk [vmem:[#allocation2] sm:$0xff] %vm137, %v555
  %v557 = vrot.slane %v202, 4
  %v558 = vrot.slane %v203, 4
  %559 = vrot.lane.b32.xlu0 %v558, 96
  %v560 = vpop.permute.xlu0 %559
  %v562 = vsel %vm212, %v557, 0
  %v565 = vsel %vm212, %v560, 0
  %567 = vmatprep.subr.bf16.mxu0 0
  %568 = vmatpush1.bf16.xpose.msra.mxu0 %v565
  %569 = vmatprep.subr.bf16.mxu0 0
  %570 = vmatpush1.bf16.xpose.msra.mxu0 0
  %571 = vmatprep.subr.bf16.mxu0 0
  %572 = vmatpush1.bf16.xpose.msra.mxu0 0
  %573 = vmatprep.subr.bf16.mxu0 0
  %574 = vmatpush1.bf16.xpose.msra.mxu0 0
  %575 = vmatprep.subr.bf16.mxu0 0
  %576 = vmatpush1.bf16.xpose.msra.mxu0 0
  %577 = vmatprep.subr.bf16.mxu0 0
  %578 = vmatpush1.bf16.xpose.msra.mxu0 0
  %579 = vmatprep.subr.bf16.mxu0 0
  %580 = vmatpush1.bf16.xpose.msra.mxu0 0
  %581 = vmatprep.subr.bf16.mxu0 0
  %582 = vmatpush1.bf16.xpose.msra.mxu0 0
  %583 = vmatprep.subr.bf16.mxu0 0
  %584 = vmatpush1.bf16.xpose.msra.mxu0 0
  %585 = vmatprep.subr.bf16.mxu0 0
  %586 = vmatpush1.bf16.xpose.msra.mxu0 0
  %587 = vmatprep.subr.bf16.mxu0 0
  %588 = vmatpush1.bf16.xpose.msra.mxu0 0
  %589 = vmatprep.subr.bf16.mxu0 0
  %590 = vmatpush1.bf16.xpose.msra.mxu0 0
  %591 = vmatprep.subr.bf16.mxu0 0
  %592 = vmatpush1.bf16.xpose.msra.mxu0 0
  %593 = vmatprep.subr.bf16.mxu0 0
  %594 = vmatpush1.bf16.xpose.msra.mxu0 0
  %595 = vmatprep.subr.bf16.mxu0 0
  %596 = vmatpush1.bf16.xpose.msra.mxu0 0
  %597 = vmatprep.subr.bf16.mxu0 0
  %598 = vmatpush1.bf16.xpose.msra.mxu0 0
  %599 = vmatprep.mubr.bf16.mxu0 0
  %600 = vmatmul.mubr.bf16.gmra.mrb[0].mxu0 %v562
  %v601 = vpop.f32.mrb[0].mxu0
  %v602 = vadd.f32 0.0, %v601
  %v603 = vpop.f32.mrb[0].mxu0
  %v604 = vpop.f32.mrb[0].mxu0
  %v605 = vpop.f32.mrb[0].mxu0
  %606 = vdwg.mxu0
  %v607 = vsel %vm78, %v602, -1e+30
  %v608 = vsel %vm260, %v607, -inf
  %609 = vmax.xlane.f32.xlu0 %v608
  %v610 = vpop.xlane.xlu0 %609
  %v611 = vsub.f32 %v607, %v610
  %v612 = vmul.f32 %v611, 1.442695
  %v613 = vpow.pop %v612
  %v614 = vsel %vm260, %v613, 0.0
  %615 = vadd.xlane.f32.xlu0 %v614
  %v616 = vpop.xlane.xlu0 %615
  %v617 = vrcp.pop %v616
  %v618 = vmul.f32 %v613, %v617
  %v619 = vpack.c.bf16 %v618, %v618
  %620 = vrot.lane.b32.xlu0 %v558, 64
  %v621 = vpop.permute.xlu0 %620
  %v623 = vsel %vm260, %v619, 0
  %v626 = vsel %vm278, %v621, 0
  %628 = vmatprep.subr.bf16.mxu0 0
  %629 = vmatpush1.bf16.msra.mxu0 %v626
  %630 = vmatprep.subr.bf16.mxu0 0
  %631 = vmatpush1.bf16.msra.mxu0 0
  %632 = vmatprep.subr.bf16.mxu0 0
  %633 = vmatpush1.bf16.msra.mxu0 0
  %634 = vmatprep.subr.bf16.mxu0 0
  %635 = vmatpush1.bf16.msra.mxu0 0
  %636 = vmatprep.subr.bf16.mxu0 0
  %637 = vmatpush1.bf16.msra.mxu0 0
  %638 = vmatprep.subr.bf16.mxu0 0
  %639 = vmatpush1.bf16.msra.mxu0 0
  %640 = vmatprep.subr.bf16.mxu0 0
  %641 = vmatpush1.bf16.msra.mxu0 0
  %642 = vmatprep.subr.bf16.mxu0 0
  %643 = vmatpush1.bf16.msra.mxu0 0
  %644 = vmatprep.subr.bf16.mxu0 0
  %645 = vmatpush1.bf16.msra.mxu0 0
  %646 = vmatprep.subr.bf16.mxu0 0
  %647 = vmatpush1.bf16.msra.mxu0 0
  %648 = vmatprep.subr.bf16.mxu0 0
  %649 = vmatpush1.bf16.msra.mxu0 0
  %650 = vmatprep.subr.bf16.mxu0 0
  %651 = vmatpush1.bf16.msra.mxu0 0
  %652 = vmatprep.subr.bf16.mxu0 0
  %653 = vmatpush1.bf16.msra.mxu0 0
  %654 = vmatprep.subr.bf16.mxu0 0
  %655 = vmatpush1.bf16.msra.mxu0 0
  %656 = vmatprep.subr.bf16.mxu0 0
  %657 = vmatpush1.bf16.msra.mxu0 0
  %658 = vmatprep.subr.bf16.mxu0 0
  %659 = vmatpush1.bf16.msra.mxu0 0
  %660 = vmatprep.mubr.bf16.mxu0 0
  %661 = vmatmul.mubr.bf16.gmra.mrb[0].mxu0 %v623
  %v662 = vpop.f32.mrb[0].mxu0
  %v663 = vadd.f32 0.0, %v662
  %v664 = vpop.f32.mrb[0].mxu0
  %v665 = vpop.f32.mrb[0].mxu0
  %v666 = vpop.f32.mrb[0].mxu0
  %667 = vdwg.mxu0
  %v668 = vpack.c.bf16 %v663, %v663
  %v670 = vsel %vm212, %v668, 0
  %672 = vmatprep.subr.bf16.mxu0 0
  %673 = vmatpush1.bf16.xpose.msra.mxu0 %v337
  %674 = vmatprep.subr.bf16.mxu0 0
  %675 = vmatpush1.bf16.xpose.msra.mxu0 %v340
  %676 = vmatprep.subr.bf16.mxu0 0
  %677 = vmatpush1.bf16.xpose.msra.mxu0 0
  %678 = vmatprep.subr.bf16.mxu0 0
  %679 = vmatpush1.bf16.xpose.msra.mxu0 0
  %680 = vmatprep.subr.bf16.mxu0 0
  %681 = vmatpush1.bf16.xpose.msra.mxu0 0
  %682 = vmatprep.subr.bf16.mxu0 0
  %683 = vmatpush1.bf16.xpose.msra.mxu0 0
  %684 = vmatprep.subr.bf16.mxu0 0
  %685 = vmatpush1.bf16.xpose.msra.mxu0 0
  %686 = vmatprep.subr.bf16.mxu0 0
  %687 = vmatpush1.bf16.xpose.msra.mxu0 0
  %688 = vmatprep.subr.bf16.mxu0 0
  %689 = vmatpush1.bf16.xpose.msra.mxu0 0
  %690 = vmatprep.subr.bf16.mxu0 0
  %691 = vmatpush1.bf16.xpose.msra.mxu0 0
  %692 = vmatprep.subr.bf16.mxu0 0
  %693 = vmatpush1.bf16.xpose.msra.mxu0 0
  %694 = vmatprep.subr.bf16.mxu0 0
  %695 = vmatpush1.bf16.xpose.msra.mxu0 0
  %696 = vmatprep.subr.bf16.mxu0 0
  %697 = vmatpush1.bf16.xpose.msra.mxu0 0
  %698 = vmatprep.subr.bf16.mxu0 0
  %699 = vmatpush1.bf16.xpose.msra.mxu0 0
  %700 = vmatprep.subr.bf16.mxu0 0
  %701 = vmatpush1.bf16.xpose.msra.mxu0 0
  %702 = vmatprep.subr.bf16.mxu0 0
  %703 = vmatpush1.bf16.xpose.msra.mxu0 0
  %704 = vmatprep.mubr.bf16.mxu0 0
  %705 = vmatmul.mubr.bf16.gmra.mrb[0].mxu0 %v670
  %v706 = vpop.f32.mrb[0].mxu0
  %v707 = vadd.f32 0.0, %v706
  %v708 = vpop.f32.mrb[0].mxu0
  %v709 = vpop.f32.mrb[0].mxu0
  %v710 = vpop.f32.mrb[0].mxu0
  %711 = vdwg.mxu0
  %v712 = vadd.f32 %v386, %v707
  %713 = vrot.lane.b32.xlu0 %v557, 112
  %v714 = vpop.permute.xlu0 %713
  %715 = vrot.lane.b32.xlu0 %v558, 80
  %v716 = vpop.permute.xlu0 %715
  %v718 = vsel %vm212, %v714, 0
  %v721 = vsel %vm212, %v716, 0
  %723 = vmatprep.subr.bf16.mxu0 0
  %724 = vmatpush1.bf16.xpose.msra.mxu0 %v721
  %725 = vmatprep.subr.bf16.mxu0 0
  %726 = vmatpush1.bf16.xpose.msra.mxu0 0
  %727 = vmatprep.subr.bf16.mxu0 0
  %728 = vmatpush1.bf16.xpose.msra.mxu0 0
  %729 = vmatprep.subr.bf16.mxu0 0
  %730 = vmatpush1.bf16.xpose.msra.mxu0 0
  %731 = vmatprep.subr.bf16.mxu0 0
  %732 = vmatpush1.bf16.xpose.msra.mxu0 0
  %733 = vmatprep.subr.bf16.mxu0 0
  %734 = vmatpush1.bf16.xpose.msra.mxu0 0
  %735 = vmatprep.subr.bf16.mxu0 0
  %736 = vmatpush1.bf16.xpose.msra.mxu0 0
  %737 = vmatprep.subr.bf16.mxu0 0
  %738 = vmatpush1.bf16.xpose.msra.mxu0 0
  %739 = vmatprep.subr.bf16.mxu0 0
  %740 = vmatpush1.bf16.xpose.msra.mxu0 0
  %741 = vmatprep.subr.bf16.mxu0 0
  %742 = vmatpush1.bf16.xpose.msra.mxu0 0
  %743 = vmatprep.subr.bf16.mxu0 0
  %744 = vmatpush1.bf16.xpose.msra.mxu0 0
  %745 = vmatprep.subr.bf16.mxu0 0
  %746 = vmatpush1.bf16.xpose.msra.mxu0 0
  %747 = vmatprep.subr.bf16.mxu0 0
  %748 = vmatpush1.bf16.xpose.msra.mxu0 0
  %749 = vmatprep.subr.bf16.mxu0 0
  %750 = vmatpush1.bf16.xpose.msra.mxu0 0
  %751 = vmatprep.subr.bf16.mxu0 0
  %752 = vmatpush1.bf16.xpose.msra.mxu0 0
  %753 = vmatprep.subr.bf16.mxu0 0
  %754 = vmatpush1.bf16.xpose.msra.mxu0 0
  %755 = vmatprep.mubr.bf16.mxu0 0
  %756 = vmatmul.mubr.bf16.gmra.mrb[0].mxu0 %v718
  %v757 = vpop.f32.mrb[0].mxu0
  %v758 = vadd.f32 0.0, %v757
  %v759 = vpop.f32.mrb[0].mxu0
  %v760 = vpop.f32.mrb[0].mxu0
  %v761 = vpop.f32.mrb[0].mxu0
  %762 = vdwg.mxu0
  %v763 = vsel %vm78, %v758, -1e+30
  %v764 = vsel %vm260, %v763, -inf
  %765 = vmax.xlane.f32.xlu0 %v764
  %v766 = vpop.xlane.xlu0 %765
  %v767 = vsub.f32 %v763, %v766
  %v768 = vmul.f32 %v767, 1.442695
  %v769 = vpow.pop %v768
  %v770 = vsel %vm260, %v769, 0.0
  %771 = vadd.xlane.f32.xlu0 %v770
  %v772 = vpop.xlane.xlu0 %771
  %v773 = vrcp.pop %v772
  %v774 = vmul.f32 %v769, %v773
  %v775 = vpack.c.bf16 %v774, %v774
  %776 = vrot.lane.b32.xlu0 %v558, 48
  %v777 = vpop.permute.xlu0 %776
  %v779 = vsel %vm260, %v775, 0
  %v782 = vsel %vm278, %v777, 0
  %784 = vmatprep.subr.bf16.mxu0 0
  %785 = vmatpush1.bf16.msra.mxu0 %v782
  %786 = vmatprep.subr.bf16.mxu0 0
  %787 = vmatpush1.bf16.msra.mxu0 0
  %788 = vmatprep.subr.bf16.mxu0 0
  %789 = vmatpush1.bf16.msra.mxu0 0
  %790 = vmatprep.subr.bf16.mxu0 0
  %791 = vmatpush1.bf16.msra.mxu0 0
  %792 = vmatprep.subr.bf16.mxu0 0
  %793 = vmatpush1.bf16.msra.mxu0 0
  %794 = vmatprep.subr.bf16.mxu0 0
  %795 = vmatpush1.bf16.msra.mxu0 0
  %796 = vmatprep.subr.bf16.mxu0 0
  %797 = vmatpush1.bf16.msra.mxu0 0
  %798 = vmatprep.subr.bf16.mxu0 0
  %799 = vmatpush1.bf16.msra.mxu0 0
  %800 = vmatprep.subr.bf16.mxu0 0
  %801 = vmatpush1.bf16.msra.mxu0 0
  %802 = vmatprep.subr.bf16.mxu0 0
  %803 = vmatpush1.bf16.msra.mxu0 0
  %804 = vmatprep.subr.bf16.mxu0 0
  %805 = vmatpush1.bf16.msra.mxu0 0
  %806 = vmatprep.subr.bf16.mxu0 0
  %807 = vmatpush1.bf16.msra.mxu0 0
  %808 = vmatprep.subr.bf16.mxu0 0
  %809 = vmatpush1.bf16.msra.mxu0 0
  %810 = vmatprep.subr.bf16.mxu0 0
  %811 = vmatpush1.bf16.msra.mxu0 0
  %812 = vmatprep.subr.bf16.mxu0 0
  %813 = vmatpush1.bf16.msra.mxu0 0
  %814 = vmatprep.subr.bf16.mxu0 0
  %815 = vmatpush1.bf16.msra.mxu0 0
  %816 = vmatprep.mubr.bf16.mxu0 0
  %817 = vmatmul.mubr.bf16.gmra.mrb[0].mxu0 %v779
  %v818 = vpop.f32.mrb[0].mxu0
  %v819 = vadd.f32 0.0, %v818
  %v820 = vpop.f32.mrb[0].mxu0
  %v821 = vpop.f32.mrb[0].mxu0
  %v822 = vpop.f32.mrb[0].mxu0
  %823 = vdwg.mxu0
  %v824 = vpack.c.bf16 %v819, %v819
  %v826 = vsel %vm212, %v824, 0
  %828 = vmatprep.subr.bf16.mxu0 0
  %829 = vmatpush1.bf16.xpose.msra.mxu0 %v510
  %830 = vmatprep.subr.bf16.mxu0 0
  %831 = vmatpush1.bf16.xpose.msra.mxu0 %v513
  %832 = vmatprep.subr.bf16.mxu0 0
  %833 = vmatpush1.bf16.xpose.msra.mxu0 0
  %834 = vmatprep.subr.bf16.mxu0 0
  %835 = vmatpush1.bf16.xpose.msra.mxu0 0
  %836 = vmatprep.subr.bf16.mxu0 0
  %837 = vmatpush1.bf16.xpose.msra.mxu0 0
  %838 = vmatprep.subr.bf16.mxu0 0
  %839 = vmatpush1.bf16.xpose.msra.mxu0 0
  %840 = vmatprep.subr.bf16.mxu0 0
  %841 = vmatpush1.bf16.xpose.msra.mxu0 0
  %842 = vmatprep.subr.bf16.mxu0 0
  %843 = vmatpush1.bf16.xpose.msra.mxu0 0
  %844 = vmatprep.subr.bf16.mxu0 0
  %845 = vmatpush1.bf16.xpose.msra.mxu0 0
  %846 = vmatprep.subr.bf16.mxu0 0
  %847 = vmatpush1.bf16.xpose.msra.mxu0 0
  %848 = vmatprep.subr.bf16.mxu0 0
  %849 = vmatpush1.bf16.xpose.msra.mxu0 0
  %850 = vmatprep.subr.bf16.mxu0 0
  %851 = vmatpush1.bf16.xpose.msra.mxu0 0
  %852 = vmatprep.subr.bf16.mxu0 0
  %853 = vmatpush1.bf16.xpose.msra.mxu0 0
  %854 = vmatprep.subr.bf16.mxu0 0
  %855 = vmatpush1.bf16.xpose.msra.mxu0 0
  %856 = vmatprep.subr.bf16.mxu0 0
  %857 = vmatpush1.bf16.xpose.msra.mxu0 0
  %858 = vmatprep.subr.bf16.mxu0 0
  %859 = vmatpush1.bf16.xpose.msra.mxu0 0
  %860 = vmatprep.mubr.bf16.mxu0 0
  %861 = vmatmul.mubr.bf16.gmra.mrb[0].mxu0 %v826
  %v862 = vpop.f32.mrb[0].mxu0
  %v863 = vadd.f32 0.0, %v862
  %v864 = vpop.f32.mrb[0].mxu0
  %v865 = vpop.f32.mrb[0].mxu0
  %v866 = vpop.f32.mrb[0].mxu0
  %867 = vdwg.mxu0
  %v868 = vadd.f32 %v712, %v863
  %869 = vst.msk [vmem:[#allocation2 + $0x8] sm:$0xff] %vm137, %v868
  %v870 = vld [vmem:[#allocation2] sm:$0xff]
  %v871 = vld [vmem:[#allocation2 + $0x8] sm:$0xff]
  %v872 = vadd.f32 %v81, %v870
  %v873 = vadd.f32 %v82, %v871
  %v874 = vld [vmem:[%s7] sm:$0x1]
  %v875 = vld [vmem:[%s8] sm:$0x1]
  %v876 = vsel %vm137, %v872, 0.0
  %877 = vadd.xlane.f32.xlu0 %v876
  %v878 = vpop.xlane.xlu0 %877
  %v879 = vsel %vm137, %v873, 0.0
  %880 = vadd.xlane.f32.xlu0 %v879
  %v881 = vpop.xlane.xlu0 %880
  %v882 = vrcp.pop 32.0
  %v883 = vmul.f32 %v878, %v882
  %v884 = vmul.f32 %v881, %v882
  %v885 = vsub.f32 %v872, %v883
  %v886 = vsub.f32 %v873, %v884
  %v887 = vmul.f32 %v885, %v885
  %v888 = vmul.f32 %v886, %v886
  %v889 = vsel %vm137, %v887, 0.0
  %890 = vadd.xlane.f32.xlu0 %v889
  %v891 = vpop.xlane.xlu0 %890
  %v892 = vsel %vm137, %v888, 0.0
  %893 = vadd.xlane.f32.xlu0 %v892
  %v894 = vpop.xlane.xlu0 %893
  %v895 = vmul.f32 %v891, %v882
  %v896 = vmul.f32 %v894, %v882
  %v897 = vadd.f32 %v895, 1e-05
  %v898 = vadd.f32 %v896, 1e-05
  %v899 = vrsqrt.pop %v897
  %v900 = vrsqrt.pop %v898
  %v901 = vmul.f32 %v885, %v899
  %v902 = vmul.f32 %v886, %v900
  %v904 = vlaneseq
  %v905 = vshrl.u32 %v904, 7
  %v906 = vsub.s32 0, %v905
  %v907 = vrot.slane %v874, %v906
  %v909 = vmul.f32 %v901, %v907
  %v910 = vmul.f32 %v902, %v907
  %v912 = vlaneseq
  %v913 = vshrl.u32 %v912, 7
  %v914 = vsub.s32 0, %v913
  %v915 = vrot.slane %v875, %v914
  %v917 = vadd.f32 %v909, %v915
  %v918 = vadd.f32 %v910, %v915
  %v919 = vld [vmem:[%s9] sm:$0xf]
  %v920 = vld [vmem:[%s9 + $0x4] sm:$0xf]
  %v921 = vld [vmem:[%s9 + $0x8] sm:$0xf]
  %v922 = vld [vmem:[%s9 + $0xc] sm:$0xf]
  %v923 = vld [vmem:[%s9 + $0x10] sm:$0xf]
  %v924 = vld [vmem:[%s9 + $0x14] sm:$0xf]
  %v925 = vld [vmem:[%s9 + $0x18] sm:$0xf]
  %v926 = vld [vmem:[%s9 + $0x1c] sm:$0xf]
  %v927 = vld [vmem:[%s9 + $0x20] sm:$0xf]
  %v928 = vld [vmem:[%s9 + $0x24] sm:$0xf]
  %v929 = vld [vmem:[%s9 + $0x28] sm:$0xf]
  %v930 = vld [vmem:[%s9 + $0x2c] sm:$0xf]
  %v931 = vld [vmem:[%s10] sm:$0x1]
  %v932 = vpack.c.bf16 %v918, %v917
  %v934 = vlaneseq
  %v935 = vshrl.u32 %v934, 7
  %v936 = vsub.s32 0, %v935
  %v937 = vrot.slane %v931, %v936
  %v943 = vunpack.c.l.b16 %v919
  %v944 = vunpack.c.l.b16 %v920
  %v945 = vunpack.c.l.b16 %v921
  %v946 = vunpack.c.l.b16 %v922
  %v947 = vpack.c.b16 %v944, %v943
  %v948 = vpack.c.b16 %v946, %v945
  %v950 = vsel %vm137, %v932, 0
  %v953 = vsel %vm137, %v947, 0
  %v956 = vsel %vm137, %v948, 0
  %958 = vmatprep.subr.bf16.mxu0 0
  %959 = vmatpush1.bf16.xpose.msra.mxu0 %v953
  %960 = vmatprep.subr.bf16.mxu0 0
  %961 = vmatpush1.bf16.xpose.msra.mxu0 %v956
  %962 = vmatprep.subr.bf16.mxu0 0
  %963 = vmatpush1.bf16.xpose.msra.mxu0 0
  %964 = vmatprep.subr.bf16.mxu0 0
  %965 = vmatpush1.bf16.xpose.msra.mxu0 0
  %966 = vmatprep.subr.bf16.mxu0 0
  %967 = vmatpush1.bf16.xpose.msra.mxu0 0
  %968 = vmatprep.subr.bf16.mxu0 0
  %969 = vmatpush1.bf16.xpose.msra.mxu0 0
  %970 = vmatprep.subr.bf16.mxu0 0
  %971 = vmatpush1.bf16.xpose.msra.mxu0 0
  %972 = vmatprep.subr.bf16.mxu0 0
  %973 = vmatpush1.bf16.xpose.msra.mxu0 0
  %974 = vmatprep.subr.bf16.mxu0 0
  %975 = vmatpush1.bf16.xpose.msra.mxu0 0
  %976 = vmatprep.subr.bf16.mxu0 0
  %977 = vmatpush1.bf16.xpose.msra.mxu0 0
  %978 = vmatprep.subr.bf16.mxu0 0
  %979 = vmatpush1.bf16.xpose.msra.mxu0 0
  %980 = vmatprep.subr.bf16.mxu0 0
  %981 = vmatpush1.bf16.xpose.msra.mxu0 0
  %982 = vmatprep.subr.bf16.mxu0 0
  %983 = vmatpush1.bf16.xpose.msra.mxu0 0
  %984 = vmatprep.subr.bf16.mxu0 0
  %985 = vmatpush1.bf16.xpose.msra.mxu0 0
  %986 = vmatprep.subr.bf16.mxu0 0
  %987 = vmatpush1.bf16.xpose.msra.mxu0 0
  %988 = vmatprep.subr.bf16.mxu0 0
  %989 = vmatpush1.bf16.xpose.msra.mxu0 0
  %990 = vmatprep.mubr.bf16.mxu0 0
  %991 = vmatmul.mubr.bf16.gmra.mrb[0].mxu0 %v950
  %v992 = vpop.f32.mrb[0].mxu0
  %v993 = vadd.f32 %v937, %v992
  %v994 = vpop.f32.mrb[0].mxu0
  %v995 = vpop.f32.mrb[0].mxu0
  %v996 = vadd.f32 %v937, %v995
  %v997 = vpop.f32.mrb[0].mxu0
  %998 = vdwg.mxu0
  %v999 = vmul.f32 %v993, 0.25
  %v1000 = vmul.f32 %v996, 0.25
  %v1001 = vpack.c.bf16 %v1000, %v999
  %v1006 = vunpack.c.l.b16 %v69
  %v1007 = vunpack.c.l.b16 %v70
  %v1008 = vunpack.c.l.b16 %v71
  %v1009 = vunpack.c.l.b16 %v72
  %v1010 = vpack.c.b16 %v1007, %v1006
  %v1011 = vpack.c.b16 %v1009, %v1008
  %v1020 = vunpack.c.l.b16 %v923
  %v1021 = vunpack.c.l.b16 %v924
  %v1022 = vunpack.c.l.b16 %v925
  %v1023 = vunpack.c.l.b16 %v926
  %v1024 = vunpack.c.l.b16 %v927
  %v1025 = vunpack.c.l.b16 %v928
  %v1026 = vunpack.c.l.b16 %v929
  %v1027 = vunpack.c.l.b16 %v930
  %v1028 = vpack.c.b16 %v1021, %v1020
  %v1029 = vpack.c.b16 %v1023, %v1022
  %v1030 = vpack.c.b16 %v1025, %v1024
  %v1031 = vpack.c.b16 %v1027, %v1026
  %1032 = vrot.lane.b32.xlu0 %v937, 96
  %v1033 = vpop.permute.xlu0 %1032
  %v1036 = vsel %vm137, %v1010, 0
  %v1039 = vsel %vm137, %v1011, 0
  %v1042 = vsel %vm137, %v1028, 0
  %v1045 = vsel %vm137, %v1029, 0
  %v1048 = vsel %vm137, %v1030, 0
  %v1051 = vsel %vm137, %v1031, 0
  %1053 = vmatprep.subr.bf16.mxu0 0
  %1054 = vmatpush1.bf16.xpose.msra.mxu0 %v1042
  %1055 = vmatprep.subr.bf16.mxu0 0
  %1056 = vmatpush1.bf16.xpose.msra.mxu0 %v1045
  %1057 = vmatprep.subr.bf16.mxu0 0
  %1058 = vmatpush1.bf16.xpose.msra.mxu0 %v1048
  %1059 = vmatprep.subr.bf16.mxu0 0
  %1060 = vmatpush1.bf16.xpose.msra.mxu0 %v1051
  %1061 = vmatprep.subr.bf16.mxu0 0
  %1062 = vmatpush1.bf16.xpose.msra.mxu0 0
  %1063 = vmatprep.subr.bf16.mxu0 0
  %1064 = vmatpush1.bf16.xpose.msra.mxu0 0
  %1065 = vmatprep.subr.bf16.mxu0 0
  %1066 = vmatpush1.bf16.xpose.msra.mxu0 0
  %1067 = vmatprep.subr.bf16.mxu0 0
  %1068 = vmatpush1.bf16.xpose.msra.mxu0 0
  %1069 = vmatprep.subr.bf16.mxu0 0
  %1070 = vmatpush1.bf16.xpose.msra.mxu0 0
  %1071 = vmatprep.subr.bf16.mxu0 0
  %1072 = vmatpush1.bf16.xpose.msra.mxu0 0
  %1073 = vmatprep.subr.bf16.mxu0 0
  %1074 = vmatpush1.bf16.xpose.msra.mxu0 0
  %1075 = vmatprep.subr.bf16.mxu0 0
  %1076 = vmatpush1.bf16.xpose.msra.mxu0 0
  %1077 = vmatprep.subr.bf16.mxu0 0
  %1078 = vmatpush1.bf16.xpose.msra.mxu0 0
  %1079 = vmatprep.subr.bf16.mxu0 0
  %1080 = vmatpush1.bf16.xpose.msra.mxu0 0
  %1081 = vmatprep.subr.bf16.mxu0 0
  %1082 = vmatpush1.bf16.xpose.msra.mxu0 0
  %1083 = vmatprep.subr.bf16.mxu0 0
  %1084 = vmatpush1.bf16.xpose.msra.mxu0 0
  %1085 = vmatprep.mubr.bf16.mxu0 0
  %1086 = vmatmul.mubr.bf16.gmra.mrb[0].mxu0 %v1036
  %v1087 = vpop.f32.mrb[0].mxu0
  %v1088 = vadd.f32 %v1033, %v1087
  %v1089 = vpop.f32.mrb[0].mxu0
  %v1090 = vpop.f32.mrb[0].mxu0
  %v1091 = vadd.f32 %v1033, %v1090
  %v1092 = vpop.f32.mrb[0].mxu0
  %1093 = vmatprep.mubr.bf16.mxu0 0
  %1094 = vmatmul.mubr.bf16.gmra.mrb[0].mxu0 %v1039
  %v1095 = vpop.f32.mrb[0].mxu0
  %v1096 = vadd.f32 %v1033, %v1095
  %v1097 = vpop.f32.mrb[0].mxu0
  %v1098 = vpop.f32.mrb[0].mxu0
  %v1099 = vadd.f32 %v1033, %v1098
  %v1100 = vpop.f32.mrb[0].mxu0
  %1101 = vdwg.mxu0
  %v1102 = vpack.c.bf16 %v1091, %v1088
  %v1103 = vpack.c.bf16 %v1099, %v1096
  %v1104 = vld [vmem:[%s11] sm:$0xf]
  %v1105 = vld [vmem:[%s11 + $0x4] sm:$0xf]
  %v1106 = vld [vmem:[%s11 + $0x8] sm:$0xf]
  %v1107 = vld [vmem:[%s11 + $0xc] sm:$0xf]
  %v1108 = vld [vmem:[%s12] sm:$0x1]
  %vm1109 = vcmp.gt.f32.partialorder %v73, 0.5
  %v1111 = vsel %vm212, %v1001, 0
  %v1114 = vsel %vm212, %v1102, 0
  %1116 = vmatprep.subr.bf16.mxu0 0
  %1117 = vmatpush1.bf16.xpose.msra.mxu0 %v1114
  %1118 = vmatprep.subr.bf16.mxu0 0
  %1119 = vmatpush1.bf16.xpose.msra.mxu0 0
  %1120 = vmatprep.subr.bf16.mxu0 0
  %1121 = vmatpush1.bf16.xpose.msra.mxu0 0
  %1122 = vmatprep.subr.bf16.mxu0 0
  %1123 = vmatpush1.bf16.xpose.msra.mxu0 0
  %1124 = vmatprep.subr.bf16.mxu0 0
  %1125 = vmatpush1.bf16.xpose.msra.mxu0 0
  %1126 = vmatprep.subr.bf16.mxu0 0
  %1127 = vmatpush1.bf16.xpose.msra.mxu0 0
  %1128 = vmatprep.subr.bf16.mxu0 0
  %1129 = vmatpush1.bf16.xpose.msra.mxu0 0
  %1130 = vmatprep.subr.bf16.mxu0 0
  %1131 = vmatpush1.bf16.xpose.msra.mxu0 0
  %1132 = vmatprep.subr.bf16.mxu0 0
  %1133 = vmatpush1.bf16.xpose.msra.mxu0 0
  %1134 = vmatprep.subr.bf16.mxu0 0
  %1135 = vmatpush1.bf16.xpose.msra.mxu0 0
  %1136 = vmatprep.subr.bf16.mxu0 0
  %1137 = vmatpush1.bf16.xpose.msra.mxu0 0
  %1138 = vmatprep.subr.bf16.mxu0 0
  %1139 = vmatpush1.bf16.xpose.msra.mxu0 0
  %1140 = vmatprep.subr.bf16.mxu0 0
  %1141 = vmatpush1.bf16.xpose.msra.mxu0 0
  %1142 = vmatprep.subr.bf16.mxu0 0
  %1143 = vmatpush1.bf16.xpose.msra.mxu0 0
  %1144 = vmatprep.subr.bf16.mxu0 0
  %1145 = vmatpush1.bf16.xpose.msra.mxu0 0
  %1146 = vmatprep.subr.bf16.mxu0 0
  %1147 = vmatpush1.bf16.xpose.msra.mxu0 0
  %1148 = vmatprep.mubr.bf16.mxu0 0
  %1149 = vmatmul.mubr.bf16.gmra.mrb[0].mxu0 %v1111
  %v1150 = vpop.f32.mrb[0].mxu0
  %v1151 = vadd.f32 0.0, %v1150
  %v1152 = vpop.f32.mrb[0].mxu0
  %v1153 = vpop.f32.mrb[0].mxu0
  %v1154 = vpop.f32.mrb[0].mxu0
  %1155 = vdwg.mxu0
  %v1156 = vsel %vm1109, 1, 0
  %v1157 = vlaneseq
  %v1158 = vshrl.u32 %v1157, 7
  %v1159 = vsub.s32 0, %v1158
  %v1160 = vrot.slane %v1156, %v1159
  %vm1161 = vcmp.eq.s32.totalorder %v1160, 1
  %v1162 = vsel %vm1161, %v1151, -1e+30
  %v1163 = vsel %vm212, %v1162, -inf
  %1164 = vmax.xlane.f32.xlu0 %v1163
  %v1165 = vpop.xlane.xlu0 %1164
  %v1166 = vsub.f32 %v1162, %v1165
  %v1167 = vmul.f32 %v1166, 1.442695
  %v1168 = vpow.pop %v1167
  %v1169 = vsel %vm212, %v1168, 0.0
  %1170 = vadd.xlane.f32.xlu0 %v1169
  %v1171 = vpop.xlane.xlu0 %1170
  %v1172 = vrcp.pop %v1171
  %v1173 = vmul.f32 %v1168, %v1172
  %v1174 = vpack.c.bf16 %v1173, %v1173
  %1176 = vrot.lane.b32.xlu0 %v1102, 96
  %v1177 = vpop.permute.xlu0 %1176
  %v1180 = vsel %vm212, %v1174, 0
  %1182 = vmatprep.subr.bf16.mxu0 0
  %1183 = vmatpush1.bf16.msra.mxu0 %v1177
  %1184 = vmatprep.subr.bf16.mxu0 0
  %1185 = vmatpush1.bf16.msra.mxu0 0
  %1186 = vmatprep.subr.bf16.mxu0 0
  %1187 = vmatpush1.bf16.msra.mxu0 0
  %1188 = vmatprep.subr.bf16.mxu0 0
  %1189 = vmatpush1.bf16.msra.mxu0 0
  %1190 = vmatprep.subr.bf16.mxu0 0
  %1191 = vmatpush1.bf16.msra.mxu0 0
  %1192 = vmatprep.subr.bf16.mxu0 0
  %1193 = vmatpush1.bf16.msra.mxu0 0
  %1194 = vmatprep.subr.bf16.mxu0 0
  %1195 = vmatpush1.bf16.msra.mxu0 0
  %1196 = vmatprep.subr.bf16.mxu0 0
  %1197 = vmatpush1.bf16.msra.mxu0 0
  %1198 = vmatprep.subr.bf16.mxu0 0
  %1199 = vmatpush1.bf16.msra.mxu0 0
  %1200 = vmatprep.subr.bf16.mxu0 0
  %1201 = vmatpush1.bf16.msra.mxu0 0
  %1202 = vmatprep.subr.bf16.mxu0 0
  %1203 = vmatpush1.bf16.msra.mxu0 0
  %1204 = vmatprep.subr.bf16.mxu0 0
  %1205 = vmatpush1.bf16.msra.mxu0 0
  %1206 = vmatprep.subr.bf16.mxu0 0
  %1207 = vmatpush1.bf16.msra.mxu0 0
  %1208 = vmatprep.subr.bf16.mxu0 0
  %1209 = vmatpush1.bf16.msra.mxu0 0
  %1210 = vmatprep.subr.bf16.mxu0 0
  %1211 = vmatpush1.bf16.msra.mxu0 0
  %1212 = vmatprep.subr.bf16.mxu0 0
  %1213 = vmatpush1.bf16.msra.mxu0 0
  %1214 = vmatprep.mubr.bf16.mxu0 0
  %1215 = vmatmul.mubr.bf16.gmra.mrb[0].mxu0 %v1180
  %v1216 = vpop.f32.mrb[0].mxu0
  %v1217 = vadd.f32 0.0, %v1216
  %v1218 = vpop.f32.mrb[0].mxu0
  %v1219 = vpop.f32.mrb[0].mxu0
  %v1220 = vpop.f32.mrb[0].mxu0
  %1221 = vdwg.mxu0
  %v1222 = vpack.c.bf16 %v1217, %v1217
  %v1227 = vunpack.c.l.b16 %v1104
  %v1228 = vunpack.c.l.b16 %v1105
  %v1229 = vunpack.c.l.b16 %v1106
  %v1230 = vunpack.c.l.b16 %v1107
  %v1231 = vpack.c.b16 %v1228, %v1227
  %v1232 = vpack.c.b16 %v1230, %v1229
  %v1234 = vsel %vm212, %v1222, 0
  %v1237 = vsel %vm212, %v1231, 0
  %v1240 = vsel %vm212, %v1232, 0
  %1242 = vmatprep.subr.bf16.mxu0 0
  %1243 = vmatpush1.bf16.xpose.msra.mxu0 %v1237
  %1244 = vmatprep.subr.bf16.mxu0 0
  %1245 = vmatpush1.bf16.xpose.msra.mxu0 %v1240
  %1246 = vmatprep.subr.bf16.mxu0 0
  %1247 = vmatpush1.bf16.xpose.msra.mxu0 0
  %1248 = vmatprep.subr.bf16.mxu0 0
  %1249 = vmatpush1.bf16.xpose.msra.mxu0 0
  %1250 = vmatprep.subr.bf16.mxu0 0
  %1251 = vmatpush1.bf16.xpose.msra.mxu0 0
  %1252 = vmatprep.subr.bf16.mxu0 0
  %1253 = vmatpush1.bf16.xpose.msra.mxu0 0
  %1254 = vmatprep.subr.bf16.mxu0 0
  %1255 = vmatpush1.bf16.xpose.msra.mxu0 0
  %1256 = vmatprep.subr.bf16.mxu0 0
  %1257 = vmatpush1.bf16.xpose.msra.mxu0 0
  %1258 = vmatprep.subr.bf16.mxu0 0
  %1259 = vmatpush1.bf16.xpose.msra.mxu0 0
  %1260 = vmatprep.subr.bf16.mxu0 0
  %1261 = vmatpush1.bf16.xpose.msra.mxu0 0
  %1262 = vmatprep.subr.bf16.mxu0 0
  %1263 = vmatpush1.bf16.xpose.msra.mxu0 0
  %1264 = vmatprep.subr.bf16.mxu0 0
  %1265 = vmatpush1.bf16.xpose.msra.mxu0 0
  %1266 = vmatprep.subr.bf16.mxu0 0
  %1267 = vmatpush1.bf16.xpose.msra.mxu0 0
  %1268 = vmatprep.subr.bf16.mxu0 0
  %1269 = vmatpush1.bf16.xpose.msra.mxu0 0
  %1270 = vmatprep.subr.bf16.mxu0 0
  %1271 = vmatpush1.bf16.xpose.msra.mxu0 0
  %1272 = vmatprep.subr.bf16.mxu0 0
  %1273 = vmatpush1.bf16.xpose.msra.mxu0 0
  %1274 = vmatprep.mubr.bf16.mxu0 0
  %1275 = vmatmul.mubr.bf16.gmra.mrb[0].mxu0 %v1234
  %v1276 = vpop.f32.mrb[0].mxu0
  %v1277 = vadd.f32 0.0, %v1276
  %v1278 = vpop.f32.mrb[0].mxu0
  %v1279 = vpop.f32.mrb[0].mxu0
  %v1280 = vpop.f32.mrb[0].mxu0
  %1281 = vdwg.mxu0
  %v1283 = vlaneseq
  %v1284 = vshrl.u32 %v1283, 7
  %v1285 = vsub.s32 0, %v1284
  %v1286 = vrot.slane %v1108, %v1285
  %v1288 = vadd.f32 %v1286, %v1277
  %1290 = vrot.lane.b32.xlu0 %v1001, 112
  %v1291 = vpop.permute.xlu0 %1290
  %1292 = vrot.lane.b32.xlu0 %v1102, 112
  %v1293 = vpop.permute.xlu0 %1292
  %v1295 = vsel %vm212, %v1291, 0
  %v1298 = vsel %vm212, %v1293, 0
  %1300 = vmatprep.subr.bf16.mxu0 0
  %1301 = vmatpush1.bf16.xpose.msra.mxu0 %v1298
  %1302 = vmatprep.subr.bf16.mxu0 0
  %1303 = vmatpush1.bf16.xpose.msra.mxu0 0
  %1304 = vmatprep.subr.bf16.mxu0 0
  %1305 = vmatpush1.bf16.xpose.msra.mxu0 0
  %1306 = vmatprep.subr.bf16.mxu0 0
  %1307 = vmatpush1.bf16.xpose.msra.mxu0 0
  %1308 = vmatprep.subr.bf16.mxu0 0
  %1309 = vmatpush1.bf16.xpose.msra.mxu0 0
  %1310 = vmatprep.subr.bf16.mxu0 0
  %1311 = vmatpush1.bf16.xpose.msra.mxu0 0
  %1312 = vmatprep.subr.bf16.mxu0 0
  %1313 = vmatpush1.bf16.xpose.msra.mxu0 0
  %1314 = vmatprep.subr.bf16.mxu0 0
  %1315 = vmatpush1.bf16.xpose.msra.mxu0 0
  %1316 = vmatprep.subr.bf16.mxu0 0
  %1317 = vmatpush1.bf16.xpose.msra.mxu0 0
  %1318 = vmatprep.subr.bf16.mxu0 0
  %1319 = vmatpush1.bf16.xpose.msra.mxu0 0
  %1320 = vmatprep.subr.bf16.mxu0 0
  %1321 = vmatpush1.bf16.xpose.msra.mxu0 0
  %1322 = vmatprep.subr.bf16.mxu0 0
  %1323 = vmatpush1.bf16.xpose.msra.mxu0 0
  %1324 = vmatprep.subr.bf16.mxu0 0
  %1325 = vmatpush1.bf16.xpose.msra.mxu0 0
  %1326 = vmatprep.subr.bf16.mxu0 0
  %1327 = vmatpush1.bf16.xpose.msra.mxu0 0
  %1328 = vmatprep.subr.bf16.mxu0 0
  %1329 = vmatpush1.bf16.xpose.msra.mxu0 0
  %1330 = vmatprep.subr.bf16.mxu0 0
  %1331 = vmatpush1.bf16.xpose.msra.mxu0 0
  %1332 = vmatprep.mubr.bf16.mxu0 0
  %1333 = vmatmul.mubr.bf16.gmra.mrb[0].mxu0 %v1295
  %v1334 = vpop.f32.mrb[0].mxu0
  %v1335 = vadd.f32 0.0, %v1334
  %v1336 = vpop.f32.mrb[0].mxu0
  %v1337 = vpop.f32.mrb[0].mxu0
  %v1338 = vpop.f32.mrb[0].mxu0
  %1339 = vdwg.mxu0
  %v1340 = vsel %vm1161, %v1335, -1e+30
  %v1341 = vsel %vm212, %v1340, -inf
  %1342 = vmax.xlane.f32.xlu0 %v1341
  %v1343 = vpop.xlane.xlu0 %1342
  %v1344 = vsub.f32 %v1340, %v1343
  %v1345 = vmul.f32 %v1344, 1.442695
  %v1346 = vpow.pop %v1345
  %v1347 = vsel %vm212, %v1346, 0.0
  %1348 = vadd.xlane.f32.xlu0 %v1347
  %v1349 = vpop.xlane.xlu0 %1348
  %v1350 = vrcp.pop %v1349
  %v1351 = vmul.f32 %v1346, %v1350
  %v1352 = vpack.c.bf16 %v1351, %v1351
  %1353 = vrot.lane.b32.xlu0 %v1102, 80
  %v1354 = vpop.permute.xlu0 %1353
  %v1357 = vsel %vm212, %v1352, 0
  %1359 = vmatprep.subr.bf16.mxu0 0
  %1360 = vmatpush1.bf16.msra.mxu0 %v1354
  %1361 = vmatprep.subr.bf16.mxu0 0
  %1362 = vmatpush1.bf16.msra.mxu0 0
  %1363 = vmatprep.subr.bf16.mxu0 0
  %1364 = vmatpush1.bf16.msra.mxu0 0
  %1365 = vmatprep.subr.bf16.mxu0 0
  %1366 = vmatpush1.bf16.msra.mxu0 0
  %1367 = vmatprep.subr.bf16.mxu0 0
  %1368 = vmatpush1.bf16.msra.mxu0 0
  %1369 = vmatprep.subr.bf16.mxu0 0
  %1370 = vmatpush1.bf16.msra.mxu0 0
  %1371 = vmatprep.subr.bf16.mxu0 0
  %1372 = vmatpush1.bf16.msra.mxu0 0
  %1373 = vmatprep.subr.bf16.mxu0 0
  %1374 = vmatpush1.bf16.msra.mxu0 0
  %1375 = vmatprep.subr.bf16.mxu0 0
  %1376 = vmatpush1.bf16.msra.mxu0 0
  %1377 = vmatprep.subr.bf16.mxu0 0
  %1378 = vmatpush1.bf16.msra.mxu0 0
  %1379 = vmatprep.subr.bf16.mxu0 0
  %1380 = vmatpush1.bf16.msra.mxu0 0
  %1381 = vmatprep.subr.bf16.mxu0 0
  %1382 = vmatpush1.bf16.msra.mxu0 0
  %1383 = vmatprep.subr.bf16.mxu0 0
  %1384 = vmatpush1.bf16.msra.mxu0 0
  %1385 = vmatprep.subr.bf16.mxu0 0
  %1386 = vmatpush1.bf16.msra.mxu0 0
  %1387 = vmatprep.subr.bf16.mxu0 0
  %1388 = vmatpush1.bf16.msra.mxu0 0
  %1389 = vmatprep.subr.bf16.mxu0 0
  %1390 = vmatpush1.bf16.msra.mxu0 0
  %1391 = vmatprep.mubr.bf16.mxu0 0
  %1392 = vmatmul.mubr.bf16.gmra.mrb[0].mxu0 %v1357
  %v1393 = vpop.f32.mrb[0].mxu0
  %v1394 = vadd.f32 0.0, %v1393
  %v1395 = vpop.f32.mrb[0].mxu0
  %v1396 = vpop.f32.mrb[0].mxu0
  %v1397 = vpop.f32.mrb[0].mxu0
  %1398 = vdwg.mxu0
  %v1399 = vpack.c.bf16 %v1394, %v1394
  %1400 = vrot.lane.b32.xlu0 %v1231, 112
  %v1401 = vpop.permute.xlu0 %1400
  %1402 = vrot.lane.b32.xlu0 %v1232, 112
  %v1403 = vpop.permute.xlu0 %1402
  %v1405 = vsel %vm212, %v1399, 0
  %v1408 = vsel %vm212, %v1401, 0
  %v1411 = vsel %vm212, %v1403, 0
  %1413 = vmatprep.subr.bf16.mxu0 0
  %1414 = vmatpush1.bf16.xpose.msra.mxu0 %v1408
  %1415 = vmatprep.subr.bf16.mxu0 0
  %1416 = vmatpush1.bf16.xpose.msra.mxu0 %v1411
  %1417 = vmatprep.subr.bf16.mxu0 0
  %1418 = vmatpush1.bf16.xpose.msra.mxu0 0
  %1419 = vmatprep.subr.bf16.mxu0 0
  %1420 = vmatpush1.bf16.xpose.msra.mxu0 0
  %1421 = vmatprep.subr.bf16.mxu0 0
  %1422 = vmatpush1.bf16.xpose.msra.mxu0 0
  %1423 = vmatprep.subr.bf16.mxu0 0
  %1424 = vmatpush1.bf16.xpose.msra.mxu0 0
  %1425 = vmatprep.subr.bf16.mxu0 0
  %1426 = vmatpush1.bf16.xpose.msra.mxu0 0
  %1427 = vmatprep.subr.bf16.mxu0 0
  %1428 = vmatpush1.bf16.xpose.msra.mxu0 0
  %1429 = vmatprep.subr.bf16.mxu0 0
  %1430 = vmatpush1.bf16.xpose.msra.mxu0 0
  %1431 = vmatprep.subr.bf16.mxu0 0
  %1432 = vmatpush1.bf16.xpose.msra.mxu0 0
  %1433 = vmatprep.subr.bf16.mxu0 0
  %1434 = vmatpush1.bf16.xpose.msra.mxu0 0
  %1435 = vmatprep.subr.bf16.mxu0 0
  %1436 = vmatpush1.bf16.xpose.msra.mxu0 0
  %1437 = vmatprep.subr.bf16.mxu0 0
  %1438 = vmatpush1.bf16.xpose.msra.mxu0 0
  %1439 = vmatprep.subr.bf16.mxu0 0
  %1440 = vmatpush1.bf16.xpose.msra.mxu0 0
  %1441 = vmatprep.subr.bf16.mxu0 0
  %1442 = vmatpush1.bf16.xpose.msra.mxu0 0
  %1443 = vmatprep.subr.bf16.mxu0 0
  %1444 = vmatpush1.bf16.xpose.msra.mxu0 0
  %1445 = vmatprep.mubr.bf16.mxu0 0
  %1446 = vmatmul.mubr.bf16.gmra.mrb[0].mxu0 %v1405
  %v1447 = vpop.f32.mrb[0].mxu0
  %v1448 = vadd.f32 0.0, %v1447
  %v1449 = vpop.f32.mrb[0].mxu0
  %v1450 = vpop.f32.mrb[0].mxu0
  %v1451 = vpop.f32.mrb[0].mxu0
  %1452 = vdwg.mxu0
  %v1453 = vadd.f32 %v1288, %v1448
  %1454 = vst.msk [vmem:[#allocation2] sm:$0xff] %vm137, %v1453
  %v1455 = vrot.slane %v1001, 4
  %v1457 = vsel %vm212, %v1455, 0
  %v1460 = vsel %vm212, %v1103, 0
  %1462 = vmatprep.subr.bf16.mxu0 0
  %1463 = vmatpush1.bf16.xpose.msra.mxu0 %v1460
  %1464 = vmatprep.subr.bf16.mxu0 0
  %1465 = vmatpush1.bf16.xpose.msra.mxu0 0
  %1466 = vmatprep.subr.bf16.mxu0 0
  %1467 = vmatpush1.bf16.xpose.msra.mxu0 0
  %1468 = vmatprep.subr.bf16.mxu0 0
  %1469 = vmatpush1.bf16.xpose.msra.mxu0 0
  %1470 = vmatprep.subr.bf16.mxu0 0
  %1471 = vmatpush1.bf16.xpose.msra.mxu0 0
  %1472 = vmatprep.subr.bf16.mxu0 0
  %1473 = vmatpush1.bf16.xpose.msra.mxu0 0
  %1474 = vmatprep.subr.bf16.mxu0 0
  %1475 = vmatpush1.bf16.xpose.msra.mxu0 0
  %1476 = vmatprep.subr.bf16.mxu0 0
  %1477 = vmatpush1.bf16.xpose.msra.mxu0 0
  %1478 = vmatprep.subr.bf16.mxu0 0
  %1479 = vmatpush1.bf16.xpose.msra.mxu0 0
  %1480 = vmatprep.subr.bf16.mxu0 0
  %1481 = vmatpush1.bf16.xpose.msra.mxu0 0
  %1482 = vmatprep.subr.bf16.mxu0 0
  %1483 = vmatpush1.bf16.xpose.msra.mxu0 0
  %1484 = vmatprep.subr.bf16.mxu0 0
  %1485 = vmatpush1.bf16.xpose.msra.mxu0 0
  %1486 = vmatprep.subr.bf16.mxu0 0
  %1487 = vmatpush1.bf16.xpose.msra.mxu0 0
  %1488 = vmatprep.subr.bf16.mxu0 0
  %1489 = vmatpush1.bf16.xpose.msra.mxu0 0
  %1490 = vmatprep.subr.bf16.mxu0 0
  %1491 = vmatpush1.bf16.xpose.msra.mxu0 0
  %1492 = vmatprep.subr.bf16.mxu0 0
  %1493 = vmatpush1.bf16.xpose.msra.mxu0 0
  %1494 = vmatprep.mubr.bf16.mxu0 0
  %1495 = vmatmul.mubr.bf16.gmra.mrb[0].mxu0 %v1457
  %v1496 = vpop.f32.mrb[0].mxu0
  %v1497 = vadd.f32 0.0, %v1496
  %v1498 = vpop.f32.mrb[0].mxu0
  %v1499 = vpop.f32.mrb[0].mxu0
  %v1500 = vpop.f32.mrb[0].mxu0
  %1501 = vdwg.mxu0
  %v1502 = vlaneseq
  %v1503 = vshrl.u32 %v1502, 7
  %v1504 = vsub.s32 1, %v1503
  %v1505 = vrot.slane %v1156, %v1504
  %vm1506 = vcmp.eq.s32.totalorder %v1505, 1
  %v1507 = vsel %vm1506, %v1497, -1e+30
  %v1508 = vsel %vm212, %v1507, -inf
  %1509 = vmax.xlane.f32.xlu0 %v1508
  %v1510 = vpop.xlane.xlu0 %1509
  %v1511 = vsub.f32 %v1507, %v1510
  %v1512 = vmul.f32 %v1511, 1.442695
  %v1513 = vpow.pop %v1512
  %v1514 = vsel %vm212, %v1513, 0.0
  %1515 = vadd.xlane.f32.xlu0 %v1514
  %v1516 = vpop.xlane.xlu0 %1515
  %v1517 = vrcp.pop %v1516
  %v1518 = vmul.f32 %v1513, %v1517
  %v1519 = vpack.c.bf16 %v1518, %v1518
  %1521 = vrot.lane.b32.xlu0 %v1103, 96
  %v1522 = vpop.permute.xlu0 %1521
  %v1525 = vsel %vm212, %v1519, 0
  %1527 = vmatprep.subr.bf16.mxu0 0
  %1528 = vmatpush1.bf16.msra.mxu0 %v1522
  %1529 = vmatprep.subr.bf16.mxu0 0
  %1530 = vmatpush1.bf16.msra.mxu0 0
  %1531 = vmatprep.subr.bf16.mxu0 0
  %1532 = vmatpush1.bf16.msra.mxu0 0
  %1533 = vmatprep.subr.bf16.mxu0 0
  %1534 = vmatpush1.bf16.msra.mxu0 0
  %1535 = vmatprep.subr.bf16.mxu0 0
  %1536 = vmatpush1.bf16.msra.mxu0 0
  %1537 = vmatprep.subr.bf16.mxu0 0
  %1538 = vmatpush1.bf16.msra.mxu0 0
  %1539 = vmatprep.subr.bf16.mxu0 0
  %1540 = vmatpush1.bf16.msra.mxu0 0
  %1541 = vmatprep.subr.bf16.mxu0 0
  %1542 = vmatpush1.bf16.msra.mxu0 0
  %1543 = vmatprep.subr.bf16.mxu0 0
  %1544 = vmatpush1.bf16.msra.mxu0 0
  %1545 = vmatprep.subr.bf16.mxu0 0
  %1546 = vmatpush1.bf16.msra.mxu0 0
  %1547 = vmatprep.subr.bf16.mxu0 0
  %1548 = vmatpush1.bf16.msra.mxu0 0
  %1549 = vmatprep.subr.bf16.mxu0 0
  %1550 = vmatpush1.bf16.msra.mxu0 0
  %1551 = vmatprep.subr.bf16.mxu0 0
  %1552 = vmatpush1.bf16.msra.mxu0 0
  %1553 = vmatprep.subr.bf16.mxu0 0
  %1554 = vmatpush1.bf16.msra.mxu0 0
  %1555 = vmatprep.subr.bf16.mxu0 0
  %1556 = vmatpush1.bf16.msra.mxu0 0
  %1557 = vmatprep.subr.bf16.mxu0 0
  %1558 = vmatpush1.bf16.msra.mxu0 0
  %1559 = vmatprep.mubr.bf16.mxu0 0
  %1560 = vmatmul.mubr.bf16.gmra.mrb[0].mxu0 %v1525
  %v1561 = vpop.f32.mrb[0].mxu0
  %v1562 = vadd.f32 0.0, %v1561
  %v1563 = vpop.f32.mrb[0].mxu0
  %v1564 = vpop.f32.mrb[0].mxu0
  %v1565 = vpop.f32.mrb[0].mxu0
  %1566 = vdwg.mxu0
  %v1567 = vpack.c.bf16 %v1562, %v1562
  %v1569 = vsel %vm212, %v1567, 0
  %1571 = vmatprep.subr.bf16.mxu0 0
  %1572 = vmatpush1.bf16.xpose.msra.mxu0 %v1237
  %1573 = vmatprep.subr.bf16.mxu0 0
  %1574 = vmatpush1.bf16.xpose.msra.mxu0 %v1240
  %1575 = vmatprep.subr.bf16.mxu0 0
  %1576 = vmatpush1.bf16.xpose.msra.mxu0 0
  %1577 = vmatprep.subr.bf16.mxu0 0
  %1578 = vmatpush1.bf16.xpose.msra.mxu0 0
  %1579 = vmatprep.subr.bf16.mxu0 0
  %1580 = vmatpush1.bf16.xpose.msra.mxu0 0
  %1581 = vmatprep.subr.bf16.mxu0 0
  %1582 = vmatpush1.bf16.xpose.msra.mxu0 0
  %1583 = vmatprep.subr.bf16.mxu0 0
  %1584 = vmatpush1.bf16.xpose.msra.mxu0 0
  %1585 = vmatprep.subr.bf16.mxu0 0
  %1586 = vmatpush1.bf16.xpose.msra.mxu0 0
  %1587 = vmatprep.subr.bf16.mxu0 0
  %1588 = vmatpush1.bf16.xpose.msra.mxu0 0
  %1589 = vmatprep.subr.bf16.mxu0 0
  %1590 = vmatpush1.bf16.xpose.msra.mxu0 0
  %1591 = vmatprep.subr.bf16.mxu0 0
  %1592 = vmatpush1.bf16.xpose.msra.mxu0 0
  %1593 = vmatprep.subr.bf16.mxu0 0
  %1594 = vmatpush1.bf16.xpose.msra.mxu0 0
  %1595 = vmatprep.subr.bf16.mxu0 0
  %1596 = vmatpush1.bf16.xpose.msra.mxu0 0
  %1597 = vmatprep.subr.bf16.mxu0 0
  %1598 = vmatpush1.bf16.xpose.msra.mxu0 0
  %1599 = vmatprep.subr.bf16.mxu0 0
  %1600 = vmatpush1.bf16.xpose.msra.mxu0 0
  %1601 = vmatprep.subr.bf16.mxu0 0
  %1602 = vmatpush1.bf16.xpose.msra.mxu0 0
  %1603 = vmatprep.mubr.bf16.mxu0 0
  %1604 = vmatmul.mubr.bf16.gmra.mrb[0].mxu0 %v1569
  %v1605 = vpop.f32.mrb[0].mxu0
  %v1606 = vadd.f32 0.0, %v1605
  %v1607 = vpop.f32.mrb[0].mxu0
  %v1608 = vpop.f32.mrb[0].mxu0
  %v1609 = vpop.f32.mrb[0].mxu0
  %1610 = vdwg.mxu0
  %v1611 = vadd.f32 %v1286, %v1606
  %1612 = vrot.lane.b32.xlu0 %v1455, 112
  %v1613 = vpop.permute.xlu0 %1612
  %1614 = vrot.lane.b32.xlu0 %v1103, 112
  %v1615 = vpop.permute.xlu0 %1614
  %v1617 = vsel %vm212, %v1613, 0
  %v1620 = vsel %vm212, %v1615, 0
  %1622 = vmatprep.subr.bf16.mxu0 0
  %1623 = vmatpush1.bf16.xpose.msra.mxu0 %v1620
  %1624 = vmatprep.subr.bf16.mxu0 0
  %1625 = vmatpush1.bf16.xpose.msra.mxu0 0
  %1626 = vmatprep.subr.bf16.mxu0 0
  %1627 = vmatpush1.bf16.xpose.msra.mxu0 0
  %1628 = vmatprep.subr.bf16.mxu0 0
  %1629 = vmatpush1.bf16.xpose.msra.mxu0 0
  %1630 = vmatprep.subr.bf16.mxu0 0
  %1631 = vmatpush1.bf16.xpose.msra.mxu0 0
  %1632 = vmatprep.subr.bf16.mxu0 0
  %1633 = vmatpush1.bf16.xpose.msra.mxu0 0
  %1634 = vmatprep.subr.bf16.mxu0 0
  %1635 = vmatpush1.bf16.xpose.msra.mxu0 0
  %1636 = vmatprep.subr.bf16.mxu0 0
  %1637 = vmatpush1.bf16.xpose.msra.mxu0 0
  %1638 = vmatprep.subr.bf16.mxu0 0
  %1639 = vmatpush1.bf16.xpose.msra.mxu0 0
  %1640 = vmatprep.subr.bf16.mxu0 0
  %1641 = vmatpush1.bf16.xpose.msra.mxu0 0
  %1642 = vmatprep.subr.bf16.mxu0 0
  %1643 = vmatpush1.bf16.xpose.msra.mxu0 0
  %1644 = vmatprep.subr.bf16.mxu0 0
  %1645 = vmatpush1.bf16.xpose.msra.mxu0 0
  %1646 = vmatprep.subr.bf16.mxu0 0
  %1647 = vmatpush1.bf16.xpose.msra.mxu0 0
  %1648 = vmatprep.subr.bf16.mxu0 0
  %1649 = vmatpush1.bf16.xpose.msra.mxu0 0
  %1650 = vmatprep.subr.bf16.mxu0 0
  %1651 = vmatpush1.bf16.xpose.msra.mxu0 0
  %1652 = vmatprep.subr.bf16.mxu0 0
  %1653 = vmatpush1.bf16.xpose.msra.mxu0 0
  %1654 = vmatprep.mubr.bf16.mxu0 0
  %1655 = vmatmul.mubr.bf16.gmra.mrb[0].mxu0 %v1617
  %v1656 = vpop.f32.mrb[0].mxu0
  %v1657 = vadd.f32 0.0, %v1656
  %v1658 = vpop.f32.mrb[0].mxu0
  %v1659 = vpop.f32.mrb[0].mxu0
  %v1660 = vpop.f32.mrb[0].mxu0
  %1661 = vdwg.mxu0
  %v1662 = vsel %vm1506, %v1657, -1e+30
  %v1663 = vsel %vm212, %v1662, -inf
  %1664 = vmax.xlane.f32.xlu0 %v1663
  %v1665 = vpop.xlane.xlu0 %1664
  %v1666 = vsub.f32 %v1662, %v1665
  %v1667 = vmul.f32 %v1666, 1.442695
  %v1668 = vpow.pop %v1667
  %v1669 = vsel %vm212, %v1668, 0.0
  %1670 = vadd.xlane.f32.xlu0 %v1669
  %v1671 = vpop.xlane.xlu0 %1670
  %v1672 = vrcp.pop %v1671
  %v1673 = vmul.f32 %v1668, %v1672
  %v1674 = vpack.c.bf16 %v1673, %v1673
  %1675 = vrot.lane.b32.xlu0 %v1103, 80
  %v1676 = vpop.permute.xlu0 %1675
  %v1679 = vsel %vm212, %v1674, 0
  %1681 = vmatprep.subr.bf16.mxu0 0
  %1682 = vmatpush1.bf16.msra.mxu0 %v1676
  %1683 = vmatprep.subr.bf16.mxu0 0
  %1684 = vmatpush1.bf16.msra.mxu0 0
  %1685 = vmatprep.subr.bf16.mxu0 0
  %1686 = vmatpush1.bf16.msra.mxu0 0
  %1687 = vmatprep.subr.bf16.mxu0 0
  %1688 = vmatpush1.bf16.msra.mxu0 0
  %1689 = vmatprep.subr.bf16.mxu0 0
  %1690 = vmatpush1.bf16.msra.mxu0 0
  %1691 = vmatprep.subr.bf16.mxu0 0
  %1692 = vmatpush1.bf16.msra.mxu0 0
  %1693 = vmatprep.subr.bf16.mxu0 0
  %1694 = vmatpush1.bf16.msra.mxu0 0
  %1695 = vmatprep.subr.bf16.mxu0 0
  %1696 = vmatpush1.bf16.msra.mxu0 0
  %1697 = vmatprep.subr.bf16.mxu0 0
  %1698 = vmatpush1.bf16.msra.mxu0 0
  %1699 = vmatprep.subr.bf16.mxu0 0
  %1700 = vmatpush1.bf16.msra.mxu0 0
  %1701 = vmatprep.subr.bf16.mxu0 0
  %1702 = vmatpush1.bf16.msra.mxu0 0
  %1703 = vmatprep.subr.bf16.mxu0 0
  %1704 = vmatpush1.bf16.msra.mxu0 0
  %1705 = vmatprep.subr.bf16.mxu0 0
  %1706 = vmatpush1.bf16.msra.mxu0 0
  %1707 = vmatprep.subr.bf16.mxu0 0
  %1708 = vmatpush1.bf16.msra.mxu0 0
  %1709 = vmatprep.subr.bf16.mxu0 0
  %1710 = vmatpush1.bf16.msra.mxu0 0
  %1711 = vmatprep.subr.bf16.mxu0 0
  %1712 = vmatpush1.bf16.msra.mxu0 0
  %1713 = vmatprep.mubr.bf16.mxu0 0
  %1714 = vmatmul.mubr.bf16.gmra.mrb[0].mxu0 %v1679
  %v1715 = vpop.f32.mrb[0].mxu0
  %v1716 = vadd.f32 0.0, %v1715
  %v1717 = vpop.f32.mrb[0].mxu0
  %v1718 = vpop.f32.mrb[0].mxu0
  %v1719 = vpop.f32.mrb[0].mxu0
  %1720 = vdwg.mxu0
  %v1721 = vpack.c.bf16 %v1716, %v1716
  %v1723 = vsel %vm212, %v1721, 0
  %1725 = vmatprep.subr.bf16.mxu0 0
  %1726 = vmatpush1.bf16.xpose.msra.mxu0 %v1408
  %1727 = vmatprep.subr.bf16.mxu0 0
  %1728 = vmatpush1.bf16.xpose.msra.mxu0 %v1411
  %1729 = vmatprep.subr.bf16.mxu0 0
  %1730 = vmatpush1.bf16.xpose.msra.mxu0 0
  %1731 = vmatprep.subr.bf16.mxu0 0
  %1732 = vmatpush1.bf16.xpose.msra.mxu0 0
  %1733 = vmatprep.subr.bf16.mxu0 0
  %1734 = vmatpush1.bf16.xpose.msra.mxu0 0
  %1735 = vmatprep.subr.bf16.mxu0 0
  %1736 = vmatpush1.bf16.xpose.msra.mxu0 0
  %1737 = vmatprep.subr.bf16.mxu0 0
  %1738 = vmatpush1.bf16.xpose.msra.mxu0 0
  %1739 = vmatprep.subr.bf16.mxu0 0
  %1740 = vmatpush1.bf16.xpose.msra.mxu0 0
  %1741 = vmatprep.subr.bf16.mxu0 0
  %1742 = vmatpush1.bf16.xpose.msra.mxu0 0
  %1743 = vmatprep.subr.bf16.mxu0 0
  %1744 = vmatpush1.bf16.xpose.msra.mxu0 0
  %1745 = vmatprep.subr.bf16.mxu0 0
  %1746 = vmatpush1.bf16.xpose.msra.mxu0 0
  %1747 = vmatprep.subr.bf16.mxu0 0
  %1748 = vmatpush1.bf16.xpose.msra.mxu0 0
  %1749 = vmatprep.subr.bf16.mxu0 0
  %1750 = vmatpush1.bf16.xpose.msra.mxu0 0
  %1751 = vmatprep.subr.bf16.mxu0 0
  %1752 = vmatpush1.bf16.xpose.msra.mxu0 0
  %1753 = vmatprep.subr.bf16.mxu0 0
  %1754 = vmatpush1.bf16.xpose.msra.mxu0 0
  %1755 = vmatprep.subr.bf16.mxu0 0
  %1756 = vmatpush1.bf16.xpose.msra.mxu0 0
  %1757 = vmatprep.mubr.bf16.mxu0 0
  %1758 = vmatmul.mubr.bf16.gmra.mrb[0].mxu0 %v1723
  %v1759 = vpop.f32.mrb[0].mxu0
  %v1760 = vadd.f32 0.0, %v1759
  %v1761 = vpop.f32.mrb[0].mxu0
  %v1762 = vpop.f32.mrb[0].mxu0
  %v1763 = vpop.f32.mrb[0].mxu0
  %1764 = vdwg.mxu0
  %v1765 = vadd.f32 %v1611, %v1760
  %1766 = vst.msk [vmem:[#allocation2 + $0x8] sm:$0xff] %vm137, %v1765
  %v1767 = vld [vmem:[#allocation2] sm:$0xff]
  %v1768 = vld [vmem:[#allocation2 + $0x8] sm:$0xff]
  %v1769 = vadd.f32 %v917, %v1767
  %v1770 = vadd.f32 %v918, %v1768
  %v1771 = vld [vmem:[%s13] sm:$0x1]
  %v1772 = vld [vmem:[%s14] sm:$0x1]
  %v1773 = vsel %vm137, %v1769, 0.0
  %1774 = vadd.xlane.f32.xlu0 %v1773
  %v1775 = vpop.xlane.xlu0 %1774
  %v1776 = vsel %vm137, %v1770, 0.0
  %1777 = vadd.xlane.f32.xlu0 %v1776
  %v1778 = vpop.xlane.xlu0 %1777
  %v1779 = vmul.f32 %v1775, %v882
  %v1780 = vmul.f32 %v1778, %v882
  %v1781 = vsub.f32 %v1769, %v1779
  %v1782 = vsub.f32 %v1770, %v1780
  %v1783 = vmul.f32 %v1781, %v1781
  %v1784 = vmul.f32 %v1782, %v1782
  %v1785 = vsel %vm137, %v1783, 0.0
  %1786 = vadd.xlane.f32.xlu0 %v1785
  %v1787 = vpop.xlane.xlu0 %1786
  %v1788 = vsel %vm137, %v1784, 0.0
  %1789 = vadd.xlane.f32.xlu0 %v1788
  %v1790 = vpop.xlane.xlu0 %1789
  %v1791 = vmul.f32 %v1787, %v882
  %v1792 = vmul.f32 %v1790, %v882
  %v1793 = vadd.f32 %v1791, 1e-05
  %v1794 = vadd.f32 %v1792, 1e-05
  %v1795 = vrsqrt.pop %v1793
  %v1796 = vrsqrt.pop %v1794
  %v1797 = vmul.f32 %v1781, %v1795
  %v1798 = vmul.f32 %v1782, %v1796
  %v1800 = vlaneseq
  %v1801 = vshrl.u32 %v1800, 7
  %v1802 = vsub.s32 0, %v1801
  %v1803 = vrot.slane %v1771, %v1802
  %v1805 = vmul.f32 %v1797, %v1803
  %v1806 = vmul.f32 %v1798, %v1803
  %v1808 = vlaneseq
  %v1809 = vshrl.u32 %v1808, 7
  %v1810 = vsub.s32 0, %v1809
  %v1811 = vrot.slane %v1772, %v1810
  %v1813 = vadd.f32 %v1805, %v1811
  %v1814 = vadd.f32 %v1806, %v1811
  %v1815 = vpack.c.bf16 %v1814, %v1813
  %v1816 = vld [vmem:[%s15] sm:$0xf]
  %v1817 = vld [vmem:[%s15 + $0x4] sm:$0xf]
  %v1818 = vld [vmem:[%s15 + $0x8] sm:$0xf]
  %v1819 = vld [vmem:[%s15 + $0xc] sm:$0xf]
  %v1820 = vld [vmem:[%s15 + $0x10] sm:$0xf]
  %v1821 = vld [vmem:[%s15 + $0x14] sm:$0xf]
  %v1822 = vld [vmem:[%s15 + $0x18] sm:$0xf]
  %v1823 = vld [vmem:[%s15 + $0x1c] sm:$0xf]
  %v1824 = vld [vmem:[%s16] sm:$0x1]
  %v1826 = vlaneseq
  %v1827 = vshrl.u32 %v1826, 7
  %v1828 = vsub.s32 0, %v1827
  %v1829 = vrot.slane %v1824, %v1828
  %v1839 = vunpack.c.l.b16 %v1816
  %v1840 = vunpack.c.l.b16 %v1817
  %v1841 = vunpack.c.l.b16 %v1818
  %v1842 = vunpack.c.l.b16 %v1819
  %v1843 = vunpack.c.l.b16 %v1820
  %v1844 = vunpack.c.l.b16 %v1821
  %v1845 = vunpack.c.l.b16 %v1822
  %v1846 = vunpack.c.l.b16 %v1823
  %v1847 = vpack.c.b16 %v1840, %v1839
  %v1848 = vpack.c.b16 %v1842, %v1841
  %v1849 = vpack.c.b16 %v1844, %v1843
  %v1850 = vpack.c.b16 %v1846, %v1845
  %v1852 = vsel %vm137, %v1815, 0
  %v1855 = vsel %vm137, %v1847, 0
  %v1858 = vsel %vm137, %v1848, 0
  %v1861 = vsel %vm137, %v1849, 0
  %v1864 = vsel %vm137, %v1850, 0
  %1866 = vmatprep.subr.bf16.mxu0 0
  %1867 = vmatpush1.bf16.xpose.msra.mxu0 %v1855
  %1868 = vmatprep.subr.bf16.mxu0 0
  %1869 = vmatpush1.bf16.xpose.msra.mxu0 %v1858
  %1870 = vmatprep.subr.bf16.mxu0 0
  %1871 = vmatpush1.bf16.xpose.msra.mxu0 %v1861
  %1872 = vmatprep.subr.bf16.mxu0 0
  %1873 = vmatpush1.bf16.xpose.msra.mxu0 %v1864
  %1874 = vmatprep.subr.bf16.mxu0 0
  %1875 = vmatpush1.bf16.xpose.msra.mxu0 0
  %1876 = vmatprep.subr.bf16.mxu0 0
  %1877 = vmatpush1.bf16.xpose.msra.mxu0 0
  %1878 = vmatprep.subr.bf16.mxu0 0
  %1879 = vmatpush1.bf16.xpose.msra.mxu0 0
  %1880 = vmatprep.subr.bf16.mxu0 0
  %1881 = vmatpush1.bf16.xpose.msra.mxu0 0
  %1882 = vmatprep.subr.bf16.mxu0 0
  %1883 = vmatpush1.bf16.xpose.msra.mxu0 0
  %1884 = vmatprep.subr.bf16.mxu0 0
  %1885 = vmatpush1.bf16.xpose.msra.mxu0 0
  %1886 = vmatprep.subr.bf16.mxu0 0
  %1887 = vmatpush1.bf16.xpose.msra.mxu0 0
  %1888 = vmatprep.subr.bf16.mxu0 0
  %1889 = vmatpush1.bf16.xpose.msra.mxu0 0
  %1890 = vmatprep.subr.bf16.mxu0 0
  %1891 = vmatpush1.bf16.xpose.msra.mxu0 0
  %1892 = vmatprep.subr.bf16.mxu0 0
  %1893 = vmatpush1.bf16.xpose.msra.mxu0 0
  %1894 = vmatprep.subr.bf16.mxu0 0
  %1895 = vmatpush1.bf16.xpose.msra.mxu0 0
  %1896 = vmatprep.subr.bf16.mxu0 0
  %1897 = vmatpush1.bf16.xpose.msra.mxu0 0
  %1898 = vmatprep.mubr.bf16.mxu0 0
  %1899 = vmatmul.mubr.bf16.gmra.mrb[0].mxu0 %v1852
  %v1900 = vpop.f32.mrb[0].mxu0
  %v1901 = vadd.f32 %v1829, %v1900
  %v1902 = vpop.f32.mrb[0].mxu0
  %v1903 = vpop.f32.mrb[0].mxu0
  %v1904 = vadd.f32 %v1829, %v1903
  %v1905 = vpop.f32.mrb[0].mxu0
  %1906 = vdwg.mxu0
  %v1907 = vmax.f32 %v1901, 0.0
  %v1908 = vmax.f32 %v1904, 0.0
  %v1909 = vpack.c.bf16 %v1908, %v1907
  %v1910 = vld [vmem:[%s17] sm:$0xf]
  %v1911 = vld [vmem:[%s17 + $0x4] sm:$0xf]
  %v1912 = vld [vmem:[%s17 + $0x8] sm:$0xf]
  %v1913 = vld [vmem:[%s17 + $0xc] sm:$0xf]
  %v1914 = vld [vmem:[%s18] sm:$0x1]
  %v1916 = vlaneseq
  %v1917 = vshrl.u32 %v1916, 7
  %v1918 = vsub.s32 0, %v1917
  %v1919 = vrot.slane %v1914, %v1918
  %v1925 = vunpack.c.l.b16 %v1910
  %v1926 = vunpack.c.l.b16 %v1911
  %v1927 = vunpack.c.l.b16 %v1912
  %v1928 = vunpack.c.l.b16 %v1913
  %v1929 = vpack.c.b16 %v1926, %v1925
  %v1930 = vpack.c.b16 %v1928, %v1927
  %vm1931 = vcmask 523264
  %v1933 = vsel %vm1931, %v1909, 0
  %v1936 = vsel %vm1931, %v1929, 0
  %v1939 = vsel %vm1931, %v1930, 0
  %1941 = vmatprep.subr.bf16.mxu0 0
  %1942 = vmatpush1.bf16.xpose.msra.mxu0 %v1936
  %1943 = vmatprep.subr.bf16.mxu0 0
  %1944 = vmatpush1.bf16.xpose.msra.mxu0 %v1939
  %1945 = vmatprep.subr.bf16.mxu0 0
  %1946 = vmatpush1.bf16.xpose.msra.mxu0 0
  %1947 = vmatprep.subr.bf16.mxu0 0
  %1948 = vmatpush1.bf16.xpose.msra.mxu0 0
  %1949 = vmatprep.subr.bf16.mxu0 0
  %1950 = vmatpush1.bf16.xpose.msra.mxu0 0
  %1951 = vmatprep.subr.bf16.mxu0 0
  %1952 = vmatpush1.bf16.xpose.msra.mxu0 0
  %1953 = vmatprep.subr.bf16.mxu0 0
  %1954 = vmatpush1.bf16.xpose.msra.mxu0 0
  %1955 = vmatprep.subr.bf16.mxu0 0
  %1956 = vmatpush1.bf16.xpose.msra.mxu0 0
  %1957 = vmatprep.subr.bf16.mxu0 0
  %1958 = vmatpush1.bf16.xpose.msra.mxu0 0
  %1959 = vmatprep.subr.bf16.mxu0 0
  %1960 = vmatpush1.bf16.xpose.msra.mxu0 0
  %1961 = vmatprep.subr.bf16.mxu0 0
  %1962 = vmatpush1.bf16.xpose.msra.mxu0 0
  %1963 = vmatprep.subr.bf16.mxu0 0
  %1964 = vmatpush1.bf16.xpose.msra.mxu0 0
  %1965 = vmatprep.subr.bf16.mxu0 0
  %1966 = vmatpush1.bf16.xpose.msra.mxu0 0
  %1967 = vmatprep.subr.bf16.mxu0 0
  %1968 = vmatpush1.bf16.xpose.msra.mxu0 0
  %1969 = vmatprep.subr.bf16.mxu0 0
  %1970 = vmatpush1.bf16.xpose.msra.mxu0 0
  %1971 = vmatprep.subr.bf16.mxu0 0
  %1972 = vmatpush1.bf16.xpose.msra.mxu0 0
  %1973 = vmatprep.mubr.bf16.mxu0 0
  %1974 = vmatmul.mubr.bf16.gmra.mrb[0].mxu0 %v1933
  %v1975 = vpop.f32.mrb[0].mxu0
  %v1976 = vadd.f32 %v1919, %v1975
  %v1977 = vpop.f32.mrb[0].mxu0
  %v1978 = vpop.f32.mrb[0].mxu0
  %v1979 = vadd.f32 %v1919, %v1978
  %v1980 = vpop.f32.mrb[0].mxu0
  %1981 = vdwg.mxu0
  %v1982 = vadd.f32 %v1813, %v1976
  %v1983 = vadd.f32 %v1814, %v1979
  %v1984 = vld [vmem:[%s19] sm:$0x1]
  %v1985 = vld [vmem:[%s20] sm:$0x1]
  %v1986 = vsel %vm137, %v1982, 0.0
  %1987 = vadd.xlane.f32.xlu0 %v1986
  %v1988 = vpop.xlane.xlu0 %1987
  %v1989 = vsel %vm137, %v1983, 0.0
  %1990 = vadd.xlane.f32.xlu0 %v1989
  %v1991 = vpop.xlane.xlu0 %1990
  %v1992 = vmul.f32 %v1988, %v882
  %v1993 = vmul.f32 %v1991, %v882
  %v1994 = vsub.f32 %v1982, %v1992
  %v1995 = vsub.f32 %v1983, %v1993
  %v1996 = vmul.f32 %v1994, %v1994
  %v1997 = vmul.f32 %v1995, %v1995
  %v1998 = vsel %vm137, %v1996, 0.0
  %1999 = vadd.xlane.f32.xlu0 %v1998
  %v2000 = vpop.xlane.xlu0 %1999
  %v2001 = vsel %vm137, %v1997, 0.0
  %2002 = vadd.xlane.f32.xlu0 %v2001
  %v2003 = vpop.xlane.xlu0 %2002
  %v2004 = vmul.f32 %v2000, %v882
  %v2005 = vmul.f32 %v2003, %v882
  %v2006 = vadd.f32 %v2004, 1e-05
  %v2007 = vadd.f32 %v2005, 1e-05
  %v2008 = vrsqrt.pop %v2006
  %v2009 = vrsqrt.pop %v2007
  %v2010 = vmul.f32 %v1994, %v2008
  %v2011 = vmul.f32 %v1995, %v2009
  %v2013 = vlaneseq
  %v2014 = vshrl.u32 %v2013, 7
  %v2015 = vsub.s32 0, %v2014
  %v2016 = vrot.slane %v1984, %v2015
  %v2018 = vmul.f32 %v2010, %v2016
  %v2019 = vmul.f32 %v2011, %v2016
  %v2021 = vlaneseq
  %v2022 = vshrl.u32 %v2021, 7
  %v2023 = vsub.s32 0, %v2022
  %v2024 = vrot.slane %v1985, %v2023
  %v2026 = vadd.f32 %v2018, %v2024
  %v2027 = vadd.f32 %v2019, %v2024
  %v2028 = vpack.c.bf16 %v2027, %v2026
  %s2029 = scalar_lea.vmem %s3, 48
  %v2030 = vld [vmem:[%s2029] sm:$0xf]
  %v2031 = vld [vmem:[%s2029 + $0x4] sm:$0xf]
  %v2032 = vld [vmem:[%s2029 + $0x8] sm:$0xf]
  %v2033 = vld [vmem:[%s2029 + $0xc] sm:$0xf]
  %v2034 = vld [vmem:[%s2029 + $0x10] sm:$0xf]
  %v2035 = vld [vmem:[%s2029 + $0x14] sm:$0xf]
  %v2036 = vld [vmem:[%s2029 + $0x18] sm:$0xf]
  %v2037 = vld [vmem:[%s2029 + $0x1c] sm:$0xf]
  %v2038 = vld [vmem:[%s2029 + $0x20] sm:$0xf]
  %v2039 = vld [vmem:[%s2029 + $0x24] sm:$0xf]
  %v2040 = vld [vmem:[%s2029 + $0x28] sm:$0xf]
  %v2041 = vld [vmem:[%s2029 + $0x2c] sm:$0xf]
  %s2042 = scalar_lea.vmem %s4, 1
  %v2043 = vld [vmem:[%s2042] sm:$0x1]
  %v2045 = vlaneseq
  %v2046 = vshrl.u32 %v2045, 7
  %v2047 = vsub.s32 0, %v2046
  %v2048 = vrot.slane %v2043, %v2047
  %v2062 = vunpack.c.l.b16 %v2030
  %v2063 = vunpack.c.l.b16 %v2031
  %v2064 = vunpack.c.l.b16 %v2032
  %v2065 = vunpack.c.l.b16 %v2033
  %v2066 = vunpack.c.l.b16 %v2034
  %v2067 = vunpack.c.l.b16 %v2035
  %v2068 = vunpack.c.l.b16 %v2036
  %v2069 = vunpack.c.l.b16 %v2037
  %v2070 = vunpack.c.l.b16 %v2038
  %v2071 = vunpack.c.l.b16 %v2039
  %v2072 = vunpack.c.l.b16 %v2040
  %v2073 = vunpack.c.l.b16 %v2041
  %v2074 = vpack.c.b16 %v2063, %v2062
  %v2075 = vpack.c.b16 %v2065, %v2064
  %v2076 = vpack.c.b16 %v2067, %v2066
  %v2077 = vpack.c.b16 %v2069, %v2068
  %v2078 = vpack.c.b16 %v2071, %v2070
  %v2079 = vpack.c.b16 %v2073, %v2072
  %v2081 = vsel %vm137, %v2028, 0
  %v2084 = vsel %vm137, %v2074, 0
  %v2087 = vsel %vm137, %v2075, 0
  %v2090 = vsel %vm137, %v2076, 0
  %v2093 = vsel %vm137, %v2077, 0
  %v2096 = vsel %vm137, %v2078, 0
  %v2099 = vsel %vm137, %v2079, 0
  %2101 = vmatprep.subr.bf16.mxu0 0
  %2102 = vmatpush1.bf16.xpose.msra.mxu0 %v2084
  %2103 = vmatprep.subr.bf16.mxu0 0
  %2104 = vmatpush1.bf16.xpose.msra.mxu0 %v2087
  %2105 = vmatprep.subr.bf16.mxu0 0
  %2106 = vmatpush1.bf16.xpose.msra.mxu0 %v2090
  %2107 = vmatprep.subr.bf16.mxu0 0
  %2108 = vmatpush1.bf16.xpose.msra.mxu0 %v2093
  %2109 = vmatprep.subr.bf16.mxu0 0
  %2110 = vmatpush1.bf16.xpose.msra.mxu0 %v2096
  %2111 = vmatprep.subr.bf16.mxu0 0
  %2112 = vmatpush1.bf16.xpose.msra.mxu0 %v2099
  %2113 = vmatprep.subr.bf16.mxu0 0
  %2114 = vmatpush1.bf16.xpose.msra.mxu0 0
  %2115 = vmatprep.subr.bf16.mxu0 0
  %2116 = vmatpush1.bf16.xpose.msra.mxu0 0
  %2117 = vmatprep.subr.bf16.mxu0 0
  %2118 = vmatpush1.bf16.xpose.msra.mxu0 0
  %2119 = vmatprep.subr.bf16.mxu0 0
  %2120 = vmatpush1.bf16.xpose.msra.mxu0 0
  %2121 = vmatprep.subr.bf16.mxu0 0
  %2122 = vmatpush1.bf16.xpose.msra.mxu0 0
  %2123 = vmatprep.subr.bf16.mxu0 0
  %2124 = vmatpush1.bf16.xpose.msra.mxu0 0
  %2125 = vmatprep.subr.bf16.mxu0 0
  %2126 = vmatpush1.bf16.xpose.msra.mxu0 0
  %2127 = vmatprep.subr.bf16.mxu0 0
  %2128 = vmatpush1.bf16.xpose.msra.mxu0 0
  %2129 = vmatprep.subr.bf16.mxu0 0
  %2130 = vmatpush1.bf16.xpose.msra.mxu0 0
  %2131 = vmatprep.subr.bf16.mxu0 0
  %2132 = vmatpush1.bf16.xpose.msra.mxu0 0
  %2133 = vmatprep.mubr.bf16.mxu0 0
  %2134 = vmatmul.mubr.bf16.gmra.mrb[0].mxu0 %v2081
  %v2135 = vpop.f32.mrb[0].mxu0
  %v2136 = vadd.f32 %v2048, %v2135
  %v2137 = vpop.f32.mrb[0].mxu0
  %v2138 = vpop.f32.mrb[0].mxu0
  %v2139 = vadd.f32 %v2048, %v2138
  %v2140 = vpop.f32.mrb[0].mxu0
  %2141 = vdwg.mxu0
  %v2142 = vmul.f32 %v2136, 0.25
  %v2143 = vmul.f32 %v2139, 0.25
  %v2144 = vpack.c.bf16 %v2143, %v2142
  %v2145 = vpack.c.bf16 %v2139, %v2136
  %s2146 = scalar_lea.vmem %s5, 16
  %v2147 = vld [vmem:[%s2146] sm:$0xf]
  %v2148 = vld [vmem:[%s2146 + $0x4] sm:$0xf]
  %v2149 = vld [vmem:[%s2146 + $0x8] sm:$0xf]
  %v2150 = vld [vmem:[%s2146 + $0xc] sm:$0xf]
  %s2151 = scalar_lea.vmem %s6, 1
  %v2152 = vld [vmem:[%s2151] sm:$0x1]
  %2154 = vrot.lane.b32.xlu0 %v2145, 96
  %v2155 = vpop.permute.xlu0 %2154
  %v2157 = vsel %vm212, %v2144, 0
  %v2160 = vsel %vm212, %v2155, 0
  %2162 = vmatprep.subr.bf16.mxu0 0
  %2163 = vmatpush1.bf16.xpose.msra.mxu0 %v2160
  %2164 = vmatprep.subr.bf16.mxu0 0
  %2165 = vmatpush1.bf16.xpose.msra.mxu0 0
  %2166 = vmatprep.subr.bf16.mxu0 0
  %2167 = vmatpush1.bf16.xpose.msra.mxu0 0
  %2168 = vmatprep.subr.bf16.mxu0 0
  %2169 = vmatpush1.bf16.xpose.msra.mxu0 0
  %2170 = vmatprep.subr.bf16.mxu0 0
  %2171 = vmatpush1.bf16.xpose.msra.mxu0 0
  %2172 = vmatprep.subr.bf16.mxu0 0
  %2173 = vmatpush1.bf16.xpose.msra.mxu0 0
  %2174 = vmatprep.subr.bf16.mxu0 0
  %2175 = vmatpush1.bf16.xpose.msra.mxu0 0
  %2176 = vmatprep.subr.bf16.mxu0 0
  %2177 = vmatpush1.bf16.xpose.msra.mxu0 0
  %2178 = vmatprep.subr.bf16.mxu0 0
  %2179 = vmatpush1.bf16.xpose.msra.mxu0 0
  %2180 = vmatprep.subr.bf16.mxu0 0
  %2181 = vmatpush1.bf16.xpose.msra.mxu0 0
  %2182 = vmatprep.subr.bf16.mxu0 0
  %2183 = vmatpush1.bf16.xpose.msra.mxu0 0
  %2184 = vmatprep.subr.bf16.mxu0 0
  %2185 = vmatpush1.bf16.xpose.msra.mxu0 0
  %2186 = vmatprep.subr.bf16.mxu0 0
  %2187 = vmatpush1.bf16.xpose.msra.mxu0 0
  %2188 = vmatprep.subr.bf16.mxu0 0
  %2189 = vmatpush1.bf16.xpose.msra.mxu0 0
  %2190 = vmatprep.subr.bf16.mxu0 0
  %2191 = vmatpush1.bf16.xpose.msra.mxu0 0
  %2192 = vmatprep.subr.bf16.mxu0 0
  %2193 = vmatpush1.bf16.xpose.msra.mxu0 0
  %2194 = vmatprep.mubr.bf16.mxu0 0
  %2195 = vmatmul.mubr.bf16.gmra.mrb[0].mxu0 %v2157
  %v2196 = vpop.f32.mrb[0].mxu0
  %v2197 = vadd.f32 0.0, %v2196
  %v2198 = vpop.f32.mrb[0].mxu0
  %v2199 = vpop.f32.mrb[0].mxu0
  %v2200 = vpop.f32.mrb[0].mxu0
  %2201 = vdwg.mxu0
  %v2202 = vsel %vm78, %v2197, -1e+30
  %v2203 = vsel %vm260, %v2202, -inf
  %2204 = vmax.xlane.f32.xlu0 %v2203
  %v2205 = vpop.xlane.xlu0 %2204
  %v2206 = vsub.f32 %v2202, %v2205
  %v2207 = vmul.f32 %v2206, 1.442695
  %v2208 = vpow.pop %v2207
  %v2209 = vsel %vm260, %v2208, 0.0
  %2210 = vadd.xlane.f32.xlu0 %v2209
  %v2211 = vpop.xlane.xlu0 %2210
  %v2212 = vrcp.pop %v2211
  %v2213 = vmul.f32 %v2208, %v2212
  %v2214 = vpack.c.bf16 %v2213, %v2213
  %2215 = vrot.lane.b32.xlu0 %v2145, 64
  %v2216 = vpop.permute.xlu0 %2215
  %v2218 = vsel %vm260, %v2214, 0
  %v2221 = vsel %vm278, %v2216, 0
  %2223 = vmatprep.subr.bf16.mxu0 0
  %2224 = vmatpush1.bf16.msra.mxu0 %v2221
  %2225 = vmatprep.subr.bf16.mxu0 0
  %2226 = vmatpush1.bf16.msra.mxu0 0
  %2227 = vmatprep.subr.bf16.mxu0 0
  %2228 = vmatpush1.bf16.msra.mxu0 0
  %2229 = vmatprep.subr.bf16.mxu0 0
  %2230 = vmatpush1.bf16.msra.mxu0 0
  %2231 = vmatprep.subr.bf16.mxu0 0
  %2232 = vmatpush1.bf16.msra.mxu0 0
  %2233 = vmatprep.subr.bf16.mxu0 0
  %2234 = vmatpush1.bf16.msra.mxu0 0
  %2235 = vmatprep.subr.bf16.mxu0 0
  %2236 = vmatpush1.bf16.msra.mxu0 0
  %2237 = vmatprep.subr.bf16.mxu0 0
  %2238 = vmatpush1.bf16.msra.mxu0 0
  %2239 = vmatprep.subr.bf16.mxu0 0
  %2240 = vmatpush1.bf16.msra.mxu0 0
  %2241 = vmatprep.subr.bf16.mxu0 0
  %2242 = vmatpush1.bf16.msra.mxu0 0
  %2243 = vmatprep.subr.bf16.mxu0 0
  %2244 = vmatpush1.bf16.msra.mxu0 0
  %2245 = vmatprep.subr.bf16.mxu0 0
  %2246 = vmatpush1.bf16.msra.mxu0 0
  %2247 = vmatprep.subr.bf16.mxu0 0
  %2248 = vmatpush1.bf16.msra.mxu0 0
  %2249 = vmatprep.subr.bf16.mxu0 0
  %2250 = vmatpush1.bf16.msra.mxu0 0
  %2251 = vmatprep.subr.bf16.mxu0 0
  %2252 = vmatpush1.bf16.msra.mxu0 0
  %2253 = vmatprep.subr.bf16.mxu0 0
  %2254 = vmatpush1.bf16.msra.mxu0 0
  %2255 = vmatprep.mubr.bf16.mxu0 0
  %2256 = vmatmul.mubr.bf16.gmra.mrb[0].mxu0 %v2218
  %v2257 = vpop.f32.mrb[0].mxu0
  %v2258 = vadd.f32 0.0, %v2257
  %v2259 = vpop.f32.mrb[0].mxu0
  %v2260 = vpop.f32.mrb[0].mxu0
  %v2261 = vpop.f32.mrb[0].mxu0
  %2262 = vdwg.mxu0
  %v2263 = vpack.c.bf16 %v2258, %v2258
  %v2268 = vunpack.c.l.b16 %v2147
  %v2269 = vunpack.c.l.b16 %v2148
  %v2270 = vunpack.c.l.b16 %v2149
  %v2271 = vunpack.c.l.b16 %v2150
  %v2272 = vpack.c.b16 %v2269, %v2268
  %v2273 = vpack.c.b16 %v2271, %v2270
  %v2275 = vsel %vm212, %v2263, 0
  %v2278 = vsel %vm212, %v2272, 0
  %v2281 = vsel %vm212, %v2273, 0
  %2283 = vmatprep.subr.bf16.mxu0 0
  %2284 = vmatpush1.bf16.xpose.msra.mxu0 %v2278
  %2285 = vmatprep.subr.bf16.mxu0 0
  %2286 = vmatpush1.bf16.xpose.msra.mxu0 %v2281
  %2287 = vmatprep.subr.bf16.mxu0 0
  %2288 = vmatpush1.bf16.xpose.msra.mxu0 0
  %2289 = vmatprep.subr.bf16.mxu0 0
  %2290 = vmatpush1.bf16.xpose.msra.mxu0 0
  %2291 = vmatprep.subr.bf16.mxu0 0
  %2292 = vmatpush1.bf16.xpose.msra.mxu0 0
  %2293 = vmatprep.subr.bf16.mxu0 0
  %2294 = vmatpush1.bf16.xpose.msra.mxu0 0
  %2295 = vmatprep.subr.bf16.mxu0 0
  %2296 = vmatpush1.bf16.xpose.msra.mxu0 0
  %2297 = vmatprep.subr.bf16.mxu0 0
  %2298 = vmatpush1.bf16.xpose.msra.mxu0 0
  %2299 = vmatprep.subr.bf16.mxu0 0
  %2300 = vmatpush1.bf16.xpose.msra.mxu0 0
  %2301 = vmatprep.subr.bf16.mxu0 0
  %2302 = vmatpush1.bf16.xpose.msra.mxu0 0
  %2303 = vmatprep.subr.bf16.mxu0 0
  %2304 = vmatpush1.bf16.xpose.msra.mxu0 0
  %2305 = vmatprep.subr.bf16.mxu0 0
  %2306 = vmatpush1.bf16.xpose.msra.mxu0 0
  %2307 = vmatprep.subr.bf16.mxu0 0
  %2308 = vmatpush1.bf16.xpose.msra.mxu0 0
  %2309 = vmatprep.subr.bf16.mxu0 0
  %2310 = vmatpush1.bf16.xpose.msra.mxu0 0
  %2311 = vmatprep.subr.bf16.mxu0 0
  %2312 = vmatpush1.bf16.xpose.msra.mxu0 0
  %2313 = vmatprep.subr.bf16.mxu0 0
  %2314 = vmatpush1.bf16.xpose.msra.mxu0 0
  %2315 = vmatprep.mubr.bf16.mxu0 0
  %2316 = vmatmul.mubr.bf16.gmra.mrb[0].mxu0 %v2275
  %v2317 = vpop.f32.mrb[0].mxu0
  %v2318 = vadd.f32 0.0, %v2317
  %v2319 = vpop.f32.mrb[0].mxu0
  %v2320 = vpop.f32.mrb[0].mxu0
  %v2321 = vpop.f32.mrb[0].mxu0
  %2322 = vdwg.mxu0
  %v2324 = vlaneseq
  %v2325 = vshrl.u32 %v2324, 7
  %v2326 = vsub.s32 0, %v2325
  %v2327 = vrot.slane %v2152, %v2326
  %v2329 = vadd.f32 %v2327, %v2318
  %2331 = vrot.lane.b32.xlu0 %v2144, 112
  %v2332 = vpop.permute.xlu0 %2331
  %2333 = vrot.lane.b32.xlu0 %v2145, 80
  %v2334 = vpop.permute.xlu0 %2333
  %v2336 = vsel %vm212, %v2332, 0
  %v2339 = vsel %vm212, %v2334, 0
  %2341 = vmatprep.subr.bf16.mxu0 0
  %2342 = vmatpush1.bf16.xpose.msra.mxu0 %v2339
  %2343 = vmatprep.subr.bf16.mxu0 0
  %2344 = vmatpush1.bf16.xpose.msra.mxu0 0
  %2345 = vmatprep.subr.bf16.mxu0 0
  %2346 = vmatpush1.bf16.xpose.msra.mxu0 0
  %2347 = vmatprep.subr.bf16.mxu0 0
  %2348 = vmatpush1.bf16.xpose.msra.mxu0 0
  %2349 = vmatprep.subr.bf16.mxu0 0
  %2350 = vmatpush1.bf16.xpose.msra.mxu0 0
  %2351 = vmatprep.subr.bf16.mxu0 0
  %2352 = vmatpush1.bf16.xpose.msra.mxu0 0
  %2353 = vmatprep.subr.bf16.mxu0 0
  %2354 = vmatpush1.bf16.xpose.msra.mxu0 0
  %2355 = vmatprep.subr.bf16.mxu0 0
  %2356 = vmatpush1.bf16.xpose.msra.mxu0 0
  %2357 = vmatprep.subr.bf16.mxu0 0
  %2358 = vmatpush1.bf16.xpose.msra.mxu0 0
  %2359 = vmatprep.subr.bf16.mxu0 0
  %2360 = vmatpush1.bf16.xpose.msra.mxu0 0
  %2361 = vmatprep.subr.bf16.mxu0 0
  %2362 = vmatpush1.bf16.xpose.msra.mxu0 0
  %2363 = vmatprep.subr.bf16.mxu0 0
  %2364 = vmatpush1.bf16.xpose.msra.mxu0 0
  %2365 = vmatprep.subr.bf16.mxu0 0
  %2366 = vmatpush1.bf16.xpose.msra.mxu0 0
  %2367 = vmatprep.subr.bf16.mxu0 0
  %2368 = vmatpush1.bf16.xpose.msra.mxu0 0
  %2369 = vmatprep.subr.bf16.mxu0 0
  %2370 = vmatpush1.bf16.xpose.msra.mxu0 0
  %2371 = vmatprep.subr.bf16.mxu0 0
  %2372 = vmatpush1.bf16.xpose.msra.mxu0 0
  %2373 = vmatprep.mubr.bf16.mxu0 0
  %2374 = vmatmul.mubr.bf16.gmra.mrb[0].mxu0 %v2336
  %v2375 = vpop.f32.mrb[0].mxu0
  %v2376 = vadd.f32 0.0, %v2375
  %v2377 = vpop.f32.mrb[0].mxu0
  %v2378 = vpop.f32.mrb[0].mxu0
  %v2379 = vpop.f32.mrb[0].mxu0
  %2380 = vdwg.mxu0
  %v2381 = vsel %vm78, %v2376, -1e+30
  %v2382 = vsel %vm260, %v2381, -inf
  %2383 = vmax.xlane.f32.xlu0 %v2382
  %v2384 = vpop.xlane.xlu0 %2383
  %v2385 = vsub.f32 %v2381, %v2384
  %v2386 = vmul.f32 %v2385, 1.442695
  %v2387 = vpow.pop %v2386
  %v2388 = vsel %vm260, %v2387, 0.0
  %2389 = vadd.xlane.f32.xlu0 %v2388
  %v2390 = vpop.xlane.xlu0 %2389
  %v2391 = vrcp.pop %v2390
  %v2392 = vmul.f32 %v2387, %v2391
  %v2393 = vpack.c.bf16 %v2392, %v2392
  %2394 = vrot.lane.b32.xlu0 %v2145, 48
  %v2395 = vpop.permute.xlu0 %2394
  %v2397 = vsel %vm260, %v2393, 0
  %v2400 = vsel %vm278, %v2395, 0
  %2402 = vmatprep.subr.bf16.mxu0 0
  %2403 = vmatpush1.bf16.msra.mxu0 %v2400
  %2404 = vmatprep.subr.bf16.mxu0 0
  %2405 = vmatpush1.bf16.msra.mxu0 0
  %2406 = vmatprep.subr.bf16.mxu0 0
  %2407 = vmatpush1.bf16.msra.mxu0 0
  %2408 = vmatprep.subr.bf16.mxu0 0
  %2409 = vmatpush1.bf16.msra.mxu0 0
  %2410 = vmatprep.subr.bf16.mxu0 0
  %2411 = vmatpush1.bf16.msra.mxu0 0
  %2412 = vmatprep.subr.bf16.mxu0 0
  %2413 = vmatpush1.bf16.msra.mxu0 0
  %2414 = vmatprep.subr.bf16.mxu0 0
  %2415 = vmatpush1.bf16.msra.mxu0 0
  %2416 = vmatprep.subr.bf16.mxu0 0
  %2417 = vmatpush1.bf16.msra.mxu0 0
  %2418 = vmatprep.subr.bf16.mxu0 0
  %2419 = vmatpush1.bf16.msra.mxu0 0
  %2420 = vmatprep.subr.bf16.mxu0 0
  %2421 = vmatpush1.bf16.msra.mxu0 0
  %2422 = vmatprep.subr.bf16.mxu0 0
  %2423 = vmatpush1.bf16.msra.mxu0 0
  %2424 = vmatprep.subr.bf16.mxu0 0
  %2425 = vmatpush1.bf16.msra.mxu0 0
  %2426 = vmatprep.subr.bf16.mxu0 0
  %2427 = vmatpush1.bf16.msra.mxu0 0
  %2428 = vmatprep.subr.bf16.mxu0 0
  %2429 = vmatpush1.bf16.msra.mxu0 0
  %2430 = vmatprep.subr.bf16.mxu0 0
  %2431 = vmatpush1.bf16.msra.mxu0 0
  %2432 = vmatprep.subr.bf16.mxu0 0
  %2433 = vmatpush1.bf16.msra.mxu0 0
  %2434 = vmatprep.mubr.bf16.mxu0 0
  %2435 = vmatmul.mubr.bf16.gmra.mrb[0].mxu0 %v2397
  %v2436 = vpop.f32.mrb[0].mxu0
  %v2437 = vadd.f32 0.0, %v2436
  %v2438 = vpop.f32.mrb[0].mxu0
  %v2439 = vpop.f32.mrb[0].mxu0
  %v2440 = vpop.f32.mrb[0].mxu0
  %2441 = vdwg.mxu0
  %v2442 = vpack.c.bf16 %v2437, %v2437
  %2443 = vrot.lane.b32.xlu0 %v2272, 112
  %v2444 = vpop.permute.xlu0 %2443
  %2445 = vrot.lane.b32.xlu0 %v2273, 112
  %v2446 = vpop.permute.xlu0 %2445
  %v2448 = vsel %vm212, %v2442, 0
  %v2451 = vsel %vm212, %v2444, 0
  %v2454 = vsel %vm212, %v2446, 0
  %2456 = vmatprep.subr.bf16.mxu0 0
  %2457 = vmatpush1.bf16.xpose.msra.mxu0 %v2451
  %2458 = vmatprep.subr.bf16.mxu0 0
  %2459 = vmatpush1.bf16.xpose.msra.mxu0 %v2454
  %2460 = vmatprep.subr.bf16.mxu0 0
  %2461 = vmatpush1.bf16.xpose.msra.mxu0 0
  %2462 = vmatprep.subr.bf16.mxu0 0
  %2463 = vmatpush1.bf16.xpose.msra.mxu0 0
  %2464 = vmatprep.subr.bf16.mxu0 0
  %2465 = vmatpush1.bf16.xpose.msra.mxu0 0
  %2466 = vmatprep.subr.bf16.mxu0 0
  %2467 = vmatpush1.bf16.xpose.msra.mxu0 0
  %2468 = vmatprep.subr.bf16.mxu0 0
  %2469 = vmatpush1.bf16.xpose.msra.mxu0 0
  %2470 = vmatprep.subr.bf16.mxu0 0
  %2471 = vmatpush1.bf16.xpose.msra.mxu0 0
  %2472 = vmatprep.subr.bf16.mxu0 0
  %2473 = vmatpush1.bf16.xpose.msra.mxu0 0
  %2474 = vmatprep.subr.bf16.mxu0 0
  %2475 = vmatpush1.bf16.xpose.msra.mxu0 0
  %2476 = vmatprep.subr.bf16.mxu0 0
  %2477 = vmatpush1.bf16.xpose.msra.mxu0 0
  %2478 = vmatprep.subr.bf16.mxu0 0
  %2479 = vmatpush1.bf16.xpose.msra.mxu0 0
  %2480 = vmatprep.subr.bf16.mxu0 0
  %2481 = vmatpush1.bf16.xpose.msra.mxu0 0
  %2482 = vmatprep.subr.bf16.mxu0 0
  %2483 = vmatpush1.bf16.xpose.msra.mxu0 0
  %2484 = vmatprep.subr.bf16.mxu0 0
  %2485 = vmatpush1.bf16.xpose.msra.mxu0 0
  %2486 = vmatprep.subr.bf16.mxu0 0
  %2487 = vmatpush1.bf16.xpose.msra.mxu0 0
  %2488 = vmatprep.mubr.bf16.mxu0 0
  %2489 = vmatmul.mubr.bf16.gmra.mrb[0].mxu0 %v2448
  %v2490 = vpop.f32.mrb[0].mxu0
  %v2491 = vadd.f32 0.0, %v2490
  %v2492 = vpop.f32.mrb[0].mxu0
  %v2493 = vpop.f32.mrb[0].mxu0
  %v2494 = vpop.f32.mrb[0].mxu0
  %2495 = vdwg.mxu0
  %v2496 = vadd.f32 %v2329, %v2491
  %2497 = vst.msk [vmem:[#allocation2] sm:$0xff] %vm137, %v2496
  %v2498 = vrot.slane %v2144, 4
  %v2499 = vrot.slane %v2145, 4
  %2500 = vrot.lane.b32.xlu0 %v2499, 96
  %v2501 = vpop.permute.xlu0 %2500
  %v2503 = vsel %vm212, %v2498, 0
  %v2506 = vsel %vm212, %v2501, 0
  %2508 = vmatprep.subr.bf16.mxu0 0
  %2509 = vmatpush1.bf16.xpose.msra.mxu0 %v2506
  %2510 = vmatprep.subr.bf16.mxu0 0
  %2511 = vmatpush1.bf16.xpose.msra.mxu0 0
  %2512 = vmatprep.subr.bf16.mxu0 0
  %2513 = vmatpush1.bf16.xpose.msra.mxu0 0
  %2514 = vmatprep.subr.bf16.mxu0 0
  %2515 = vmatpush1.bf16.xpose.msra.mxu0 0
  %2516 = vmatprep.subr.bf16.mxu0 0
  %2517 = vmatpush1.bf16.xpose.msra.mxu0 0
  %2518 = vmatprep.subr.bf16.mxu0 0
  %2519 = vmatpush1.bf16.xpose.msra.mxu0 0
  %2520 = vmatprep.subr.bf16.mxu0 0
  %2521 = vmatpush1.bf16.xpose.msra.mxu0 0
  %2522 = vmatprep.subr.bf16.mxu0 0
  %2523 = vmatpush1.bf16.xpose.msra.mxu0 0
  %2524 = vmatprep.subr.bf16.mxu0 0
  %2525 = vmatpush1.bf16.xpose.msra.mxu0 0
  %2526 = vmatprep.subr.bf16.mxu0 0
  %2527 = vmatpush1.bf16.xpose.msra.mxu0 0
  %2528 = vmatprep.subr.bf16.mxu0 0
  %2529 = vmatpush1.bf16.xpose.msra.mxu0 0
  %2530 = vmatprep.subr.bf16.mxu0 0
  %2531 = vmatpush1.bf16.xpose.msra.mxu0 0
  %2532 = vmatprep.subr.bf16.mxu0 0
  %2533 = vmatpush1.bf16.xpose.msra.mxu0 0
  %2534 = vmatprep.subr.bf16.mxu0 0
  %2535 = vmatpush1.bf16.xpose.msra.mxu0 0
  %2536 = vmatprep.subr.bf16.mxu0 0
  %2537 = vmatpush1.bf16.xpose.msra.mxu0 0
  %2538 = vmatprep.subr.bf16.mxu0 0
  %2539 = vmatpush1.bf16.xpose.msra.mxu0 0
  %2540 = vmatprep.mubr.bf16.mxu0 0
  %2541 = vmatmul.mubr.bf16.gmra.mrb[0].mxu0 %v2503
  %v2542 = vpop.f32.mrb[0].mxu0
  %v2543 = vadd.f32 0.0, %v2542
  %v2544 = vpop.f32.mrb[0].mxu0
  %v2545 = vpop.f32.mrb[0].mxu0
  %v2546 = vpop.f32.mrb[0].mxu0
  %2547 = vdwg.mxu0
  %v2548 = vsel %vm78, %v2543, -1e+30
  %v2549 = vsel %vm260, %v2548, -inf
  %2550 = vmax.xlane.f32.xlu0 %v2549
  %v2551 = vpop.xlane.xlu0 %2550
  %v2552 = vsub.f32 %v2548, %v2551
  %v2553 = vmul.f32 %v2552, 1.442695
  %v2554 = vpow.pop %v2553
  %v2555 = vsel %vm260, %v2554, 0.0
  %2556 = vadd.xlane.f32.xlu0 %v2555
  %v2557 = vpop.xlane.xlu0 %2556
  %v2558 = vrcp.pop %v2557
  %v2559 = vmul.f32 %v2554, %v2558
  %v2560 = vpack.c.bf16 %v2559, %v2559
  %2561 = vrot.lane.b32.xlu0 %v2499, 64
  %v2562 = vpop.permute.xlu0 %2561
  %v2564 = vsel %vm260, %v2560, 0
  %v2567 = vsel %vm278, %v2562, 0
  %2569 = vmatprep.subr.bf16.mxu0 0
  %2570 = vmatpush1.bf16.msra.mxu0 %v2567
  %2571 = vmatprep.subr.bf16.mxu0 0
  %2572 = vmatpush1.bf16.msra.mxu0 0
  %2573 = vmatprep.subr.bf16.mxu0 0
  %2574 = vmatpush1.bf16.msra.mxu0 0
  %2575 = vmatprep.subr.bf16.mxu0 0
  %2576 = vmatpush1.bf16.msra.mxu0 0
  %2577 = vmatprep.subr.bf16.mxu0 0
  %2578 = vmatpush1.bf16.msra.mxu0 0
  %2579 = vmatprep.subr.bf16.mxu0 0
  %2580 = vmatpush1.bf16.msra.mxu0 0
  %2581 = vmatprep.subr.bf16.mxu0 0
  %2582 = vmatpush1.bf16.msra.mxu0 0
  %2583 = vmatprep.subr.bf16.mxu0 0
  %2584 = vmatpush1.bf16.msra.mxu0 0
  %2585 = vmatprep.subr.bf16.mxu0 0
  %2586 = vmatpush1.bf16.msra.mxu0 0
  %2587 = vmatprep.subr.bf16.mxu0 0
  %2588 = vmatpush1.bf16.msra.mxu0 0
  %2589 = vmatprep.subr.bf16.mxu0 0
  %2590 = vmatpush1.bf16.msra.mxu0 0
  %2591 = vmatprep.subr.bf16.mxu0 0
  %2592 = vmatpush1.bf16.msra.mxu0 0
  %2593 = vmatprep.subr.bf16.mxu0 0
  %2594 = vmatpush1.bf16.msra.mxu0 0
  %2595 = vmatprep.subr.bf16.mxu0 0
  %2596 = vmatpush1.bf16.msra.mxu0 0
  %2597 = vmatprep.subr.bf16.mxu0 0
  %2598 = vmatpush1.bf16.msra.mxu0 0
  %2599 = vmatprep.subr.bf16.mxu0 0
  %2600 = vmatpush1.bf16.msra.mxu0 0
  %2601 = vmatprep.mubr.bf16.mxu0 0
  %2602 = vmatmul.mubr.bf16.gmra.mrb[0].mxu0 %v2564
  %v2603 = vpop.f32.mrb[0].mxu0
  %v2604 = vadd.f32 0.0, %v2603
  %v2605 = vpop.f32.mrb[0].mxu0
  %v2606 = vpop.f32.mrb[0].mxu0
  %v2607 = vpop.f32.mrb[0].mxu0
  %2608 = vdwg.mxu0
  %v2609 = vpack.c.bf16 %v2604, %v2604
  %v2611 = vsel %vm212, %v2609, 0
  %2613 = vmatprep.subr.bf16.mxu0 0
  %2614 = vmatpush1.bf16.xpose.msra.mxu0 %v2278
  %2615 = vmatprep.subr.bf16.mxu0 0
  %2616 = vmatpush1.bf16.xpose.msra.mxu0 %v2281
  %2617 = vmatprep.subr.bf16.mxu0 0
  %2618 = vmatpush1.bf16.xpose.msra.mxu0 0
  %2619 = vmatprep.subr.bf16.mxu0 0
  %2620 = vmatpush1.bf16.xpose.msra.mxu0 0
  %2621 = vmatprep.subr.bf16.mxu0 0
  %2622 = vmatpush1.bf16.xpose.msra.mxu0 0
  %2623 = vmatprep.subr.bf16.mxu0 0
  %2624 = vmatpush1.bf16.xpose.msra.mxu0 0
  %2625 = vmatprep.subr.bf16.mxu0 0
  %2626 = vmatpush1.bf16.xpose.msra.mxu0 0
  %2627 = vmatprep.subr.bf16.mxu0 0
  %2628 = vmatpush1.bf16.xpose.msra.mxu0 0
  %2629 = vmatprep.subr.bf16.mxu0 0
  %2630 = vmatpush1.bf16.xpose.msra.mxu0 0
  %2631 = vmatprep.subr.bf16.mxu0 0
  %2632 = vmatpush1.bf16.xpose.msra.mxu0 0
  %2633 = vmatprep.subr.bf16.mxu0 0
  %2634 = vmatpush1.bf16.xpose.msra.mxu0 0
  %2635 = vmatprep.subr.bf16.mxu0 0
  %2636 = vmatpush1.bf16.xpose.msra.mxu0 0
  %2637 = vmatprep.subr.bf16.mxu0 0
  %2638 = vmatpush1.bf16.xpose.msra.mxu0 0
  %2639 = vmatprep.subr.bf16.mxu0 0
  %2640 = vmatpush1.bf16.xpose.msra.mxu0 0
  %2641 = vmatprep.subr.bf16.mxu0 0
  %2642 = vmatpush1.bf16.xpose.msra.mxu0 0
  %2643 = vmatprep.subr.bf16.mxu0 0
  %2644 = vmatpush1.bf16.xpose.msra.mxu0 0
  %2645 = vmatprep.mubr.bf16.mxu0 0
  %2646 = vmatmul.mubr.bf16.gmra.mrb[0].mxu0 %v2611
  %v2647 = vpop.f32.mrb[0].mxu0
  %v2648 = vadd.f32 0.0, %v2647
  %v2649 = vpop.f32.mrb[0].mxu0
  %v2650 = vpop.f32.mrb[0].mxu0
  %v2651 = vpop.f32.mrb[0].mxu0
  %2652 = vdwg.mxu0
  %v2653 = vadd.f32 %v2327, %v2648
  %2654 = vrot.lane.b32.xlu0 %v2498, 112
  %v2655 = vpop.permute.xlu0 %2654
  %2656 = vrot.lane.b32.xlu0 %v2499, 80
  %v2657 = vpop.permute.xlu0 %2656
  %v2659 = vsel %vm212, %v2655, 0
  %v2662 = vsel %vm212, %v2657, 0
  %2664 = vmatprep.subr.bf16.mxu0 0
  %2665 = vmatpush1.bf16.xpose.msra.mxu0 %v2662
  %2666 = vmatprep.subr.bf16.mxu0 0
  %2667 = vmatpush1.bf16.xpose.msra.mxu0 0
  %2668 = vmatprep.subr.bf16.mxu0 0
  %2669 = vmatpush1.bf16.xpose.msra.mxu0 0
  %2670 = vmatprep.subr.bf16.mxu0 0
  %2671 = vmatpush1.bf16.xpose.msra.mxu0 0
  %2672 = vmatprep.subr.bf16.mxu0 0
  %2673 = vmatpush1.bf16.xpose.msra.mxu0 0
  %2674 = vmatprep.subr.bf16.mxu0 0
  %2675 = vmatpush1.bf16.xpose.msra.mxu0 0
  %2676 = vmatprep.subr.bf16.mxu0 0
  %2677 = vmatpush1.bf16.xpose.msra.mxu0 0
  %2678 = vmatprep.subr.bf16.mxu0 0
  %2679 = vmatpush1.bf16.xpose.msra.mxu0 0
  %2680 = vmatprep.subr.bf16.mxu0 0
  %2681 = vmatpush1.bf16.xpose.msra.mxu0 0
  %2682 = vmatprep.subr.bf16.mxu0 0
  %2683 = vmatpush1.bf16.xpose.msra.mxu0 0
  %2684 = vmatprep.subr.bf16.mxu0 0
  %2685 = vmatpush1.bf16.xpose.msra.mxu0 0
  %2686 = vmatprep.subr.bf16.mxu0 0
  %2687 = vmatpush1.bf16.xpose.msra.mxu0 0
  %2688 = vmatprep.subr.bf16.mxu0 0
  %2689 = vmatpush1.bf16.xpose.msra.mxu0 0
  %2690 = vmatprep.subr.bf16.mxu0 0
  %2691 = vmatpush1.bf16.xpose.msra.mxu0 0
  %2692 = vmatprep.subr.bf16.mxu0 0
  %2693 = vmatpush1.bf16.xpose.msra.mxu0 0
  %2694 = vmatprep.subr.bf16.mxu0 0
  %2695 = vmatpush1.bf16.xpose.msra.mxu0 0
  %2696 = vmatprep.mubr.bf16.mxu0 0
  %2697 = vmatmul.mubr.bf16.gmra.mrb[0].mxu0 %v2659
  %v2698 = vpop.f32.mrb[0].mxu0
  %v2699 = vadd.f32 0.0, %v2698
  %v2700 = vpop.f32.mrb[0].mxu0
  %v2701 = vpop.f32.mrb[0].mxu0
  %v2702 = vpop.f32.mrb[0].mxu0
  %2703 = vdwg.mxu0
  %v2704 = vsel %vm78, %v2699, -1e+30
  %v2705 = vsel %vm260, %v2704, -inf
  %2706 = vmax.xlane.f32.xlu0 %v2705
  %v2707 = vpop.xlane.xlu0 %2706
  %v2708 = vsub.f32 %v2704, %v2707
  %v2709 = vmul.f32 %v2708, 1.442695
  %v2710 = vpow.pop %v2709
  %v2711 = vsel %vm260, %v2710, 0.0
  %2712 = vadd.xlane.f32.xlu0 %v2711
  %v2713 = vpop.xlane.xlu0 %2712
  %v2714 = vrcp.pop %v2713
  %v2715 = vmul.f32 %v2710, %v2714
  %v2716 = vpack.c.bf16 %v2715, %v2715
  %2717 = vrot.lane.b32.xlu0 %v2499, 48
  %v2718 = vpop.permute.xlu0 %2717
  %v2720 = vsel %vm260, %v2716, 0
  %v2723 = vsel %vm278, %v2718, 0
  %2725 = vmatprep.subr.bf16.mxu0 0
  %2726 = vmatpush1.bf16.msra.mxu0 %v2723
  %2727 = vmatprep.subr.bf16.mxu0 0
  %2728 = vmatpush1.bf16.msra.mxu0 0
  %2729 = vmatprep.subr.bf16.mxu0 0
  %2730 = vmatpush1.bf16.msra.mxu0 0
  %2731 = vmatprep.subr.bf16.mxu0 0
  %2732 = vmatpush1.bf16.msra.mxu0 0
  %2733 = vmatprep.subr.bf16.mxu0 0
  %2734 = vmatpush1.bf16.msra.mxu0 0
  %2735 = vmatprep.subr.bf16.mxu0 0
  %2736 = vmatpush1.bf16.msra.mxu0 0
  %2737 = vmatprep.subr.bf16.mxu0 0
  %2738 = vmatpush1.bf16.msra.mxu0 0
  %2739 = vmatprep.subr.bf16.mxu0 0
  %2740 = vmatpush1.bf16.msra.mxu0 0
  %2741 = vmatprep.subr.bf16.mxu0 0
  %2742 = vmatpush1.bf16.msra.mxu0 0
  %2743 = vmatprep.subr.bf16.mxu0 0
  %2744 = vmatpush1.bf16.msra.mxu0 0
  %2745 = vmatprep.subr.bf16.mxu0 0
  %2746 = vmatpush1.bf16.msra.mxu0 0
  %2747 = vmatprep.subr.bf16.mxu0 0
  %2748 = vmatpush1.bf16.msra.mxu0 0
  %2749 = vmatprep.subr.bf16.mxu0 0
  %2750 = vmatpush1.bf16.msra.mxu0 0
  %2751 = vmatprep.subr.bf16.mxu0 0
  %2752 = vmatpush1.bf16.msra.mxu0 0
  %2753 = vmatprep.subr.bf16.mxu0 0
  %2754 = vmatpush1.bf16.msra.mxu0 0
  %2755 = vmatprep.subr.bf16.mxu0 0
  %2756 = vmatpush1.bf16.msra.mxu0 0
  %2757 = vmatprep.mubr.bf16.mxu0 0
  %2758 = vmatmul.mubr.bf16.gmra.mrb[0].mxu0 %v2720
  %v2759 = vpop.f32.mrb[0].mxu0
  %v2760 = vadd.f32 0.0, %v2759
  %v2761 = vpop.f32.mrb[0].mxu0
  %v2762 = vpop.f32.mrb[0].mxu0
  %v2763 = vpop.f32.mrb[0].mxu0
  %2764 = vdwg.mxu0
  %v2765 = vpack.c.bf16 %v2760, %v2760
  %v2767 = vsel %vm212, %v2765, 0
  %2769 = vmatprep.subr.bf16.mxu0 0
  %2770 = vmatpush1.bf16.xpose.msra.mxu0 %v2451
  %2771 = vmatprep.subr.bf16.mxu0 0
  %2772 = vmatpush1.bf16.xpose.msra.mxu0 %v2454
  %2773 = vmatprep.subr.bf16.mxu0 0
  %2774 = vmatpush1.bf16.xpose.msra.mxu0 0
  %2775 = vmatprep.subr.bf16.mxu0 0
  %2776 = vmatpush1.bf16.xpose.msra.mxu0 0
  %2777 = vmatprep.subr.bf16.mxu0 0
  %2778 = vmatpush1.bf16.xpose.msra.mxu0 0
  %2779 = vmatprep.subr.bf16.mxu0 0
  %2780 = vmatpush1.bf16.xpose.msra.mxu0 0
  %2781 = vmatprep.subr.bf16.mxu0 0
  %2782 = vmatpush1.bf16.xpose.msra.mxu0 0
  %2783 = vmatprep.subr.bf16.mxu0 0
  %2784 = vmatpush1.bf16.xpose.msra.mxu0 0
  %2785 = vmatprep.subr.bf16.mxu0 0
  %2786 = vmatpush1.bf16.xpose.msra.mxu0 0
  %2787 = vmatprep.subr.bf16.mxu0 0
  %2788 = vmatpush1.bf16.xpose.msra.mxu0 0
  %2789 = vmatprep.subr.bf16.mxu0 0
  %2790 = vmatpush1.bf16.xpose.msra.mxu0 0
  %2791 = vmatprep.subr.bf16.mxu0 0
  %2792 = vmatpush1.bf16.xpose.msra.mxu0 0
  %2793 = vmatprep.subr.bf16.mxu0 0
  %2794 = vmatpush1.bf16.xpose.msra.mxu0 0
  %2795 = vmatprep.subr.bf16.mxu0 0
  %2796 = vmatpush1.bf16.xpose.msra.mxu0 0
  %2797 = vmatprep.subr.bf16.mxu0 0
  %2798 = vmatpush1.bf16.xpose.msra.mxu0 0
  %2799 = vmatprep.subr.bf16.mxu0 0
  %2800 = vmatpush1.bf16.xpose.msra.mxu0 0
  %2801 = vmatprep.mubr.bf16.mxu0 0
  %2802 = vmatmul.mubr.bf16.gmra.mrb[0].mxu0 %v2767
  %v2803 = vpop.f32.mrb[0].mxu0
  %v2804 = vadd.f32 0.0, %v2803
  %v2805 = vpop.f32.mrb[0].mxu0
  %v2806 = vpop.f32.mrb[0].mxu0
  %v2807 = vpop.f32.mrb[0].mxu0
  %2808 = vdwg.mxu0
  %v2809 = vadd.f32 %v2653, %v2804
  %2810 = vst.msk [vmem:[#allocation2 + $0x8] sm:$0xff] %vm137, %v2809
  %v2811 = vld [vmem:[#allocation2] sm:$0xff]
  %v2812 = vld [vmem:[#allocation2 + $0x8] sm:$0xff]
  %v2813 = vadd.f32 %v2026, %v2811
  %v2814 = vadd.f32 %v2027, %v2812
  %s2815 = scalar_lea.vmem %s7, 1
  %v2816 = vld [vmem:[%s2815] sm:$0x1]
  %s2817 = scalar_lea.vmem %s8, 1
  %v2818 = vld [vmem:[%s2817] sm:$0x1]
  %v2819 = vsel %vm137, %v2813, 0.0
  %2820 = vadd.xlane.f32.xlu0 %v2819
  %v2821 = vpop.xlane.xlu0 %2820
  %v2822 = vsel %vm137, %v2814, 0.0
  %2823 = vadd.xlane.f32.xlu0 %v2822
  %v2824 = vpop.xlane.xlu0 %2823
  %v2825 = vmul.f32 %v2821, %v882
  %v2826 = vmul.f32 %v2824, %v882
  %v2827 = vsub.f32 %v2813, %v2825
  %v2828 = vsub.f32 %v2814, %v2826
  %v2829 = vmul.f32 %v2827, %v2827
  %v2830 = vmul.f32 %v2828, %v2828
  %v2831 = vsel %vm137, %v2829, 0.0
  %2832 = vadd.xlane.f32.xlu0 %v2831
  %v2833 = vpop.xlane.xlu0 %2832
  %v2834 = vsel %vm137, %v2830, 0.0
  %2835 = vadd.xlane.f32.xlu0 %v2834
  %v2836 = vpop.xlane.xlu0 %2835
  %v2837 = vmul.f32 %v2833, %v882
  %v2838 = vmul.f32 %v2836, %v882
  %v2839 = vadd.f32 %v2837, 1e-05
  %v2840 = vadd.f32 %v2838, 1e-05
  %v2841 = vrsqrt.pop %v2839
  %v2842 = vrsqrt.pop %v2840
  %v2843 = vmul.f32 %v2827, %v2841
  %v2844 = vmul.f32 %v2828, %v2842
  %v2846 = vlaneseq
  %v2847 = vshrl.u32 %v2846, 7
  %v2848 = vsub.s32 0, %v2847
  %v2849 = vrot.slane %v2816, %v2848
  %v2851 = vmul.f32 %v2843, %v2849
  %v2852 = vmul.f32 %v2844, %v2849
  %v2854 = vlaneseq
  %v2855 = vshrl.u32 %v2854, 7
  %v2856 = vsub.s32 0, %v2855
  %v2857 = vrot.slane %v2818, %v2856
  %v2859 = vadd.f32 %v2851, %v2857
  %v2860 = vadd.f32 %v2852, %v2857
  %s2861 = scalar_lea.vmem %s9, 48
  %v2862 = vld [vmem:[%s2861] sm:$0xf]
  %v2863 = vld [vmem:[%s2861 + $0x4] sm:$0xf]
  %v2864 = vld [vmem:[%s2861 + $0x8] sm:$0xf]
  %v2865 = vld [vmem:[%s2861 + $0xc] sm:$0xf]
  %v2866 = vld [vmem:[%s2861 + $0x10] sm:$0xf]
  %v2867 = vld [vmem:[%s2861 + $0x14] sm:$0xf]
  %v2868 = vld [vmem:[%s2861 + $0x18] sm:$0xf]
  %v2869 = vld [vmem:[%s2861 + $0x1c] sm:$0xf]
  %v2870 = vld [vmem:[%s2861 + $0x20] sm:$0xf]
  %v2871 = vld [vmem:[%s2861 + $0x24] sm:$0xf]
  %v2872 = vld [vmem:[%s2861 + $0x28] sm:$0xf]
  %v2873 = vld [vmem:[%s2861 + $0x2c] sm:$0xf]
  %s2874 = scalar_lea.vmem %s10, 1
  %v2875 = vld [vmem:[%s2874] sm:$0x1]
  %v2876 = vpack.c.bf16 %v2860, %v2859
  %v2878 = vlaneseq
  %v2879 = vshrl.u32 %v2878, 7
  %v2880 = vsub.s32 0, %v2879
  %v2881 = vrot.slane %v2875, %v2880
  %v2887 = vunpack.c.l.b16 %v2862
  %v2888 = vunpack.c.l.b16 %v2863
  %v2889 = vunpack.c.l.b16 %v2864
  %v2890 = vunpack.c.l.b16 %v2865
  %v2891 = vpack.c.b16 %v2888, %v2887
  %v2892 = vpack.c.b16 %v2890, %v2889
  %v2894 = vsel %vm137, %v2876, 0
  %v2897 = vsel %vm137, %v2891, 0
  %v2900 = vsel %vm137, %v2892, 0
  %2902 = vmatprep.subr.bf16.mxu0 0
  %2903 = vmatpush1.bf16.xpose.msra.mxu0 %v2897
  %2904 = vmatprep.subr.bf16.mxu0 0
  %2905 = vmatpush1.bf16.xpose.msra.mxu0 %v2900
  %2906 = vmatprep.subr.bf16.mxu0 0
  %2907 = vmatpush1.bf16.xpose.msra.mxu0 0
  %2908 = vmatprep.subr.bf16.mxu0 0
  %2909 = vmatpush1.bf16.xpose.msra.mxu0 0
  %2910 = vmatprep.subr.bf16.mxu0 0
  %2911 = vmatpush1.bf16.xpose.msra.mxu0 0
  %2912 = vmatprep.subr.bf16.mxu0 0
  %2913 = vmatpush1.bf16.xpose.msra.mxu0 0
  %2914 = vmatprep.subr.bf16.mxu0 0
  %2915 = vmatpush1.bf16.xpose.msra.mxu0 0
  %2916 = vmatprep.subr.bf16.mxu0 0
  %2917 = vmatpush1.bf16.xpose.msra.mxu0 0
  %2918 = vmatprep.subr.bf16.mxu0 0
  %2919 = vmatpush1.bf16.xpose.msra.mxu0 0
  %2920 = vmatprep.subr.bf16.mxu0 0
  %2921 = vmatpush1.bf16.xpose.msra.mxu0 0
  %2922 = vmatprep.subr.bf16.mxu0 0
  %2923 = vmatpush1.bf16.xpose.msra.mxu0 0
  %2924 = vmatprep.subr.bf16.mxu0 0
  %2925 = vmatpush1.bf16.xpose.msra.mxu0 0
  %2926 = vmatprep.subr.bf16.mxu0 0
  %2927 = vmatpush1.bf16.xpose.msra.mxu0 0
  %2928 = vmatprep.subr.bf16.mxu0 0
  %2929 = vmatpush1.bf16.xpose.msra.mxu0 0
  %2930 = vmatprep.subr.bf16.mxu0 0
  %2931 = vmatpush1.bf16.xpose.msra.mxu0 0
  %2932 = vmatprep.subr.bf16.mxu0 0
  %2933 = vmatpush1.bf16.xpose.msra.mxu0 0
  %2934 = vmatprep.mubr.bf16.mxu0 0
  %2935 = vmatmul.mubr.bf16.gmra.mrb[0].mxu0 %v2894
  %v2936 = vpop.f32.mrb[0].mxu0
  %v2937 = vadd.f32 %v2881, %v2936
  %v2938 = vpop.f32.mrb[0].mxu0
  %v2939 = vpop.f32.mrb[0].mxu0
  %v2940 = vadd.f32 %v2881, %v2939
  %v2941 = vpop.f32.mrb[0].mxu0
  %2942 = vdwg.mxu0
  %v2943 = vmul.f32 %v2937, 0.25
  %v2944 = vmul.f32 %v2940, 0.25
  %v2945 = vpack.c.bf16 %v2944, %v2943
  %v2954 = vunpack.c.l.b16 %v2866
  %v2955 = vunpack.c.l.b16 %v2867
  %v2956 = vunpack.c.l.b16 %v2868
  %v2957 = vunpack.c.l.b16 %v2869
  %v2958 = vunpack.c.l.b16 %v2870
  %v2959 = vunpack.c.l.b16 %v2871
  %v2960 = vunpack.c.l.b16 %v2872
  %v2961 = vunpack.c.l.b16 %v2873
  %v2962 = vpack.c.b16 %v2955, %v2954
  %v2963 = vpack.c.b16 %v2957, %v2956
  %v2964 = vpack.c.b16 %v2959, %v2958
  %v2965 = vpack.c.b16 %v2961, %v2960
  %2966 = vrot.lane.b32.xlu0 %v2881, 96
  %v2967 = vpop.permute.xlu0 %2966
  %v2970 = vsel %vm137, %v2962, 0
  %v2973 = vsel %vm137, %v2963, 0
  %v2976 = vsel %vm137, %v2964, 0
  %v2979 = vsel %vm137, %v2965, 0
  %2981 = vmatprep.subr.bf16.mxu0 0
  %2982 = vmatpush1.bf16.xpose.msra.mxu0 %v2970
  %2983 = vmatprep.subr.bf16.mxu0 0
  %2984 = vmatpush1.bf16.xpose.msra.mxu0 %v2973
  %2985 = vmatprep.subr.bf16.mxu0 0
  %2986 = vmatpush1.bf16.xpose.msra.mxu0 %v2976
  %2987 = vmatprep.subr.bf16.mxu0 0
  %2988 = vmatpush1.bf16.xpose.msra.mxu0 %v2979
  %2989 = vmatprep.subr.bf16.mxu0 0
  %2990 = vmatpush1.bf16.xpose.msra.mxu0 0
  %2991 = vmatprep.subr.bf16.mxu0 0
  %2992 = vmatpush1.bf16.xpose.msra.mxu0 0
  %2993 = vmatprep.subr.bf16.mxu0 0
  %2994 = vmatpush1.bf16.xpose.msra.mxu0 0
  %2995 = vmatprep.subr.bf16.mxu0 0
  %2996 = vmatpush1.bf16.xpose.msra.mxu0 0
  %2997 = vmatprep.subr.bf16.mxu0 0
  %2998 = vmatpush1.bf16.xpose.msra.mxu0 0
  %2999 = vmatprep.subr.bf16.mxu0 0
  %3000 = vmatpush1.bf16.xpose.msra.mxu0 0
  %3001 = vmatprep.subr.bf16.mxu0 0
  %3002 = vmatpush1.bf16.xpose.msra.mxu0 0
  %3003 = vmatprep.subr.bf16.mxu0 0
  %3004 = vmatpush1.bf16.xpose.msra.mxu0 0
  %3005 = vmatprep.subr.bf16.mxu0 0
  %3006 = vmatpush1.bf16.xpose.msra.mxu0 0
  %3007 = vmatprep.subr.bf16.mxu0 0
  %3008 = vmatpush1.bf16.xpose.msra.mxu0 0
  %3009 = vmatprep.subr.bf16.mxu0 0
  %3010 = vmatpush1.bf16.xpose.msra.mxu0 0
  %3011 = vmatprep.subr.bf16.mxu0 0
  %3012 = vmatpush1.bf16.xpose.msra.mxu0 0
  %3013 = vmatprep.mubr.bf16.mxu0 0
  %3014 = vmatmul.mubr.bf16.gmra.mrb[0].mxu0 %v1036
  %v3015 = vpop.f32.mrb[0].mxu0
  %v3016 = vadd.f32 %v2967, %v3015
  %v3017 = vpop.f32.mrb[0].mxu0
  %v3018 = vpop.f32.mrb[0].mxu0
  %v3019 = vadd.f32 %v2967, %v3018
  %v3020 = vpop.f32.mrb[0].mxu0
  %3021 = vmatprep.mubr.bf16.mxu0 0
  %3022 = vmatmul.mubr.bf16.gmra.mrb[0].mxu0 %v1039
  %v3023 = vpop.f32.mrb[0].mxu0
  %v3024 = vadd.f32 %v2967, %v3023
  %v3025 = vpop.f32.mrb[0].mxu0
  %v3026 = vpop.f32.mrb[0].mxu0
  %v3027 = vadd.f32 %v2967, %v3026
  %v3028 = vpop.f32.mrb[0].mxu0
  %3029 = vdwg.mxu0
  %v3030 = vpack.c.bf16 %v3019, %v3016
  %v3031 = vpack.c.bf16 %v3027, %v3024
  %s3032 = scalar_lea.vmem %s11, 16
  %v3033 = vld [vmem:[%s3032] sm:$0xf]
  %v3034 = vld [vmem:[%s3032 + $0x4] sm:$0xf]
  %v3035 = vld [vmem:[%s3032 + $0x8] sm:$0xf]
  %v3036 = vld [vmem:[%s3032 + $0xc] sm:$0xf]
  %s3037 = scalar_lea.vmem %s12, 1
  %v3038 = vld [vmem:[%s3037] sm:$0x1]
  %v3040 = vsel %vm212, %v2945, 0
  %v3043 = vsel %vm212, %v3030, 0
  %3045 = vmatprep.subr.bf16.mxu0 0
  %3046 = vmatpush1.bf16.xpose.msra.mxu0 %v3043
  %3047 = vmatprep.subr.bf16.mxu0 0
  %3048 = vmatpush1.bf16.xpose.msra.mxu0 0
  %3049 = vmatprep.subr.bf16.mxu0 0
  %3050 = vmatpush1.bf16.xpose.msra.mxu0 0
  %3051 = vmatprep.subr.bf16.mxu0 0
  %3052 = vmatpush1.bf16.xpose.msra.mxu0 0
  %3053 = vmatprep.subr.bf16.mxu0 0
  %3054 = vmatpush1.bf16.xpose.msra.mxu0 0
  %3055 = vmatprep.subr.bf16.mxu0 0
  %3056 = vmatpush1.bf16.xpose.msra.mxu0 0
  %3057 = vmatprep.subr.bf16.mxu0 0
  %3058 = vmatpush1.bf16.xpose.msra.mxu0 0
  %3059 = vmatprep.subr.bf16.mxu0 0
  %3060 = vmatpush1.bf16.xpose.msra.mxu0 0
  %3061 = vmatprep.subr.bf16.mxu0 0
  %3062 = vmatpush1.bf16.xpose.msra.mxu0 0
  %3063 = vmatprep.subr.bf16.mxu0 0
  %3064 = vmatpush1.bf16.xpose.msra.mxu0 0
  %3065 = vmatprep.subr.bf16.mxu0 0
  %3066 = vmatpush1.bf16.xpose.msra.mxu0 0
  %3067 = vmatprep.subr.bf16.mxu0 0
  %3068 = vmatpush1.bf16.xpose.msra.mxu0 0
  %3069 = vmatprep.subr.bf16.mxu0 0
  %3070 = vmatpush1.bf16.xpose.msra.mxu0 0
  %3071 = vmatprep.subr.bf16.mxu0 0
  %3072 = vmatpush1.bf16.xpose.msra.mxu0 0
  %3073 = vmatprep.subr.bf16.mxu0 0
  %3074 = vmatpush1.bf16.xpose.msra.mxu0 0
  %3075 = vmatprep.subr.bf16.mxu0 0
  %3076 = vmatpush1.bf16.xpose.msra.mxu0 0
  %3077 = vmatprep.mubr.bf16.mxu0 0
  %3078 = vmatmul.mubr.bf16.gmra.mrb[0].mxu0 %v3040
  %v3079 = vpop.f32.mrb[0].mxu0
  %v3080 = vadd.f32 0.0, %v3079
  %v3081 = vpop.f32.mrb[0].mxu0
  %v3082 = vpop.f32.mrb[0].mxu0
  %v3083 = vpop.f32.mrb[0].mxu0
  %3084 = vdwg.mxu0
  %v3085 = vsel %vm1161, %v3080, -1e+30
  %v3086 = vsel %vm212, %v3085, -inf
  %3087 = vmax.xlane.f32.xlu0 %v3086
  %v3088 = vpop.xlane.xlu0 %3087
  %v3089 = vsub.f32 %v3085, %v3088
  %v3090 = vmul.f32 %v3089, 1.442695
  %v3091 = vpow.pop %v3090
  %v3092 = vsel %vm212, %v3091, 0.0
  %3093 = vadd.xlane.f32.xlu0 %v3092
  %v3094 = vpop.xlane.xlu0 %3093
  %v3095 = vrcp.pop %v3094
  %v3096 = vmul.f32 %v3091, %v3095
  %v3097 = vpack.c.bf16 %v3096, %v3096
  %3099 = vrot.lane.b32.xlu0 %v3030, 96
  %v3100 = vpop.permute.xlu0 %3099
  %v3103 = vsel %vm212, %v3097, 0
  %3105 = vmatprep.subr.bf16.mxu0 0
  %3106 = vmatpush1.bf16.msra.mxu0 %v3100
  %3107 = vmatprep.subr.bf16.mxu0 0
  %3108 = vmatpush1.bf16.msra.mxu0 0
  %3109 = vmatprep.subr.bf16.mxu0 0
  %3110 = vmatpush1.bf16.msra.mxu0 0
  %3111 = vmatprep.subr.bf16.mxu0 0
  %3112 = vmatpush1.bf16.msra.mxu0 0
  %3113 = vmatprep.subr.bf16.mxu0 0
  %3114 = vmatpush1.bf16.msra.mxu0 0
  %3115 = vmatprep.subr.bf16.mxu0 0
  %3116 = vmatpush1.bf16.msra.mxu0 0
  %3117 = vmatprep.subr.bf16.mxu0 0
  %3118 = vmatpush1.bf16.msra.mxu0 0
  %3119 = vmatprep.subr.bf16.mxu0 0
  %3120 = vmatpush1.bf16.msra.mxu0 0
  %3121 = vmatprep.subr.bf16.mxu0 0
  %3122 = vmatpush1.bf16.msra.mxu0 0
  %3123 = vmatprep.subr.bf16.mxu0 0
  %3124 = vmatpush1.bf16.msra.mxu0 0
  %3125 = vmatprep.subr.bf16.mxu0 0
  %3126 = vmatpush1.bf16.msra.mxu0 0
  %3127 = vmatprep.subr.bf16.mxu0 0
  %3128 = vmatpush1.bf16.msra.mxu0 0
  %3129 = vmatprep.subr.bf16.mxu0 0
  %3130 = vmatpush1.bf16.msra.mxu0 0
  %3131 = vmatprep.subr.bf16.mxu0 0
  %3132 = vmatpush1.bf16.msra.mxu0 0
  %3133 = vmatprep.subr.bf16.mxu0 0
  %3134 = vmatpush1.bf16.msra.mxu0 0
  %3135 = vmatprep.subr.bf16.mxu0 0
  %3136 = vmatpush1.bf16.msra.mxu0 0
  %3137 = vmatprep.mubr.bf16.mxu0 0
  %3138 = vmatmul.mubr.bf16.gmra.mrb[0].mxu0 %v3103
  %v3139 = vpop.f32.mrb[0].mxu0
  %v3140 = vadd.f32 0.0, %v3139
  %v3141 = vpop.f32.mrb[0].mxu0
  %v3142 = vpop.f32.mrb[0].mxu0
  %v3143 = vpop.f32.mrb[0].mxu0
  %3144 = vdwg.mxu0
  %v3145 = vpack.c.bf16 %v3140, %v3140
  %v3150 = vunpack.c.l.b16 %v3033
  %v3151 = vunpack.c.l.b16 %v3034
  %v3152 = vunpack.c.l.b16 %v3035
  %v3153 = vunpack.c.l.b16 %v3036
  %v3154 = vpack.c.b16 %v3151, %v3150
  %v3155 = vpack.c.b16 %v3153, %v3152
  %v3157 = vsel %vm212, %v3145, 0
  %v3160 = vsel %vm212, %v3154, 0
  %v3163 = vsel %vm212, %v3155, 0
  %3165 = vmatprep.subr.bf16.mxu0 0
  %3166 = vmatpush1.bf16.xpose.msra.mxu0 %v3160
  %3167 = vmatprep.subr.bf16.mxu0 0
  %3168 = vmatpush1.bf16.xpose.msra.mxu0 %v3163
  %3169 = vmatprep.subr.bf16.mxu0 0
  %3170 = vmatpush1.bf16.xpose.msra.mxu0 0
  %3171 = vmatprep.subr.bf16.mxu0 0
  %3172 = vmatpush1.bf16.xpose.msra.mxu0 0
  %3173 = vmatprep.subr.bf16.mxu0 0
  %3174 = vmatpush1.bf16.xpose.msra.mxu0 0
  %3175 = vmatprep.subr.bf16.mxu0 0
  %3176 = vmatpush1.bf16.xpose.msra.mxu0 0
  %3177 = vmatprep.subr.bf16.mxu0 0
  %3178 = vmatpush1.bf16.xpose.msra.mxu0 0
  %3179 = vmatprep.subr.bf16.mxu0 0
  %3180 = vmatpush1.bf16.xpose.msra.mxu0 0
  %3181 = vmatprep.subr.bf16.mxu0 0
  %3182 = vmatpush1.bf16.xpose.msra.mxu0 0
  %3183 = vmatprep.subr.bf16.mxu0 0
  %3184 = vmatpush1.bf16.xpose.msra.mxu0 0
  %3185 = vmatprep.subr.bf16.mxu0 0
  %3186 = vmatpush1.bf16.xpose.msra.mxu0 0
  %3187 = vmatprep.subr.bf16.mxu0 0
  %3188 = vmatpush1.bf16.xpose.msra.mxu0 0
  %3189 = vmatprep.subr.bf16.mxu0 0
  %3190 = vmatpush1.bf16.xpose.msra.mxu0 0
  %3191 = vmatprep.subr.bf16.mxu0 0
  %3192 = vmatpush1.bf16.xpose.msra.mxu0 0
  %3193 = vmatprep.subr.bf16.mxu0 0
  %3194 = vmatpush1.bf16.xpose.msra.mxu0 0
  %3195 = vmatprep.subr.bf16.mxu0 0
  %3196 = vmatpush1.bf16.xpose.msra.mxu0 0
  %3197 = vmatprep.mubr.bf16.mxu0 0
  %3198 = vmatmul.mubr.bf16.gmra.mrb[0].mxu0 %v3157
  %v3199 = vpop.f32.mrb[0].mxu0
  %v3200 = vadd.f32 0.0, %v3199
  %v3201 = vpop.f32.mrb[0].mxu0
  %v3202 = vpop.f32.mrb[0].mxu0
  %v3203 = vpop.f32.mrb[0].mxu0
  %3204 = vdwg.mxu0
  %v3206 = vlaneseq
  %v3207 = vshrl.u32 %v3206, 7
  %v3208 = vsub.s32 0, %v3207
  %v3209 = vrot.slane %v3038, %v3208
  %v3211 = vadd.f32 %v3209, %v3200
  %3213 = vrot.lane.b32.xlu0 %v2945, 112
  %v3214 = vpop.permute.xlu0 %3213
  %3215 = vrot.lane.b32.xlu0 %v3030, 112
  %v3216 = vpop.permute.xlu0 %3215
  %v3218 = vsel %vm212, %v3214, 0
  %v3221 = vsel %vm212, %v3216, 0
  %3223 = vmatprep.subr.bf16.mxu0 0
  %3224 = vmatpush1.bf16.xpose.msra.mxu0 %v3221
  %3225 = vmatprep.subr.bf16.mxu0 0
  %3226 = vmatpush1.bf16.xpose.msra.mxu0 0
  %3227 = vmatprep.subr.bf16.mxu0 0
  %3228 = vmatpush1.bf16.xpose.msra.mxu0 0
  %3229 = vmatprep.subr.bf16.mxu0 0
  %3230 = vmatpush1.bf16.xpose.msra.mxu0 0
  %3231 = vmatprep.subr.bf16.mxu0 0
  %3232 = vmatpush1.bf16.xpose.msra.mxu0 0
  %3233 = vmatprep.subr.bf16.mxu0 0
  %3234 = vmatpush1.bf16.xpose.msra.mxu0 0
  %3235 = vmatprep.subr.bf16.mxu0 0
  %3236 = vmatpush1.bf16.xpose.msra.mxu0 0
  %3237 = vmatprep.subr.bf16.mxu0 0
  %3238 = vmatpush1.bf16.xpose.msra.mxu0 0
  %3239 = vmatprep.subr.bf16.mxu0 0
  %3240 = vmatpush1.bf16.xpose.msra.mxu0 0
  %3241 = vmatprep.subr.bf16.mxu0 0
  %3242 = vmatpush1.bf16.xpose.msra.mxu0 0
  %3243 = vmatprep.subr.bf16.mxu0 0
  %3244 = vmatpush1.bf16.xpose.msra.mxu0 0
  %3245 = vmatprep.subr.bf16.mxu0 0
  %3246 = vmatpush1.bf16.xpose.msra.mxu0 0
  %3247 = vmatprep.subr.bf16.mxu0 0
  %3248 = vmatpush1.bf16.xpose.msra.mxu0 0
  %3249 = vmatprep.subr.bf16.mxu0 0
  %3250 = vmatpush1.bf16.xpose.msra.mxu0 0
  %3251 = vmatprep.subr.bf16.mxu0 0
  %3252 = vmatpush1.bf16.xpose.msra.mxu0 0
  %3253 = vmatprep.subr.bf16.mxu0 0
  %3254 = vmatpush1.bf16.xpose.msra.mxu0 0
  %3255 = vmatprep.mubr.bf16.mxu0 0
  %3256 = vmatmul.mubr.bf16.gmra.mrb[0].mxu0 %v3218
  %v3257 = vpop.f32.mrb[0].mxu0
  %v3258 = vadd.f32 0.0, %v3257
  %v3259 = vpop.f32.mrb[0].mxu0
  %v3260 = vpop.f32.mrb[0].mxu0
  %v3261 = vpop.f32.mrb[0].mxu0
  %3262 = vdwg.mxu0
  %v3263 = vsel %vm1161, %v3258, -1e+30
  %v3264 = vsel %vm212, %v3263, -inf
  %3265 = vmax.xlane.f32.xlu0 %v3264
  %v3266 = vpop.xlane.xlu0 %3265
  %v3267 = vsub.f32 %v3263, %v3266
  %v3268 = vmul.f32 %v3267, 1.442695
  %v3269 = vpow.pop %v3268
  %v3270 = vsel %vm212, %v3269, 0.0
  %3271 = vadd.xlane.f32.xlu0 %v3270
  %v3272 = vpop.xlane.xlu0 %3271
  %v3273 = vrcp.pop %v3272
  %v3274 = vmul.f32 %v3269, %v3273
  %v3275 = vpack.c.bf16 %v3274, %v3274
  %3276 = vrot.lane.b32.xlu0 %v3030, 80
  %v3277 = vpop.permute.xlu0 %3276
  %v3280 = vsel %vm212, %v3275, 0
  %3282 = vmatprep.subr.bf16.mxu0 0
  %3283 = vmatpush1.bf16.msra.mxu0 %v3277
  %3284 = vmatprep.subr.bf16.mxu0 0
  %3285 = vmatpush1.bf16.msra.mxu0 0
  %3286 = vmatprep.subr.bf16.mxu0 0
  %3287 = vmatpush1.bf16.msra.mxu0 0
  %3288 = vmatprep.subr.bf16.mxu0 0
  %3289 = vmatpush1.bf16.msra.mxu0 0
  %3290 = vmatprep.subr.bf16.mxu0 0
  %3291 = vmatpush1.bf16.msra.mxu0 0
  %3292 = vmatprep.subr.bf16.mxu0 0
  %3293 = vmatpush1.bf16.msra.mxu0 0
  %3294 = vmatprep.subr.bf16.mxu0 0
  %3295 = vmatpush1.bf16.msra.mxu0 0
  %3296 = vmatprep.subr.bf16.mxu0 0
  %3297 = vmatpush1.bf16.msra.mxu0 0
  %3298 = vmatprep.subr.bf16.mxu0 0
  %3299 = vmatpush1.bf16.msra.mxu0 0
  %3300 = vmatprep.subr.bf16.mxu0 0
  %3301 = vmatpush1.bf16.msra.mxu0 0
  %3302 = vmatprep.subr.bf16.mxu0 0
  %3303 = vmatpush1.bf16.msra.mxu0 0
  %3304 = vmatprep.subr.bf16.mxu0 0
  %3305 = vmatpush1.bf16.msra.mxu0 0
  %3306 = vmatprep.subr.bf16.mxu0 0
  %3307 = vmatpush1.bf16.msra.mxu0 0
  %3308 = vmatprep.subr.bf16.mxu0 0
  %3309 = vmatpush1.bf16.msra.mxu0 0
  %3310 = vmatprep.subr.bf16.mxu0 0
  %3311 = vmatpush1.bf16.msra.mxu0 0
  %3312 = vmatprep.subr.bf16.mxu0 0
  %3313 = vmatpush1.bf16.msra.mxu0 0
  %3314 = vmatprep.mubr.bf16.mxu0 0
  %3315 = vmatmul.mubr.bf16.gmra.mrb[0].mxu0 %v3280
  %v3316 = vpop.f32.mrb[0].mxu0
  %v3317 = vadd.f32 0.0, %v3316
  %v3318 = vpop.f32.mrb[0].mxu0
  %v3319 = vpop.f32.mrb[0].mxu0
  %v3320 = vpop.f32.mrb[0].mxu0
  %3321 = vdwg.mxu0
  %v3322 = vpack.c.bf16 %v3317, %v3317
  %3323 = vrot.lane.b32.xlu0 %v3154, 112
  %v3324 = vpop.permute.xlu0 %3323
  %3325 = vrot.lane.b32.xlu0 %v3155, 112
  %v3326 = vpop.permute.xlu0 %3325
  %v3328 = vsel %vm212, %v3322, 0
  %v3331 = vsel %vm212, %v3324, 0
  %v3334 = vsel %vm212, %v3326, 0
  %3336 = vmatprep.subr.bf16.mxu0 0
  %3337 = vmatpush1.bf16.xpose.msra.mxu0 %v3331
  %3338 = vmatprep.subr.bf16.mxu0 0
  %3339 = vmatpush1.bf16.xpose.msra.mxu0 %v3334
  %3340 = vmatprep.subr.bf16.mxu0 0
  %3341 = vmatpush1.bf16.xpose.msra.mxu0 0
  %3342 = vmatprep.subr.bf16.mxu0 0
  %3343 = vmatpush1.bf16.xpose.msra.mxu0 0
  %3344 = vmatprep.subr.bf16.mxu0 0
  %3345 = vmatpush1.bf16.xpose.msra.mxu0 0
  %3346 = vmatprep.subr.bf16.mxu0 0
  %3347 = vmatpush1.bf16.xpose.msra.mxu0 0
  %3348 = vmatprep.subr.bf16.mxu0 0
  %3349 = vmatpush1.bf16.xpose.msra.mxu0 0
  %3350 = vmatprep.subr.bf16.mxu0 0
  %3351 = vmatpush1.bf16.xpose.msra.mxu0 0
  %3352 = vmatprep.subr.bf16.mxu0 0
  %3353 = vmatpush1.bf16.xpose.msra.mxu0 0
  %3354 = vmatprep.subr.bf16.mxu0 0
  %3355 = vmatpush1.bf16.xpose.msra.mxu0 0
  %3356 = vmatprep.subr.bf16.mxu0 0
  %3357 = vmatpush1.bf16.xpose.msra.mxu0 0
  %3358 = vmatprep.subr.bf16.mxu0 0
  %3359 = vmatpush1.bf16.xpose.msra.mxu0 0
  %3360 = vmatprep.subr.bf16.mxu0 0
  %3361 = vmatpush1.bf16.xpose.msra.mxu0 0
  %3362 = vmatprep.subr.bf16.mxu0 0
  %3363 = vmatpush1.bf16.xpose.msra.mxu0 0
  %3364 = vmatprep.subr.bf16.mxu0 0
  %3365 = vmatpush1.bf16.xpose.msra.mxu0 0
  %3366 = vmatprep.subr.bf16.mxu0 0
  %3367 = vmatpush1.bf16.xpose.msra.mxu0 0
  %3368 = vmatprep.mubr.bf16.mxu0 0
  %3369 = vmatmul.mubr.bf16.gmra.mrb[0].mxu0 %v3328
  %v3370 = vpop.f32.mrb[0].mxu0
  %v3371 = vadd.f32 0.0, %v3370
  %v3372 = vpop.f32.mrb[0].mxu0
  %v3373 = vpop.f32.mrb[0].mxu0
  %v3374 = vpop.f32.mrb[0].mxu0
  %3375 = vdwg.mxu0
  %v3376 = vadd.f32 %v3211, %v3371
  %3377 = vst.msk [vmem:[#allocation2] sm:$0xff] %vm137, %v3376
  %v3378 = vrot.slane %v2945, 4
  %v3380 = vsel %vm212, %v3378, 0
  %v3383 = vsel %vm212, %v3031, 0
  %3385 = vmatprep.subr.bf16.mxu0 0
  %3386 = vmatpush1.bf16.xpose.msra.mxu0 %v3383
  %3387 = vmatprep.subr.bf16.mxu0 0
  %3388 = vmatpush1.bf16.xpose.msra.mxu0 0
  %3389 = vmatprep.subr.bf16.mxu0 0
  %3390 = vmatpush1.bf16.xpose.msra.mxu0 0
  %3391 = vmatprep.subr.bf16.mxu0 0
  %3392 = vmatpush1.bf16.xpose.msra.mxu0 0
  %3393 = vmatprep.subr.bf16.mxu0 0
  %3394 = vmatpush1.bf16.xpose.msra.mxu0 0
  %3395 = vmatprep.subr.bf16.mxu0 0
  %3396 = vmatpush1.bf16.xpose.msra.mxu0 0
  %3397 = vmatprep.subr.bf16.mxu0 0
  %3398 = vmatpush1.bf16.xpose.msra.mxu0 0
  %3399 = vmatprep.subr.bf16.mxu0 0
  %3400 = vmatpush1.bf16.xpose.msra.mxu0 0
  %3401 = vmatprep.subr.bf16.mxu0 0
  %3402 = vmatpush1.bf16.xpose.msra.mxu0 0
  %3403 = vmatprep.subr.bf16.mxu0 0
  %3404 = vmatpush1.bf16.xpose.msra.mxu0 0
  %3405 = vmatprep.subr.bf16.mxu0 0
  %3406 = vmatpush1.bf16.xpose.msra.mxu0 0
  %3407 = vmatprep.subr.bf16.mxu0 0
  %3408 = vmatpush1.bf16.xpose.msra.mxu0 0
  %3409 = vmatprep.subr.bf16.mxu0 0
  %3410 = vmatpush1.bf16.xpose.msra.mxu0 0
  %3411 = vmatprep.subr.bf16.mxu0 0
  %3412 = vmatpush1.bf16.xpose.msra.mxu0 0
  %3413 = vmatprep.subr.bf16.mxu0 0
  %3414 = vmatpush1.bf16.xpose.msra.mxu0 0
  %3415 = vmatprep.subr.bf16.mxu0 0
  %3416 = vmatpush1.bf16.xpose.msra.mxu0 0
  %3417 = vmatprep.mubr.bf16.mxu0 0
  %3418 = vmatmul.mubr.bf16.gmra.mrb[0].mxu0 %v3380
  %v3419 = vpop.f32.mrb[0].mxu0
  %v3420 = vadd.f32 0.0, %v3419
  %v3421 = vpop.f32.mrb[0].mxu0
  %v3422 = vpop.f32.mrb[0].mxu0
  %v3423 = vpop.f32.mrb[0].mxu0
  %3424 = vdwg.mxu0
  %v3425 = vsel %vm1506, %v3420, -1e+30
  %v3426 = vsel %vm212, %v3425, -inf
  %3427 = vmax.xlane.f32.xlu0 %v3426
  %v3428 = vpop.xlane.xlu0 %3427
  %v3429 = vsub.f32 %v3425, %v3428
  %v3430 = vmul.f32 %v3429, 1.442695
  %v3431 = vpow.pop %v3430
  %v3432 = vsel %vm212, %v3431, 0.0
  %3433 = vadd.xlane.f32.xlu0 %v3432
  %v3434 = vpop.xlane.xlu0 %3433
  %v3435 = vrcp.pop %v3434
  %v3436 = vmul.f32 %v3431, %v3435
  %v3437 = vpack.c.bf16 %v3436, %v3436
  %3439 = vrot.lane.b32.xlu0 %v3031, 96
  %v3440 = vpop.permute.xlu0 %3439
  %v3443 = vsel %vm212, %v3437, 0
  %3445 = vmatprep.subr.bf16.mxu0 0
  %3446 = vmatpush1.bf16.msra.mxu0 %v3440
  %3447 = vmatprep.subr.bf16.mxu0 0
  %3448 = vmatpush1.bf16.msra.mxu0 0
  %3449 = vmatprep.subr.bf16.mxu0 0
  %3450 = vmatpush1.bf16.msra.mxu0 0
  %3451 = vmatprep.subr.bf16.mxu0 0
  %3452 = vmatpush1.bf16.msra.mxu0 0
  %3453 = vmatprep.subr.bf16.mxu0 0
  %3454 = vmatpush1.bf16.msra.mxu0 0
  %3455 = vmatprep.subr.bf16.mxu0 0
  %3456 = vmatpush1.bf16.msra.mxu0 0
  %3457 = vmatprep.subr.bf16.mxu0 0
  %3458 = vmatpush1.bf16.msra.mxu0 0
  %3459 = vmatprep.subr.bf16.mxu0 0
  %3460 = vmatpush1.bf16.msra.mxu0 0
  %3461 = vmatprep.subr.bf16.mxu0 0
  %3462 = vmatpush1.bf16.msra.mxu0 0
  %3463 = vmatprep.subr.bf16.mxu0 0
  %3464 = vmatpush1.bf16.msra.mxu0 0
  %3465 = vmatprep.subr.bf16.mxu0 0
  %3466 = vmatpush1.bf16.msra.mxu0 0
  %3467 = vmatprep.subr.bf16.mxu0 0
  %3468 = vmatpush1.bf16.msra.mxu0 0
  %3469 = vmatprep.subr.bf16.mxu0 0
  %3470 = vmatpush1.bf16.msra.mxu0 0
  %3471 = vmatprep.subr.bf16.mxu0 0
  %3472 = vmatpush1.bf16.msra.mxu0 0
  %3473 = vmatprep.subr.bf16.mxu0 0
  %3474 = vmatpush1.bf16.msra.mxu0 0
  %3475 = vmatprep.subr.bf16.mxu0 0
  %3476 = vmatpush1.bf16.msra.mxu0 0
  %3477 = vmatprep.mubr.bf16.mxu0 0
  %3478 = vmatmul.mubr.bf16.gmra.mrb[0].mxu0 %v3443
  %v3479 = vpop.f32.mrb[0].mxu0
  %v3480 = vadd.f32 0.0, %v3479
  %v3481 = vpop.f32.mrb[0].mxu0
  %v3482 = vpop.f32.mrb[0].mxu0
  %v3483 = vpop.f32.mrb[0].mxu0
  %3484 = vdwg.mxu0
  %v3485 = vpack.c.bf16 %v3480, %v3480
  %v3487 = vsel %vm212, %v3485, 0
  %3489 = vmatprep.subr.bf16.mxu0 0
  %3490 = vmatpush1.bf16.xpose.msra.mxu0 %v3160
  %3491 = vmatprep.subr.bf16.mxu0 0
  %3492 = vmatpush1.bf16.xpose.msra.mxu0 %v3163
  %3493 = vmatprep.subr.bf16.mxu0 0
  %3494 = vmatpush1.bf16.xpose.msra.mxu0 0
  %3495 = vmatprep.subr.bf16.mxu0 0
  %3496 = vmatpush1.bf16.xpose.msra.mxu0 0
  %3497 = vmatprep.subr.bf16.mxu0 0
  %3498 = vmatpush1.bf16.xpose.msra.mxu0 0
  %3499 = vmatprep.subr.bf16.mxu0 0
  %3500 = vmatpush1.bf16.xpose.msra.mxu0 0
  %3501 = vmatprep.subr.bf16.mxu0 0
  %3502 = vmatpush1.bf16.xpose.msra.mxu0 0
  %3503 = vmatprep.subr.bf16.mxu0 0
  %3504 = vmatpush1.bf16.xpose.msra.mxu0 0
  %3505 = vmatprep.subr.bf16.mxu0 0
  %3506 = vmatpush1.bf16.xpose.msra.mxu0 0
  %3507 = vmatprep.subr.bf16.mxu0 0
  %3508 = vmatpush1.bf16.xpose.msra.mxu0 0
  %3509 = vmatprep.subr.bf16.mxu0 0
  %3510 = vmatpush1.bf16.xpose.msra.mxu0 0
  %3511 = vmatprep.subr.bf16.mxu0 0
  %3512 = vmatpush1.bf16.xpose.msra.mxu0 0
  %3513 = vmatprep.subr.bf16.mxu0 0
  %3514 = vmatpush1.bf16.xpose.msra.mxu0 0
  %3515 = vmatprep.subr.bf16.mxu0 0
  %3516 = vmatpush1.bf16.xpose.msra.mxu0 0
  %3517 = vmatprep.subr.bf16.mxu0 0
  %3518 = vmatpush1.bf16.xpose.msra.mxu0 0
  %3519 = vmatprep.subr.bf16.mxu0 0
  %3520 = vmatpush1.bf16.xpose.msra.mxu0 0
  %3521 = vmatprep.mubr.bf16.mxu0 0
  %3522 = vmatmul.mubr.bf16.gmra.mrb[0].mxu0 %v3487
  %v3523 = vpop.f32.mrb[0].mxu0
  %v3524 = vadd.f32 0.0, %v3523
  %v3525 = vpop.f32.mrb[0].mxu0
  %v3526 = vpop.f32.mrb[0].mxu0
  %v3527 = vpop.f32.mrb[0].mxu0
  %3528 = vdwg.mxu0
  %v3529 = vadd.f32 %v3209, %v3524
  %3530 = vrot.lane.b32.xlu0 %v3378, 112
  %v3531 = vpop.permute.xlu0 %3530
  %3532 = vrot.lane.b32.xlu0 %v3031, 112
  %v3533 = vpop.permute.xlu0 %3532
  %v3535 = vsel %vm212, %v3531, 0
  %v3538 = vsel %vm212, %v3533, 0
  %3540 = vmatprep.subr.bf16.mxu0 0
  %3541 = vmatpush1.bf16.xpose.msra.mxu0 %v3538
  %3542 = vmatprep.subr.bf16.mxu0 0
  %3543 = vmatpush1.bf16.xpose.msra.mxu0 0
  %3544 = vmatprep.subr.bf16.mxu0 0
  %3545 = vmatpush1.bf16.xpose.msra.mxu0 0
  %3546 = vmatprep.subr.bf16.mxu0 0
  %3547 = vmatpush1.bf16.xpose.msra.mxu0 0
  %3548 = vmatprep.subr.bf16.mxu0 0
  %3549 = vmatpush1.bf16.xpose.msra.mxu0 0
  %3550 = vmatprep.subr.bf16.mxu0 0
  %3551 = vmatpush1.bf16.xpose.msra.mxu0 0
  %3552 = vmatprep.subr.bf16.mxu0 0
  %3553 = vmatpush1.bf16.xpose.msra.mxu0 0
  %3554 = vmatprep.subr.bf16.mxu0 0
  %3555 = vmatpush1.bf16.xpose.msra.mxu0 0
  %3556 = vmatprep.subr.bf16.mxu0 0
  %3557 = vmatpush1.bf16.xpose.msra.mxu0 0
  %3558 = vmatprep.subr.bf16.mxu0 0
  %3559 = vmatpush1.bf16.xpose.msra.mxu0 0
  %3560 = vmatprep.subr.bf16.mxu0 0
  %3561 = vmatpush1.bf16.xpose.msra.mxu0 0
  %3562 = vmatprep.subr.bf16.mxu0 0
  %3563 = vmatpush1.bf16.xpose.msra.mxu0 0
  %3564 = vmatprep.subr.bf16.mxu0 0
  %3565 = vmatpush1.bf16.xpose.msra.mxu0 0
  %3566 = vmatprep.subr.bf16.mxu0 0
  %3567 = vmatpush1.bf16.xpose.msra.mxu0 0
  %3568 = vmatprep.subr.bf16.mxu0 0
  %3569 = vmatpush1.bf16.xpose.msra.mxu0 0
  %3570 = vmatprep.subr.bf16.mxu0 0
  %3571 = vmatpush1.bf16.xpose.msra.mxu0 0
  %3572 = vmatprep.mubr.bf16.mxu0 0
  %3573 = vmatmul.mubr.bf16.gmra.mrb[0].mxu0 %v3535
  %v3574 = vpop.f32.mrb[0].mxu0
  %v3575 = vadd.f32 0.0, %v3574
  %v3576 = vpop.f32.mrb[0].mxu0
  %v3577 = vpop.f32.mrb[0].mxu0
  %v3578 = vpop.f32.mrb[0].mxu0
  %3579 = vdwg.mxu0
  %v3580 = vsel %vm1506, %v3575, -1e+30
  %v3581 = vsel %vm212, %v3580, -inf
  %3582 = vmax.xlane.f32.xlu0 %v3581
  %v3583 = vpop.xlane.xlu0 %3582
  %v3584 = vsub.f32 %v3580, %v3583
  %v3585 = vmul.f32 %v3584, 1.442695
  %v3586 = vpow.pop %v3585
  %v3587 = vsel %vm212, %v3586, 0.0
  %3588 = vadd.xlane.f32.xlu0 %v3587
  %v3589 = vpop.xlane.xlu0 %3588
  %v3590 = vrcp.pop %v3589
  %v3591 = vmul.f32 %v3586, %v3590
  %v3592 = vpack.c.bf16 %v3591, %v3591
  %3593 = vrot.lane.b32.xlu0 %v3031, 80
  %v3594 = vpop.permute.xlu0 %3593
  %v3597 = vsel %vm212, %v3592, 0
  %3599 = vmatprep.subr.bf16.mxu0 0
  %3600 = vmatpush1.bf16.msra.mxu0 %v3594
  %3601 = vmatprep.subr.bf16.mxu0 0
  %3602 = vmatpush1.bf16.msra.mxu0 0
  %3603 = vmatprep.subr.bf16.mxu0 0
  %3604 = vmatpush1.bf16.msra.mxu0 0
  %3605 = vmatprep.subr.bf16.mxu0 0
  %3606 = vmatpush1.bf16.msra.mxu0 0
  %3607 = vmatprep.subr.bf16.mxu0 0
  %3608 = vmatpush1.bf16.msra.mxu0 0
  %3609 = vmatprep.subr.bf16.mxu0 0
  %3610 = vmatpush1.bf16.msra.mxu0 0
  %3611 = vmatprep.subr.bf16.mxu0 0
  %3612 = vmatpush1.bf16.msra.mxu0 0
  %3613 = vmatprep.subr.bf16.mxu0 0
  %3614 = vmatpush1.bf16.msra.mxu0 0
  %3615 = vmatprep.subr.bf16.mxu0 0
  %3616 = vmatpush1.bf16.msra.mxu0 0
  %3617 = vmatprep.subr.bf16.mxu0 0
  %3618 = vmatpush1.bf16.msra.mxu0 0
  %3619 = vmatprep.subr.bf16.mxu0 0
  %3620 = vmatpush1.bf16.msra.mxu0 0
  %3621 = vmatprep.subr.bf16.mxu0 0
  %3622 = vmatpush1.bf16.msra.mxu0 0
  %3623 = vmatprep.subr.bf16.mxu0 0
  %3624 = vmatpush1.bf16.msra.mxu0 0
  %3625 = vmatprep.subr.bf16.mxu0 0
  %3626 = vmatpush1.bf16.msra.mxu0 0
  %3627 = vmatprep.subr.bf16.mxu0 0
  %3628 = vmatpush1.bf16.msra.mxu0 0
  %3629 = vmatprep.subr.bf16.mxu0 0
  %3630 = vmatpush1.bf16.msra.mxu0 0
  %3631 = vmatprep.mubr.bf16.mxu0 0
  %3632 = vmatmul.mubr.bf16.gmra.mrb[0].mxu0 %v3597
  %v3633 = vpop.f32.mrb[0].mxu0
  %v3634 = vadd.f32 0.0, %v3633
  %v3635 = vpop.f32.mrb[0].mxu0
  %v3636 = vpop.f32.mrb[0].mxu0
  %v3637 = vpop.f32.mrb[0].mxu0
  %3638 = vdwg.mxu0
  %v3639 = vpack.c.bf16 %v3634, %v3634
  %v3641 = vsel %vm212, %v3639, 0
  %3643 = vmatprep.subr.bf16.mxu0 0
  %3644 = vmatpush1.bf16.xpose.msra.mxu0 %v3331
  %3645 = vmatprep.subr.bf16.mxu0 0
  %3646 = vmatpush1.bf16.xpose.msra.mxu0 %v3334
  %3647 = vmatprep.subr.bf16.mxu0 0
  %3648 = vmatpush1.bf16.xpose.msra.mxu0 0
  %3649 = vmatprep.subr.bf16.mxu0 0
  %3650 = vmatpush1.bf16.xpose.msra.mxu0 0
  %3651 = vmatprep.subr.bf16.mxu0 0
  %3652 = vmatpush1.bf16.xpose.msra.mxu0 0
  %3653 = vmatprep.subr.bf16.mxu0 0
  %3654 = vmatpush1.bf16.xpose.msra.mxu0 0
  %3655 = vmatprep.subr.bf16.mxu0 0
  %3656 = vmatpush1.bf16.xpose.msra.mxu0 0
  %3657 = vmatprep.subr.bf16.mxu0 0
  %3658 = vmatpush1.bf16.xpose.msra.mxu0 0
  %3659 = vmatprep.subr.bf16.mxu0 0
  %3660 = vmatpush1.bf16.xpose.msra.mxu0 0
  %3661 = vmatprep.subr.bf16.mxu0 0
  %3662 = vmatpush1.bf16.xpose.msra.mxu0 0
  %3663 = vmatprep.subr.bf16.mxu0 0
  %3664 = vmatpush1.bf16.xpose.msra.mxu0 0
  %3665 = vmatprep.subr.bf16.mxu0 0
  %3666 = vmatpush1.bf16.xpose.msra.mxu0 0
  %3667 = vmatprep.subr.bf16.mxu0 0
  %3668 = vmatpush1.bf16.xpose.msra.mxu0 0
  %3669 = vmatprep.subr.bf16.mxu0 0
  %3670 = vmatpush1.bf16.xpose.msra.mxu0 0
  %3671 = vmatprep.subr.bf16.mxu0 0
  %3672 = vmatpush1.bf16.xpose.msra.mxu0 0
  %3673 = vmatprep.subr.bf16.mxu0 0
  %3674 = vmatpush1.bf16.xpose.msra.mxu0 0
  %3675 = vmatprep.mubr.bf16.mxu0 0
  %3676 = vmatmul.mubr.bf16.gmra.mrb[0].mxu0 %v3641
  %v3677 = vpop.f32.mrb[0].mxu0
  %v3678 = vadd.f32 0.0, %v3677
  %v3679 = vpop.f32.mrb[0].mxu0
  %v3680 = vpop.f32.mrb[0].mxu0
  %v3681 = vpop.f32.mrb[0].mxu0
  %3682 = vdwg.mxu0
  %v3683 = vadd.f32 %v3529, %v3678
  %3684 = vst.msk [vmem:[#allocation2 + $0x8] sm:$0xff] %vm137, %v3683
  %v3685 = vld [vmem:[#allocation2] sm:$0xff]
  %v3686 = vld [vmem:[#allocation2 + $0x8] sm:$0xff]
  %v3687 = vadd.f32 %v2859, %v3685
  %v3688 = vadd.f32 %v2860, %v3686
  %s3689 = scalar_lea.vmem %s13, 1
  %v3690 = vld [vmem:[%s3689] sm:$0x1]
  %s3691 = scalar_lea.vmem %s14, 1
  %v3692 = vld [vmem:[%s3691] sm:$0x1]
  %v3693 = vsel %vm137, %v3687, 0.0
  %3694 = vadd.xlane.f32.xlu0 %v3693
  %v3695 = vpop.xlane.xlu0 %3694
  %v3696 = vsel %vm137, %v3688, 0.0
  %3697 = vadd.xlane.f32.xlu0 %v3696
  %v3698 = vpop.xlane.xlu0 %3697
  %v3699 = vmul.f32 %v3695, %v882
  %v3700 = vmul.f32 %v3698, %v882
  %v3701 = vsub.f32 %v3687, %v3699
  %v3702 = vsub.f32 %v3688, %v3700
  %v3703 = vmul.f32 %v3701, %v3701
  %v3704 = vmul.f32 %v3702, %v3702
  %v3705 = vsel %vm137, %v3703, 0.0
  %3706 = vadd.xlane.f32.xlu0 %v3705
  %v3707 = vpop.xlane.xlu0 %3706
  %v3708 = vsel %vm137, %v3704, 0.0
  %3709 = vadd.xlane.f32.xlu0 %v3708
  %v3710 = vpop.xlane.xlu0 %3709
  %v3711 = vmul.f32 %v3707, %v882
  %v3712 = vmul.f32 %v3710, %v882
  %v3713 = vadd.f32 %v3711, 1e-05
  %v3714 = vadd.f32 %v3712, 1e-05
  %v3715 = vrsqrt.pop %v3713
  %v3716 = vrsqrt.pop %v3714
  %v3717 = vmul.f32 %v3701, %v3715
  %v3718 = vmul.f32 %v3702, %v3716
  %v3720 = vlaneseq
  %v3721 = vshrl.u32 %v3720, 7
  %v3722 = vsub.s32 0, %v3721
  %v3723 = vrot.slane %v3690, %v3722
  %v3725 = vmul.f32 %v3717, %v3723
  %v3726 = vmul.f32 %v3718, %v3723
  %v3728 = vlaneseq
  %v3729 = vshrl.u32 %v3728, 7
  %v3730 = vsub.s32 0, %v3729
  %v3731 = vrot.slane %v3692, %v3730
  %v3733 = vadd.f32 %v3725, %v3731
  %v3734 = vadd.f32 %v3726, %v3731
  %v3735 = vpack.c.bf16 %v3734, %v3733
  %s3736 = scalar_lea.vmem %s15, 32
  %v3737 = vld [vmem:[%s3736] sm:$0xf]
  %v3738 = vld [vmem:[%s3736 + $0x4] sm:$0xf]
  %v3739 = vld [vmem:[%s3736 + $0x8] sm:$0xf]
  %v3740 = vld [vmem:[%s3736 + $0xc] sm:$0xf]
  %v3741 = vld [vmem:[%s3736 + $0x10] sm:$0xf]
  %v3742 = vld [vmem:[%s3736 + $0x14] sm:$0xf]
  %v3743 = vld [vmem:[%s3736 + $0x18] sm:$0xf]
  %v3744 = vld [vmem:[%s3736 + $0x1c] sm:$0xf]
  %s3745 = scalar_lea.vmem %s16, 1
  %v3746 = vld [vmem:[%s3745] sm:$0x1]
  %v3748 = vlaneseq
  %v3749 = vshrl.u32 %v3748, 7
  %v3750 = vsub.s32 0, %v3749
  %v3751 = vrot.slane %v3746, %v3750
  %v3761 = vunpack.c.l.b16 %v3737
  %v3762 = vunpack.c.l.b16 %v3738
  %v3763 = vunpack.c.l.b16 %v3739
  %v3764 = vunpack.c.l.b16 %v3740
  %v3765 = vunpack.c.l.b16 %v3741
  %v3766 = vunpack.c.l.b16 %v3742
  %v3767 = vunpack.c.l.b16 %v3743
  %v3768 = vunpack.c.l.b16 %v3744
  %v3769 = vpack.c.b16 %v3762, %v3761
  %v3770 = vpack.c.b16 %v3764, %v3763
  %v3771 = vpack.c.b16 %v3766, %v3765
  %v3772 = vpack.c.b16 %v3768, %v3767
  %v3774 = vsel %vm137, %v3735, 0
  %v3777 = vsel %vm137, %v3769, 0
  %v3780 = vsel %vm137, %v3770, 0
  %v3783 = vsel %vm137, %v3771, 0
  %v3786 = vsel %vm137, %v3772, 0
  %3788 = vmatprep.subr.bf16.mxu0 0
  %3789 = vmatpush1.bf16.xpose.msra.mxu0 %v3777
  %3790 = vmatprep.subr.bf16.mxu0 0
  %3791 = vmatpush1.bf16.xpose.msra.mxu0 %v3780
  %3792 = vmatprep.subr.bf16.mxu0 0
  %3793 = vmatpush1.bf16.xpose.msra.mxu0 %v3783
  %3794 = vmatprep.subr.bf16.mxu0 0
  %3795 = vmatpush1.bf16.xpose.msra.mxu0 %v3786
  %3796 = vmatprep.subr.bf16.mxu0 0
  %3797 = vmatpush1.bf16.xpose.msra.mxu0 0
  %3798 = vmatprep.subr.bf16.mxu0 0
  %3799 = vmatpush1.bf16.xpose.msra.mxu0 0
  %3800 = vmatprep.subr.bf16.mxu0 0
  %3801 = vmatpush1.bf16.xpose.msra.mxu0 0
  %3802 = vmatprep.subr.bf16.mxu0 0
  %3803 = vmatpush1.bf16.xpose.msra.mxu0 0
  %3804 = vmatprep.subr.bf16.mxu0 0
  %3805 = vmatpush1.bf16.xpose.msra.mxu0 0
  %3806 = vmatprep.subr.bf16.mxu0 0
  %3807 = vmatpush1.bf16.xpose.msra.mxu0 0
  %3808 = vmatprep.subr.bf16.mxu0 0
  %3809 = vmatpush1.bf16.xpose.msra.mxu0 0
  %3810 = vmatprep.subr.bf16.mxu0 0
  %3811 = vmatpush1.bf16.xpose.msra.mxu0 0
  %3812 = vmatprep.subr.bf16.mxu0 0
  %3813 = vmatpush1.bf16.xpose.msra.mxu0 0
  %3814 = vmatprep.subr.bf16.mxu0 0
  %3815 = vmatpush1.bf16.xpose.msra.mxu0 0
  %3816 = vmatprep.subr.bf16.mxu0 0
  %3817 = vmatpush1.bf16.xpose.msra.mxu0 0
  %3818 = vmatprep.subr.bf16.mxu0 0
  %3819 = vmatpush1.bf16.xpose.msra.mxu0 0
  %3820 = vmatprep.mubr.bf16.mxu0 0
  %3821 = vmatmul.mubr.bf16.gmra.mrb[0].mxu0 %v3774
  %v3822 = vpop.f32.mrb[0].mxu0
  %v3823 = vadd.f32 %v3751, %v3822
  %v3824 = vpop.f32.mrb[0].mxu0
  %v3825 = vpop.f32.mrb[0].mxu0
  %v3826 = vadd.f32 %v3751, %v3825
  %v3827 = vpop.f32.mrb[0].mxu0
  %3828 = vdwg.mxu0
  %v3829 = vmax.f32 %v3823, 0.0
  %v3830 = vmax.f32 %v3826, 0.0
  %v3831 = vpack.c.bf16 %v3830, %v3829
  %s3832 = scalar_lea.vmem %s17, 16
  %v3833 = vld [vmem:[%s3832] sm:$0xf]
  %v3834 = vld [vmem:[%s3832 + $0x4] sm:$0xf]
  %v3835 = vld [vmem:[%s3832 + $0x8] sm:$0xf]
  %v3836 = vld [vmem:[%s3832 + $0xc] sm:$0xf]
  %s3837 = scalar_lea.vmem %s18, 1
  %v3838 = vld [vmem:[%s3837] sm:$0x1]
  %v3840 = vlaneseq
  %v3841 = vshrl.u32 %v3840, 7
  %v3842 = vsub.s32 0, %v3841
  %v3843 = vrot.slane %v3838, %v3842
  %v3849 = vunpack.c.l.b16 %v3833
  %v3850 = vunpack.c.l.b16 %v3834
  %v3851 = vunpack.c.l.b16 %v3835
  %v3852 = vunpack.c.l.b16 %v3836
  %v3853 = vpack.c.b16 %v3850, %v3849
  %v3854 = vpack.c.b16 %v3852, %v3851
  %v3856 = vsel %vm1931, %v3831, 0
  %v3859 = vsel %vm1931, %v3853, 0
  %v3862 = vsel %vm1931, %v3854, 0
  %3864 = vmatprep.subr.bf16.mxu0 0
  %3865 = vmatpush1.bf16.xpose.msra.mxu0 %v3859
  %3866 = vmatprep.subr.bf16.mxu0 0
  %3867 = vmatpush1.bf16.xpose.msra.mxu0 %v3862
  %3868 = vmatprep.subr.bf16.mxu0 0
  %3869 = vmatpush1.bf16.xpose.msra.mxu0 0
  %3870 = vmatprep.subr.bf16.mxu0 0
  %3871 = vmatpush1.bf16.xpose.msra.mxu0 0
  %3872 = vmatprep.subr.bf16.mxu0 0
  %3873 = vmatpush1.bf16.xpose.msra.mxu0 0
  %3874 = vmatprep.subr.bf16.mxu0 0
  %3875 = vmatpush1.bf16.xpose.msra.mxu0 0
  %3876 = vmatprep.subr.bf16.mxu0 0
  %3877 = vmatpush1.bf16.xpose.msra.mxu0 0
  %3878 = vmatprep.subr.bf16.mxu0 0
  %3879 = vmatpush1.bf16.xpose.msra.mxu0 0
  %3880 = vmatprep.subr.bf16.mxu0 0
  %3881 = vmatpush1.bf16.xpose.msra.mxu0 0
  %3882 = vmatprep.subr.bf16.mxu0 0
  %3883 = vmatpush1.bf16.xpose.msra.mxu0 0
  %3884 = vmatprep.subr.bf16.mxu0 0
  %3885 = vmatpush1.bf16.xpose.msra.mxu0 0
  %3886 = vmatprep.subr.bf16.mxu0 0
  %3887 = vmatpush1.bf16.xpose.msra.mxu0 0
  %3888 = vmatprep.subr.bf16.mxu0 0
  %3889 = vmatpush1.bf16.xpose.msra.mxu0 0
  %3890 = vmatprep.subr.bf16.mxu0 0
  %3891 = vmatpush1.bf16.xpose.msra.mxu0 0
  %3892 = vmatprep.subr.bf16.mxu0 0
  %3893 = vmatpush1.bf16.xpose.msra.mxu0 0
  %3894 = vmatprep.subr.bf16.mxu0 0
  %3895 = vmatpush1.bf16.xpose.msra.mxu0 0
  %3896 = vmatprep.mubr.bf16.mxu0 0
  %3897 = vmatmul.mubr.bf16.gmra.mrb[0].mxu0 %v3856
  %v3898 = vpop.f32.mrb[0].mxu0
  %v3899 = vadd.f32 %v3843, %v3898
  %v3900 = vpop.f32.mrb[0].mxu0
  %v3901 = vpop.f32.mrb[0].mxu0
  %v3902 = vadd.f32 %v3843, %v3901
  %v3903 = vpop.f32.mrb[0].mxu0
  %3904 = vdwg.mxu0
  %v3905 = vadd.f32 %v3733, %v3899
  %v3906 = vadd.f32 %v3734, %v3902
  %s3907 = scalar_lea.vmem %s19, 1
  %v3908 = vld [vmem:[%s3907] sm:$0x1]
  %s3909 = scalar_lea.vmem %s20, 1
  %v3910 = vld [vmem:[%s3909] sm:$0x1]
  %v3911 = vsel %vm137, %v3905, 0.0
  %3912 = vadd.xlane.f32.xlu0 %v3911
  %v3913 = vpop.xlane.xlu0 %3912
  %v3914 = vsel %vm137, %v3906, 0.0
  %3915 = vadd.xlane.f32.xlu0 %v3914
  %v3916 = vpop.xlane.xlu0 %3915
  %v3917 = vmul.f32 %v3913, %v882
  %v3918 = vmul.f32 %v3916, %v882
  %v3919 = vsub.f32 %v3905, %v3917
  %v3920 = vsub.f32 %v3906, %v3918
  %v3921 = vmul.f32 %v3919, %v3919
  %v3922 = vmul.f32 %v3920, %v3920
  %v3923 = vsel %vm137, %v3921, 0.0
  %3924 = vadd.xlane.f32.xlu0 %v3923
  %v3925 = vpop.xlane.xlu0 %3924
  %v3926 = vsel %vm137, %v3922, 0.0
  %3927 = vadd.xlane.f32.xlu0 %v3926
  %v3928 = vpop.xlane.xlu0 %3927
  %v3929 = vmul.f32 %v3925, %v882
  %v3930 = vmul.f32 %v3928, %v882
  %v3931 = vadd.f32 %v3929, 1e-05
  %v3932 = vadd.f32 %v3930, 1e-05
  %v3933 = vrsqrt.pop %v3931
  %v3934 = vrsqrt.pop %v3932
  %v3935 = vmul.f32 %v3919, %v3933
  %v3936 = vmul.f32 %v3920, %v3934
  %v3938 = vlaneseq
  %v3939 = vshrl.u32 %v3938, 7
  %v3940 = vsub.s32 0, %v3939
  %v3941 = vrot.slane %v3908, %v3940
  %v3943 = vmul.f32 %v3935, %v3941
  %v3944 = vmul.f32 %v3936, %v3941
  %v3946 = vlaneseq
  %v3947 = vshrl.u32 %v3946, 7
  %v3948 = vsub.s32 0, %v3947
  %v3949 = vrot.slane %v3910, %v3948
  %v3951 = vadd.f32 %v3943, %v3949
  %v3952 = vadd.f32 %v3944, %v3949
  %v3953 = vpack.c.bf16 %v3952, %v3951
  %v3955 = vunpack.c.l.b16 %v3953
  %v3956 = vunpack.c.h.b16 %v3953
  %v3957 = vpack.c.b16 %v3955, %v3955
  %v3958 = vpack.c.b16 %v3956, %v3956
  %vm3961 = vcmask 257024
  %3962 = vst.msk [vmem:[%s21] sm:$0xf] %vm3961, %v3957
  %3963 = vst.msk [vmem:[%s21 + $0x4] sm:$0xf] %vm3961, %v3958
  // Predicated region
  $region86: #{_lambda_.4} parent=0 // pred_check
    _
  $region87: #{_lambda_.4} parent=0 // pred_check_branch
    %3965 = sbr.rel (0) target = $region89
  $region88: #{_lambda_.4} parent=0 // pred_region
    _
  $region89: #{_lambda_.4} parent=0 // pred_fallthru
    _
  // Predicated region
  $region90: #{_lambda_.4} parent=0 // pred_check
    _
  $region91: #{_lambda_.4} parent=0 // pred_check_branch
    %3967 = sbr.rel (0) target = $region93
  $region92: #{_lambda_.4} parent=0 // pred_region
    _
  $region93: #{_lambda_.4} parent=0 // pred_fallthru
    _

</llo_original>
